<compile_context>
chip_gen: v7x
topology: tpu7x:2x2x1
jax: 0.10.0
libtpu: 0.0.40
codegen_flags: <defaults>
</compile_context>

<pallas_src>
import numpy as np

import jax
import jax.numpy as jnp
from jax.experimental import pallas as pl
from jax.experimental.pallas import tpu as pltpu

NB = 64  # batch tile (multiple of 16); grid iterates over batch tiles.


# ---------------------------------------------------------------------------
# Fused forward kernel (one grid step == one batch tile of NB samples)
# ---------------------------------------------------------------------------
def _fused_forward_kernel(p1_ref, w1_ref, b1_ref, w2_ref, b2_ref,
                          wf1_ref, bf1_ref, wf2_ref, bf2_ref, o_ref):
    nb = o_ref.shape[0]

    # ---- conv1 as ONE phase-merged matmul, then maxpool(2) + bias + ReLU ----
    # p1 rows: (a1=(ah,aw), rh, u, n)   cols: (rw, v, ky, kx) -> K=300
    # w1 block-diagonal over (rw, v) -> output cols (rw, v, c1), padded to 128.
    y1 = jnp.dot(p1_ref[...], w1_ref[...],
                 preferred_element_type=jnp.float32)            # (48*nb, 128) f32
    blk = 12 * nb                                               # rows per pool phase
    m1 = jnp.maximum(jnp.maximum(y1[0 * blk:1 * blk], y1[1 * blk:2 * blk]),
                     jnp.maximum(y1[2 * blk:3 * blk], y1[3 * blk:4 * blk]))
    # f1 rows (rh, u, n), cols (rw, v, c1) [120 valid of 128]; keep f32.
    f1 = jnp.maximum(m1 + b1_ref[...], 0.0)                     # (12*nb, 128) f32

    # ---- conv2 im2col: 6 contiguous static row slices of f1 (no matmuls) ----
    # slab for vertical offset s_h: rows (ph2, n) with u = ph2 + s_h//2,
    # taken from parity block rh = s_h % 2.  All offsets are multiples of nb.
    slabs = []
    for s_h in range(6):
        rh, qh = s_h % 2, s_h // 2
        base = rh * 6 * nb + qh * nb
        slabs.append(f1[base:base + 4 * nb, :])                 # (4*nb, 128)
    # lane-aligned concat (128-col groups), single bf16 cast
    lhs2 = jnp.concatenate(slabs, axis=1).astype(jnp.bfloat16)  # (4*nb, 768)

    # ---- conv2: ONE Toeplitz-packed matmul, phases stacked along columns ----
    o2 = jnp.dot(lhs2, w2_ref[...],
                 preferred_element_type=jnp.float32)            # (4*nb, 512) f32
    m2 = jnp.maximum(jnp.maximum(o2[:, 0:128], o2[:, 128:256]),
                     jnp.maximum(o2[:, 256:384], o2[:, 384:512]))
    # TODO(synk): Dropout(0.3) is identity at inference; stochastic masking
    # (training mode) is not implemented.
    h2 = jnp.maximum(m2 + b2_ref[...], 0.0)                     # (4*nb, 128) f32

    # ---- flatten: 128-aligned column blocks, nb-aligned row blocks ----------
    flat = jnp.concatenate([h2[p * nb:(p + 1) * nb, :] for p in range(4)],
                           axis=1).astype(jnp.bfloat16)         # (nb, 512)

    # ---- fc1 -> ReLU -> fc2 -> log_softmax ----------------------------------
    z1 = jnp.dot(flat, wf1_ref[...], preferred_element_type=jnp.float32)
    z1 = jnp.maximum(z1 + bf1_ref[...], 0.0).astype(jnp.bfloat16)   # (nb, 128)
    z2 = jnp.dot(z1, wf2_ref[...], preferred_element_type=jnp.float32)
    z2 = z2 + bf2_ref[...]                                      # (nb, 10)
    z2 = z2 - jnp.max(z2, axis=-1, keepdims=True)
    o_ref[...] = z2 - jnp.log(jnp.sum(jnp.exp(z2), axis=-1, keepdims=True))


# ---------------------------------------------------------------------------
# XLA glue: conv1 im2col, rows (tile, a1, rh, u, n), cols (rw, v, ky, kx)
# ---------------------------------------------------------------------------
def build_conv1_patches(x_nchw, nb):
    """(N,1,28,28) -> (48*N, 300); N must be a multiple of nb."""
    n_total = x_nchw.shape[0]
    t = n_total // nb
    # bf16 pre-cast: halves the XLA im2col work and the p1 HBM bytes (v5e win)
    x = x_nchw[:, 0].astype(jnp.bfloat16)                       # (N, 28, 28)
    cols = [x[:, ky:ky + 24, kx:kx + 24] for ky in range(5) for kx in range(5)]
    p = jnp.stack(cols, axis=-1)                                # (N, 24, 24, 25)
    # oh = 4*u + 2*rh + ah ; ow = 4*v + 2*rw + aw
    p = p.reshape(t, nb, 6, 2, 2, 6, 2, 2, 25)
    # axes: 0:T 1:n 2:u 3:rh 4:ah 5:v 6:rw 7:aw 8:k
    #   ->  (T, ah, aw, rh, u, n, rw, v, k)
    p = p.transpose(0, 4, 7, 3, 2, 1, 6, 5, 8)
    return p.reshape(t * 48 * nb, 300)


# ---------------------------------------------------------------------------
# Parameter packing (done once, plain numpy)
# ---------------------------------------------------------------------------
def pack_params(params):
    w1 = np.asarray(params["conv1_w"], np.float32)              # (10, 1, 5, 5)
    b1 = np.asarray(params["conv1_b"], np.float32)
    w2 = np.asarray(params["conv2_w"], np.float32)              # (20, 10, 5, 5)
    b2 = np.asarray(params["conv2_b"], np.float32)
    wf1 = np.asarray(params["fc1_w"], np.float32)               # (50, 320)
    bf1 = np.asarray(params["fc1_b"], np.float32)
    wf2 = np.asarray(params["fc2_w"], np.float32)               # (10, 50)
    bf2 = np.asarray(params["fc2_b"], np.float32)

    # conv1 weights: block-diagonal over (rw, v) -> (300, 128) [cols (rw,v,c1)]
    w1m = w1.reshape(10, 25).T                                  # [k=(ky,kx), c1]
    w1blk = np.zeros((2, 6, 25, 128), np.float32)
    for rw in range(2):
        for v in range(6):
            c0 = rw * 60 + v * 10
            w1blk[rw, v, :, c0:c0 + 10] = w1m
    w1blk = w1blk.reshape(300, 128)
    b1row = np.zeros((1, 128), np.float32)
    b1row[0, :120] = np.tile(b1, 12)                            # col = rw*60+v*10+c1

    # conv2 Toeplitz weights, all 4 pool phases merged along columns:
    #   rows  (s_h, rw*60+v*10+c1) padded to 6*128 = 768
    #   cols  (a2,  pw2*20+c2)     padded to 4*128 = 512
    #   dy = s_h - a2_h ; dx = 2*(v - pw2) + rw - a2_w  (valid iff in [0,5))
    w2p = np.zeros((6, 128, 4, 128), np.float32)
    for a2h in range(2):
        for a2w in range(2):
            a2 = 2 * a2h + a2w
            for s_h in range(6):
                dy = s_h - a2h
                if not (0 <= dy < 5):
                    continue
                for rw in range(2):
                    for v in range(6):
                        for pw2 in range(4):
                            dx = 2 * (v - pw2) + rw - a2w
                            if not (0 <= dx < 5):
                                continue
                            r0 = rw * 60 + v * 10
                            c0 = pw2 * 20
                            w2p[s_h, r0:r0 + 10, a2, c0:c0 + 20] = w2[:, :, dy, dx].T
    w2p = w2p.reshape(768, 512)
    b2row = np.zeros((1, 128), np.float32)
    b2row[0, :80] = np.tile(b2, 4)                              # col = pw2*20+c2

    # fc1 re-permuted: flat col (ph2*128 + pw2*20 + c2) -> torch idx c2*16+ph2*4+pw2
    wfc1p = np.zeros((4, 128, 128), np.float32)
    for ph2 in range(4):
        for pw2 in range(4):
            for c2 in range(20):
                wfc1p[ph2, pw2 * 20 + c2, :50] = wf1[:, c2 * 16 + ph2 * 4 + pw2]
    wfc1p = wfc1p.reshape(512, 128)
    bfc1 = np.zeros((1, 128), np.float32)
    bfc1[0, :50] = bf1

    # fc2: rows padded 50 -> 128 (padded z1 cols are exactly 0)
    wfc2p = np.zeros((128, 10), np.float32)
    wfc2p[:50, :] = wf2.T
    bfc2 = bf2[None, :]

    return dict(
        w1blk=jnp.asarray(w1blk, jnp.bfloat16),
        b1row=jnp.asarray(b1row, jnp.float32),
        w2p=jnp.asarray(w2p, jnp.bfloat16),
        b2row=jnp.asarray(b2row, jnp.float32),
        wfc1p=jnp.asarray(wfc1p, jnp.bfloat16),
        bfc1=jnp.asarray(bfc1, jnp.float32),
        wfc2p=jnp.asarray(wfc2p, jnp.bfloat16),
        bfc2=jnp.asarray(bfc2, jnp.float32),
    )


# ---------------------------------------------------------------------------
# Forward wrapper: single fused pallas_call, grid over batch tiles
# ---------------------------------------------------------------------------
def my_network_forward(x_nchw, packed, nb=NB):
    n = x_nchw.shape[0]
    npad = ((n + nb - 1) // nb) * nb
    if npad != n:
        x_nchw = jnp.pad(x_nchw, ((0, npad - n), (0, 0), (0, 0), (0, 0)))
    t = npad // nb

    p1 = build_conv1_patches(x_nchw, nb)                        # (48*npad, 300) bf16

    out = pl.pallas_call(
        _fused_forward_kernel,
        out_shape=jax.ShapeDtypeStruct((npad, 10), jnp.float32),
        grid=(t,),
        in_specs=[
            pl.BlockSpec((48 * nb, 300), lambda i: (i, 0)),      # conv1 patches (per tile)
            pl.BlockSpec((300, 128), lambda i: (0, 0)),          # conv1 weights (blockdiag)
            pl.BlockSpec((1, 128), lambda i: (0, 0)),            # conv1 bias row
            pl.BlockSpec((768, 512), lambda i: (0, 0)),          # conv2 Toeplitz weights
            pl.BlockSpec((1, 128), lambda i: (0, 0)),            # conv2 bias row
            pl.BlockSpec((512, 128), lambda i: (0, 0)),          # fc1 weights (re-permuted)
            pl.BlockSpec((1, 128), lambda i: (0, 0)),            # fc1 bias
            pl.BlockSpec((128, 10), lambda i: (0, 0)),           # fc2 weights
            pl.BlockSpec((1, 10), lambda i: (0, 0)),             # fc2 bias
        ],
        out_specs=pl.BlockSpec((nb, 10), lambda i: (i, 0)),
        compiler_params=pltpu.CompilerParams(
            dimension_semantics=("parallel",)),
    )(p1, packed["w1blk"], packed["b1row"], packed["w2p"], packed["b2row"],
      packed["wfc1p"], packed["bfc1"], packed["wfc2p"], packed["bfc2"])
    return out[:n]


# ---------------------------------------------------------------------------
# Reference (pure JAX, f32) and parameter init
# ---------------------------------------------------------------------------
def reference_forward(x, params):
    y = jax.lax.conv_general_dilated(
        x, params["conv1_w"], (1, 1), "VALID",
        dimension_numbers=("NCHW", "OIHW", "NCHW"))
    y = y + params["conv1_b"][None, :, None, None]
    y = jax.lax.reduce_window(y, -jnp.inf, jax.lax.max,
                              (1, 1, 2, 2), (1, 1, 2, 2), "VALID")
    y = jnp.maximum(y, 0.0)
    y = jax.lax.conv_general_dilated(
        y, params["conv2_w"], (1, 1), "VALID",
        dimension_numbers=("NCHW", "OIHW", "NCHW"))
    y = y + params["conv2_b"][None, :, None, None]
    y = jax.lax.reduce_window(y, -jnp.inf, jax.lax.max,
                              (1, 1, 2, 2), (1, 1, 2, 2), "VALID")
    y = jnp.maximum(y, 0.0)
    y = y.reshape(y.shape[0], -1)
    y = jnp.maximum(y @ params["fc1_w"].T + params["fc1_b"], 0.0)
    y = y @ params["fc2_w"].T + params["fc2_b"]
    return jax.nn.log_softmax(y, axis=-1)


def init_params(key):
    ks = jax.random.split(key, 8)

    def u(k, shape, fan_in):
        bound = 1.0 / jnp.sqrt(jnp.float32(fan_in))
        return jax.random.uniform(k, shape, jnp.float32, -bound, bound)

    return {
        "conv1_w": u(ks[0], (10, 1, 5, 5), 25),
        "conv1_b": u(ks[1], (10,), 25),
        "conv2_w": u(ks[2], (20, 10, 5, 5), 250),
        "conv2_b": u(ks[3], (20,), 250),
        "fc1_w": u(ks[4], (50, 320), 320),
        "fc1_b": u(ks[5], (50,), 320),
        "fc2_w": u(ks[6], (10, 50), 50),
        "fc2_b": u(ks[7], (10,), 50),
    }


if __name__ == "__main__":
    key = jax.random.PRNGKey(0)
    pkey, xkey = jax.random.split(key)
    params = init_params(pkey)
    packed = pack_params(params)

    # MNIST-shaped input (fc1 expects 320 = 20*4*4 -> 28x28 spatial).
    # Batch 100: not a multiple of NB=64 -> exercises padding, and the grid
    # has 2 steps so both v7x TensorCores get a tile.
    x = jax.random.normal(xkey, (100, 1, 28, 28), jnp.float32)

    fwd = jax.jit(lambda xx: my_network_forward(xx, packed, nb=NB))
    out = jax.block_until_ready(fwd(x))

    assert out.shape == (100, 10)
    assert bool(jnp.all(jnp.isfinite(out)))

    # loose tolerance: bf16 matmul inputs vs f32 reference
    ref = reference_forward(x, params)
    max_err = float(jnp.max(jnp.abs(out - ref)))
    assert max_err < 0.25, f"mismatch vs reference: max|diff|={max_err}"
    print("KERNEL_OK")
</pallas_src>

<mosaic_0001>
module attributes {stable_mosaic.version = 11 : i64} {
  func.func @_fused_forward_kernel(%arg0: i32, %arg1: memref<3072x300xbf16, #tpu.memory_space<vmem>>, %arg2: memref<300x128xbf16, #tpu.memory_space<vmem>>, %arg3: memref<1x128xf32, #tpu.memory_space<vmem>>, %arg4: memref<768x512xbf16, #tpu.memory_space<vmem>>, %arg5: memref<1x128xf32, #tpu.memory_space<vmem>>, %arg6: memref<512x128xbf16, #tpu.memory_space<vmem>>, %arg7: memref<1x128xf32, #tpu.memory_space<vmem>>, %arg8: memref<128x10xbf16, #tpu.memory_space<vmem>>, %arg9: memref<1x10xf32, #tpu.memory_space<vmem>>, %arg10: memref<64x10xf32, #tpu.memory_space<vmem>>) attributes {dimension_semantics = [#tpu.dimension_semantics<parallel>], iteration_bounds = array<i64: 2>, scalar_prefetch = 0 : i64, scratch_operands = 0 : i64, tpu.core_type = #tpu.core_type<tc>, window_params = [{transform_indices = @transform_0, window_bounds = array<i64: 3072, 300>}, {pipeline_mode = #tpu.pipeline_mode<synchronous>, transform_indices = @transform_1, window_bounds = array<i64: 300, 128>}, {pipeline_mode = #tpu.pipeline_mode<synchronous>, transform_indices = @transform_2, window_bounds = array<i64: 1, 128>}, {pipeline_mode = #tpu.pipeline_mode<synchronous>, transform_indices = @transform_3, window_bounds = array<i64: 768, 512>}, {pipeline_mode = #tpu.pipeline_mode<synchronous>, transform_indices = @transform_4, window_bounds = array<i64: 1, 128>}, {pipeline_mode = #tpu.pipeline_mode<synchronous>, transform_indices = @transform_5, window_bounds = array<i64: 512, 128>}, {pipeline_mode = #tpu.pipeline_mode<synchronous>, transform_indices = @transform_6, window_bounds = array<i64: 1, 128>}, {pipeline_mode = #tpu.pipeline_mode<synchronous>, transform_indices = @transform_7, window_bounds = array<i64: 128, 10>}, {pipeline_mode = #tpu.pipeline_mode<synchronous>, transform_indices = @transform_8, window_bounds = array<i64: 1, 10>}, {transform_indices = @transform_9, window_bounds = array<i64: 64, 10>}]} {
    %c0 = arith.constant 0 : index
    %c0_0 = arith.constant 0 : index
    %0 = vector.load %arg1[%c0, %c0_0] : memref<3072x300xbf16, #tpu.memory_space<vmem>>, vector<3072x300xbf16>
    %c0_1 = arith.constant 0 : index
    %c0_2 = arith.constant 0 : index
    %1 = vector.load %arg2[%c0_1, %c0_2] : memref<300x128xbf16, #tpu.memory_space<vmem>>, vector<300x128xbf16>
    %cst = arith.constant dense<0.000000e+00> : vector<3072x128xf32>
    %2 = tpu.matmul %0, %1, %cst {dimension_numbers = #tpu.dot_dimension_numbers<[1], [0], [0], [1], [0, 0, 1, 1], [], []>} : vector<3072x300xbf16>, vector<300x128xbf16>, vector<3072x128xf32> -> vector<3072x128xf32>
    %3 = vector.extract_strided_slice %2 {offsets = [0, 0], sizes = [768, 128], strides = [1, 1]} : vector<3072x128xf32> to vector<768x128xf32>
    %4 = vector.extract_strided_slice %2 {offsets = [768, 0], sizes = [768, 128], strides = [1, 1]} : vector<3072x128xf32> to vector<768x128xf32>
    %5 = arith.maximumf %3, %4 : vector<768x128xf32>
    %6 = vector.extract_strided_slice %2 {offsets = [1536, 0], sizes = [768, 128], strides = [1, 1]} : vector<3072x128xf32> to vector<768x128xf32>
    %7 = vector.extract_strided_slice %2 {offsets = [2304, 0], sizes = [768, 128], strides = [1, 1]} : vector<3072x128xf32> to vector<768x128xf32>
    %8 = arith.maximumf %6, %7 : vector<768x128xf32>
    %9 = arith.maximumf %5, %8 : vector<768x128xf32>
    %c0_3 = arith.constant 0 : index
    %c0_4 = arith.constant 0 : index
    %10 = vector.load %arg3[%c0_3, %c0_4] : memref<1x128xf32, #tpu.memory_space<vmem>>, vector<1x128xf32>
    %11 = vector.broadcast %10 : vector<1x128xf32> to vector<768x128xf32>
    %12 = arith.addf %9, %11 : vector<768x128xf32>
    %cst_5 = arith.constant 0.000000e+00 : f32
    %13 = vector.broadcast %cst_5 : f32 to vector<768x128xf32>
    %14 = arith.maximumf %12, %13 : vector<768x128xf32>
    %15 = vector.extract_strided_slice %14 {offsets = [0, 0], sizes = [256, 128], strides = [1, 1]} : vector<768x128xf32> to vector<256x128xf32>
    %16 = vector.extract_strided_slice %14 {offsets = [384, 0], sizes = [256, 128], strides = [1, 1]} : vector<768x128xf32> to vector<256x128xf32>
    %17 = vector.extract_strided_slice %14 {offsets = [64, 0], sizes = [256, 128], strides = [1, 1]} : vector<768x128xf32> to vector<256x128xf32>
    %18 = vector.extract_strided_slice %14 {offsets = [448, 0], sizes = [256, 128], strides = [1, 1]} : vector<768x128xf32> to vector<256x128xf32>
    %19 = vector.extract_strided_slice %14 {offsets = [128, 0], sizes = [256, 128], strides = [1, 1]} : vector<768x128xf32> to vector<256x128xf32>
    %20 = vector.extract_strided_slice %14 {offsets = [512, 0], sizes = [256, 128], strides = [1, 1]} : vector<768x128xf32> to vector<256x128xf32>
    %21 = tpu.concatenate %15, %16, %17, %18, %19, %20 in 1 : vector<256x128xf32>, vector<256x128xf32>, vector<256x128xf32>, vector<256x128xf32>, vector<256x128xf32>, vector<256x128xf32> -> vector<256x768xf32>
    %22 = arith.truncf %21 : vector<256x768xf32> to vector<256x768xbf16>
    %c0_6 = arith.constant 0 : index
    %c0_7 = arith.constant 0 : index
    %23 = vector.load %arg4[%c0_6, %c0_7] : memref<768x512xbf16, #tpu.memory_space<vmem>>, vector<768x512xbf16>
    %cst_8 = arith.constant dense<0.000000e+00> : vector<256x512xf32>
    %24 = tpu.matmul %22, %23, %cst_8 {dimension_numbers = #tpu.dot_dimension_numbers<[1], [0], [0], [1], [0, 0, 1, 1], [], []>} : vector<256x768xbf16>, vector<768x512xbf16>, vector<256x512xf32> -> vector<256x512xf32>
    %25 = vector.extract_strided_slice %24 {offsets = [0, 0], sizes = [256, 128], strides = [1, 1]} : vector<256x512xf32> to vector<256x128xf32>
    %26 = vector.extract_strided_slice %24 {offsets = [0, 128], sizes = [256, 128], strides = [1, 1]} : vector<256x512xf32> to vector<256x128xf32>
    %27 = arith.maximumf %25, %26 : vector<256x128xf32>
    %28 = vector.extract_strided_slice %24 {offsets = [0, 256], sizes = [256, 128], strides = [1, 1]} : vector<256x512xf32> to vector<256x128xf32>
    %29 = vector.extract_strided_slice %24 {offsets = [0, 384], sizes = [256, 128], strides = [1, 1]} : vector<256x512xf32> to vector<256x128xf32>
    %30 = arith.maximumf %28, %29 : vector<256x128xf32>
    %31 = arith.maximumf %27, %30 : vector<256x128xf32>
    %c0_9 = arith.constant 0 : index
    %c0_10 = arith.constant 0 : index
    %32 = vector.load %arg5[%c0_9, %c0_10] : memref<1x128xf32, #tpu.memory_space<vmem>>, vector<1x128xf32>
    %33 = vector.broadcast %32 : vector<1x128xf32> to vector<256x128xf32>
    %34 = arith.addf %31, %33 : vector<256x128xf32>
    %cst_11 = arith.constant 0.000000e+00 : f32
    %35 = vector.broadcast %cst_11 : f32 to vector<256x128xf32>
    %36 = arith.maximumf %34, %35 : vector<256x128xf32>
    %37 = vector.extract_strided_slice %36 {offsets = [0, 0], sizes = [64, 128], strides = [1, 1]} : vector<256x128xf32> to vector<64x128xf32>
    %38 = vector.extract_strided_slice %36 {offsets = [64, 0], sizes = [64, 128], strides = [1, 1]} : vector<256x128xf32> to vector<64x128xf32>
    %39 = vector.extract_strided_slice %36 {offsets = [128, 0], sizes = [64, 128], strides = [1, 1]} : vector<256x128xf32> to vector<64x128xf32>
    %40 = vector.extract_strided_slice %36 {offsets = [192, 0], sizes = [64, 128], strides = [1, 1]} : vector<256x128xf32> to vector<64x128xf32>
    %41 = tpu.concatenate %37, %38, %39, %40 in 1 : vector<64x128xf32>, vector<64x128xf32>, vector<64x128xf32>, vector<64x128xf32> -> vector<64x512xf32>
    %42 = arith.truncf %41 : vector<64x512xf32> to vector<64x512xbf16>
    %c0_12 = arith.constant 0 : index
    %c0_13 = arith.constant 0 : index
    %43 = vector.load %arg6[%c0_12, %c0_13] : memref<512x128xbf16, #tpu.memory_space<vmem>>, vector<512x128xbf16>
    %cst_14 = arith.constant dense<0.000000e+00> : vector<64x128xf32>
    %44 = tpu.matmul %42, %43, %cst_14 {dimension_numbers = #tpu.dot_dimension_numbers<[1], [0], [0], [1], [0, 0, 1, 1], [], []>} : vector<64x512xbf16>, vector<512x128xbf16>, vector<64x128xf32> -> vector<64x128xf32>
    %c0_15 = arith.constant 0 : index
    %c0_16 = arith.constant 0 : index
    %45 = vector.load %arg7[%c0_15, %c0_16] : memref<1x128xf32, #tpu.memory_space<vmem>>, vector<1x128xf32>
    %46 = vector.broadcast %45 : vector<1x128xf32> to vector<64x128xf32>
    %47 = arith.addf %44, %46 : vector<64x128xf32>
    %cst_17 = arith.constant 0.000000e+00 : f32
    %48 = vector.broadcast %cst_17 : f32 to vector<64x128xf32>
    %49 = arith.maximumf %47, %48 : vector<64x128xf32>
    %50 = arith.truncf %49 : vector<64x128xf32> to vector<64x128xbf16>
    %c0_18 = arith.constant 0 : index
    %c0_19 = arith.constant 0 : index
    %51 = vector.load %arg8[%c0_18, %c0_19] : memref<128x10xbf16, #tpu.memory_space<vmem>>, vector<128x10xbf16>
    %cst_20 = arith.constant dense<0.000000e+00> : vector<64x10xf32>
    %52 = tpu.matmul %50, %51, %cst_20 {dimension_numbers = #tpu.dot_dimension_numbers<[1], [0], [0], [1], [0, 0, 1, 1], [], []>} : vector<64x128xbf16>, vector<128x10xbf16>, vector<64x10xf32> -> vector<64x10xf32>
    %c0_21 = arith.constant 0 : index
    %c0_22 = arith.constant 0 : index
    %53 = vector.load %arg9[%c0_21, %c0_22] : memref<1x10xf32, #tpu.memory_space<vmem>>, vector<1x10xf32>
    %54 = vector.broadcast %53 : vector<1x10xf32> to vector<64x10xf32>
    %55 = arith.addf %52, %54 : vector<64x10xf32>
    %cst_23 = arith.constant dense<0xFF800000> : vector<64xf32>
    %56 = vector.multi_reduction <maximumf>, %55, %cst_23 [1] : vector<64x10xf32> to vector<64xf32>
    %57 = vector.shape_cast %56 : vector<64xf32> to vector<64x1xf32>
    %58 = vector.broadcast %57 : vector<64x1xf32> to vector<64x10xf32>
    %59 = arith.subf %55, %58 : vector<64x10xf32>
    %60 = math.exp %59 : vector<64x10xf32>
    %cst_24 = arith.constant dense<0.000000e+00> : vector<64xf32>
    %61 = vector.multi_reduction <add>, %60, %cst_24 [1] : vector<64x10xf32> to vector<64xf32>
    %62 = vector.shape_cast %61 : vector<64xf32> to vector<64x1xf32>
    %63 = math.log %62 : vector<64x1xf32>
    %64 = vector.broadcast %63 : vector<64x1xf32> to vector<64x10xf32>
    %65 = arith.subf %59, %64 : vector<64x10xf32>
    %c0_25 = arith.constant 0 : index
    %c0_26 = arith.constant 0 : index
    %66 = vector.load %arg10[%c0_25, %c0_26] : memref<64x10xf32, #tpu.memory_space<vmem>>, vector<64x10xf32>
    tpu.vector_store %arg10[%c0_25, %c0_26], %65 {strides = array<i32>} : memref<64x10xf32, #tpu.memory_space<vmem>>, vector<64x10xf32>,
    return
  }
  func.func @transform_0(%arg0: i32) -> (i32, i32) {
    %c0_i32 = arith.constant 0 : i32
    %c0_i32_0 = arith.constant 0 : i32
    return %arg0, %c0_i32 : i32, i32
  }
  func.func @transform_1(%arg0: i32) -> (i32, i32) {
    %c0_i32 = arith.constant 0 : i32
    %c0_i32_0 = arith.constant 0 : i32
    %c0_i32_1 = arith.constant 0 : i32
    return %c0_i32, %c0_i32_0 : i32, i32
  }
  func.func @transform_2(%arg0: i32) -> (i32, i32) {
    %c0_i32 = arith.constant 0 : i32
    %c0_i32_0 = arith.constant 0 : i32
    %c0_i32_1 = arith.constant 0 : i32
    return %c0_i32, %c0_i32_0 : i32, i32
  }
  func.func @transform_3(%arg0: i32) -> (i32, i32) {
    %c0_i32 = arith.constant 0 : i32
    %c0_i32_0 = arith.constant 0 : i32
    %c0_i32_1 = arith.constant 0 : i32
    return %c0_i32, %c0_i32_0 : i32, i32
  }
  func.func @transform_4(%arg0: i32) -> (i32, i32) {
    %c0_i32 = arith.constant 0 : i32
    %c0_i32_0 = arith.constant 0 : i32
    %c0_i32_1 = arith.constant 0 : i32
    return %c0_i32, %c0_i32_0 : i32, i32
  }
  func.func @transform_5(%arg0: i32) -> (i32, i32) {
    %c0_i32 = arith.constant 0 : i32
    %c0_i32_0 = arith.constant 0 : i32
    %c0_i32_1 = arith.constant 0 : i32
    return %c0_i32, %c0_i32_0 : i32, i32
  }
  func.func @transform_6(%arg0: i32) -> (i32, i32) {
    %c0_i32 = arith.constant 0 : i32
    %c0_i32_0 = arith.constant 0 : i32
    %c0_i32_1 = arith.constant 0 : i32
    return %c0_i32, %c0_i32_0 : i32, i32
  }
  func.func @transform_7(%arg0: i32) -> (i32, i32) {
    %c0_i32 = arith.constant 0 : i32
    %c0_i32_0 = arith.constant 0 : i32
    %c0_i32_1 = arith.constant 0 : i32
    return %c0_i32, %c0_i32_0 : i32, i32
  }
  func.func @transform_8(%arg0: i32) -> (i32, i32) {
    %c0_i32 = arith.constant 0 : i32
    %c0_i32_0 = arith.constant 0 : i32
    %c0_i32_1 = arith.constant 0 : i32
    return %c0_i32, %c0_i32_0 : i32, i32
  }
  func.func @transform_9(%arg0: i32) -> (i32, i32) {
    %c0_i32 = arith.constant 0 : i32
    %c0_i32_0 = arith.constant 0 : i32
    return %arg0, %c0_i32 : i32, i32
  }
}

</mosaic_0001>

<llo_original>
// kernel: _lambda_.1
$region0: #{_lambda_.1}
  #allocation0 [shape = 'u32[]', space=smem, size = 0x4, offset = 0x4, fixed_abs, tag = 'smem constant byte address 0x4 - core index']
  #allocation1 [shape = 'u32[144,128]{1,0:T(1,128)}', space=vmem, size = 0x12000, scoped, tag = 'internal scratch']
  %s0 = inlined_call_operand.vmem [shape: bf16[6144,300], index: 0, kind: input, shape index: {}]
  %s1 = inlined_call_operand.vmem [shape: bf16[300,128], index: 1, kind: input, shape index: {}]
  %s2 = inlined_call_operand.vmem [shape: f32[1,128], index: 2, kind: input, shape index: {}]
  %s3 = inlined_call_operand.vmem [shape: bf16[768,512], index: 3, kind: input, shape index: {}]
  %s4 = inlined_call_operand.vmem [shape: f32[1,128], index: 4, kind: input, shape index: {}]
  %s5 = inlined_call_operand.vmem [shape: bf16[512,128], index: 5, kind: input, shape index: {}]
  %s6 = inlined_call_operand.vmem [shape: f32[1,128], index: 6, kind: input, shape index: {}]
  %s7 = inlined_call_operand.vmem [shape: bf16[128,10], index: 7, kind: input, shape index: {}]
  %s8 = inlined_call_operand.vmem [shape: f32[1,10], index: 8, kind: input, shape index: {}]
  %s9 = inlined_call_operand.vmem [shape: f32[128,10], index: 9, kind: output, shape index: {}]
  %s10 = sld [smem:[#allocation0]]
  $region69: #{_lambda_.1} parent=0
    _
  %s12 = ssub.s32 1, %s10
  %s13 = scalar_select 0, %s12, %s10
  loop: start=0, step=1, limit=4
  $region2: #{_lambda_.1} parent=0 // loop_pre_header
    _
  $region3: #{_lambda_.1} parent=0 // loop_header
    %s15 = sphi 0, %s19
    %p16 = scmp.ge.s32.totalorder %s15, 4
    %s25 = sphi 0, %s27
    %s28 = sphi 0, %s25
    %s29 = sphi 0, %s28
    %s45 = sphi 0, %s29
    %s49 = sphi 0, %s49
    %s51 = sphi 0, %s49
    %s52 = sphi 0, %s51
    %s66 = sphi 0, %s52
    %s70 = sphi 0, %s70
    %s72 = sphi 0, %s70
    %s73 = sphi 0, %s72
    %s87 = sphi 0, %s73
    %s91 = sphi 0, %s91
    %s93 = sphi 0, %s91
    %s94 = sphi 0, %s93
    %s108 = sphi 0, %s94
    %s112 = sphi 0, %s112
    %s114 = sphi 0, %s112
    %s115 = sphi 0, %s114
    %s129 = sphi 0, %s115
    %s133 = sphi 0, %s133
    %s135 = sphi 0, %s133
    %s136 = sphi 0, %s135
    %s150 = sphi 0, %s136
    %s154 = sphi 0, %s154
    %s156 = sphi 0, %s154
    %s157 = sphi 0, %s156
    %s171 = sphi 0, %s157
    %s175 = sphi 0, %s175
    %s177 = sphi 0, %s175
    %s178 = sphi 0, %s177
    %s192 = sphi 0, %s178
    %s196 = sphi 0, %s196
    %s198 = sphi 0, %s196
    %s199 = sphi 0, %s198
    %s213 = sphi 0, %s199
    %s219 = sphi 0, %s221
    %s222 = sphi 0, %s219
    %s223 = sphi 0, %s222
    %s239 = sphi 0, %s223
  $region4: #{_lambda_.1} parent=0 // loop_header_branch
    %18 = sbr.rel (%p16) target = $region8
  $region5: #{_lambda_.1} parent=0 // loop_body
    %s20 = ssub.s32 %s15, 1
    %s21 = ssub.s32 %s15, 2
    %s22 = sadd.s32 %s15, 1
    %s23 = ssub.s32 %s15, %s22
    %p24 = scmp.eq.s32.totalorder %s23, 0
    %s26 = sadd.s32 %s25, 1
    %s27 = scalar_select %p24, %s25, %s26
    %p30 = pneg %p24
    %p31 = scmp.eq.s32.totalorder %s15, 1
    %p32 = por %p30, %p31
    %p33 = scmp.ne.s32.totalorder %s25, %s28
    %p34 = scmp.eq.s32.totalorder %s15, 0
    %p35 = por %p33, %p34
    %p36 = scmp.ne.s32.totalorder %s25, %s28
    %p37 = scmp.eq.s32.totalorder %s20, 1
    %p38 = por %p36, %p37
    %p39 = scmp.ne.s32.totalorder %s28, %s29
    %p40 = scmp.eq.s32.totalorder %s20, 0
    %p41 = por %p39, %p40
    %p42 = scmp.ne.s32.totalorder %s28, %s29
    %p43 = scmp.eq.s32.totalorder %s21, 1
    %p44 = por %p42, %p43
    %p46 = scmp.ne.s32.totalorder %s29, %s45
    %p47 = scmp.eq.s32.totalorder %s21, 0
    %p48 = por %p46, %p47
    %s50 = sadd.s32 %s49, 1
    %p53 = scmp.eq.s32.totalorder %s15, 1
    %p54 = scmp.ne.s32.totalorder %s49, %s51
    %p55 = scmp.eq.s32.totalorder %s15, 0
    %p56 = por %p54, %p55
    %p57 = scmp.ne.s32.totalorder %s49, %s51
    %p58 = scmp.eq.s32.totalorder %s20, 1
    %p59 = por %p57, %p58
    %p60 = scmp.ne.s32.totalorder %s51, %s52
    %p61 = scmp.eq.s32.totalorder %s20, 0
    %p62 = por %p60, %p61
    %p63 = scmp.ne.s32.totalorder %s51, %s52
    %p64 = scmp.eq.s32.totalorder %s21, 1
    %p65 = por %p63, %p64
    %p67 = scmp.ne.s32.totalorder %s52, %s66
    %p68 = scmp.eq.s32.totalorder %s21, 0
    %p69 = por %p67, %p68
    %s71 = sadd.s32 %s70, 1
    %p74 = scmp.eq.s32.totalorder %s15, 1
    %p75 = scmp.ne.s32.totalorder %s70, %s72
    %p76 = scmp.eq.s32.totalorder %s15, 0
    %p77 = por %p75, %p76
    %p78 = scmp.ne.s32.totalorder %s70, %s72
    %p79 = scmp.eq.s32.totalorder %s20, 1
    %p80 = por %p78, %p79
    %p81 = scmp.ne.s32.totalorder %s72, %s73
    %p82 = scmp.eq.s32.totalorder %s20, 0
    %p83 = por %p81, %p82
    %p84 = scmp.ne.s32.totalorder %s72, %s73
    %p85 = scmp.eq.s32.totalorder %s21, 1
    %p86 = por %p84, %p85
    %p88 = scmp.ne.s32.totalorder %s73, %s87
    %p89 = scmp.eq.s32.totalorder %s21, 0
    %p90 = por %p88, %p89
    %s92 = sadd.s32 %s91, 1
    %p95 = scmp.eq.s32.totalorder %s15, 1
    %p96 = scmp.ne.s32.totalorder %s91, %s93
    %p97 = scmp.eq.s32.totalorder %s15, 0
    %p98 = por %p96, %p97
    %p99 = scmp.ne.s32.totalorder %s91, %s93
    %p100 = scmp.eq.s32.totalorder %s20, 1
    %p101 = por %p99, %p100
    %p102 = scmp.ne.s32.totalorder %s93, %s94
    %p103 = scmp.eq.s32.totalorder %s20, 0
    %p104 = por %p102, %p103
    %p105 = scmp.ne.s32.totalorder %s93, %s94
    %p106 = scmp.eq.s32.totalorder %s21, 1
    %p107 = por %p105, %p106
    %p109 = scmp.ne.s32.totalorder %s94, %s108
    %p110 = scmp.eq.s32.totalorder %s21, 0
    %p111 = por %p109, %p110
    %s113 = sadd.s32 %s112, 1
    %p116 = scmp.eq.s32.totalorder %s15, 1
    %p117 = scmp.ne.s32.totalorder %s112, %s114
    %p118 = scmp.eq.s32.totalorder %s15, 0
    %p119 = por %p117, %p118
    %p120 = scmp.ne.s32.totalorder %s112, %s114
    %p121 = scmp.eq.s32.totalorder %s20, 1
    %p122 = por %p120, %p121
    %p123 = scmp.ne.s32.totalorder %s114, %s115
    %p124 = scmp.eq.s32.totalorder %s20, 0
    %p125 = por %p123, %p124
    %p126 = scmp.ne.s32.totalorder %s114, %s115
    %p127 = scmp.eq.s32.totalorder %s21, 1
    %p128 = por %p126, %p127
    %p130 = scmp.ne.s32.totalorder %s115, %s129
    %p131 = scmp.eq.s32.totalorder %s21, 0
    %p132 = por %p130, %p131
    %s134 = sadd.s32 %s133, 1
    %p137 = scmp.eq.s32.totalorder %s15, 1
    %p138 = scmp.ne.s32.totalorder %s133, %s135
    %p139 = scmp.eq.s32.totalorder %s15, 0
    %p140 = por %p138, %p139
    %p141 = scmp.ne.s32.totalorder %s133, %s135
    %p142 = scmp.eq.s32.totalorder %s20, 1
    %p143 = por %p141, %p142
    %p144 = scmp.ne.s32.totalorder %s135, %s136
    %p145 = scmp.eq.s32.totalorder %s20, 0
    %p146 = por %p144, %p145
    %p147 = scmp.ne.s32.totalorder %s135, %s136
    %p148 = scmp.eq.s32.totalorder %s21, 1
    %p149 = por %p147, %p148
    %p151 = scmp.ne.s32.totalorder %s136, %s150
    %p152 = scmp.eq.s32.totalorder %s21, 0
    %p153 = por %p151, %p152
    %s155 = sadd.s32 %s154, 1
    %p158 = scmp.eq.s32.totalorder %s15, 1
    %p159 = scmp.ne.s32.totalorder %s154, %s156
    %p160 = scmp.eq.s32.totalorder %s15, 0
    %p161 = por %p159, %p160
    %p162 = scmp.ne.s32.totalorder %s154, %s156
    %p163 = scmp.eq.s32.totalorder %s20, 1
    %p164 = por %p162, %p163
    %p165 = scmp.ne.s32.totalorder %s156, %s157
    %p166 = scmp.eq.s32.totalorder %s20, 0
    %p167 = por %p165, %p166
    %p168 = scmp.ne.s32.totalorder %s156, %s157
    %p169 = scmp.eq.s32.totalorder %s21, 1
    %p170 = por %p168, %p169
    %p172 = scmp.ne.s32.totalorder %s157, %s171
    %p173 = scmp.eq.s32.totalorder %s21, 0
    %p174 = por %p172, %p173
    %s176 = sadd.s32 %s175, 1
    %p179 = scmp.eq.s32.totalorder %s15, 1
    %p180 = scmp.ne.s32.totalorder %s175, %s177
    %p181 = scmp.eq.s32.totalorder %s15, 0
    %p182 = por %p180, %p181
    %p183 = scmp.ne.s32.totalorder %s175, %s177
    %p184 = scmp.eq.s32.totalorder %s20, 1
    %p185 = por %p183, %p184
    %p186 = scmp.ne.s32.totalorder %s177, %s178
    %p187 = scmp.eq.s32.totalorder %s20, 0
    %p188 = por %p186, %p187
    %p189 = scmp.ne.s32.totalorder %s177, %s178
    %p190 = scmp.eq.s32.totalorder %s21, 1
    %p191 = por %p189, %p190
    %p193 = scmp.ne.s32.totalorder %s178, %s192
    %p194 = scmp.eq.s32.totalorder %s21, 0
    %p195 = por %p193, %p194
    %s197 = sadd.s32 %s196, 1
    %p200 = scmp.eq.s32.totalorder %s15, 1
    %p201 = scmp.ne.s32.totalorder %s196, %s198
    %p202 = scmp.eq.s32.totalorder %s15, 0
    %p203 = por %p201, %p202
    %p204 = scmp.ne.s32.totalorder %s196, %s198
    %p205 = scmp.eq.s32.totalorder %s20, 1
    %p206 = por %p204, %p205
    %p207 = scmp.ne.s32.totalorder %s198, %s199
    %p208 = scmp.eq.s32.totalorder %s20, 0
    %p209 = por %p207, %p208
    %p210 = scmp.ne.s32.totalorder %s198, %s199
    %p211 = scmp.eq.s32.totalorder %s21, 1
    %p212 = por %p210, %p211
    %p214 = scmp.ne.s32.totalorder %s199, %s213
    %p215 = scmp.eq.s32.totalorder %s21, 0
    %p216 = por %p214, %p215
    %s217 = ssub.s32 %s15, %s22
    %p218 = scmp.eq.s32.totalorder %s217, 0
    %s220 = sadd.s32 %s219, 1
    %s221 = scalar_select %p218, %s219, %s220
    %p224 = pneg %p218
    %p225 = scmp.eq.s32.totalorder %s15, 1
    %p226 = por %p224, %p225
    %p227 = scmp.ne.s32.totalorder %s219, %s222
    %p228 = scmp.eq.s32.totalorder %s15, 0
    %p229 = por %p227, %p228
    %p230 = scmp.ne.s32.totalorder %s219, %s222
    %p231 = scmp.eq.s32.totalorder %s20, 1
    %p232 = por %p230, %p231
    %p233 = scmp.ne.s32.totalorder %s222, %s223
    %p234 = scmp.eq.s32.totalorder %s20, 0
    %p235 = por %p233, %p234
    %p236 = scmp.ne.s32.totalorder %s222, %s223
    %p237 = scmp.eq.s32.totalorder %s21, 1
    %p238 = por %p236, %p237
    %p240 = scmp.ne.s32.totalorder %s223, %s239
    %p241 = scmp.eq.s32.totalorder %s21, 0
    %p242 = por %p240, %p241
    %p243 = scmp.le.s32.totalorder 1, %s15
    %p244 = scmp.lt.s32.totalorder %s15, 3
    %p245 = pnand %p243, %p244
    %p246 = pneg %p245
    // Predicated region
    $region9: #{_lambda_.1} parent=5 // pred_check
      _
    $region10: #{_lambda_.1} parent=5 // pred_check_branch
      %248 = sbr.rel (%p245) target = $region12
    $region11: #{_lambda_.1} parent=5 // pred_region
      %s249 = ssub.s32 %s15, 1
      // Predicated region
      $region13: #{_lambda_.1} parent=11 // pred_check
        %p250 = pneg %p62
      $region14: #{_lambda_.1} parent=11 // pred_check_branch
        %252 = sbr.rel (%p250) target = $region16
      $region15: #{_lambda_.1} parent=11 // pred_region
        _
      $region16: #{_lambda_.1} parent=11 // pred_fallthru
        _
      // Predicated region
      $region17: #{_lambda_.1} parent=11 // pred_check
        %p253 = pneg %p83
      $region18: #{_lambda_.1} parent=11 // pred_check_branch
        %255 = sbr.rel (%p253) target = $region20
      $region19: #{_lambda_.1} parent=11 // pred_region
        _
      $region20: #{_lambda_.1} parent=11 // pred_fallthru
        _
      // Predicated region
      $region21: #{_lambda_.1} parent=11 // pred_check
        %p256 = pneg %p104
      $region22: #{_lambda_.1} parent=11 // pred_check_branch
        %258 = sbr.rel (%p256) target = $region24
      $region23: #{_lambda_.1} parent=11 // pred_region
        _
      $region24: #{_lambda_.1} parent=11 // pred_fallthru
        _
      // Predicated region
      $region25: #{_lambda_.1} parent=11 // pred_check
        %p259 = pneg %p125
      $region26: #{_lambda_.1} parent=11 // pred_check_branch
        %261 = sbr.rel (%p259) target = $region28
      $region27: #{_lambda_.1} parent=11 // pred_region
        _
      $region28: #{_lambda_.1} parent=11 // pred_fallthru
        _
      // Predicated region
      $region29: #{_lambda_.1} parent=11 // pred_check
        %p262 = pneg %p146
      $region30: #{_lambda_.1} parent=11 // pred_check_branch
        %264 = sbr.rel (%p262) target = $region32
      $region31: #{_lambda_.1} parent=11 // pred_region
        _
      $region32: #{_lambda_.1} parent=11 // pred_fallthru
        _
      // Predicated region
      $region33: #{_lambda_.1} parent=11 // pred_check
        %p265 = pneg %p167
      $region34: #{_lambda_.1} parent=11 // pred_check_branch
        %267 = sbr.rel (%p265) target = $region36
      $region35: #{_lambda_.1} parent=11 // pred_region
        _
      $region36: #{_lambda_.1} parent=11 // pred_fallthru
        _
      // Predicated region
      $region37: #{_lambda_.1} parent=11 // pred_check
        %p268 = pneg %p188
      $region38: #{_lambda_.1} parent=11 // pred_check_branch
        %270 = sbr.rel (%p268) target = $region40
      $region39: #{_lambda_.1} parent=11 // pred_region
        _
      $region40: #{_lambda_.1} parent=11 // pred_fallthru
        _
      // Predicated region
      $region41: #{_lambda_.1} parent=11 // pred_check
        %p271 = pneg %p209
      $region42: #{_lambda_.1} parent=11 // pred_check_branch
        %273 = sbr.rel (%p271) target = $region44
      $region43: #{_lambda_.1} parent=11 // pred_region
        _
      $region44: #{_lambda_.1} parent=11 // pred_fallthru
        _
    $region12: #{_lambda_.1} parent=5 // pred_fallthru
      _
    %p274 = scmp.lt.s32.totalorder %s15, 2
    // Predicated region
    $region45: #{_lambda_.1} parent=5 // pred_check
      %p275 = pneg %p274
    $region46: #{_lambda_.1} parent=5 // pred_check_branch
      %277 = sbr.rel (%p275) target = $region48
    $region47: #{_lambda_.1} parent=5 // pred_region
      // Predicated region
      $region49: #{_lambda_.1} parent=47 // pred_check
        %p278 = pneg %p35
      $region50: #{_lambda_.1} parent=47 // pred_check_branch
        %280 = sbr.rel (%p278) target = $region52
      $region51: #{_lambda_.1} parent=47 // pred_region
        %s281 = smul.u32 384, %s15
        %p282 = scmp.lt.s32.totalorder %s281, 767
        %s283 = scalar_select %p282, %s281, 767
        %s284 = smul.addr %s283, 3
        %s285 = smul.addr %s284, 4
        %s286 = scalar_lea.vmem %s0, %s285
        %s287 = smul.u32 384, %s15
      $region52: #{_lambda_.1} parent=47 // pred_fallthru
        _
    $region48: #{_lambda_.1} parent=5 // pred_fallthru
      _
    %p288 = scmp.le.s32.totalorder 1, %s15
    %p289 = scmp.lt.s32.totalorder %s15, 3
    %p290 = pnand %p288, %p289
    %p291 = pneg %p290
    // Predicated region
    $region53: #{_lambda_.1} parent=5 // pred_check
      _
    $region54: #{_lambda_.1} parent=5 // pred_check_branch
      %293 = sbr.rel (%p290) target = $region56
    $region55: #{_lambda_.1} parent=5 // pred_region
      %s294 = ssub.s32 %s15, 1
      %s295 = smul.u32 384, %s20
      %p296 = scmp.lt.s32.totalorder %s295, 767
      %s297 = scalar_select %p296, %s295, 767
      %s298 = smul.addr %s297, 3
      %s299 = smul.addr %s298, 4
      %s300 = scalar_lea.vmem %s0, %s299
      %p301 = pneg %p41
      %p302 = pneg %p38
      %p303 = pneg %p62
      %p304 = pneg %p59
      %p305 = pneg %p83
      %p306 = pneg %p80
      %p307 = pneg %p104
      %p308 = pneg %p101
      %p309 = pneg %p125
      %p310 = pneg %p122
      %p311 = pneg %p146
      %p312 = pneg %p143
      %p313 = pneg %p167
      %p314 = pneg %p164
      %p315 = pneg %p188
      %p316 = pneg %p185
      %p317 = pneg %p209
      %p318 = pneg %p206
      %p319 = pneg %p235
      %p320 = pneg %p232
      %s321 = smul.u32 8, %s20
      %p322 = scmp.lt.s32.totalorder %s321, 15
      %s323 = scalar_select %p322, %s321, 15
      %s324 = smul.addr %s323, 8
      %s325 = scalar_lea.vmem %s9, %s324
      %s326 = smul.u32 384, %s20
      %p327 = scmp.lt.s32.totalorder %s326, 767
      %s328 = scalar_select %p327, %s326, 767
      %s329 = smul.addr %s328, 3
      %s330 = smul.addr %s329, 4
      %s331 = scalar_lea.vmem %s0, %s330
      %s332 = smul.u32 384, %s20
      %s333 = smul.u32 8, %s20
      %p334 = scmp.lt.s32.totalorder %s333, 15
      %s335 = scalar_select %p334, %s333, 15
      %s336 = smul.addr %s335, 8
      %s337 = scalar_lea.vmem %s9, %s336
      %s338 = smul.u32 8, %s20
      %v340 = vld [vmem:[%s331] sm:$0xff]
      %v341 = vld [vmem:[%s331 + $0x8] sm:$0xf]
      %v342 = vld [vmem:[%s331 + $0xc] sm:$0xff]
      %v343 = vld [vmem:[%s331 + $0x14] sm:$0xf]
      %v344 = vld [vmem:[%s331 + $0x18] sm:$0xff]
      %v345 = vld [vmem:[%s331 + $0x20] sm:$0xf]
      %v346 = vld [vmem:[%s331 + $0x24] sm:$0xff]
      %v347 = vld [vmem:[%s331 + $0x2c] sm:$0xf]
      %v348 = vld [vmem:[%s331 + $0x30] sm:$0xff]
      %v349 = vld [vmem:[%s331 + $0x38] sm:$0xf]
      %v350 = vld [vmem:[%s331 + $0x3c] sm:$0xff]
      %v351 = vld [vmem:[%s331 + $0x44] sm:$0xf]
      %v352 = vld [vmem:[%s331 + $0x48] sm:$0xff]
      %v353 = vld [vmem:[%s331 + $0x50] sm:$0xf]
      %v354 = vld [vmem:[%s331 + $0x54] sm:$0xff]
      %v355 = vld [vmem:[%s331 + $0x5c] sm:$0xf]
      %v356 = vld [vmem:[%s331 + $0x60] sm:$0xff]
      %v357 = vld [vmem:[%s331 + $0x68] sm:$0xf]
      %v358 = vld [vmem:[%s331 + $0x6c] sm:$0xff]
      %v359 = vld [vmem:[%s331 + $0x74] sm:$0xf]
      %v360 = vld [vmem:[%s331 + $0x78] sm:$0xff]
      %v361 = vld [vmem:[%s331 + $0x80] sm:$0xf]
      %v362 = vld [vmem:[%s331 + $0x84] sm:$0xff]
      %v363 = vld [vmem:[%s331 + $0x8c] sm:$0xf]
      %v364 = vld [vmem:[%s331 + $0x90] sm:$0xff]
      %v365 = vld [vmem:[%s331 + $0x98] sm:$0xf]
      %v366 = vld [vmem:[%s331 + $0x9c] sm:$0xff]
      %v367 = vld [vmem:[%s331 + $0xa4] sm:$0xf]
      %v368 = vld [vmem:[%s331 + $0xa8] sm:$0xff]
      %v369 = vld [vmem:[%s331 + $0xb0] sm:$0xf]
      %v370 = vld [vmem:[%s331 + $0xb4] sm:$0xff]
      %v371 = vld [vmem:[%s331 + $0xbc] sm:$0xf]
      %v372 = vld [vmem:[%s331 + $0xc0] sm:$0xff]
      %v373 = vld [vmem:[%s331 + $0xc8] sm:$0xf]
      %v374 = vld [vmem:[%s331 + $0xcc] sm:$0xff]
      %v375 = vld [vmem:[%s331 + $0xd4] sm:$0xf]
      %v376 = vld [vmem:[%s331 + $0xd8] sm:$0xff]
      %v377 = vld [vmem:[%s331 + $0xe0] sm:$0xf]
      %v378 = vld [vmem:[%s331 + $0xe4] sm:$0xff]
      %v379 = vld [vmem:[%s331 + $0xec] sm:$0xf]
      %v380 = vld [vmem:[%s331 + $0xf0] sm:$0xff]
      %v381 = vld [vmem:[%s331 + $0xf8] sm:$0xf]
      %v382 = vld [vmem:[%s331 + $0xfc] sm:$0xff]
      %v383 = vld [vmem:[%s331 + $0x104] sm:$0xf]
      %v384 = vld [vmem:[%s331 + $0x108] sm:$0xff]
      %v385 = vld [vmem:[%s331 + $0x110] sm:$0xf]
      %v386 = vld [vmem:[%s331 + $0x114] sm:$0xff]
      %v387 = vld [vmem:[%s331 + $0x11c] sm:$0xf]
      %v388 = vld [vmem:[%s331 + $0x120] sm:$0xff]
      %v389 = vld [vmem:[%s331 + $0x128] sm:$0xf]
      %v390 = vld [vmem:[%s331 + $0x12c] sm:$0xff]
      %v391 = vld [vmem:[%s331 + $0x134] sm:$0xf]
      %v392 = vld [vmem:[%s331 + $0x138] sm:$0xff]
      %v393 = vld [vmem:[%s331 + $0x140] sm:$0xf]
      %v394 = vld [vmem:[%s331 + $0x144] sm:$0xff]
      %v395 = vld [vmem:[%s331 + $0x14c] sm:$0xf]
      %v396 = vld [vmem:[%s331 + $0x150] sm:$0xff]
      %v397 = vld [vmem:[%s331 + $0x158] sm:$0xf]
      %v398 = vld [vmem:[%s331 + $0x15c] sm:$0xff]
      %v399 = vld [vmem:[%s331 + $0x164] sm:$0xf]
      %v400 = vld [vmem:[%s331 + $0x168] sm:$0xff]
      %v401 = vld [vmem:[%s331 + $0x170] sm:$0xf]
      %v402 = vld [vmem:[%s331 + $0x174] sm:$0xff]
      %v403 = vld [vmem:[%s331 + $0x17c] sm:$0xf]
      %v404 = vld [vmem:[%s331 + $0x180] sm:$0xff]
      %v405 = vld [vmem:[%s331 + $0x188] sm:$0xf]
      %v406 = vld [vmem:[%s331 + $0x18c] sm:$0xff]
      %v407 = vld [vmem:[%s331 + $0x194] sm:$0xf]
      %v408 = vld [vmem:[%s331 + $0x198] sm:$0xff]
      %v409 = vld [vmem:[%s331 + $0x1a0] sm:$0xf]
      %v410 = vld [vmem:[%s331 + $0x1a4] sm:$0xff]
      %v411 = vld [vmem:[%s331 + $0x1ac] sm:$0xf]
      %v412 = vld [vmem:[%s331 + $0x1b0] sm:$0xff]
      %v413 = vld [vmem:[%s331 + $0x1b8] sm:$0xf]
      %v414 = vld [vmem:[%s331 + $0x1bc] sm:$0xff]
      %v415 = vld [vmem:[%s331 + $0x1c4] sm:$0xf]
      %v416 = vld [vmem:[%s331 + $0x1c8] sm:$0xff]
      %v417 = vld [vmem:[%s331 + $0x1d0] sm:$0xf]
      %v418 = vld [vmem:[%s331 + $0x1d4] sm:$0xff]
      %v419 = vld [vmem:[%s331 + $0x1dc] sm:$0xf]
      %v420 = vld [vmem:[%s331 + $0x1e0] sm:$0xff]
      %v421 = vld [vmem:[%s331 + $0x1e8] sm:$0xf]
      %v422 = vld [vmem:[%s331 + $0x1ec] sm:$0xff]
      %v423 = vld [vmem:[%s331 + $0x1f4] sm:$0xf]
      %v424 = vld [vmem:[%s331 + $0x1f8] sm:$0xff]
      %v425 = vld [vmem:[%s331 + $0x200] sm:$0xf]
      %v426 = vld [vmem:[%s331 + $0x204] sm:$0xff]
      %v427 = vld [vmem:[%s331 + $0x20c] sm:$0xf]
      %v428 = vld [vmem:[%s331 + $0x210] sm:$0xff]
      %v429 = vld [vmem:[%s331 + $0x218] sm:$0xf]
      %v430 = vld [vmem:[%s331 + $0x21c] sm:$0xff]
      %v431 = vld [vmem:[%s331 + $0x224] sm:$0xf]
      %v432 = vld [vmem:[%s331 + $0x228] sm:$0xff]
      %v433 = vld [vmem:[%s331 + $0x230] sm:$0xf]
      %v434 = vld [vmem:[%s331 + $0x234] sm:$0xff]
      %v435 = vld [vmem:[%s331 + $0x23c] sm:$0xf]
      %v436 = vld [vmem:[%s331 + $0x240] sm:$0xff]
      %v437 = vld [vmem:[%s331 + $0x248] sm:$0xf]
      %v438 = vld [vmem:[%s331 + $0x24c] sm:$0xff]
      %v439 = vld [vmem:[%s331 + $0x254] sm:$0xf]
      %v440 = vld [vmem:[%s331 + $0x258] sm:$0xff]
      %v441 = vld [vmem:[%s331 + $0x260] sm:$0xf]
      %v442 = vld [vmem:[%s331 + $0x264] sm:$0xff]
      %v443 = vld [vmem:[%s331 + $0x26c] sm:$0xf]
      %v444 = vld [vmem:[%s331 + $0x270] sm:$0xff]
      %v445 = vld [vmem:[%s331 + $0x278] sm:$0xf]
      %v446 = vld [vmem:[%s331 + $0x27c] sm:$0xff]
      %v447 = vld [vmem:[%s331 + $0x284] sm:$0xf]
      %v448 = vld [vmem:[%s331 + $0x288] sm:$0xff]
      %v449 = vld [vmem:[%s331 + $0x290] sm:$0xf]
      %v450 = vld [vmem:[%s331 + $0x294] sm:$0xff]
      %v451 = vld [vmem:[%s331 + $0x29c] sm:$0xf]
      %v452 = vld [vmem:[%s331 + $0x2a0] sm:$0xff]
      %v453 = vld [vmem:[%s331 + $0x2a8] sm:$0xf]
      %v454 = vld [vmem:[%s331 + $0x2ac] sm:$0xff]
      %v455 = vld [vmem:[%s331 + $0x2b4] sm:$0xf]
      %v456 = vld [vmem:[%s331 + $0x2b8] sm:$0xff]
      %v457 = vld [vmem:[%s331 + $0x2c0] sm:$0xf]
      %v458 = vld [vmem:[%s331 + $0x2c4] sm:$0xff]
      %v459 = vld [vmem:[%s331 + $0x2cc] sm:$0xf]
      %v460 = vld [vmem:[%s331 + $0x2d0] sm:$0xff]
      %v461 = vld [vmem:[%s331 + $0x2d8] sm:$0xf]
      %v462 = vld [vmem:[%s331 + $0x2dc] sm:$0xff]
      %v463 = vld [vmem:[%s331 + $0x2e4] sm:$0xf]
      %v464 = vld [vmem:[%s331 + $0x2e8] sm:$0xff]
      %v465 = vld [vmem:[%s331 + $0x2f0] sm:$0xf]
      %v466 = vld [vmem:[%s331 + $0x2f4] sm:$0xff]
      %v467 = vld [vmem:[%s331 + $0x2fc] sm:$0xf]
      %v468 = vld [vmem:[%s331 + $0x300] sm:$0xff]
      %v469 = vld [vmem:[%s331 + $0x308] sm:$0xf]
      %v470 = vld [vmem:[%s331 + $0x30c] sm:$0xff]
      %v471 = vld [vmem:[%s331 + $0x314] sm:$0xf]
      %v472 = vld [vmem:[%s331 + $0x318] sm:$0xff]
      %v473 = vld [vmem:[%s331 + $0x320] sm:$0xf]
      %v474 = vld [vmem:[%s331 + $0x324] sm:$0xff]
      %v475 = vld [vmem:[%s331 + $0x32c] sm:$0xf]
      %v476 = vld [vmem:[%s331 + $0x330] sm:$0xff]
      %v477 = vld [vmem:[%s331 + $0x338] sm:$0xf]
      %v478 = vld [vmem:[%s331 + $0x33c] sm:$0xff]
      %v479 = vld [vmem:[%s331 + $0x344] sm:$0xf]
      %v480 = vld [vmem:[%s331 + $0x348] sm:$0xff]
      %v481 = vld [vmem:[%s331 + $0x350] sm:$0xf]
      %v482 = vld [vmem:[%s331 + $0x354] sm:$0xff]
      %v483 = vld [vmem:[%s331 + $0x35c] sm:$0xf]
      %v484 = vld [vmem:[%s331 + $0x360] sm:$0xff]
      %v485 = vld [vmem:[%s331 + $0x368] sm:$0xf]
      %v486 = vld [vmem:[%s331 + $0x36c] sm:$0xff]
      %v487 = vld [vmem:[%s331 + $0x374] sm:$0xf]
      %v488 = vld [vmem:[%s331 + $0x378] sm:$0xff]
      %v489 = vld [vmem:[%s331 + $0x380] sm:$0xf]
      %v490 = vld [vmem:[%s331 + $0x384] sm:$0xff]
      %v491 = vld [vmem:[%s331 + $0x38c] sm:$0xf]
      %v492 = vld [vmem:[%s331 + $0x390] sm:$0xff]
      %v493 = vld [vmem:[%s331 + $0x398] sm:$0xf]
      %v494 = vld [vmem:[%s331 + $0x39c] sm:$0xff]
      %v495 = vld [vmem:[%s331 + $0x3a4] sm:$0xf]
      %v496 = vld [vmem:[%s331 + $0x3a8] sm:$0xff]
      %v497 = vld [vmem:[%s331 + $0x3b0] sm:$0xf]
      %v498 = vld [vmem:[%s331 + $0x3b4] sm:$0xff]
      %v499 = vld [vmem:[%s331 + $0x3bc] sm:$0xf]
      %v500 = vld [vmem:[%s331 + $0x3c0] sm:$0xff]
      %v501 = vld [vmem:[%s331 + $0x3c8] sm:$0xf]
      %v502 = vld [vmem:[%s331 + $0x3cc] sm:$0xff]
      %v503 = vld [vmem:[%s331 + $0x3d4] sm:$0xf]
      %v504 = vld [vmem:[%s331 + $0x3d8] sm:$0xff]
      %v505 = vld [vmem:[%s331 + $0x3e0] sm:$0xf]
      %v506 = vld [vmem:[%s331 + $0x3e4] sm:$0xff]
      %v507 = vld [vmem:[%s331 + $0x3ec] sm:$0xf]
      %v508 = vld [vmem:[%s331 + $0x3f0] sm:$0xff]
      %v509 = vld [vmem:[%s331 + $0x3f8] sm:$0xf]
      %v510 = vld [vmem:[%s331 + $0x3fc] sm:$0xff]
      %v511 = vld [vmem:[%s331 + $0x404] sm:$0xf]
      %v512 = vld [vmem:[%s331 + $0x408] sm:$0xff]
      %v513 = vld [vmem:[%s331 + $0x410] sm:$0xf]
      %v514 = vld [vmem:[%s331 + $0x414] sm:$0xff]
      %v515 = vld [vmem:[%s331 + $0x41c] sm:$0xf]
      %v516 = vld [vmem:[%s331 + $0x420] sm:$0xff]
      %v517 = vld [vmem:[%s331 + $0x428] sm:$0xf]
      %v518 = vld [vmem:[%s331 + $0x42c] sm:$0xff]
      %v519 = vld [vmem:[%s331 + $0x434] sm:$0xf]
      %v520 = vld [vmem:[%s331 + $0x438] sm:$0xff]
      %v521 = vld [vmem:[%s331 + $0x440] sm:$0xf]
      %v522 = vld [vmem:[%s331 + $0x444] sm:$0xff]
      %v523 = vld [vmem:[%s331 + $0x44c] sm:$0xf]
      %v524 = vld [vmem:[%s331 + $0x450] sm:$0xff]
      %v525 = vld [vmem:[%s331 + $0x458] sm:$0xf]
      %v526 = vld [vmem:[%s331 + $0x45c] sm:$0xff]
      %v527 = vld [vmem:[%s331 + $0x464] sm:$0xf]
      %v528 = vld [vmem:[%s331 + $0x468] sm:$0xff]
      %v529 = vld [vmem:[%s331 + $0x470] sm:$0xf]
      %v530 = vld [vmem:[%s331 + $0x474] sm:$0xff]
      %v531 = vld [vmem:[%s331 + $0x47c] sm:$0xf]
      %v532 = vld [vmem:[%s331 + $0x480] sm:$0xff]
      %v533 = vld [vmem:[%s331 + $0x488] sm:$0xf]
      %v534 = vld [vmem:[%s331 + $0x48c] sm:$0xff]
      %v535 = vld [vmem:[%s331 + $0x494] sm:$0xf]
      %v536 = vld [vmem:[%s331 + $0x498] sm:$0xff]
      %v537 = vld [vmem:[%s331 + $0x4a0] sm:$0xf]
      %v538 = vld [vmem:[%s331 + $0x4a4] sm:$0xff]
      %v539 = vld [vmem:[%s331 + $0x4ac] sm:$0xf]
      %v540 = vld [vmem:[%s331 + $0x4b0] sm:$0xff]
      %v541 = vld [vmem:[%s331 + $0x4b8] sm:$0xf]
      %v542 = vld [vmem:[%s331 + $0x4bc] sm:$0xff]
      %v543 = vld [vmem:[%s331 + $0x4c4] sm:$0xf]
      %v544 = vld [vmem:[%s331 + $0x4c8] sm:$0xff]
      %v545 = vld [vmem:[%s331 + $0x4d0] sm:$0xf]
      %v546 = vld [vmem:[%s331 + $0x4d4] sm:$0xff]
      %v547 = vld [vmem:[%s331 + $0x4dc] sm:$0xf]
      %v548 = vld [vmem:[%s331 + $0x4e0] sm:$0xff]
      %v549 = vld [vmem:[%s331 + $0x4e8] sm:$0xf]
      %v550 = vld [vmem:[%s331 + $0x4ec] sm:$0xff]
      %v551 = vld [vmem:[%s331 + $0x4f4] sm:$0xf]
      %v552 = vld [vmem:[%s331 + $0x4f8] sm:$0xff]
      %v553 = vld [vmem:[%s331 + $0x500] sm:$0xf]
      %v554 = vld [vmem:[%s331 + $0x504] sm:$0xff]
      %v555 = vld [vmem:[%s331 + $0x50c] sm:$0xf]
      %v556 = vld [vmem:[%s331 + $0x510] sm:$0xff]
      %v557 = vld [vmem:[%s331 + $0x518] sm:$0xf]
      %v558 = vld [vmem:[%s331 + $0x51c] sm:$0xff]
      %v559 = vld [vmem:[%s331 + $0x524] sm:$0xf]
      %v560 = vld [vmem:[%s331 + $0x528] sm:$0xff]
      %v561 = vld [vmem:[%s331 + $0x530] sm:$0xf]
      %v562 = vld [vmem:[%s331 + $0x534] sm:$0xff]
      %v563 = vld [vmem:[%s331 + $0x53c] sm:$0xf]
      %v564 = vld [vmem:[%s331 + $0x540] sm:$0xff]
      %v565 = vld [vmem:[%s331 + $0x548] sm:$0xf]
      %v566 = vld [vmem:[%s331 + $0x54c] sm:$0xff]
      %v567 = vld [vmem:[%s331 + $0x554] sm:$0xf]
      %v568 = vld [vmem:[%s331 + $0x558] sm:$0xff]
      %v569 = vld [vmem:[%s331 + $0x560] sm:$0xf]
      %v570 = vld [vmem:[%s331 + $0x564] sm:$0xff]
      %v571 = vld [vmem:[%s331 + $0x56c] sm:$0xf]
      %v572 = vld [vmem:[%s331 + $0x570] sm:$0xff]
      %v573 = vld [vmem:[%s331 + $0x578] sm:$0xf]
      %v574 = vld [vmem:[%s331 + $0x57c] sm:$0xff]
      %v575 = vld [vmem:[%s331 + $0x584] sm:$0xf]
      %v576 = vld [vmem:[%s331 + $0x588] sm:$0xff]
      %v577 = vld [vmem:[%s331 + $0x590] sm:$0xf]
      %v578 = vld [vmem:[%s331 + $0x594] sm:$0xff]
      %v579 = vld [vmem:[%s331 + $0x59c] sm:$0xf]
      %v580 = vld [vmem:[%s331 + $0x5a0] sm:$0xff]
      %v581 = vld [vmem:[%s331 + $0x5a8] sm:$0xf]
      %v582 = vld [vmem:[%s331 + $0x5ac] sm:$0xff]
      %v583 = vld [vmem:[%s331 + $0x5b4] sm:$0xf]
      %v584 = vld [vmem:[%s331 + $0x5b8] sm:$0xff]
      %v585 = vld [vmem:[%s331 + $0x5c0] sm:$0xf]
      %v586 = vld [vmem:[%s331 + $0x5c4] sm:$0xff]
      %v587 = vld [vmem:[%s331 + $0x5cc] sm:$0xf]
      %v588 = vld [vmem:[%s331 + $0x5d0] sm:$0xff]
      %v589 = vld [vmem:[%s331 + $0x5d8] sm:$0xf]
      %v590 = vld [vmem:[%s331 + $0x5dc] sm:$0xff]
      %v591 = vld [vmem:[%s331 + $0x5e4] sm:$0xf]
      %v592 = vld [vmem:[%s331 + $0x5e8] sm:$0xff]
      %v593 = vld [vmem:[%s331 + $0x5f0] sm:$0xf]
      %v594 = vld [vmem:[%s331 + $0x5f4] sm:$0xff]
      %v595 = vld [vmem:[%s331 + $0x5fc] sm:$0xf]
      %v596 = vld [vmem:[%s331 + $0x600] sm:$0xff]
      %v597 = vld [vmem:[%s331 + $0x608] sm:$0xf]
      %v598 = vld [vmem:[%s331 + $0x60c] sm:$0xff]
      %v599 = vld [vmem:[%s331 + $0x614] sm:$0xf]
      %v600 = vld [vmem:[%s331 + $0x618] sm:$0xff]
      %v601 = vld [vmem:[%s331 + $0x620] sm:$0xf]
      %v602 = vld [vmem:[%s331 + $0x624] sm:$0xff]
      %v603 = vld [vmem:[%s331 + $0x62c] sm:$0xf]
      %v604 = vld [vmem:[%s331 + $0x630] sm:$0xff]
      %v605 = vld [vmem:[%s331 + $0x638] sm:$0xf]
      %v606 = vld [vmem:[%s331 + $0x63c] sm:$0xff]
      %v607 = vld [vmem:[%s331 + $0x644] sm:$0xf]
      %v608 = vld [vmem:[%s331 + $0x648] sm:$0xff]
      %v609 = vld [vmem:[%s331 + $0x650] sm:$0xf]
      %v610 = vld [vmem:[%s331 + $0x654] sm:$0xff]
      %v611 = vld [vmem:[%s331 + $0x65c] sm:$0xf]
      %v612 = vld [vmem:[%s331 + $0x660] sm:$0xff]
      %v613 = vld [vmem:[%s331 + $0x668] sm:$0xf]
      %v614 = vld [vmem:[%s331 + $0x66c] sm:$0xff]
      %v615 = vld [vmem:[%s331 + $0x674] sm:$0xf]
      %v616 = vld [vmem:[%s331 + $0x678] sm:$0xff]
      %v617 = vld [vmem:[%s331 + $0x680] sm:$0xf]
      %v618 = vld [vmem:[%s331 + $0x684] sm:$0xff]
      %v619 = vld [vmem:[%s331 + $0x68c] sm:$0xf]
      %v620 = vld [vmem:[%s331 + $0x690] sm:$0xff]
      %v621 = vld [vmem:[%s331 + $0x698] sm:$0xf]
      %v622 = vld [vmem:[%s331 + $0x69c] sm:$0xff]
      %v623 = vld [vmem:[%s331 + $0x6a4] sm:$0xf]
      %v624 = vld [vmem:[%s331 + $0x6a8] sm:$0xff]
      %v625 = vld [vmem:[%s331 + $0x6b0] sm:$0xf]
      %v626 = vld [vmem:[%s331 + $0x6b4] sm:$0xff]
      %v627 = vld [vmem:[%s331 + $0x6bc] sm:$0xf]
      %v628 = vld [vmem:[%s331 + $0x6c0] sm:$0xff]
      %v629 = vld [vmem:[%s331 + $0x6c8] sm:$0xf]
      %v630 = vld [vmem:[%s331 + $0x6cc] sm:$0xff]
      %v631 = vld [vmem:[%s331 + $0x6d4] sm:$0xf]
      %v632 = vld [vmem:[%s331 + $0x6d8] sm:$0xff]
      %v633 = vld [vmem:[%s331 + $0x6e0] sm:$0xf]
      %v634 = vld [vmem:[%s331 + $0x6e4] sm:$0xff]
      %v635 = vld [vmem:[%s331 + $0x6ec] sm:$0xf]
      %v636 = vld [vmem:[%s331 + $0x6f0] sm:$0xff]
      %v637 = vld [vmem:[%s331 + $0x6f8] sm:$0xf]
      %v638 = vld [vmem:[%s331 + $0x6fc] sm:$0xff]
      %v639 = vld [vmem:[%s331 + $0x704] sm:$0xf]
      %v640 = vld [vmem:[%s331 + $0x708] sm:$0xff]
      %v641 = vld [vmem:[%s331 + $0x710] sm:$0xf]
      %v642 = vld [vmem:[%s331 + $0x714] sm:$0xff]
      %v643 = vld [vmem:[%s331 + $0x71c] sm:$0xf]
      %v644 = vld [vmem:[%s331 + $0x720] sm:$0xff]
      %v645 = vld [vmem:[%s331 + $0x728] sm:$0xf]
      %v646 = vld [vmem:[%s331 + $0x72c] sm:$0xff]
      %v647 = vld [vmem:[%s331 + $0x734] sm:$0xf]
      %v648 = vld [vmem:[%s331 + $0x738] sm:$0xff]
      %v649 = vld [vmem:[%s331 + $0x740] sm:$0xf]
      %v650 = vld [vmem:[%s331 + $0x744] sm:$0xff]
      %v651 = vld [vmem:[%s331 + $0x74c] sm:$0xf]
      %v652 = vld [vmem:[%s331 + $0x750] sm:$0xff]
      %v653 = vld [vmem:[%s331 + $0x758] sm:$0xf]
      %v654 = vld [vmem:[%s331 + $0x75c] sm:$0xff]
      %v655 = vld [vmem:[%s331 + $0x764] sm:$0xf]
      %v656 = vld [vmem:[%s331 + $0x768] sm:$0xff]
      %v657 = vld [vmem:[%s331 + $0x770] sm:$0xf]
      %v658 = vld [vmem:[%s331 + $0x774] sm:$0xff]
      %v659 = vld [vmem:[%s331 + $0x77c] sm:$0xf]
      %v660 = vld [vmem:[%s331 + $0x780] sm:$0xff]
      %v661 = vld [vmem:[%s331 + $0x788] sm:$0xf]
      %v662 = vld [vmem:[%s331 + $0x78c] sm:$0xff]
      %v663 = vld [vmem:[%s331 + $0x794] sm:$0xf]
      %v664 = vld [vmem:[%s331 + $0x798] sm:$0xff]
      %v665 = vld [vmem:[%s331 + $0x7a0] sm:$0xf]
      %v666 = vld [vmem:[%s331 + $0x7a4] sm:$0xff]
      %v667 = vld [vmem:[%s331 + $0x7ac] sm:$0xf]
      %v668 = vld [vmem:[%s331 + $0x7b0] sm:$0xff]
      %v669 = vld [vmem:[%s331 + $0x7b8] sm:$0xf]
      %v670 = vld [vmem:[%s331 + $0x7bc] sm:$0xff]
      %v671 = vld [vmem:[%s331 + $0x7c4] sm:$0xf]
      %v672 = vld [vmem:[%s331 + $0x7c8] sm:$0xff]
      %v673 = vld [vmem:[%s331 + $0x7d0] sm:$0xf]
      %v674 = vld [vmem:[%s331 + $0x7d4] sm:$0xff]
      %v675 = vld [vmem:[%s331 + $0x7dc] sm:$0xf]
      %v676 = vld [vmem:[%s331 + $0x7e0] sm:$0xff]
      %v677 = vld [vmem:[%s331 + $0x7e8] sm:$0xf]
      %v678 = vld [vmem:[%s331 + $0x7ec] sm:$0xff]
      %v679 = vld [vmem:[%s331 + $0x7f4] sm:$0xf]
      %v680 = vld [vmem:[%s331 + $0x7f8] sm:$0xff]
      %v681 = vld [vmem:[%s331 + $0x800] sm:$0xf]
      %v682 = vld [vmem:[%s331 + $0x804] sm:$0xff]
      %v683 = vld [vmem:[%s331 + $0x80c] sm:$0xf]
      %v684 = vld [vmem:[%s331 + $0x810] sm:$0xff]
      %v685 = vld [vmem:[%s331 + $0x818] sm:$0xf]
      %v686 = vld [vmem:[%s331 + $0x81c] sm:$0xff]
      %v687 = vld [vmem:[%s331 + $0x824] sm:$0xf]
      %v688 = vld [vmem:[%s331 + $0x828] sm:$0xff]
      %v689 = vld [vmem:[%s331 + $0x830] sm:$0xf]
      %v690 = vld [vmem:[%s331 + $0x834] sm:$0xff]
      %v691 = vld [vmem:[%s331 + $0x83c] sm:$0xf]
      %v692 = vld [vmem:[%s331 + $0x840] sm:$0xff]
      %v693 = vld [vmem:[%s331 + $0x848] sm:$0xf]
      %v694 = vld [vmem:[%s331 + $0x84c] sm:$0xff]
      %v695 = vld [vmem:[%s331 + $0x854] sm:$0xf]
      %v696 = vld [vmem:[%s331 + $0x858] sm:$0xff]
      %v697 = vld [vmem:[%s331 + $0x860] sm:$0xf]
      %v698 = vld [vmem:[%s331 + $0x864] sm:$0xff]
      %v699 = vld [vmem:[%s331 + $0x86c] sm:$0xf]
      %v700 = vld [vmem:[%s331 + $0x870] sm:$0xff]
      %v701 = vld [vmem:[%s331 + $0x878] sm:$0xf]
      %v702 = vld [vmem:[%s331 + $0x87c] sm:$0xff]
      %v703 = vld [vmem:[%s331 + $0x884] sm:$0xf]
      %v704 = vld [vmem:[%s331 + $0x888] sm:$0xff]
      %v705 = vld [vmem:[%s331 + $0x890] sm:$0xf]
      %v706 = vld [vmem:[%s331 + $0x894] sm:$0xff]
      %v707 = vld [vmem:[%s331 + $0x89c] sm:$0xf]
      %v708 = vld [vmem:[%s331 + $0x8a0] sm:$0xff]
      %v709 = vld [vmem:[%s331 + $0x8a8] sm:$0xf]
      %v710 = vld [vmem:[%s331 + $0x8ac] sm:$0xff]
      %v711 = vld [vmem:[%s331 + $0x8b4] sm:$0xf]
      %v712 = vld [vmem:[%s331 + $0x8b8] sm:$0xff]
      %v713 = vld [vmem:[%s331 + $0x8c0] sm:$0xf]
      %v714 = vld [vmem:[%s331 + $0x8c4] sm:$0xff]
      %v715 = vld [vmem:[%s331 + $0x8cc] sm:$0xf]
      %v716 = vld [vmem:[%s331 + $0x8d0] sm:$0xff]
      %v717 = vld [vmem:[%s331 + $0x8d8] sm:$0xf]
      %v718 = vld [vmem:[%s331 + $0x8dc] sm:$0xff]
      %v719 = vld [vmem:[%s331 + $0x8e4] sm:$0xf]
      %v720 = vld [vmem:[%s331 + $0x8e8] sm:$0xff]
      %v721 = vld [vmem:[%s331 + $0x8f0] sm:$0xf]
      %v722 = vld [vmem:[%s331 + $0x8f4] sm:$0xff]
      %v723 = vld [vmem:[%s331 + $0x8fc] sm:$0xf]
      %v724 = vld [vmem:[%s331 + $0x900] sm:$0xff]
      %v725 = vld [vmem:[%s331 + $0x908] sm:$0xf]
      %v726 = vld [vmem:[%s331 + $0x90c] sm:$0xff]
      %v727 = vld [vmem:[%s331 + $0x914] sm:$0xf]
      %v728 = vld [vmem:[%s331 + $0x918] sm:$0xff]
      %v729 = vld [vmem:[%s331 + $0x920] sm:$0xf]
      %v730 = vld [vmem:[%s331 + $0x924] sm:$0xff]
      %v731 = vld [vmem:[%s331 + $0x92c] sm:$0xf]
      %v732 = vld [vmem:[%s331 + $0x930] sm:$0xff]
      %v733 = vld [vmem:[%s331 + $0x938] sm:$0xf]
      %v734 = vld [vmem:[%s331 + $0x93c] sm:$0xff]
      %v735 = vld [vmem:[%s331 + $0x944] sm:$0xf]
      %v736 = vld [vmem:[%s331 + $0x948] sm:$0xff]
      %v737 = vld [vmem:[%s331 + $0x950] sm:$0xf]
      %v738 = vld [vmem:[%s331 + $0x954] sm:$0xff]
      %v739 = vld [vmem:[%s331 + $0x95c] sm:$0xf]
      %v740 = vld [vmem:[%s331 + $0x960] sm:$0xff]
      %v741 = vld [vmem:[%s331 + $0x968] sm:$0xf]
      %v742 = vld [vmem:[%s331 + $0x96c] sm:$0xff]
      %v743 = vld [vmem:[%s331 + $0x974] sm:$0xf]
      %v744 = vld [vmem:[%s331 + $0x978] sm:$0xff]
      %v745 = vld [vmem:[%s331 + $0x980] sm:$0xf]
      %v746 = vld [vmem:[%s331 + $0x984] sm:$0xff]
      %v747 = vld [vmem:[%s331 + $0x98c] sm:$0xf]
      %v748 = vld [vmem:[%s331 + $0x990] sm:$0xff]
      %v749 = vld [vmem:[%s331 + $0x998] sm:$0xf]
      %v750 = vld [vmem:[%s331 + $0x99c] sm:$0xff]
      %v751 = vld [vmem:[%s331 + $0x9a4] sm:$0xf]
      %v752 = vld [vmem:[%s331 + $0x9a8] sm:$0xff]
      %v753 = vld [vmem:[%s331 + $0x9b0] sm:$0xf]
      %v754 = vld [vmem:[%s331 + $0x9b4] sm:$0xff]
      %v755 = vld [vmem:[%s331 + $0x9bc] sm:$0xf]
      %v756 = vld [vmem:[%s331 + $0x9c0] sm:$0xff]
      %v757 = vld [vmem:[%s331 + $0x9c8] sm:$0xf]
      %v758 = vld [vmem:[%s331 + $0x9cc] sm:$0xff]
      %v759 = vld [vmem:[%s331 + $0x9d4] sm:$0xf]
      %v760 = vld [vmem:[%s331 + $0x9d8] sm:$0xff]
      %v761 = vld [vmem:[%s331 + $0x9e0] sm:$0xf]
      %v762 = vld [vmem:[%s331 + $0x9e4] sm:$0xff]
      %v763 = vld [vmem:[%s331 + $0x9ec] sm:$0xf]
      %v764 = vld [vmem:[%s331 + $0x9f0] sm:$0xff]
      %v765 = vld [vmem:[%s331 + $0x9f8] sm:$0xf]
      %v766 = vld [vmem:[%s331 + $0x9fc] sm:$0xff]
      %v767 = vld [vmem:[%s331 + $0xa04] sm:$0xf]
      %v768 = vld [vmem:[%s331 + $0xa08] sm:$0xff]
      %v769 = vld [vmem:[%s331 + $0xa10] sm:$0xf]
      %v770 = vld [vmem:[%s331 + $0xa14] sm:$0xff]
      %v771 = vld [vmem:[%s331 + $0xa1c] sm:$0xf]
      %v772 = vld [vmem:[%s331 + $0xa20] sm:$0xff]
      %v773 = vld [vmem:[%s331 + $0xa28] sm:$0xf]
      %v774 = vld [vmem:[%s331 + $0xa2c] sm:$0xff]
      %v775 = vld [vmem:[%s331 + $0xa34] sm:$0xf]
      %v776 = vld [vmem:[%s331 + $0xa38] sm:$0xff]
      %v777 = vld [vmem:[%s331 + $0xa40] sm:$0xf]
      %v778 = vld [vmem:[%s331 + $0xa44] sm:$0xff]
      %v779 = vld [vmem:[%s331 + $0xa4c] sm:$0xf]
      %v780 = vld [vmem:[%s331 + $0xa50] sm:$0xff]
      %v781 = vld [vmem:[%s331 + $0xa58] sm:$0xf]
      %v782 = vld [vmem:[%s331 + $0xa5c] sm:$0xff]
      %v783 = vld [vmem:[%s331 + $0xa64] sm:$0xf]
      %v784 = vld [vmem:[%s331 + $0xa68] sm:$0xff]
      %v785 = vld [vmem:[%s331 + $0xa70] sm:$0xf]
      %v786 = vld [vmem:[%s331 + $0xa74] sm:$0xff]
      %v787 = vld [vmem:[%s331 + $0xa7c] sm:$0xf]
      %v788 = vld [vmem:[%s331 + $0xa80] sm:$0xff]
      %v789 = vld [vmem:[%s331 + $0xa88] sm:$0xf]
      %v790 = vld [vmem:[%s331 + $0xa8c] sm:$0xff]
      %v791 = vld [vmem:[%s331 + $0xa94] sm:$0xf]
      %v792 = vld [vmem:[%s331 + $0xa98] sm:$0xff]
      %v793 = vld [vmem:[%s331 + $0xaa0] sm:$0xf]
      %v794 = vld [vmem:[%s331 + $0xaa4] sm:$0xff]
      %v795 = vld [vmem:[%s331 + $0xaac] sm:$0xf]
      %v796 = vld [vmem:[%s331 + $0xab0] sm:$0xff]
      %v797 = vld [vmem:[%s331 + $0xab8] sm:$0xf]
      %v798 = vld [vmem:[%s331 + $0xabc] sm:$0xff]
      %v799 = vld [vmem:[%s331 + $0xac4] sm:$0xf]
      %v800 = vld [vmem:[%s331 + $0xac8] sm:$0xff]
      %v801 = vld [vmem:[%s331 + $0xad0] sm:$0xf]
      %v802 = vld [vmem:[%s331 + $0xad4] sm:$0xff]
      %v803 = vld [vmem:[%s331 + $0xadc] sm:$0xf]
      %v804 = vld [vmem:[%s331 + $0xae0] sm:$0xff]
      %v805 = vld [vmem:[%s331 + $0xae8] sm:$0xf]
      %v806 = vld [vmem:[%s331 + $0xaec] sm:$0xff]
      %v807 = vld [vmem:[%s331 + $0xaf4] sm:$0xf]
      %v808 = vld [vmem:[%s331 + $0xaf8] sm:$0xff]
      %v809 = vld [vmem:[%s331 + $0xb00] sm:$0xf]
      %v810 = vld [vmem:[%s331 + $0xb04] sm:$0xff]
      %v811 = vld [vmem:[%s331 + $0xb0c] sm:$0xf]
      %v812 = vld [vmem:[%s331 + $0xb10] sm:$0xff]
      %v813 = vld [vmem:[%s331 + $0xb18] sm:$0xf]
      %v814 = vld [vmem:[%s331 + $0xb1c] sm:$0xff]
      %v815 = vld [vmem:[%s331 + $0xb24] sm:$0xf]
      %v816 = vld [vmem:[%s331 + $0xb28] sm:$0xff]
      %v817 = vld [vmem:[%s331 + $0xb30] sm:$0xf]
      %v818 = vld [vmem:[%s331 + $0xb34] sm:$0xff]
      %v819 = vld [vmem:[%s331 + $0xb3c] sm:$0xf]
      %v820 = vld [vmem:[%s331 + $0xb40] sm:$0xff]
      %v821 = vld [vmem:[%s331 + $0xb48] sm:$0xf]
      %v822 = vld [vmem:[%s331 + $0xb4c] sm:$0xff]
      %v823 = vld [vmem:[%s331 + $0xb54] sm:$0xf]
      %v824 = vld [vmem:[%s331 + $0xb58] sm:$0xff]
      %v825 = vld [vmem:[%s331 + $0xb60] sm:$0xf]
      %v826 = vld [vmem:[%s331 + $0xb64] sm:$0xff]
      %v827 = vld [vmem:[%s331 + $0xb6c] sm:$0xf]
      %v828 = vld [vmem:[%s331 + $0xb70] sm:$0xff]
      %v829 = vld [vmem:[%s331 + $0xb78] sm:$0xf]
      %v830 = vld [vmem:[%s331 + $0xb7c] sm:$0xff]
      %v831 = vld [vmem:[%s331 + $0xb84] sm:$0xf]
      %v832 = vld [vmem:[%s331 + $0xb88] sm:$0xff]
      %v833 = vld [vmem:[%s331 + $0xb90] sm:$0xf]
      %v834 = vld [vmem:[%s331 + $0xb94] sm:$0xff]
      %v835 = vld [vmem:[%s331 + $0xb9c] sm:$0xf]
      %v836 = vld [vmem:[%s331 + $0xba0] sm:$0xff]
      %v837 = vld [vmem:[%s331 + $0xba8] sm:$0xf]
      %v838 = vld [vmem:[%s331 + $0xbac] sm:$0xff]
      %v839 = vld [vmem:[%s331 + $0xbb4] sm:$0xf]
      %v840 = vld [vmem:[%s331 + $0xbb8] sm:$0xff]
      %v841 = vld [vmem:[%s331 + $0xbc0] sm:$0xf]
      %v842 = vld [vmem:[%s331 + $0xbc4] sm:$0xff]
      %v843 = vld [vmem:[%s331 + $0xbcc] sm:$0xf]
      %v844 = vld [vmem:[%s331 + $0xbd0] sm:$0xff]
      %v845 = vld [vmem:[%s331 + $0xbd8] sm:$0xf]
      %v846 = vld [vmem:[%s331 + $0xbdc] sm:$0xff]
      %v847 = vld [vmem:[%s331 + $0xbe4] sm:$0xf]
      %v848 = vld [vmem:[%s331 + $0xbe8] sm:$0xff]
      %v849 = vld [vmem:[%s331 + $0xbf0] sm:$0xf]
      %v850 = vld [vmem:[%s331 + $0xbf4] sm:$0xff]
      %v851 = vld [vmem:[%s331 + $0xbfc] sm:$0xf]
      %v852 = vld [vmem:[%s331 + $0xc00] sm:$0xff]
      %v853 = vld [vmem:[%s331 + $0xc08] sm:$0xf]
      %v854 = vld [vmem:[%s331 + $0xc0c] sm:$0xff]
      %v855 = vld [vmem:[%s331 + $0xc14] sm:$0xf]
      %v856 = vld [vmem:[%s331 + $0xc18] sm:$0xff]
      %v857 = vld [vmem:[%s331 + $0xc20] sm:$0xf]
      %v858 = vld [vmem:[%s331 + $0xc24] sm:$0xff]
      %v859 = vld [vmem:[%s331 + $0xc2c] sm:$0xf]
      %v860 = vld [vmem:[%s331 + $0xc30] sm:$0xff]
      %v861 = vld [vmem:[%s331 + $0xc38] sm:$0xf]
      %v862 = vld [vmem:[%s331 + $0xc3c] sm:$0xff]
      %v863 = vld [vmem:[%s331 + $0xc44] sm:$0xf]
      %v864 = vld [vmem:[%s331 + $0xc48] sm:$0xff]
      %v865 = vld [vmem:[%s331 + $0xc50] sm:$0xf]
      %v866 = vld [vmem:[%s331 + $0xc54] sm:$0xff]
      %v867 = vld [vmem:[%s331 + $0xc5c] sm:$0xf]
      %v868 = vld [vmem:[%s331 + $0xc60] sm:$0xff]
      %v869 = vld [vmem:[%s331 + $0xc68] sm:$0xf]
      %v870 = vld [vmem:[%s331 + $0xc6c] sm:$0xff]
      %v871 = vld [vmem:[%s331 + $0xc74] sm:$0xf]
      %v872 = vld [vmem:[%s331 + $0xc78] sm:$0xff]
      %v873 = vld [vmem:[%s331 + $0xc80] sm:$0xf]
      %v874 = vld [vmem:[%s331 + $0xc84] sm:$0xff]
      %v875 = vld [vmem:[%s331 + $0xc8c] sm:$0xf]
      %v876 = vld [vmem:[%s331 + $0xc90] sm:$0xff]
      %v877 = vld [vmem:[%s331 + $0xc98] sm:$0xf]
      %v878 = vld [vmem:[%s331 + $0xc9c] sm:$0xff]
      %v879 = vld [vmem:[%s331 + $0xca4] sm:$0xf]
      %v880 = vld [vmem:[%s331 + $0xca8] sm:$0xff]
      %v881 = vld [vmem:[%s331 + $0xcb0] sm:$0xf]
      %v882 = vld [vmem:[%s331 + $0xcb4] sm:$0xff]
      %v883 = vld [vmem:[%s331 + $0xcbc] sm:$0xf]
      %v884 = vld [vmem:[%s331 + $0xcc0] sm:$0xff]
      %v885 = vld [vmem:[%s331 + $0xcc8] sm:$0xf]
      %v886 = vld [vmem:[%s331 + $0xccc] sm:$0xff]
      %v887 = vld [vmem:[%s331 + $0xcd4] sm:$0xf]
      %v888 = vld [vmem:[%s331 + $0xcd8] sm:$0xff]
      %v889 = vld [vmem:[%s331 + $0xce0] sm:$0xf]
      %v890 = vld [vmem:[%s331 + $0xce4] sm:$0xff]
      %v891 = vld [vmem:[%s331 + $0xcec] sm:$0xf]
      %v892 = vld [vmem:[%s331 + $0xcf0] sm:$0xff]
      %v893 = vld [vmem:[%s331 + $0xcf8] sm:$0xf]
      %v894 = vld [vmem:[%s331 + $0xcfc] sm:$0xff]
      %v895 = vld [vmem:[%s331 + $0xd04] sm:$0xf]
      %v896 = vld [vmem:[%s331 + $0xd08] sm:$0xff]
      %v897 = vld [vmem:[%s331 + $0xd10] sm:$0xf]
      %v898 = vld [vmem:[%s331 + $0xd14] sm:$0xff]
      %v899 = vld [vmem:[%s331 + $0xd1c] sm:$0xf]
      %v900 = vld [vmem:[%s331 + $0xd20] sm:$0xff]
      %v901 = vld [vmem:[%s331 + $0xd28] sm:$0xf]
      %v902 = vld [vmem:[%s331 + $0xd2c] sm:$0xff]
      %v903 = vld [vmem:[%s331 + $0xd34] sm:$0xf]
      %v904 = vld [vmem:[%s331 + $0xd38] sm:$0xff]
      %v905 = vld [vmem:[%s331 + $0xd40] sm:$0xf]
      %v906 = vld [vmem:[%s331 + $0xd44] sm:$0xff]
      %v907 = vld [vmem:[%s331 + $0xd4c] sm:$0xf]
      %v908 = vld [vmem:[%s331 + $0xd50] sm:$0xff]
      %v909 = vld [vmem:[%s331 + $0xd58] sm:$0xf]
      %v910 = vld [vmem:[%s331 + $0xd5c] sm:$0xff]
      %v911 = vld [vmem:[%s331 + $0xd64] sm:$0xf]
      %v912 = vld [vmem:[%s331 + $0xd68] sm:$0xff]
      %v913 = vld [vmem:[%s331 + $0xd70] sm:$0xf]
      %v914 = vld [vmem:[%s331 + $0xd74] sm:$0xff]
      %v915 = vld [vmem:[%s331 + $0xd7c] sm:$0xf]
      %v916 = vld [vmem:[%s331 + $0xd80] sm:$0xff]
      %v917 = vld [vmem:[%s331 + $0xd88] sm:$0xf]
      %v918 = vld [vmem:[%s331 + $0xd8c] sm:$0xff]
      %v919 = vld [vmem:[%s331 + $0xd94] sm:$0xf]
      %v920 = vld [vmem:[%s331 + $0xd98] sm:$0xff]
      %v921 = vld [vmem:[%s331 + $0xda0] sm:$0xf]
      %v922 = vld [vmem:[%s331 + $0xda4] sm:$0xff]
      %v923 = vld [vmem:[%s331 + $0xdac] sm:$0xf]
      %v924 = vld [vmem:[%s331 + $0xdb0] sm:$0xff]
      %v925 = vld [vmem:[%s331 + $0xdb8] sm:$0xf]
      %v926 = vld [vmem:[%s331 + $0xdbc] sm:$0xff]
      %v927 = vld [vmem:[%s331 + $0xdc4] sm:$0xf]
      %v928 = vld [vmem:[%s331 + $0xdc8] sm:$0xff]
      %v929 = vld [vmem:[%s331 + $0xdd0] sm:$0xf]
      %v930 = vld [vmem:[%s331 + $0xdd4] sm:$0xff]
      %v931 = vld [vmem:[%s331 + $0xddc] sm:$0xf]
      %v932 = vld [vmem:[%s331 + $0xde0] sm:$0xff]
      %v933 = vld [vmem:[%s331 + $0xde8] sm:$0xf]
      %v934 = vld [vmem:[%s331 + $0xdec] sm:$0xff]
      %v935 = vld [vmem:[%s331 + $0xdf4] sm:$0xf]
      %v936 = vld [vmem:[%s331 + $0xdf8] sm:$0xff]
      %v937 = vld [vmem:[%s331 + $0xe00] sm:$0xf]
      %v938 = vld [vmem:[%s331 + $0xe04] sm:$0xff]
      %v939 = vld [vmem:[%s331 + $0xe0c] sm:$0xf]
      %v940 = vld [vmem:[%s331 + $0xe10] sm:$0xff]
      %v941 = vld [vmem:[%s331 + $0xe18] sm:$0xf]
      %v942 = vld [vmem:[%s331 + $0xe1c] sm:$0xff]
      %v943 = vld [vmem:[%s331 + $0xe24] sm:$0xf]
      %v944 = vld [vmem:[%s331 + $0xe28] sm:$0xff]
      %v945 = vld [vmem:[%s331 + $0xe30] sm:$0xf]
      %v946 = vld [vmem:[%s331 + $0xe34] sm:$0xff]
      %v947 = vld [vmem:[%s331 + $0xe3c] sm:$0xf]
      %v948 = vld [vmem:[%s331 + $0xe40] sm:$0xff]
      %v949 = vld [vmem:[%s331 + $0xe48] sm:$0xf]
      %v950 = vld [vmem:[%s331 + $0xe4c] sm:$0xff]
      %v951 = vld [vmem:[%s331 + $0xe54] sm:$0xf]
      %v952 = vld [vmem:[%s331 + $0xe58] sm:$0xff]
      %v953 = vld [vmem:[%s331 + $0xe60] sm:$0xf]
      %v954 = vld [vmem:[%s331 + $0xe64] sm:$0xff]
      %v955 = vld [vmem:[%s331 + $0xe6c] sm:$0xf]
      %v956 = vld [vmem:[%s331 + $0xe70] sm:$0xff]
      %v957 = vld [vmem:[%s331 + $0xe78] sm:$0xf]
      %v958 = vld [vmem:[%s331 + $0xe7c] sm:$0xff]
      %v959 = vld [vmem:[%s331 + $0xe84] sm:$0xf]
      %v960 = vld [vmem:[%s331 + $0xe88] sm:$0xff]
      %v961 = vld [vmem:[%s331 + $0xe90] sm:$0xf]
      %v962 = vld [vmem:[%s331 + $0xe94] sm:$0xff]
      %v963 = vld [vmem:[%s331 + $0xe9c] sm:$0xf]
      %v964 = vld [vmem:[%s331 + $0xea0] sm:$0xff]
      %v965 = vld [vmem:[%s331 + $0xea8] sm:$0xf]
      %v966 = vld [vmem:[%s331 + $0xeac] sm:$0xff]
      %v967 = vld [vmem:[%s331 + $0xeb4] sm:$0xf]
      %v968 = vld [vmem:[%s331 + $0xeb8] sm:$0xff]
      %v969 = vld [vmem:[%s331 + $0xec0] sm:$0xf]
      %v970 = vld [vmem:[%s331 + $0xec4] sm:$0xff]
      %v971 = vld [vmem:[%s331 + $0xecc] sm:$0xf]
      %v972 = vld [vmem:[%s331 + $0xed0] sm:$0xff]
      %v973 = vld [vmem:[%s331 + $0xed8] sm:$0xf]
      %v974 = vld [vmem:[%s331 + $0xedc] sm:$0xff]
      %v975 = vld [vmem:[%s331 + $0xee4] sm:$0xf]
      %v976 = vld [vmem:[%s331 + $0xee8] sm:$0xff]
      %v977 = vld [vmem:[%s331 + $0xef0] sm:$0xf]
      %v978 = vld [vmem:[%s331 + $0xef4] sm:$0xff]
      %v979 = vld [vmem:[%s331 + $0xefc] sm:$0xf]
      %v980 = vld [vmem:[%s331 + $0xf00] sm:$0xff]
      %v981 = vld [vmem:[%s331 + $0xf08] sm:$0xf]
      %v982 = vld [vmem:[%s331 + $0xf0c] sm:$0xff]
      %v983 = vld [vmem:[%s331 + $0xf14] sm:$0xf]
      %v984 = vld [vmem:[%s331 + $0xf18] sm:$0xff]
      %v985 = vld [vmem:[%s331 + $0xf20] sm:$0xf]
      %v986 = vld [vmem:[%s331 + $0xf24] sm:$0xff]
      %v987 = vld [vmem:[%s331 + $0xf2c] sm:$0xf]
      %v988 = vld [vmem:[%s331 + $0xf30] sm:$0xff]
      %v989 = vld [vmem:[%s331 + $0xf38] sm:$0xf]
      %v990 = vld [vmem:[%s331 + $0xf3c] sm:$0xff]
      %v991 = vld [vmem:[%s331 + $0xf44] sm:$0xf]
      %v992 = vld [vmem:[%s331 + $0xf48] sm:$0xff]
      %v993 = vld [vmem:[%s331 + $0xf50] sm:$0xf]
      %v994 = vld [vmem:[%s331 + $0xf54] sm:$0xff]
      %v995 = vld [vmem:[%s331 + $0xf5c] sm:$0xf]
      %v996 = vld [vmem:[%s331 + $0xf60] sm:$0xff]
      %v997 = vld [vmem:[%s331 + $0xf68] sm:$0xf]
      %v998 = vld [vmem:[%s331 + $0xf6c] sm:$0xff]
      %v999 = vld [vmem:[%s331 + $0xf74] sm:$0xf]
      %v1000 = vld [vmem:[%s331 + $0xf78] sm:$0xff]
      %v1001 = vld [vmem:[%s331 + $0xf80] sm:$0xf]
      %v1002 = vld [vmem:[%s331 + $0xf84] sm:$0xff]
      %v1003 = vld [vmem:[%s331 + $0xf8c] sm:$0xf]
      %v1004 = vld [vmem:[%s331 + $0xf90] sm:$0xff]
      %v1005 = vld [vmem:[%s331 + $0xf98] sm:$0xf]
      %v1006 = vld [vmem:[%s331 + $0xf9c] sm:$0xff]
      %v1007 = vld [vmem:[%s331 + $0xfa4] sm:$0xf]
      %v1008 = vld [vmem:[%s331 + $0xfa8] sm:$0xff]
      %v1009 = vld [vmem:[%s331 + $0xfb0] sm:$0xf]
      %v1010 = vld [vmem:[%s331 + $0xfb4] sm:$0xff]
      %v1011 = vld [vmem:[%s331 + $0xfbc] sm:$0xf]
      %v1012 = vld [vmem:[%s331 + $0xfc0] sm:$0xff]
      %v1013 = vld [vmem:[%s331 + $0xfc8] sm:$0xf]
      %v1014 = vld [vmem:[%s331 + $0xfcc] sm:$0xff]
      %v1015 = vld [vmem:[%s331 + $0xfd4] sm:$0xf]
      %v1016 = vld [vmem:[%s331 + $0xfd8] sm:$0xff]
      %v1017 = vld [vmem:[%s331 + $0xfe0] sm:$0xf]
      %v1018 = vld [vmem:[%s331 + $0xfe4] sm:$0xff]
      %v1019 = vld [vmem:[%s331 + $0xfec] sm:$0xf]
      %v1020 = vld [vmem:[%s331 + $0xff0] sm:$0xff]
      %v1021 = vld [vmem:[%s331 + $0xff8] sm:$0xf]
      %v1022 = vld [vmem:[%s331 + $0xffc] sm:$0xff]
      %v1023 = vld [vmem:[%s331 + $0x1004] sm:$0xf]
      %v1024 = vld [vmem:[%s331 + $0x1008] sm:$0xff]
      %v1025 = vld [vmem:[%s331 + $0x1010] sm:$0xf]
      %v1026 = vld [vmem:[%s331 + $0x1014] sm:$0xff]
      %v1027 = vld [vmem:[%s331 + $0x101c] sm:$0xf]
      %v1028 = vld [vmem:[%s331 + $0x1020] sm:$0xff]
      %v1029 = vld [vmem:[%s331 + $0x1028] sm:$0xf]
      %v1030 = vld [vmem:[%s331 + $0x102c] sm:$0xff]
      %v1031 = vld [vmem:[%s331 + $0x1034] sm:$0xf]
      %v1032 = vld [vmem:[%s331 + $0x1038] sm:$0xff]
      %v1033 = vld [vmem:[%s331 + $0x1040] sm:$0xf]
      %v1034 = vld [vmem:[%s331 + $0x1044] sm:$0xff]
      %v1035 = vld [vmem:[%s331 + $0x104c] sm:$0xf]
      %v1036 = vld [vmem:[%s331 + $0x1050] sm:$0xff]
      %v1037 = vld [vmem:[%s331 + $0x1058] sm:$0xf]
      %v1038 = vld [vmem:[%s331 + $0x105c] sm:$0xff]
      %v1039 = vld [vmem:[%s331 + $0x1064] sm:$0xf]
      %v1040 = vld [vmem:[%s331 + $0x1068] sm:$0xff]
      %v1041 = vld [vmem:[%s331 + $0x1070] sm:$0xf]
      %v1042 = vld [vmem:[%s331 + $0x1074] sm:$0xff]
      %v1043 = vld [vmem:[%s331 + $0x107c] sm:$0xf]
      %v1044 = vld [vmem:[%s331 + $0x1080] sm:$0xff]
      %v1045 = vld [vmem:[%s331 + $0x1088] sm:$0xf]
      %v1046 = vld [vmem:[%s331 + $0x108c] sm:$0xff]
      %v1047 = vld [vmem:[%s331 + $0x1094] sm:$0xf]
      %v1048 = vld [vmem:[%s331 + $0x1098] sm:$0xff]
      %v1049 = vld [vmem:[%s331 + $0x10a0] sm:$0xf]
      %v1050 = vld [vmem:[%s331 + $0x10a4] sm:$0xff]
      %v1051 = vld [vmem:[%s331 + $0x10ac] sm:$0xf]
      %v1052 = vld [vmem:[%s331 + $0x10b0] sm:$0xff]
      %v1053 = vld [vmem:[%s331 + $0x10b8] sm:$0xf]
      %v1054 = vld [vmem:[%s331 + $0x10bc] sm:$0xff]
      %v1055 = vld [vmem:[%s331 + $0x10c4] sm:$0xf]
      %v1056 = vld [vmem:[%s331 + $0x10c8] sm:$0xff]
      %v1057 = vld [vmem:[%s331 + $0x10d0] sm:$0xf]
      %v1058 = vld [vmem:[%s331 + $0x10d4] sm:$0xff]
      %v1059 = vld [vmem:[%s331 + $0x10dc] sm:$0xf]
      %v1060 = vld [vmem:[%s331 + $0x10e0] sm:$0xff]
      %v1061 = vld [vmem:[%s331 + $0x10e8] sm:$0xf]
      %v1062 = vld [vmem:[%s331 + $0x10ec] sm:$0xff]
      %v1063 = vld [vmem:[%s331 + $0x10f4] sm:$0xf]
      %v1064 = vld [vmem:[%s331 + $0x10f8] sm:$0xff]
      %v1065 = vld [vmem:[%s331 + $0x1100] sm:$0xf]
      %v1066 = vld [vmem:[%s331 + $0x1104] sm:$0xff]
      %v1067 = vld [vmem:[%s331 + $0x110c] sm:$0xf]
      %v1068 = vld [vmem:[%s331 + $0x1110] sm:$0xff]
      %v1069 = vld [vmem:[%s331 + $0x1118] sm:$0xf]
      %v1070 = vld [vmem:[%s331 + $0x111c] sm:$0xff]
      %v1071 = vld [vmem:[%s331 + $0x1124] sm:$0xf]
      %v1072 = vld [vmem:[%s331 + $0x1128] sm:$0xff]
      %v1073 = vld [vmem:[%s331 + $0x1130] sm:$0xf]
      %v1074 = vld [vmem:[%s331 + $0x1134] sm:$0xff]
      %v1075 = vld [vmem:[%s331 + $0x113c] sm:$0xf]
      %v1076 = vld [vmem:[%s331 + $0x1140] sm:$0xff]
      %v1077 = vld [vmem:[%s331 + $0x1148] sm:$0xf]
      %v1078 = vld [vmem:[%s331 + $0x114c] sm:$0xff]
      %v1079 = vld [vmem:[%s331 + $0x1154] sm:$0xf]
      %v1080 = vld [vmem:[%s331 + $0x1158] sm:$0xff]
      %v1081 = vld [vmem:[%s331 + $0x1160] sm:$0xf]
      %v1082 = vld [vmem:[%s331 + $0x1164] sm:$0xff]
      %v1083 = vld [vmem:[%s331 + $0x116c] sm:$0xf]
      %v1084 = vld [vmem:[%s331 + $0x1170] sm:$0xff]
      %v1085 = vld [vmem:[%s331 + $0x1178] sm:$0xf]
      %v1086 = vld [vmem:[%s331 + $0x117c] sm:$0xff]
      %v1087 = vld [vmem:[%s331 + $0x1184] sm:$0xf]
      %v1088 = vld [vmem:[%s331 + $0x1188] sm:$0xff]
      %v1089 = vld [vmem:[%s331 + $0x1190] sm:$0xf]
      %v1090 = vld [vmem:[%s331 + $0x1194] sm:$0xff]
      %v1091 = vld [vmem:[%s331 + $0x119c] sm:$0xf]
      %v1092 = vld [vmem:[%s331 + $0x11a0] sm:$0xff]
      %v1093 = vld [vmem:[%s331 + $0x11a8] sm:$0xf]
      %v1094 = vld [vmem:[%s331 + $0x11ac] sm:$0xff]
      %v1095 = vld [vmem:[%s331 + $0x11b4] sm:$0xf]
      %v1096 = vld [vmem:[%s331 + $0x11b8] sm:$0xff]
      %v1097 = vld [vmem:[%s331 + $0x11c0] sm:$0xf]
      %v1098 = vld [vmem:[%s331 + $0x11c4] sm:$0xff]
      %v1099 = vld [vmem:[%s331 + $0x11cc] sm:$0xf]
      %v1100 = vld [vmem:[%s331 + $0x11d0] sm:$0xff]
      %v1101 = vld [vmem:[%s331 + $0x11d8] sm:$0xf]
      %v1102 = vld [vmem:[%s331 + $0x11dc] sm:$0xff]
      %v1103 = vld [vmem:[%s331 + $0x11e4] sm:$0xf]
      %v1104 = vld [vmem:[%s331 + $0x11e8] sm:$0xff]
      %v1105 = vld [vmem:[%s331 + $0x11f0] sm:$0xf]
      %v1106 = vld [vmem:[%s331 + $0x11f4] sm:$0xff]
      %v1107 = vld [vmem:[%s331 + $0x11fc] sm:$0xf]
      %v1108 = vld [vmem:[%s1] sm:$0xf]
      %v1109 = vld [vmem:[%s1 + $0x4] sm:$0xf]
      %v1110 = vld [vmem:[%s1 + $0x8] sm:$0xf]
      %v1111 = vld [vmem:[%s1 + $0xc] sm:$0xf]
      %v1112 = vld [vmem:[%s1 + $0x10] sm:$0xf]
      %v1113 = vld [vmem:[%s1 + $0x14] sm:$0xf]
      %v1114 = vld [vmem:[%s1 + $0x18] sm:$0xf]
      %v1115 = vld [vmem:[%s1 + $0x1c] sm:$0xf]
      %v1116 = vld [vmem:[%s1 + $0x20] sm:$0xf]
      %v1117 = vld [vmem:[%s1 + $0x24] sm:$0xf]
      %v1118 = vld [vmem:[%s1 + $0x28] sm:$0xf]
      %v1119 = vld [vmem:[%s1 + $0x2c] sm:$0xf]
      %v1120 = vld [vmem:[%s1 + $0x30] sm:$0xf]
      %v1121 = vld [vmem:[%s1 + $0x34] sm:$0xf]
      %v1122 = vld [vmem:[%s1 + $0x38] sm:$0xf]
      %v1123 = vld [vmem:[%s1 + $0x3c] sm:$0xf]
      %v1124 = vld [vmem:[%s1 + $0x40] sm:$0xf]
      %v1125 = vld [vmem:[%s1 + $0x44] sm:$0xf]
      %v1126 = vld [vmem:[%s1 + $0x48] sm:$0xf]
      %v1127 = vld [vmem:[%s1 + $0x4c] sm:$0xf]
      %v1128 = vld [vmem:[%s1 + $0x50] sm:$0xf]
      %v1129 = vld [vmem:[%s1 + $0x54] sm:$0xf]
      %v1130 = vld [vmem:[%s1 + $0x58] sm:$0xf]
      %v1131 = vld [vmem:[%s1 + $0x5c] sm:$0xf]
      %v1132 = vld [vmem:[%s1 + $0x60] sm:$0xf]
      %v1133 = vld [vmem:[%s1 + $0x64] sm:$0xf]
      %v1134 = vld [vmem:[%s1 + $0x68] sm:$0xf]
      %v1135 = vld [vmem:[%s1 + $0x6c] sm:$0xf]
      %v1136 = vld [vmem:[%s1 + $0x70] sm:$0xf]
      %v1137 = vld [vmem:[%s1 + $0x74] sm:$0xf]
      %v1138 = vld [vmem:[%s1 + $0x78] sm:$0xf]
      %v1139 = vld [vmem:[%s1 + $0x7c] sm:$0xf]
      %v1140 = vld [vmem:[%s1 + $0x80] sm:$0xf]
      %v1141 = vld [vmem:[%s1 + $0x84] sm:$0xf]
      %v1142 = vld [vmem:[%s1 + $0x88] sm:$0xf]
      %v1143 = vld [vmem:[%s1 + $0x8c] sm:$0xf]
      %v1144 = vld [vmem:[%s1 + $0x90] sm:$0xf]
      %v1145 = vld [vmem:[%s1 + $0x94] sm:$0x3]
      %v1914 = vunpack.c.l.b16 %v340
      %v1915 = vunpack.c.h.b16 %v340
      %v1916 = vunpack.c.l.b16 %v341
      %v1917 = vunpack.c.l.b16 %v342
      %v1918 = vunpack.c.h.b16 %v342
      %v1919 = vunpack.c.l.b16 %v343
      %v1920 = vunpack.c.l.b16 %v344
      %v1921 = vunpack.c.h.b16 %v344
      %v1922 = vunpack.c.l.b16 %v345
      %v1923 = vunpack.c.l.b16 %v346
      %v1924 = vunpack.c.h.b16 %v346
      %v1925 = vunpack.c.l.b16 %v347
      %v1926 = vunpack.c.l.b16 %v348
      %v1927 = vunpack.c.h.b16 %v348
      %v1928 = vunpack.c.l.b16 %v349
      %v1929 = vunpack.c.l.b16 %v350
      %v1930 = vunpack.c.h.b16 %v350
      %v1931 = vunpack.c.l.b16 %v351
      %v1932 = vunpack.c.l.b16 %v352
      %v1933 = vunpack.c.h.b16 %v352
      %v1934 = vunpack.c.l.b16 %v353
      %v1935 = vunpack.c.l.b16 %v354
      %v1936 = vunpack.c.h.b16 %v354
      %v1937 = vunpack.c.l.b16 %v355
      %v1938 = vunpack.c.l.b16 %v356
      %v1939 = vunpack.c.h.b16 %v356
      %v1940 = vunpack.c.l.b16 %v357
      %v1941 = vunpack.c.l.b16 %v358
      %v1942 = vunpack.c.h.b16 %v358
      %v1943 = vunpack.c.l.b16 %v359
      %v1944 = vunpack.c.l.b16 %v360
      %v1945 = vunpack.c.h.b16 %v360
      %v1946 = vunpack.c.l.b16 %v361
      %v1947 = vunpack.c.l.b16 %v362
      %v1948 = vunpack.c.h.b16 %v362
      %v1949 = vunpack.c.l.b16 %v363
      %v1950 = vunpack.c.l.b16 %v364
      %v1951 = vunpack.c.h.b16 %v364
      %v1952 = vunpack.c.l.b16 %v365
      %v1953 = vunpack.c.l.b16 %v366
      %v1954 = vunpack.c.h.b16 %v366
      %v1955 = vunpack.c.l.b16 %v367
      %v1956 = vunpack.c.l.b16 %v368
      %v1957 = vunpack.c.h.b16 %v368
      %v1958 = vunpack.c.l.b16 %v369
      %v1959 = vunpack.c.l.b16 %v370
      %v1960 = vunpack.c.h.b16 %v370
      %v1961 = vunpack.c.l.b16 %v371
      %v1962 = vunpack.c.l.b16 %v372
      %v1963 = vunpack.c.h.b16 %v372
      %v1964 = vunpack.c.l.b16 %v373
      %v1965 = vunpack.c.l.b16 %v374
      %v1966 = vunpack.c.h.b16 %v374
      %v1967 = vunpack.c.l.b16 %v375
      %v1968 = vunpack.c.l.b16 %v376
      %v1969 = vunpack.c.h.b16 %v376
      %v1970 = vunpack.c.l.b16 %v377
      %v1971 = vunpack.c.l.b16 %v378
      %v1972 = vunpack.c.h.b16 %v378
      %v1973 = vunpack.c.l.b16 %v379
      %v1974 = vunpack.c.l.b16 %v380
      %v1975 = vunpack.c.h.b16 %v380
      %v1976 = vunpack.c.l.b16 %v381
      %v1977 = vunpack.c.l.b16 %v382
      %v1978 = vunpack.c.h.b16 %v382
      %v1979 = vunpack.c.l.b16 %v383
      %v1980 = vunpack.c.l.b16 %v384
      %v1981 = vunpack.c.h.b16 %v384
      %v1982 = vunpack.c.l.b16 %v385
      %v1983 = vunpack.c.l.b16 %v386
      %v1984 = vunpack.c.h.b16 %v386
      %v1985 = vunpack.c.l.b16 %v387
      %v1986 = vunpack.c.l.b16 %v388
      %v1987 = vunpack.c.h.b16 %v388
      %v1988 = vunpack.c.l.b16 %v389
      %v1989 = vunpack.c.l.b16 %v390
      %v1990 = vunpack.c.h.b16 %v390
      %v1991 = vunpack.c.l.b16 %v391
      %v1992 = vunpack.c.l.b16 %v392
      %v1993 = vunpack.c.h.b16 %v392
      %v1994 = vunpack.c.l.b16 %v393
      %v1995 = vunpack.c.l.b16 %v394
      %v1996 = vunpack.c.h.b16 %v394
      %v1997 = vunpack.c.l.b16 %v395
      %v1998 = vunpack.c.l.b16 %v396
      %v1999 = vunpack.c.h.b16 %v396
      %v2000 = vunpack.c.l.b16 %v397
      %v2001 = vunpack.c.l.b16 %v398
      %v2002 = vunpack.c.h.b16 %v398
      %v2003 = vunpack.c.l.b16 %v399
      %v2004 = vunpack.c.l.b16 %v400
      %v2005 = vunpack.c.h.b16 %v400
      %v2006 = vunpack.c.l.b16 %v401
      %v2007 = vunpack.c.l.b16 %v402
      %v2008 = vunpack.c.h.b16 %v402
      %v2009 = vunpack.c.l.b16 %v403
      %v2010 = vunpack.c.l.b16 %v404
      %v2011 = vunpack.c.h.b16 %v404
      %v2012 = vunpack.c.l.b16 %v405
      %v2013 = vunpack.c.l.b16 %v406
      %v2014 = vunpack.c.h.b16 %v406
      %v2015 = vunpack.c.l.b16 %v407
      %v2016 = vunpack.c.l.b16 %v408
      %v2017 = vunpack.c.h.b16 %v408
      %v2018 = vunpack.c.l.b16 %v409
      %v2019 = vunpack.c.l.b16 %v410
      %v2020 = vunpack.c.h.b16 %v410
      %v2021 = vunpack.c.l.b16 %v411
      %v2022 = vunpack.c.l.b16 %v412
      %v2023 = vunpack.c.h.b16 %v412
      %v2024 = vunpack.c.l.b16 %v413
      %v2025 = vunpack.c.l.b16 %v414
      %v2026 = vunpack.c.h.b16 %v414
      %v2027 = vunpack.c.l.b16 %v415
      %v2028 = vunpack.c.l.b16 %v416
      %v2029 = vunpack.c.h.b16 %v416
      %v2030 = vunpack.c.l.b16 %v417
      %v2031 = vunpack.c.l.b16 %v418
      %v2032 = vunpack.c.h.b16 %v418
      %v2033 = vunpack.c.l.b16 %v419
      %v2034 = vunpack.c.l.b16 %v420
      %v2035 = vunpack.c.h.b16 %v420
      %v2036 = vunpack.c.l.b16 %v421
      %v2037 = vunpack.c.l.b16 %v422
      %v2038 = vunpack.c.h.b16 %v422
      %v2039 = vunpack.c.l.b16 %v423
      %v2040 = vunpack.c.l.b16 %v424
      %v2041 = vunpack.c.h.b16 %v424
      %v2042 = vunpack.c.l.b16 %v425
      %v2043 = vunpack.c.l.b16 %v426
      %v2044 = vunpack.c.h.b16 %v426
      %v2045 = vunpack.c.l.b16 %v427
      %v2046 = vunpack.c.l.b16 %v428
      %v2047 = vunpack.c.h.b16 %v428
      %v2048 = vunpack.c.l.b16 %v429
      %v2049 = vunpack.c.l.b16 %v430
      %v2050 = vunpack.c.h.b16 %v430
      %v2051 = vunpack.c.l.b16 %v431
      %v2052 = vunpack.c.l.b16 %v432
      %v2053 = vunpack.c.h.b16 %v432
      %v2054 = vunpack.c.l.b16 %v433
      %v2055 = vunpack.c.l.b16 %v434
      %v2056 = vunpack.c.h.b16 %v434
      %v2057 = vunpack.c.l.b16 %v435
      %v2058 = vunpack.c.l.b16 %v436
      %v2059 = vunpack.c.h.b16 %v436
      %v2060 = vunpack.c.l.b16 %v437
      %v2061 = vunpack.c.l.b16 %v438
      %v2062 = vunpack.c.h.b16 %v438
      %v2063 = vunpack.c.l.b16 %v439
      %v2064 = vunpack.c.l.b16 %v440
      %v2065 = vunpack.c.h.b16 %v440
      %v2066 = vunpack.c.l.b16 %v441
      %v2067 = vunpack.c.l.b16 %v442
      %v2068 = vunpack.c.h.b16 %v442
      %v2069 = vunpack.c.l.b16 %v443
      %v2070 = vunpack.c.l.b16 %v444
      %v2071 = vunpack.c.h.b16 %v444
      %v2072 = vunpack.c.l.b16 %v445
      %v2073 = vunpack.c.l.b16 %v446
      %v2074 = vunpack.c.h.b16 %v446
      %v2075 = vunpack.c.l.b16 %v447
      %v2076 = vunpack.c.l.b16 %v448
      %v2077 = vunpack.c.h.b16 %v448
      %v2078 = vunpack.c.l.b16 %v449
      %v2079 = vunpack.c.l.b16 %v450
      %v2080 = vunpack.c.h.b16 %v450
      %v2081 = vunpack.c.l.b16 %v451
      %v2082 = vunpack.c.l.b16 %v452
      %v2083 = vunpack.c.h.b16 %v452
      %v2084 = vunpack.c.l.b16 %v453
      %v2085 = vunpack.c.l.b16 %v454
      %v2086 = vunpack.c.h.b16 %v454
      %v2087 = vunpack.c.l.b16 %v455
      %v2088 = vunpack.c.l.b16 %v456
      %v2089 = vunpack.c.h.b16 %v456
      %v2090 = vunpack.c.l.b16 %v457
      %v2091 = vunpack.c.l.b16 %v458
      %v2092 = vunpack.c.h.b16 %v458
      %v2093 = vunpack.c.l.b16 %v459
      %v2094 = vunpack.c.l.b16 %v460
      %v2095 = vunpack.c.h.b16 %v460
      %v2096 = vunpack.c.l.b16 %v461
      %v2097 = vunpack.c.l.b16 %v462
      %v2098 = vunpack.c.h.b16 %v462
      %v2099 = vunpack.c.l.b16 %v463
      %v2100 = vunpack.c.l.b16 %v464
      %v2101 = vunpack.c.h.b16 %v464
      %v2102 = vunpack.c.l.b16 %v465
      %v2103 = vunpack.c.l.b16 %v466
      %v2104 = vunpack.c.h.b16 %v466
      %v2105 = vunpack.c.l.b16 %v467
      %v2106 = vunpack.c.l.b16 %v468
      %v2107 = vunpack.c.h.b16 %v468
      %v2108 = vunpack.c.l.b16 %v469
      %v2109 = vunpack.c.l.b16 %v470
      %v2110 = vunpack.c.h.b16 %v470
      %v2111 = vunpack.c.l.b16 %v471
      %v2112 = vunpack.c.l.b16 %v472
      %v2113 = vunpack.c.h.b16 %v472
      %v2114 = vunpack.c.l.b16 %v473
      %v2115 = vunpack.c.l.b16 %v474
      %v2116 = vunpack.c.h.b16 %v474
      %v2117 = vunpack.c.l.b16 %v475
      %v2118 = vunpack.c.l.b16 %v476
      %v2119 = vunpack.c.h.b16 %v476
      %v2120 = vunpack.c.l.b16 %v477
      %v2121 = vunpack.c.l.b16 %v478
      %v2122 = vunpack.c.h.b16 %v478
      %v2123 = vunpack.c.l.b16 %v479
      %v2124 = vunpack.c.l.b16 %v480
      %v2125 = vunpack.c.h.b16 %v480
      %v2126 = vunpack.c.l.b16 %v481
      %v2127 = vunpack.c.l.b16 %v482
      %v2128 = vunpack.c.h.b16 %v482
      %v2129 = vunpack.c.l.b16 %v483
      %v2130 = vunpack.c.l.b16 %v484
      %v2131 = vunpack.c.h.b16 %v484
      %v2132 = vunpack.c.l.b16 %v485
      %v2133 = vunpack.c.l.b16 %v486
      %v2134 = vunpack.c.h.b16 %v486
      %v2135 = vunpack.c.l.b16 %v487
      %v2136 = vunpack.c.l.b16 %v488
      %v2137 = vunpack.c.h.b16 %v488
      %v2138 = vunpack.c.l.b16 %v489
      %v2139 = vunpack.c.l.b16 %v490
      %v2140 = vunpack.c.h.b16 %v490
      %v2141 = vunpack.c.l.b16 %v491
      %v2142 = vunpack.c.l.b16 %v492
      %v2143 = vunpack.c.h.b16 %v492
      %v2144 = vunpack.c.l.b16 %v493
      %v2145 = vunpack.c.l.b16 %v494
      %v2146 = vunpack.c.h.b16 %v494
      %v2147 = vunpack.c.l.b16 %v495
      %v2148 = vunpack.c.l.b16 %v496
      %v2149 = vunpack.c.h.b16 %v496
      %v2150 = vunpack.c.l.b16 %v497
      %v2151 = vunpack.c.l.b16 %v498
      %v2152 = vunpack.c.h.b16 %v498
      %v2153 = vunpack.c.l.b16 %v499
      %v2154 = vunpack.c.l.b16 %v500
      %v2155 = vunpack.c.h.b16 %v500
      %v2156 = vunpack.c.l.b16 %v501
      %v2157 = vunpack.c.l.b16 %v502
      %v2158 = vunpack.c.h.b16 %v502
      %v2159 = vunpack.c.l.b16 %v503
      %v2160 = vunpack.c.l.b16 %v504
      %v2161 = vunpack.c.h.b16 %v504
      %v2162 = vunpack.c.l.b16 %v505
      %v2163 = vunpack.c.l.b16 %v506
      %v2164 = vunpack.c.h.b16 %v506
      %v2165 = vunpack.c.l.b16 %v507
      %v2166 = vunpack.c.l.b16 %v508
      %v2167 = vunpack.c.h.b16 %v508
      %v2168 = vunpack.c.l.b16 %v509
      %v2169 = vunpack.c.l.b16 %v510
      %v2170 = vunpack.c.h.b16 %v510
      %v2171 = vunpack.c.l.b16 %v511
      %v2172 = vunpack.c.l.b16 %v512
      %v2173 = vunpack.c.h.b16 %v512
      %v2174 = vunpack.c.l.b16 %v513
      %v2175 = vunpack.c.l.b16 %v514
      %v2176 = vunpack.c.h.b16 %v514
      %v2177 = vunpack.c.l.b16 %v515
      %v2178 = vunpack.c.l.b16 %v516
      %v2179 = vunpack.c.h.b16 %v516
      %v2180 = vunpack.c.l.b16 %v517
      %v2181 = vunpack.c.l.b16 %v518
      %v2182 = vunpack.c.h.b16 %v518
      %v2183 = vunpack.c.l.b16 %v519
      %v2184 = vunpack.c.l.b16 %v520
      %v2185 = vunpack.c.h.b16 %v520
      %v2186 = vunpack.c.l.b16 %v521
      %v2187 = vunpack.c.l.b16 %v522
      %v2188 = vunpack.c.h.b16 %v522
      %v2189 = vunpack.c.l.b16 %v523
      %v2190 = vunpack.c.l.b16 %v524
      %v2191 = vunpack.c.h.b16 %v524
      %v2192 = vunpack.c.l.b16 %v525
      %v2193 = vunpack.c.l.b16 %v526
      %v2194 = vunpack.c.h.b16 %v526
      %v2195 = vunpack.c.l.b16 %v527
      %v2196 = vunpack.c.l.b16 %v528
      %v2197 = vunpack.c.h.b16 %v528
      %v2198 = vunpack.c.l.b16 %v529
      %v2199 = vunpack.c.l.b16 %v530
      %v2200 = vunpack.c.h.b16 %v530
      %v2201 = vunpack.c.l.b16 %v531
      %v2202 = vunpack.c.l.b16 %v532
      %v2203 = vunpack.c.h.b16 %v532
      %v2204 = vunpack.c.l.b16 %v533
      %v2205 = vunpack.c.l.b16 %v534
      %v2206 = vunpack.c.h.b16 %v534
      %v2207 = vunpack.c.l.b16 %v535
      %v2208 = vunpack.c.l.b16 %v536
      %v2209 = vunpack.c.h.b16 %v536
      %v2210 = vunpack.c.l.b16 %v537
      %v2211 = vunpack.c.l.b16 %v538
      %v2212 = vunpack.c.h.b16 %v538
      %v2213 = vunpack.c.l.b16 %v539
      %v2214 = vunpack.c.l.b16 %v540
      %v2215 = vunpack.c.h.b16 %v540
      %v2216 = vunpack.c.l.b16 %v541
      %v2217 = vunpack.c.l.b16 %v542
      %v2218 = vunpack.c.h.b16 %v542
      %v2219 = vunpack.c.l.b16 %v543
      %v2220 = vunpack.c.l.b16 %v544
      %v2221 = vunpack.c.h.b16 %v544
      %v2222 = vunpack.c.l.b16 %v545
      %v2223 = vunpack.c.l.b16 %v546
      %v2224 = vunpack.c.h.b16 %v546
      %v2225 = vunpack.c.l.b16 %v547
      %v2226 = vunpack.c.l.b16 %v548
      %v2227 = vunpack.c.h.b16 %v548
      %v2228 = vunpack.c.l.b16 %v549
      %v2229 = vunpack.c.l.b16 %v550
      %v2230 = vunpack.c.h.b16 %v550
      %v2231 = vunpack.c.l.b16 %v551
      %v2232 = vunpack.c.l.b16 %v552
      %v2233 = vunpack.c.h.b16 %v552
      %v2234 = vunpack.c.l.b16 %v553
      %v2235 = vunpack.c.l.b16 %v554
      %v2236 = vunpack.c.h.b16 %v554
      %v2237 = vunpack.c.l.b16 %v555
      %v2238 = vunpack.c.l.b16 %v556
      %v2239 = vunpack.c.h.b16 %v556
      %v2240 = vunpack.c.l.b16 %v557
      %v2241 = vunpack.c.l.b16 %v558
      %v2242 = vunpack.c.h.b16 %v558
      %v2243 = vunpack.c.l.b16 %v559
      %v2244 = vunpack.c.l.b16 %v560
      %v2245 = vunpack.c.h.b16 %v560
      %v2246 = vunpack.c.l.b16 %v561
      %v2247 = vunpack.c.l.b16 %v562
      %v2248 = vunpack.c.h.b16 %v562
      %v2249 = vunpack.c.l.b16 %v563
      %v2250 = vunpack.c.l.b16 %v564
      %v2251 = vunpack.c.h.b16 %v564
      %v2252 = vunpack.c.l.b16 %v565
      %v2253 = vunpack.c.l.b16 %v566
      %v2254 = vunpack.c.h.b16 %v566
      %v2255 = vunpack.c.l.b16 %v567
      %v2256 = vunpack.c.l.b16 %v568
      %v2257 = vunpack.c.h.b16 %v568
      %v2258 = vunpack.c.l.b16 %v569
      %v2259 = vunpack.c.l.b16 %v570
      %v2260 = vunpack.c.h.b16 %v570
      %v2261 = vunpack.c.l.b16 %v571
      %v2262 = vunpack.c.l.b16 %v572
      %v2263 = vunpack.c.h.b16 %v572
      %v2264 = vunpack.c.l.b16 %v573
      %v2265 = vunpack.c.l.b16 %v574
      %v2266 = vunpack.c.h.b16 %v574
      %v2267 = vunpack.c.l.b16 %v575
      %v2268 = vunpack.c.l.b16 %v576
      %v2269 = vunpack.c.h.b16 %v576
      %v2270 = vunpack.c.l.b16 %v577
      %v2271 = vunpack.c.l.b16 %v578
      %v2272 = vunpack.c.h.b16 %v578
      %v2273 = vunpack.c.l.b16 %v579
      %v2274 = vunpack.c.l.b16 %v580
      %v2275 = vunpack.c.h.b16 %v580
      %v2276 = vunpack.c.l.b16 %v581
      %v2277 = vunpack.c.l.b16 %v582
      %v2278 = vunpack.c.h.b16 %v582
      %v2279 = vunpack.c.l.b16 %v583
      %v2280 = vunpack.c.l.b16 %v584
      %v2281 = vunpack.c.h.b16 %v584
      %v2282 = vunpack.c.l.b16 %v585
      %v2283 = vunpack.c.l.b16 %v586
      %v2284 = vunpack.c.h.b16 %v586
      %v2285 = vunpack.c.l.b16 %v587
      %v2286 = vunpack.c.l.b16 %v588
      %v2287 = vunpack.c.h.b16 %v588
      %v2288 = vunpack.c.l.b16 %v589
      %v2289 = vunpack.c.l.b16 %v590
      %v2290 = vunpack.c.h.b16 %v590
      %v2291 = vunpack.c.l.b16 %v591
      %v2292 = vunpack.c.l.b16 %v592
      %v2293 = vunpack.c.h.b16 %v592
      %v2294 = vunpack.c.l.b16 %v593
      %v2295 = vunpack.c.l.b16 %v594
      %v2296 = vunpack.c.h.b16 %v594
      %v2297 = vunpack.c.l.b16 %v595
      %v2298 = vunpack.c.l.b16 %v596
      %v2299 = vunpack.c.h.b16 %v596
      %v2300 = vunpack.c.l.b16 %v597
      %v2301 = vunpack.c.l.b16 %v598
      %v2302 = vunpack.c.h.b16 %v598
      %v2303 = vunpack.c.l.b16 %v599
      %v2304 = vunpack.c.l.b16 %v600
      %v2305 = vunpack.c.h.b16 %v600
      %v2306 = vunpack.c.l.b16 %v601
      %v2307 = vunpack.c.l.b16 %v602
      %v2308 = vunpack.c.h.b16 %v602
      %v2309 = vunpack.c.l.b16 %v603
      %v2310 = vunpack.c.l.b16 %v604
      %v2311 = vunpack.c.h.b16 %v604
      %v2312 = vunpack.c.l.b16 %v605
      %v2313 = vunpack.c.l.b16 %v606
      %v2314 = vunpack.c.h.b16 %v606
      %v2315 = vunpack.c.l.b16 %v607
      %v2316 = vunpack.c.l.b16 %v608
      %v2317 = vunpack.c.h.b16 %v608
      %v2318 = vunpack.c.l.b16 %v609
      %v2319 = vunpack.c.l.b16 %v610
      %v2320 = vunpack.c.h.b16 %v610
      %v2321 = vunpack.c.l.b16 %v611
      %v2322 = vunpack.c.l.b16 %v612
      %v2323 = vunpack.c.h.b16 %v612
      %v2324 = vunpack.c.l.b16 %v613
      %v2325 = vunpack.c.l.b16 %v614
      %v2326 = vunpack.c.h.b16 %v614
      %v2327 = vunpack.c.l.b16 %v615
      %v2328 = vunpack.c.l.b16 %v616
      %v2329 = vunpack.c.h.b16 %v616
      %v2330 = vunpack.c.l.b16 %v617
      %v2331 = vunpack.c.l.b16 %v618
      %v2332 = vunpack.c.h.b16 %v618
      %v2333 = vunpack.c.l.b16 %v619
      %v2334 = vunpack.c.l.b16 %v620
      %v2335 = vunpack.c.h.b16 %v620
      %v2336 = vunpack.c.l.b16 %v621
      %v2337 = vunpack.c.l.b16 %v622
      %v2338 = vunpack.c.h.b16 %v622
      %v2339 = vunpack.c.l.b16 %v623
      %v2340 = vunpack.c.l.b16 %v624
      %v2341 = vunpack.c.h.b16 %v624
      %v2342 = vunpack.c.l.b16 %v625
      %v2343 = vunpack.c.l.b16 %v626
      %v2344 = vunpack.c.h.b16 %v626
      %v2345 = vunpack.c.l.b16 %v627
      %v2346 = vunpack.c.l.b16 %v628
      %v2347 = vunpack.c.h.b16 %v628
      %v2348 = vunpack.c.l.b16 %v629
      %v2349 = vunpack.c.l.b16 %v630
      %v2350 = vunpack.c.h.b16 %v630
      %v2351 = vunpack.c.l.b16 %v631
      %v2352 = vunpack.c.l.b16 %v632
      %v2353 = vunpack.c.h.b16 %v632
      %v2354 = vunpack.c.l.b16 %v633
      %v2355 = vunpack.c.l.b16 %v634
      %v2356 = vunpack.c.h.b16 %v634
      %v2357 = vunpack.c.l.b16 %v635
      %v2358 = vunpack.c.l.b16 %v636
      %v2359 = vunpack.c.h.b16 %v636
      %v2360 = vunpack.c.l.b16 %v637
      %v2361 = vunpack.c.l.b16 %v638
      %v2362 = vunpack.c.h.b16 %v638
      %v2363 = vunpack.c.l.b16 %v639
      %v2364 = vunpack.c.l.b16 %v640
      %v2365 = vunpack.c.h.b16 %v640
      %v2366 = vunpack.c.l.b16 %v641
      %v2367 = vunpack.c.l.b16 %v642
      %v2368 = vunpack.c.h.b16 %v642
      %v2369 = vunpack.c.l.b16 %v643
      %v2370 = vunpack.c.l.b16 %v644
      %v2371 = vunpack.c.h.b16 %v644
      %v2372 = vunpack.c.l.b16 %v645
      %v2373 = vunpack.c.l.b16 %v646
      %v2374 = vunpack.c.h.b16 %v646
      %v2375 = vunpack.c.l.b16 %v647
      %v2376 = vunpack.c.l.b16 %v648
      %v2377 = vunpack.c.h.b16 %v648
      %v2378 = vunpack.c.l.b16 %v649
      %v2379 = vunpack.c.l.b16 %v650
      %v2380 = vunpack.c.h.b16 %v650
      %v2381 = vunpack.c.l.b16 %v651
      %v2382 = vunpack.c.l.b16 %v652
      %v2383 = vunpack.c.h.b16 %v652
      %v2384 = vunpack.c.l.b16 %v653
      %v2385 = vunpack.c.l.b16 %v654
      %v2386 = vunpack.c.h.b16 %v654
      %v2387 = vunpack.c.l.b16 %v655
      %v2388 = vunpack.c.l.b16 %v656
      %v2389 = vunpack.c.h.b16 %v656
      %v2390 = vunpack.c.l.b16 %v657
      %v2391 = vunpack.c.l.b16 %v658
      %v2392 = vunpack.c.h.b16 %v658
      %v2393 = vunpack.c.l.b16 %v659
      %v2394 = vunpack.c.l.b16 %v660
      %v2395 = vunpack.c.h.b16 %v660
      %v2396 = vunpack.c.l.b16 %v661
      %v2397 = vunpack.c.l.b16 %v662
      %v2398 = vunpack.c.h.b16 %v662
      %v2399 = vunpack.c.l.b16 %v663
      %v2400 = vunpack.c.l.b16 %v664
      %v2401 = vunpack.c.h.b16 %v664
      %v2402 = vunpack.c.l.b16 %v665
      %v2403 = vunpack.c.l.b16 %v666
      %v2404 = vunpack.c.h.b16 %v666
      %v2405 = vunpack.c.l.b16 %v667
      %v2406 = vunpack.c.l.b16 %v668
      %v2407 = vunpack.c.h.b16 %v668
      %v2408 = vunpack.c.l.b16 %v669
      %v2409 = vunpack.c.l.b16 %v670
      %v2410 = vunpack.c.h.b16 %v670
      %v2411 = vunpack.c.l.b16 %v671
      %v2412 = vunpack.c.l.b16 %v672
      %v2413 = vunpack.c.h.b16 %v672
      %v2414 = vunpack.c.l.b16 %v673
      %v2415 = vunpack.c.l.b16 %v674
      %v2416 = vunpack.c.h.b16 %v674
      %v2417 = vunpack.c.l.b16 %v675
      %v2418 = vunpack.c.l.b16 %v676
      %v2419 = vunpack.c.h.b16 %v676
      %v2420 = vunpack.c.l.b16 %v677
      %v2421 = vunpack.c.l.b16 %v678
      %v2422 = vunpack.c.h.b16 %v678
      %v2423 = vunpack.c.l.b16 %v679
      %v2424 = vunpack.c.l.b16 %v680
      %v2425 = vunpack.c.h.b16 %v680
      %v2426 = vunpack.c.l.b16 %v681
      %v2427 = vunpack.c.l.b16 %v682
      %v2428 = vunpack.c.h.b16 %v682
      %v2429 = vunpack.c.l.b16 %v683
      %v2430 = vunpack.c.l.b16 %v684
      %v2431 = vunpack.c.h.b16 %v684
      %v2432 = vunpack.c.l.b16 %v685
      %v2433 = vunpack.c.l.b16 %v686
      %v2434 = vunpack.c.h.b16 %v686
      %v2435 = vunpack.c.l.b16 %v687
      %v2436 = vunpack.c.l.b16 %v688
      %v2437 = vunpack.c.h.b16 %v688
      %v2438 = vunpack.c.l.b16 %v689
      %v2439 = vunpack.c.l.b16 %v690
      %v2440 = vunpack.c.h.b16 %v690
      %v2441 = vunpack.c.l.b16 %v691
      %v2442 = vunpack.c.l.b16 %v692
      %v2443 = vunpack.c.h.b16 %v692
      %v2444 = vunpack.c.l.b16 %v693
      %v2445 = vunpack.c.l.b16 %v694
      %v2446 = vunpack.c.h.b16 %v694
      %v2447 = vunpack.c.l.b16 %v695
      %v2448 = vunpack.c.l.b16 %v696
      %v2449 = vunpack.c.h.b16 %v696
      %v2450 = vunpack.c.l.b16 %v697
      %v2451 = vunpack.c.l.b16 %v698
      %v2452 = vunpack.c.h.b16 %v698
      %v2453 = vunpack.c.l.b16 %v699
      %v2454 = vunpack.c.l.b16 %v700
      %v2455 = vunpack.c.h.b16 %v700
      %v2456 = vunpack.c.l.b16 %v701
      %v2457 = vunpack.c.l.b16 %v702
      %v2458 = vunpack.c.h.b16 %v702
      %v2459 = vunpack.c.l.b16 %v703
      %v2460 = vunpack.c.l.b16 %v704
      %v2461 = vunpack.c.h.b16 %v704
      %v2462 = vunpack.c.l.b16 %v705
      %v2463 = vunpack.c.l.b16 %v706
      %v2464 = vunpack.c.h.b16 %v706
      %v2465 = vunpack.c.l.b16 %v707
      %v2466 = vunpack.c.l.b16 %v708
      %v2467 = vunpack.c.h.b16 %v708
      %v2468 = vunpack.c.l.b16 %v709
      %v2469 = vunpack.c.l.b16 %v710
      %v2470 = vunpack.c.h.b16 %v710
      %v2471 = vunpack.c.l.b16 %v711
      %v2472 = vunpack.c.l.b16 %v712
      %v2473 = vunpack.c.h.b16 %v712
      %v2474 = vunpack.c.l.b16 %v713
      %v2475 = vunpack.c.l.b16 %v714
      %v2476 = vunpack.c.h.b16 %v714
      %v2477 = vunpack.c.l.b16 %v715
      %v2478 = vunpack.c.l.b16 %v716
      %v2479 = vunpack.c.h.b16 %v716
      %v2480 = vunpack.c.l.b16 %v717
      %v2481 = vunpack.c.l.b16 %v718
      %v2482 = vunpack.c.h.b16 %v718
      %v2483 = vunpack.c.l.b16 %v719
      %v2484 = vunpack.c.l.b16 %v720
      %v2485 = vunpack.c.h.b16 %v720
      %v2486 = vunpack.c.l.b16 %v721
      %v2487 = vunpack.c.l.b16 %v722
      %v2488 = vunpack.c.h.b16 %v722
      %v2489 = vunpack.c.l.b16 %v723
      %v2490 = vunpack.c.l.b16 %v724
      %v2491 = vunpack.c.h.b16 %v724
      %v2492 = vunpack.c.l.b16 %v725
      %v2493 = vunpack.c.l.b16 %v726
      %v2494 = vunpack.c.h.b16 %v726
      %v2495 = vunpack.c.l.b16 %v727
      %v2496 = vunpack.c.l.b16 %v728
      %v2497 = vunpack.c.h.b16 %v728
      %v2498 = vunpack.c.l.b16 %v729
      %v2499 = vunpack.c.l.b16 %v730
      %v2500 = vunpack.c.h.b16 %v730
      %v2501 = vunpack.c.l.b16 %v731
      %v2502 = vunpack.c.l.b16 %v732
      %v2503 = vunpack.c.h.b16 %v732
      %v2504 = vunpack.c.l.b16 %v733
      %v2505 = vunpack.c.l.b16 %v734
      %v2506 = vunpack.c.h.b16 %v734
      %v2507 = vunpack.c.l.b16 %v735
      %v2508 = vunpack.c.l.b16 %v736
      %v2509 = vunpack.c.h.b16 %v736
      %v2510 = vunpack.c.l.b16 %v737
      %v2511 = vunpack.c.l.b16 %v738
      %v2512 = vunpack.c.h.b16 %v738
      %v2513 = vunpack.c.l.b16 %v739
      %v2514 = vunpack.c.l.b16 %v740
      %v2515 = vunpack.c.h.b16 %v740
      %v2516 = vunpack.c.l.b16 %v741
      %v2517 = vunpack.c.l.b16 %v742
      %v2518 = vunpack.c.h.b16 %v742
      %v2519 = vunpack.c.l.b16 %v743
      %v2520 = vunpack.c.l.b16 %v744
      %v2521 = vunpack.c.h.b16 %v744
      %v2522 = vunpack.c.l.b16 %v745
      %v2523 = vunpack.c.l.b16 %v746
      %v2524 = vunpack.c.h.b16 %v746
      %v2525 = vunpack.c.l.b16 %v747
      %v2526 = vunpack.c.l.b16 %v748
      %v2527 = vunpack.c.h.b16 %v748
      %v2528 = vunpack.c.l.b16 %v749
      %v2529 = vunpack.c.l.b16 %v750
      %v2530 = vunpack.c.h.b16 %v750
      %v2531 = vunpack.c.l.b16 %v751
      %v2532 = vunpack.c.l.b16 %v752
      %v2533 = vunpack.c.h.b16 %v752
      %v2534 = vunpack.c.l.b16 %v753
      %v2535 = vunpack.c.l.b16 %v754
      %v2536 = vunpack.c.h.b16 %v754
      %v2537 = vunpack.c.l.b16 %v755
      %v2538 = vunpack.c.l.b16 %v756
      %v2539 = vunpack.c.h.b16 %v756
      %v2540 = vunpack.c.l.b16 %v757
      %v2541 = vunpack.c.l.b16 %v758
      %v2542 = vunpack.c.h.b16 %v758
      %v2543 = vunpack.c.l.b16 %v759
      %v2544 = vunpack.c.l.b16 %v760
      %v2545 = vunpack.c.h.b16 %v760
      %v2546 = vunpack.c.l.b16 %v761
      %v2547 = vunpack.c.l.b16 %v762
      %v2548 = vunpack.c.h.b16 %v762
      %v2549 = vunpack.c.l.b16 %v763
      %v2550 = vunpack.c.l.b16 %v764
      %v2551 = vunpack.c.h.b16 %v764
      %v2552 = vunpack.c.l.b16 %v765
      %v2553 = vunpack.c.l.b16 %v766
      %v2554 = vunpack.c.h.b16 %v766
      %v2555 = vunpack.c.l.b16 %v767
      %v2556 = vunpack.c.l.b16 %v768
      %v2557 = vunpack.c.h.b16 %v768
      %v2558 = vunpack.c.l.b16 %v769
      %v2559 = vunpack.c.l.b16 %v770
      %v2560 = vunpack.c.h.b16 %v770
      %v2561 = vunpack.c.l.b16 %v771
      %v2562 = vunpack.c.l.b16 %v772
      %v2563 = vunpack.c.h.b16 %v772
      %v2564 = vunpack.c.l.b16 %v773
      %v2565 = vunpack.c.l.b16 %v774
      %v2566 = vunpack.c.h.b16 %v774
      %v2567 = vunpack.c.l.b16 %v775
      %v2568 = vunpack.c.l.b16 %v776
      %v2569 = vunpack.c.h.b16 %v776
      %v2570 = vunpack.c.l.b16 %v777
      %v2571 = vunpack.c.l.b16 %v778
      %v2572 = vunpack.c.h.b16 %v778
      %v2573 = vunpack.c.l.b16 %v779
      %v2574 = vunpack.c.l.b16 %v780
      %v2575 = vunpack.c.h.b16 %v780
      %v2576 = vunpack.c.l.b16 %v781
      %v2577 = vunpack.c.l.b16 %v782
      %v2578 = vunpack.c.h.b16 %v782
      %v2579 = vunpack.c.l.b16 %v783
      %v2580 = vunpack.c.l.b16 %v784
      %v2581 = vunpack.c.h.b16 %v784
      %v2582 = vunpack.c.l.b16 %v785
      %v2583 = vunpack.c.l.b16 %v786
      %v2584 = vunpack.c.h.b16 %v786
      %v2585 = vunpack.c.l.b16 %v787
      %v2586 = vunpack.c.l.b16 %v788
      %v2587 = vunpack.c.h.b16 %v788
      %v2588 = vunpack.c.l.b16 %v789
      %v2589 = vunpack.c.l.b16 %v790
      %v2590 = vunpack.c.h.b16 %v790
      %v2591 = vunpack.c.l.b16 %v791
      %v2592 = vunpack.c.l.b16 %v792
      %v2593 = vunpack.c.h.b16 %v792
      %v2594 = vunpack.c.l.b16 %v793
      %v2595 = vunpack.c.l.b16 %v794
      %v2596 = vunpack.c.h.b16 %v794
      %v2597 = vunpack.c.l.b16 %v795
      %v2598 = vunpack.c.l.b16 %v796
      %v2599 = vunpack.c.h.b16 %v796
      %v2600 = vunpack.c.l.b16 %v797
      %v2601 = vunpack.c.l.b16 %v798
      %v2602 = vunpack.c.h.b16 %v798
      %v2603 = vunpack.c.l.b16 %v799
      %v2604 = vunpack.c.l.b16 %v800
      %v2605 = vunpack.c.h.b16 %v800
      %v2606 = vunpack.c.l.b16 %v801
      %v2607 = vunpack.c.l.b16 %v802
      %v2608 = vunpack.c.h.b16 %v802
      %v2609 = vunpack.c.l.b16 %v803
      %v2610 = vunpack.c.l.b16 %v804
      %v2611 = vunpack.c.h.b16 %v804
      %v2612 = vunpack.c.l.b16 %v805
      %v2613 = vunpack.c.l.b16 %v806
      %v2614 = vunpack.c.h.b16 %v806
      %v2615 = vunpack.c.l.b16 %v807
      %v2616 = vunpack.c.l.b16 %v808
      %v2617 = vunpack.c.h.b16 %v808
      %v2618 = vunpack.c.l.b16 %v809
      %v2619 = vunpack.c.l.b16 %v810
      %v2620 = vunpack.c.h.b16 %v810
      %v2621 = vunpack.c.l.b16 %v811
      %v2622 = vunpack.c.l.b16 %v812
      %v2623 = vunpack.c.h.b16 %v812
      %v2624 = vunpack.c.l.b16 %v813
      %v2625 = vunpack.c.l.b16 %v814
      %v2626 = vunpack.c.h.b16 %v814
      %v2627 = vunpack.c.l.b16 %v815
      %v2628 = vunpack.c.l.b16 %v816
      %v2629 = vunpack.c.h.b16 %v816
      %v2630 = vunpack.c.l.b16 %v817
      %v2631 = vunpack.c.l.b16 %v818
      %v2632 = vunpack.c.h.b16 %v818
      %v2633 = vunpack.c.l.b16 %v819
      %v2634 = vunpack.c.l.b16 %v820
      %v2635 = vunpack.c.h.b16 %v820
      %v2636 = vunpack.c.l.b16 %v821
      %v2637 = vunpack.c.l.b16 %v822
      %v2638 = vunpack.c.h.b16 %v822
      %v2639 = vunpack.c.l.b16 %v823
      %v2640 = vunpack.c.l.b16 %v824
      %v2641 = vunpack.c.h.b16 %v824
      %v2642 = vunpack.c.l.b16 %v825
      %v2643 = vunpack.c.l.b16 %v826
      %v2644 = vunpack.c.h.b16 %v826
      %v2645 = vunpack.c.l.b16 %v827
      %v2646 = vunpack.c.l.b16 %v828
      %v2647 = vunpack.c.h.b16 %v828
      %v2648 = vunpack.c.l.b16 %v829
      %v2649 = vunpack.c.l.b16 %v830
      %v2650 = vunpack.c.h.b16 %v830
      %v2651 = vunpack.c.l.b16 %v831
      %v2652 = vunpack.c.l.b16 %v832
      %v2653 = vunpack.c.h.b16 %v832
      %v2654 = vunpack.c.l.b16 %v833
      %v2655 = vunpack.c.l.b16 %v834
      %v2656 = vunpack.c.h.b16 %v834
      %v2657 = vunpack.c.l.b16 %v835
      %v2658 = vunpack.c.l.b16 %v836
      %v2659 = vunpack.c.h.b16 %v836
      %v2660 = vunpack.c.l.b16 %v837
      %v2661 = vunpack.c.l.b16 %v838
      %v2662 = vunpack.c.h.b16 %v838
      %v2663 = vunpack.c.l.b16 %v839
      %v2664 = vunpack.c.l.b16 %v840
      %v2665 = vunpack.c.h.b16 %v840
      %v2666 = vunpack.c.l.b16 %v841
      %v2667 = vunpack.c.l.b16 %v842
      %v2668 = vunpack.c.h.b16 %v842
      %v2669 = vunpack.c.l.b16 %v843
      %v2670 = vunpack.c.l.b16 %v844
      %v2671 = vunpack.c.h.b16 %v844
      %v2672 = vunpack.c.l.b16 %v845
      %v2673 = vunpack.c.l.b16 %v846
      %v2674 = vunpack.c.h.b16 %v846
      %v2675 = vunpack.c.l.b16 %v847
      %v2676 = vunpack.c.l.b16 %v848
      %v2677 = vunpack.c.h.b16 %v848
      %v2678 = vunpack.c.l.b16 %v849
      %v2679 = vunpack.c.l.b16 %v850
      %v2680 = vunpack.c.h.b16 %v850
      %v2681 = vunpack.c.l.b16 %v851
      %v2682 = vunpack.c.l.b16 %v852
      %v2683 = vunpack.c.h.b16 %v852
      %v2684 = vunpack.c.l.b16 %v853
      %v2685 = vunpack.c.l.b16 %v854
      %v2686 = vunpack.c.h.b16 %v854
      %v2687 = vunpack.c.l.b16 %v855
      %v2688 = vunpack.c.l.b16 %v856
      %v2689 = vunpack.c.h.b16 %v856
      %v2690 = vunpack.c.l.b16 %v857
      %v2691 = vunpack.c.l.b16 %v858
      %v2692 = vunpack.c.h.b16 %v858
      %v2693 = vunpack.c.l.b16 %v859
      %v2694 = vunpack.c.l.b16 %v860
      %v2695 = vunpack.c.h.b16 %v860
      %v2696 = vunpack.c.l.b16 %v861
      %v2697 = vunpack.c.l.b16 %v862
      %v2698 = vunpack.c.h.b16 %v862
      %v2699 = vunpack.c.l.b16 %v863
      %v2700 = vunpack.c.l.b16 %v864
      %v2701 = vunpack.c.h.b16 %v864
      %v2702 = vunpack.c.l.b16 %v865
      %v2703 = vunpack.c.l.b16 %v866
      %v2704 = vunpack.c.h.b16 %v866
      %v2705 = vunpack.c.l.b16 %v867
      %v2706 = vunpack.c.l.b16 %v868
      %v2707 = vunpack.c.h.b16 %v868
      %v2708 = vunpack.c.l.b16 %v869
      %v2709 = vunpack.c.l.b16 %v870
      %v2710 = vunpack.c.h.b16 %v870
      %v2711 = vunpack.c.l.b16 %v871
      %v2712 = vunpack.c.l.b16 %v872
      %v2713 = vunpack.c.h.b16 %v872
      %v2714 = vunpack.c.l.b16 %v873
      %v2715 = vunpack.c.l.b16 %v874
      %v2716 = vunpack.c.h.b16 %v874
      %v2717 = vunpack.c.l.b16 %v875
      %v2718 = vunpack.c.l.b16 %v876
      %v2719 = vunpack.c.h.b16 %v876
      %v2720 = vunpack.c.l.b16 %v877
      %v2721 = vunpack.c.l.b16 %v878
      %v2722 = vunpack.c.h.b16 %v878
      %v2723 = vunpack.c.l.b16 %v879
      %v2724 = vunpack.c.l.b16 %v880
      %v2725 = vunpack.c.h.b16 %v880
      %v2726 = vunpack.c.l.b16 %v881
      %v2727 = vunpack.c.l.b16 %v882
      %v2728 = vunpack.c.h.b16 %v882
      %v2729 = vunpack.c.l.b16 %v883
      %v2730 = vunpack.c.l.b16 %v884
      %v2731 = vunpack.c.h.b16 %v884
      %v2732 = vunpack.c.l.b16 %v885
      %v2733 = vunpack.c.l.b16 %v886
      %v2734 = vunpack.c.h.b16 %v886
      %v2735 = vunpack.c.l.b16 %v887
      %v2736 = vunpack.c.l.b16 %v888
      %v2737 = vunpack.c.h.b16 %v888
      %v2738 = vunpack.c.l.b16 %v889
      %v2739 = vunpack.c.l.b16 %v890
      %v2740 = vunpack.c.h.b16 %v890
      %v2741 = vunpack.c.l.b16 %v891
      %v2742 = vunpack.c.l.b16 %v892
      %v2743 = vunpack.c.h.b16 %v892
      %v2744 = vunpack.c.l.b16 %v893
      %v2745 = vunpack.c.l.b16 %v894
      %v2746 = vunpack.c.h.b16 %v894
      %v2747 = vunpack.c.l.b16 %v895
      %v2748 = vunpack.c.l.b16 %v896
      %v2749 = vunpack.c.h.b16 %v896
      %v2750 = vunpack.c.l.b16 %v897
      %v2751 = vunpack.c.l.b16 %v898
      %v2752 = vunpack.c.h.b16 %v898
      %v2753 = vunpack.c.l.b16 %v899
      %v2754 = vunpack.c.l.b16 %v900
      %v2755 = vunpack.c.h.b16 %v900
      %v2756 = vunpack.c.l.b16 %v901
      %v2757 = vunpack.c.l.b16 %v902
      %v2758 = vunpack.c.h.b16 %v902
      %v2759 = vunpack.c.l.b16 %v903
      %v2760 = vunpack.c.l.b16 %v904
      %v2761 = vunpack.c.h.b16 %v904
      %v2762 = vunpack.c.l.b16 %v905
      %v2763 = vunpack.c.l.b16 %v906
      %v2764 = vunpack.c.h.b16 %v906
      %v2765 = vunpack.c.l.b16 %v907
      %v2766 = vunpack.c.l.b16 %v908
      %v2767 = vunpack.c.h.b16 %v908
      %v2768 = vunpack.c.l.b16 %v909
      %v2769 = vunpack.c.l.b16 %v910
      %v2770 = vunpack.c.h.b16 %v910
      %v2771 = vunpack.c.l.b16 %v911
      %v2772 = vunpack.c.l.b16 %v912
      %v2773 = vunpack.c.h.b16 %v912
      %v2774 = vunpack.c.l.b16 %v913
      %v2775 = vunpack.c.l.b16 %v914
      %v2776 = vunpack.c.h.b16 %v914
      %v2777 = vunpack.c.l.b16 %v915
      %v2778 = vunpack.c.l.b16 %v916
      %v2779 = vunpack.c.h.b16 %v916
      %v2780 = vunpack.c.l.b16 %v917
      %v2781 = vunpack.c.l.b16 %v918
      %v2782 = vunpack.c.h.b16 %v918
      %v2783 = vunpack.c.l.b16 %v919
      %v2784 = vunpack.c.l.b16 %v920
      %v2785 = vunpack.c.h.b16 %v920
      %v2786 = vunpack.c.l.b16 %v921
      %v2787 = vunpack.c.l.b16 %v922
      %v2788 = vunpack.c.h.b16 %v922
      %v2789 = vunpack.c.l.b16 %v923
      %v2790 = vunpack.c.l.b16 %v924
      %v2791 = vunpack.c.h.b16 %v924
      %v2792 = vunpack.c.l.b16 %v925
      %v2793 = vunpack.c.l.b16 %v926
      %v2794 = vunpack.c.h.b16 %v926
      %v2795 = vunpack.c.l.b16 %v927
      %v2796 = vunpack.c.l.b16 %v928
      %v2797 = vunpack.c.h.b16 %v928
      %v2798 = vunpack.c.l.b16 %v929
      %v2799 = vunpack.c.l.b16 %v930
      %v2800 = vunpack.c.h.b16 %v930
      %v2801 = vunpack.c.l.b16 %v931
      %v2802 = vunpack.c.l.b16 %v932
      %v2803 = vunpack.c.h.b16 %v932
      %v2804 = vunpack.c.l.b16 %v933
      %v2805 = vunpack.c.l.b16 %v934
      %v2806 = vunpack.c.h.b16 %v934
      %v2807 = vunpack.c.l.b16 %v935
      %v2808 = vunpack.c.l.b16 %v936
      %v2809 = vunpack.c.h.b16 %v936
      %v2810 = vunpack.c.l.b16 %v937
      %v2811 = vunpack.c.l.b16 %v938
      %v2812 = vunpack.c.h.b16 %v938
      %v2813 = vunpack.c.l.b16 %v939
      %v2814 = vunpack.c.l.b16 %v940
      %v2815 = vunpack.c.h.b16 %v940
      %v2816 = vunpack.c.l.b16 %v941
      %v2817 = vunpack.c.l.b16 %v942
      %v2818 = vunpack.c.h.b16 %v942
      %v2819 = vunpack.c.l.b16 %v943
      %v2820 = vunpack.c.l.b16 %v944
      %v2821 = vunpack.c.h.b16 %v944
      %v2822 = vunpack.c.l.b16 %v945
      %v2823 = vunpack.c.l.b16 %v946
      %v2824 = vunpack.c.h.b16 %v946
      %v2825 = vunpack.c.l.b16 %v947
      %v2826 = vunpack.c.l.b16 %v948
      %v2827 = vunpack.c.h.b16 %v948
      %v2828 = vunpack.c.l.b16 %v949
      %v2829 = vunpack.c.l.b16 %v950
      %v2830 = vunpack.c.h.b16 %v950
      %v2831 = vunpack.c.l.b16 %v951
      %v2832 = vunpack.c.l.b16 %v952
      %v2833 = vunpack.c.h.b16 %v952
      %v2834 = vunpack.c.l.b16 %v953
      %v2835 = vunpack.c.l.b16 %v954
      %v2836 = vunpack.c.h.b16 %v954
      %v2837 = vunpack.c.l.b16 %v955
      %v2838 = vunpack.c.l.b16 %v956
      %v2839 = vunpack.c.h.b16 %v956
      %v2840 = vunpack.c.l.b16 %v957
      %v2841 = vunpack.c.l.b16 %v958
      %v2842 = vunpack.c.h.b16 %v958
      %v2843 = vunpack.c.l.b16 %v959
      %v2844 = vunpack.c.l.b16 %v960
      %v2845 = vunpack.c.h.b16 %v960
      %v2846 = vunpack.c.l.b16 %v961
      %v2847 = vunpack.c.l.b16 %v962
      %v2848 = vunpack.c.h.b16 %v962
      %v2849 = vunpack.c.l.b16 %v963
      %v2850 = vunpack.c.l.b16 %v964
      %v2851 = vunpack.c.h.b16 %v964
      %v2852 = vunpack.c.l.b16 %v965
      %v2853 = vunpack.c.l.b16 %v966
      %v2854 = vunpack.c.h.b16 %v966
      %v2855 = vunpack.c.l.b16 %v967
      %v2856 = vunpack.c.l.b16 %v968
      %v2857 = vunpack.c.h.b16 %v968
      %v2858 = vunpack.c.l.b16 %v969
      %v2859 = vunpack.c.l.b16 %v970
      %v2860 = vunpack.c.h.b16 %v970
      %v2861 = vunpack.c.l.b16 %v971
      %v2862 = vunpack.c.l.b16 %v972
      %v2863 = vunpack.c.h.b16 %v972
      %v2864 = vunpack.c.l.b16 %v973
      %v2865 = vunpack.c.l.b16 %v974
      %v2866 = vunpack.c.h.b16 %v974
      %v2867 = vunpack.c.l.b16 %v975
      %v2868 = vunpack.c.l.b16 %v976
      %v2869 = vunpack.c.h.b16 %v976
      %v2870 = vunpack.c.l.b16 %v977
      %v2871 = vunpack.c.l.b16 %v978
      %v2872 = vunpack.c.h.b16 %v978
      %v2873 = vunpack.c.l.b16 %v979
      %v2874 = vunpack.c.l.b16 %v980
      %v2875 = vunpack.c.h.b16 %v980
      %v2876 = vunpack.c.l.b16 %v981
      %v2877 = vunpack.c.l.b16 %v982
      %v2878 = vunpack.c.h.b16 %v982
      %v2879 = vunpack.c.l.b16 %v983
      %v2880 = vunpack.c.l.b16 %v984
      %v2881 = vunpack.c.h.b16 %v984
      %v2882 = vunpack.c.l.b16 %v985
      %v2883 = vunpack.c.l.b16 %v986
      %v2884 = vunpack.c.h.b16 %v986
      %v2885 = vunpack.c.l.b16 %v987
      %v2886 = vunpack.c.l.b16 %v988
      %v2887 = vunpack.c.h.b16 %v988
      %v2888 = vunpack.c.l.b16 %v989
      %v2889 = vunpack.c.l.b16 %v990
      %v2890 = vunpack.c.h.b16 %v990
      %v2891 = vunpack.c.l.b16 %v991
      %v2892 = vunpack.c.l.b16 %v992
      %v2893 = vunpack.c.h.b16 %v992
      %v2894 = vunpack.c.l.b16 %v993
      %v2895 = vunpack.c.l.b16 %v994
      %v2896 = vunpack.c.h.b16 %v994
      %v2897 = vunpack.c.l.b16 %v995
      %v2898 = vunpack.c.l.b16 %v996
      %v2899 = vunpack.c.h.b16 %v996
      %v2900 = vunpack.c.l.b16 %v997
      %v2901 = vunpack.c.l.b16 %v998
      %v2902 = vunpack.c.h.b16 %v998
      %v2903 = vunpack.c.l.b16 %v999
      %v2904 = vunpack.c.l.b16 %v1000
      %v2905 = vunpack.c.h.b16 %v1000
      %v2906 = vunpack.c.l.b16 %v1001
      %v2907 = vunpack.c.l.b16 %v1002
      %v2908 = vunpack.c.h.b16 %v1002
      %v2909 = vunpack.c.l.b16 %v1003
      %v2910 = vunpack.c.l.b16 %v1004
      %v2911 = vunpack.c.h.b16 %v1004
      %v2912 = vunpack.c.l.b16 %v1005
      %v2913 = vunpack.c.l.b16 %v1006
      %v2914 = vunpack.c.h.b16 %v1006
      %v2915 = vunpack.c.l.b16 %v1007
      %v2916 = vunpack.c.l.b16 %v1008
      %v2917 = vunpack.c.h.b16 %v1008
      %v2918 = vunpack.c.l.b16 %v1009
      %v2919 = vunpack.c.l.b16 %v1010
      %v2920 = vunpack.c.h.b16 %v1010
      %v2921 = vunpack.c.l.b16 %v1011
      %v2922 = vunpack.c.l.b16 %v1012
      %v2923 = vunpack.c.h.b16 %v1012
      %v2924 = vunpack.c.l.b16 %v1013
      %v2925 = vunpack.c.l.b16 %v1014
      %v2926 = vunpack.c.h.b16 %v1014
      %v2927 = vunpack.c.l.b16 %v1015
      %v2928 = vunpack.c.l.b16 %v1016
      %v2929 = vunpack.c.h.b16 %v1016
      %v2930 = vunpack.c.l.b16 %v1017
      %v2931 = vunpack.c.l.b16 %v1018
      %v2932 = vunpack.c.h.b16 %v1018
      %v2933 = vunpack.c.l.b16 %v1019
      %v2934 = vunpack.c.l.b16 %v1020
      %v2935 = vunpack.c.h.b16 %v1020
      %v2936 = vunpack.c.l.b16 %v1021
      %v2937 = vunpack.c.l.b16 %v1022
      %v2938 = vunpack.c.h.b16 %v1022
      %v2939 = vunpack.c.l.b16 %v1023
      %v2940 = vunpack.c.l.b16 %v1024
      %v2941 = vunpack.c.h.b16 %v1024
      %v2942 = vunpack.c.l.b16 %v1025
      %v2943 = vunpack.c.l.b16 %v1026
      %v2944 = vunpack.c.h.b16 %v1026
      %v2945 = vunpack.c.l.b16 %v1027
      %v2946 = vunpack.c.l.b16 %v1028
      %v2947 = vunpack.c.h.b16 %v1028
      %v2948 = vunpack.c.l.b16 %v1029
      %v2949 = vunpack.c.l.b16 %v1030
      %v2950 = vunpack.c.h.b16 %v1030
      %v2951 = vunpack.c.l.b16 %v1031
      %v2952 = vunpack.c.l.b16 %v1032
      %v2953 = vunpack.c.h.b16 %v1032
      %v2954 = vunpack.c.l.b16 %v1033
      %v2955 = vunpack.c.l.b16 %v1034
      %v2956 = vunpack.c.h.b16 %v1034
      %v2957 = vunpack.c.l.b16 %v1035
      %v2958 = vunpack.c.l.b16 %v1036
      %v2959 = vunpack.c.h.b16 %v1036
      %v2960 = vunpack.c.l.b16 %v1037
      %v2961 = vunpack.c.l.b16 %v1038
      %v2962 = vunpack.c.h.b16 %v1038
      %v2963 = vunpack.c.l.b16 %v1039
      %v2964 = vunpack.c.l.b16 %v1040
      %v2965 = vunpack.c.h.b16 %v1040
      %v2966 = vunpack.c.l.b16 %v1041
      %v2967 = vunpack.c.l.b16 %v1042
      %v2968 = vunpack.c.h.b16 %v1042
      %v2969 = vunpack.c.l.b16 %v1043
      %v2970 = vunpack.c.l.b16 %v1044
      %v2971 = vunpack.c.h.b16 %v1044
      %v2972 = vunpack.c.l.b16 %v1045
      %v2973 = vunpack.c.l.b16 %v1046
      %v2974 = vunpack.c.h.b16 %v1046
      %v2975 = vunpack.c.l.b16 %v1047
      %v2976 = vunpack.c.l.b16 %v1048
      %v2977 = vunpack.c.h.b16 %v1048
      %v2978 = vunpack.c.l.b16 %v1049
      %v2979 = vunpack.c.l.b16 %v1050
      %v2980 = vunpack.c.h.b16 %v1050
      %v2981 = vunpack.c.l.b16 %v1051
      %v2982 = vunpack.c.l.b16 %v1052
      %v2983 = vunpack.c.h.b16 %v1052
      %v2984 = vunpack.c.l.b16 %v1053
      %v2985 = vunpack.c.l.b16 %v1054
      %v2986 = vunpack.c.h.b16 %v1054
      %v2987 = vunpack.c.l.b16 %v1055
      %v2988 = vunpack.c.l.b16 %v1056
      %v2989 = vunpack.c.h.b16 %v1056
      %v2990 = vunpack.c.l.b16 %v1057
      %v2991 = vunpack.c.l.b16 %v1058
      %v2992 = vunpack.c.h.b16 %v1058
      %v2993 = vunpack.c.l.b16 %v1059
      %v2994 = vunpack.c.l.b16 %v1060
      %v2995 = vunpack.c.h.b16 %v1060
      %v2996 = vunpack.c.l.b16 %v1061
      %v2997 = vunpack.c.l.b16 %v1062
      %v2998 = vunpack.c.h.b16 %v1062
      %v2999 = vunpack.c.l.b16 %v1063
      %v3000 = vunpack.c.l.b16 %v1064
      %v3001 = vunpack.c.h.b16 %v1064
      %v3002 = vunpack.c.l.b16 %v1065
      %v3003 = vunpack.c.l.b16 %v1066
      %v3004 = vunpack.c.h.b16 %v1066
      %v3005 = vunpack.c.l.b16 %v1067
      %v3006 = vunpack.c.l.b16 %v1068
      %v3007 = vunpack.c.h.b16 %v1068
      %v3008 = vunpack.c.l.b16 %v1069
      %v3009 = vunpack.c.l.b16 %v1070
      %v3010 = vunpack.c.h.b16 %v1070
      %v3011 = vunpack.c.l.b16 %v1071
      %v3012 = vunpack.c.l.b16 %v1072
      %v3013 = vunpack.c.h.b16 %v1072
      %v3014 = vunpack.c.l.b16 %v1073
      %v3015 = vunpack.c.l.b16 %v1074
      %v3016 = vunpack.c.h.b16 %v1074
      %v3017 = vunpack.c.l.b16 %v1075
      %v3018 = vunpack.c.l.b16 %v1076
      %v3019 = vunpack.c.h.b16 %v1076
      %v3020 = vunpack.c.l.b16 %v1077
      %v3021 = vunpack.c.l.b16 %v1078
      %v3022 = vunpack.c.h.b16 %v1078
      %v3023 = vunpack.c.l.b16 %v1079
      %v3024 = vunpack.c.l.b16 %v1080
      %v3025 = vunpack.c.h.b16 %v1080
      %v3026 = vunpack.c.l.b16 %v1081
      %v3027 = vunpack.c.l.b16 %v1082
      %v3028 = vunpack.c.h.b16 %v1082
      %v3029 = vunpack.c.l.b16 %v1083
      %v3030 = vunpack.c.l.b16 %v1084
      %v3031 = vunpack.c.h.b16 %v1084
      %v3032 = vunpack.c.l.b16 %v1085
      %v3033 = vunpack.c.l.b16 %v1086
      %v3034 = vunpack.c.h.b16 %v1086
      %v3035 = vunpack.c.l.b16 %v1087
      %v3036 = vunpack.c.l.b16 %v1088
      %v3037 = vunpack.c.h.b16 %v1088
      %v3038 = vunpack.c.l.b16 %v1089
      %v3039 = vunpack.c.l.b16 %v1090
      %v3040 = vunpack.c.h.b16 %v1090
      %v3041 = vunpack.c.l.b16 %v1091
      %v3042 = vunpack.c.l.b16 %v1092
      %v3043 = vunpack.c.h.b16 %v1092
      %v3044 = vunpack.c.l.b16 %v1093
      %v3045 = vunpack.c.l.b16 %v1094
      %v3046 = vunpack.c.h.b16 %v1094
      %v3047 = vunpack.c.l.b16 %v1095
      %v3048 = vunpack.c.l.b16 %v1096
      %v3049 = vunpack.c.h.b16 %v1096
      %v3050 = vunpack.c.l.b16 %v1097
      %v3051 = vunpack.c.l.b16 %v1098
      %v3052 = vunpack.c.h.b16 %v1098
      %v3053 = vunpack.c.l.b16 %v1099
      %v3054 = vunpack.c.l.b16 %v1100
      %v3055 = vunpack.c.h.b16 %v1100
      %v3056 = vunpack.c.l.b16 %v1101
      %v3057 = vunpack.c.l.b16 %v1102
      %v3058 = vunpack.c.h.b16 %v1102
      %v3059 = vunpack.c.l.b16 %v1103
      %v3060 = vunpack.c.l.b16 %v1104
      %v3061 = vunpack.c.h.b16 %v1104
      %v3062 = vunpack.c.l.b16 %v1105
      %v3063 = vunpack.c.l.b16 %v1106
      %v3064 = vunpack.c.h.b16 %v1106
      %v3065 = vunpack.c.l.b16 %v1107
      %v3066 = vpack.c.b16 %v1917, %v1914
      %v3067 = vpack.c.b16 %v1918, %v1915
      %v3068 = vpack.c.b16 %v1919, %v1916
      %v3069 = vpack.c.b16 %v1923, %v1920
      %v3070 = vpack.c.b16 %v1924, %v1921
      %v3071 = vpack.c.b16 %v1925, %v1922
      %v3072 = vpack.c.b16 %v1929, %v1926
      %v3073 = vpack.c.b16 %v1930, %v1927
      %v3074 = vpack.c.b16 %v1931, %v1928
      %v3075 = vpack.c.b16 %v1935, %v1932
      %v3076 = vpack.c.b16 %v1936, %v1933
      %v3077 = vpack.c.b16 %v1937, %v1934
      %v3078 = vpack.c.b16 %v1941, %v1938
      %v3079 = vpack.c.b16 %v1942, %v1939
      %v3080 = vpack.c.b16 %v1943, %v1940
      %v3081 = vpack.c.b16 %v1947, %v1944
      %v3082 = vpack.c.b16 %v1948, %v1945
      %v3083 = vpack.c.b16 %v1949, %v1946
      %v3084 = vpack.c.b16 %v1953, %v1950
      %v3085 = vpack.c.b16 %v1954, %v1951
      %v3086 = vpack.c.b16 %v1955, %v1952
      %v3087 = vpack.c.b16 %v1959, %v1956
      %v3088 = vpack.c.b16 %v1960, %v1957
      %v3089 = vpack.c.b16 %v1961, %v1958
      %v3090 = vpack.c.b16 %v1965, %v1962
      %v3091 = vpack.c.b16 %v1966, %v1963
      %v3092 = vpack.c.b16 %v1967, %v1964
      %v3093 = vpack.c.b16 %v1971, %v1968
      %v3094 = vpack.c.b16 %v1972, %v1969
      %v3095 = vpack.c.b16 %v1973, %v1970
      %v3096 = vpack.c.b16 %v1977, %v1974
      %v3097 = vpack.c.b16 %v1978, %v1975
      %v3098 = vpack.c.b16 %v1979, %v1976
      %v3099 = vpack.c.b16 %v1983, %v1980
      %v3100 = vpack.c.b16 %v1984, %v1981
      %v3101 = vpack.c.b16 %v1985, %v1982
      %v3102 = vpack.c.b16 %v1989, %v1986
      %v3103 = vpack.c.b16 %v1990, %v1987
      %v3104 = vpack.c.b16 %v1991, %v1988
      %v3105 = vpack.c.b16 %v1995, %v1992
      %v3106 = vpack.c.b16 %v1996, %v1993
      %v3107 = vpack.c.b16 %v1997, %v1994
      %v3108 = vpack.c.b16 %v2001, %v1998
      %v3109 = vpack.c.b16 %v2002, %v1999
      %v3110 = vpack.c.b16 %v2003, %v2000
      %v3111 = vpack.c.b16 %v2007, %v2004
      %v3112 = vpack.c.b16 %v2008, %v2005
      %v3113 = vpack.c.b16 %v2009, %v2006
      %v3114 = vpack.c.b16 %v2013, %v2010
      %v3115 = vpack.c.b16 %v2014, %v2011
      %v3116 = vpack.c.b16 %v2015, %v2012
      %v3117 = vpack.c.b16 %v2019, %v2016
      %v3118 = vpack.c.b16 %v2020, %v2017
      %v3119 = vpack.c.b16 %v2021, %v2018
      %v3120 = vpack.c.b16 %v2025, %v2022
      %v3121 = vpack.c.b16 %v2026, %v2023
      %v3122 = vpack.c.b16 %v2027, %v2024
      %v3123 = vpack.c.b16 %v2031, %v2028
      %v3124 = vpack.c.b16 %v2032, %v2029
      %v3125 = vpack.c.b16 %v2033, %v2030
      %v3126 = vpack.c.b16 %v2037, %v2034
      %v3127 = vpack.c.b16 %v2038, %v2035
      %v3128 = vpack.c.b16 %v2039, %v2036
      %v3129 = vpack.c.b16 %v2043, %v2040
      %v3130 = vpack.c.b16 %v2044, %v2041
      %v3131 = vpack.c.b16 %v2045, %v2042
      %v3132 = vpack.c.b16 %v2049, %v2046
      %v3133 = vpack.c.b16 %v2050, %v2047
      %v3134 = vpack.c.b16 %v2051, %v2048
      %v3135 = vpack.c.b16 %v2055, %v2052
      %v3136 = vpack.c.b16 %v2056, %v2053
      %v3137 = vpack.c.b16 %v2057, %v2054
      %v3138 = vpack.c.b16 %v2061, %v2058
      %v3139 = vpack.c.b16 %v2062, %v2059
      %v3140 = vpack.c.b16 %v2063, %v2060
      %v3141 = vpack.c.b16 %v2067, %v2064
      %v3142 = vpack.c.b16 %v2068, %v2065
      %v3143 = vpack.c.b16 %v2069, %v2066
      %v3144 = vpack.c.b16 %v2073, %v2070
      %v3145 = vpack.c.b16 %v2074, %v2071
      %v3146 = vpack.c.b16 %v2075, %v2072
      %v3147 = vpack.c.b16 %v2079, %v2076
      %v3148 = vpack.c.b16 %v2080, %v2077
      %v3149 = vpack.c.b16 %v2081, %v2078
      %v3150 = vpack.c.b16 %v2085, %v2082
      %v3151 = vpack.c.b16 %v2086, %v2083
      %v3152 = vpack.c.b16 %v2087, %v2084
      %v3153 = vpack.c.b16 %v2091, %v2088
      %v3154 = vpack.c.b16 %v2092, %v2089
      %v3155 = vpack.c.b16 %v2093, %v2090
      %v3156 = vpack.c.b16 %v2097, %v2094
      %v3157 = vpack.c.b16 %v2098, %v2095
      %v3158 = vpack.c.b16 %v2099, %v2096
      %v3159 = vpack.c.b16 %v2103, %v2100
      %v3160 = vpack.c.b16 %v2104, %v2101
      %v3161 = vpack.c.b16 %v2105, %v2102
      %v3162 = vpack.c.b16 %v2109, %v2106
      %v3163 = vpack.c.b16 %v2110, %v2107
      %v3164 = vpack.c.b16 %v2111, %v2108
      %v3165 = vpack.c.b16 %v2115, %v2112
      %v3166 = vpack.c.b16 %v2116, %v2113
      %v3167 = vpack.c.b16 %v2117, %v2114
      %v3168 = vpack.c.b16 %v2121, %v2118
      %v3169 = vpack.c.b16 %v2122, %v2119
      %v3170 = vpack.c.b16 %v2123, %v2120
      %v3171 = vpack.c.b16 %v2127, %v2124
      %v3172 = vpack.c.b16 %v2128, %v2125
      %v3173 = vpack.c.b16 %v2129, %v2126
      %v3174 = vpack.c.b16 %v2133, %v2130
      %v3175 = vpack.c.b16 %v2134, %v2131
      %v3176 = vpack.c.b16 %v2135, %v2132
      %v3177 = vpack.c.b16 %v2139, %v2136
      %v3178 = vpack.c.b16 %v2140, %v2137
      %v3179 = vpack.c.b16 %v2141, %v2138
      %v3180 = vpack.c.b16 %v2145, %v2142
      %v3181 = vpack.c.b16 %v2146, %v2143
      %v3182 = vpack.c.b16 %v2147, %v2144
      %v3183 = vpack.c.b16 %v2151, %v2148
      %v3184 = vpack.c.b16 %v2152, %v2149
      %v3185 = vpack.c.b16 %v2153, %v2150
      %v3186 = vpack.c.b16 %v2157, %v2154
      %v3187 = vpack.c.b16 %v2158, %v2155
      %v3188 = vpack.c.b16 %v2159, %v2156
      %v3189 = vpack.c.b16 %v2163, %v2160
      %v3190 = vpack.c.b16 %v2164, %v2161
      %v3191 = vpack.c.b16 %v2165, %v2162
      %v3192 = vpack.c.b16 %v2169, %v2166
      %v3193 = vpack.c.b16 %v2170, %v2167
      %v3194 = vpack.c.b16 %v2171, %v2168
      %v3195 = vpack.c.b16 %v2175, %v2172
      %v3196 = vpack.c.b16 %v2176, %v2173
      %v3197 = vpack.c.b16 %v2177, %v2174
      %v3198 = vpack.c.b16 %v2181, %v2178
      %v3199 = vpack.c.b16 %v2182, %v2179
      %v3200 = vpack.c.b16 %v2183, %v2180
      %v3201 = vpack.c.b16 %v2187, %v2184
      %v3202 = vpack.c.b16 %v2188, %v2185
      %v3203 = vpack.c.b16 %v2189, %v2186
      %v3204 = vpack.c.b16 %v2193, %v2190
      %v3205 = vpack.c.b16 %v2194, %v2191
      %v3206 = vpack.c.b16 %v2195, %v2192
      %v3207 = vpack.c.b16 %v2199, %v2196
      %v3208 = vpack.c.b16 %v2200, %v2197
      %v3209 = vpack.c.b16 %v2201, %v2198
      %v3210 = vpack.c.b16 %v2205, %v2202
      %v3211 = vpack.c.b16 %v2206, %v2203
      %v3212 = vpack.c.b16 %v2207, %v2204
      %v3213 = vpack.c.b16 %v2211, %v2208
      %v3214 = vpack.c.b16 %v2212, %v2209
      %v3215 = vpack.c.b16 %v2213, %v2210
      %v3216 = vpack.c.b16 %v2217, %v2214
      %v3217 = vpack.c.b16 %v2218, %v2215
      %v3218 = vpack.c.b16 %v2219, %v2216
      %v3219 = vpack.c.b16 %v2223, %v2220
      %v3220 = vpack.c.b16 %v2224, %v2221
      %v3221 = vpack.c.b16 %v2225, %v2222
      %v3222 = vpack.c.b16 %v2229, %v2226
      %v3223 = vpack.c.b16 %v2230, %v2227
      %v3224 = vpack.c.b16 %v2231, %v2228
      %v3225 = vpack.c.b16 %v2235, %v2232
      %v3226 = vpack.c.b16 %v2236, %v2233
      %v3227 = vpack.c.b16 %v2237, %v2234
      %v3228 = vpack.c.b16 %v2241, %v2238
      %v3229 = vpack.c.b16 %v2242, %v2239
      %v3230 = vpack.c.b16 %v2243, %v2240
      %v3231 = vpack.c.b16 %v2247, %v2244
      %v3232 = vpack.c.b16 %v2248, %v2245
      %v3233 = vpack.c.b16 %v2249, %v2246
      %v3234 = vpack.c.b16 %v2253, %v2250
      %v3235 = vpack.c.b16 %v2254, %v2251
      %v3236 = vpack.c.b16 %v2255, %v2252
      %v3237 = vpack.c.b16 %v2259, %v2256
      %v3238 = vpack.c.b16 %v2260, %v2257
      %v3239 = vpack.c.b16 %v2261, %v2258
      %v3240 = vpack.c.b16 %v2265, %v2262
      %v3241 = vpack.c.b16 %v2266, %v2263
      %v3242 = vpack.c.b16 %v2267, %v2264
      %v3243 = vpack.c.b16 %v2271, %v2268
      %v3244 = vpack.c.b16 %v2272, %v2269
      %v3245 = vpack.c.b16 %v2273, %v2270
      %v3246 = vpack.c.b16 %v2277, %v2274
      %v3247 = vpack.c.b16 %v2278, %v2275
      %v3248 = vpack.c.b16 %v2279, %v2276
      %v3249 = vpack.c.b16 %v2283, %v2280
      %v3250 = vpack.c.b16 %v2284, %v2281
      %v3251 = vpack.c.b16 %v2285, %v2282
      %v3252 = vpack.c.b16 %v2289, %v2286
      %v3253 = vpack.c.b16 %v2290, %v2287
      %v3254 = vpack.c.b16 %v2291, %v2288
      %v3255 = vpack.c.b16 %v2295, %v2292
      %v3256 = vpack.c.b16 %v2296, %v2293
      %v3257 = vpack.c.b16 %v2297, %v2294
      %v3258 = vpack.c.b16 %v2301, %v2298
      %v3259 = vpack.c.b16 %v2302, %v2299
      %v3260 = vpack.c.b16 %v2303, %v2300
      %v3261 = vpack.c.b16 %v2307, %v2304
      %v3262 = vpack.c.b16 %v2308, %v2305
      %v3263 = vpack.c.b16 %v2309, %v2306
      %v3264 = vpack.c.b16 %v2313, %v2310
      %v3265 = vpack.c.b16 %v2314, %v2311
      %v3266 = vpack.c.b16 %v2315, %v2312
      %v3267 = vpack.c.b16 %v2319, %v2316
      %v3268 = vpack.c.b16 %v2320, %v2317
      %v3269 = vpack.c.b16 %v2321, %v2318
      %v3270 = vpack.c.b16 %v2325, %v2322
      %v3271 = vpack.c.b16 %v2326, %v2323
      %v3272 = vpack.c.b16 %v2327, %v2324
      %v3273 = vpack.c.b16 %v2331, %v2328
      %v3274 = vpack.c.b16 %v2332, %v2329
      %v3275 = vpack.c.b16 %v2333, %v2330
      %v3276 = vpack.c.b16 %v2337, %v2334
      %v3277 = vpack.c.b16 %v2338, %v2335
      %v3278 = vpack.c.b16 %v2339, %v2336
      %v3279 = vpack.c.b16 %v2343, %v2340
      %v3280 = vpack.c.b16 %v2344, %v2341
      %v3281 = vpack.c.b16 %v2345, %v2342
      %v3282 = vpack.c.b16 %v2349, %v2346
      %v3283 = vpack.c.b16 %v2350, %v2347
      %v3284 = vpack.c.b16 %v2351, %v2348
      %v3285 = vpack.c.b16 %v2355, %v2352
      %v3286 = vpack.c.b16 %v2356, %v2353
      %v3287 = vpack.c.b16 %v2357, %v2354
      %v3288 = vpack.c.b16 %v2361, %v2358
      %v3289 = vpack.c.b16 %v2362, %v2359
      %v3290 = vpack.c.b16 %v2363, %v2360
      %v3291 = vpack.c.b16 %v2367, %v2364
      %v3292 = vpack.c.b16 %v2368, %v2365
      %v3293 = vpack.c.b16 %v2369, %v2366
      %v3294 = vpack.c.b16 %v2373, %v2370
      %v3295 = vpack.c.b16 %v2374, %v2371
      %v3296 = vpack.c.b16 %v2375, %v2372
      %v3297 = vpack.c.b16 %v2379, %v2376
      %v3298 = vpack.c.b16 %v2380, %v2377
      %v3299 = vpack.c.b16 %v2381, %v2378
      %v3300 = vpack.c.b16 %v2385, %v2382
      %v3301 = vpack.c.b16 %v2386, %v2383
      %v3302 = vpack.c.b16 %v2387, %v2384
      %v3303 = vpack.c.b16 %v2391, %v2388
      %v3304 = vpack.c.b16 %v2392, %v2389
      %v3305 = vpack.c.b16 %v2393, %v2390
      %v3306 = vpack.c.b16 %v2397, %v2394
      %v3307 = vpack.c.b16 %v2398, %v2395
      %v3308 = vpack.c.b16 %v2399, %v2396
      %v3309 = vpack.c.b16 %v2403, %v2400
      %v3310 = vpack.c.b16 %v2404, %v2401
      %v3311 = vpack.c.b16 %v2405, %v2402
      %v3312 = vpack.c.b16 %v2409, %v2406
      %v3313 = vpack.c.b16 %v2410, %v2407
      %v3314 = vpack.c.b16 %v2411, %v2408
      %v3315 = vpack.c.b16 %v2415, %v2412
      %v3316 = vpack.c.b16 %v2416, %v2413
      %v3317 = vpack.c.b16 %v2417, %v2414
      %v3318 = vpack.c.b16 %v2421, %v2418
      %v3319 = vpack.c.b16 %v2422, %v2419
      %v3320 = vpack.c.b16 %v2423, %v2420
      %v3321 = vpack.c.b16 %v2427, %v2424
      %v3322 = vpack.c.b16 %v2428, %v2425
      %v3323 = vpack.c.b16 %v2429, %v2426
      %v3324 = vpack.c.b16 %v2433, %v2430
      %v3325 = vpack.c.b16 %v2434, %v2431
      %v3326 = vpack.c.b16 %v2435, %v2432
      %v3327 = vpack.c.b16 %v2439, %v2436
      %v3328 = vpack.c.b16 %v2440, %v2437
      %v3329 = vpack.c.b16 %v2441, %v2438
      %v3330 = vpack.c.b16 %v2445, %v2442
      %v3331 = vpack.c.b16 %v2446, %v2443
      %v3332 = vpack.c.b16 %v2447, %v2444
      %v3333 = vpack.c.b16 %v2451, %v2448
      %v3334 = vpack.c.b16 %v2452, %v2449
      %v3335 = vpack.c.b16 %v2453, %v2450
      %v3336 = vpack.c.b16 %v2457, %v2454
      %v3337 = vpack.c.b16 %v2458, %v2455
      %v3338 = vpack.c.b16 %v2459, %v2456
      %v3339 = vpack.c.b16 %v2463, %v2460
      %v3340 = vpack.c.b16 %v2464, %v2461
      %v3341 = vpack.c.b16 %v2465, %v2462
      %v3342 = vpack.c.b16 %v2469, %v2466
      %v3343 = vpack.c.b16 %v2470, %v2467
      %v3344 = vpack.c.b16 %v2471, %v2468
      %v3345 = vpack.c.b16 %v2475, %v2472
      %v3346 = vpack.c.b16 %v2476, %v2473
      %v3347 = vpack.c.b16 %v2477, %v2474
      %v3348 = vpack.c.b16 %v2481, %v2478
      %v3349 = vpack.c.b16 %v2482, %v2479
      %v3350 = vpack.c.b16 %v2483, %v2480
      %v3351 = vpack.c.b16 %v2487, %v2484
      %v3352 = vpack.c.b16 %v2488, %v2485
      %v3353 = vpack.c.b16 %v2489, %v2486
      %v3354 = vpack.c.b16 %v2493, %v2490
      %v3355 = vpack.c.b16 %v2494, %v2491
      %v3356 = vpack.c.b16 %v2495, %v2492
      %v3357 = vpack.c.b16 %v2499, %v2496
      %v3358 = vpack.c.b16 %v2500, %v2497
      %v3359 = vpack.c.b16 %v2501, %v2498
      %v3360 = vpack.c.b16 %v2505, %v2502
      %v3361 = vpack.c.b16 %v2506, %v2503
      %v3362 = vpack.c.b16 %v2507, %v2504
      %v3363 = vpack.c.b16 %v2511, %v2508
      %v3364 = vpack.c.b16 %v2512, %v2509
      %v3365 = vpack.c.b16 %v2513, %v2510
      %v3366 = vpack.c.b16 %v2517, %v2514
      %v3367 = vpack.c.b16 %v2518, %v2515
      %v3368 = vpack.c.b16 %v2519, %v2516
      %v3369 = vpack.c.b16 %v2523, %v2520
      %v3370 = vpack.c.b16 %v2524, %v2521
      %v3371 = vpack.c.b16 %v2525, %v2522
      %v3372 = vpack.c.b16 %v2529, %v2526
      %v3373 = vpack.c.b16 %v2530, %v2527
      %v3374 = vpack.c.b16 %v2531, %v2528
      %v3375 = vpack.c.b16 %v2535, %v2532
      %v3376 = vpack.c.b16 %v2536, %v2533
      %v3377 = vpack.c.b16 %v2537, %v2534
      %v3378 = vpack.c.b16 %v2541, %v2538
      %v3379 = vpack.c.b16 %v2542, %v2539
      %v3380 = vpack.c.b16 %v2543, %v2540
      %v3381 = vpack.c.b16 %v2547, %v2544
      %v3382 = vpack.c.b16 %v2548, %v2545
      %v3383 = vpack.c.b16 %v2549, %v2546
      %v3384 = vpack.c.b16 %v2553, %v2550
      %v3385 = vpack.c.b16 %v2554, %v2551
      %v3386 = vpack.c.b16 %v2555, %v2552
      %v3387 = vpack.c.b16 %v2559, %v2556
      %v3388 = vpack.c.b16 %v2560, %v2557
      %v3389 = vpack.c.b16 %v2561, %v2558
      %v3390 = vpack.c.b16 %v2565, %v2562
      %v3391 = vpack.c.b16 %v2566, %v2563
      %v3392 = vpack.c.b16 %v2567, %v2564
      %v3393 = vpack.c.b16 %v2571, %v2568
      %v3394 = vpack.c.b16 %v2572, %v2569
      %v3395 = vpack.c.b16 %v2573, %v2570
      %v3396 = vpack.c.b16 %v2577, %v2574
      %v3397 = vpack.c.b16 %v2578, %v2575
      %v3398 = vpack.c.b16 %v2579, %v2576
      %v3399 = vpack.c.b16 %v2583, %v2580
      %v3400 = vpack.c.b16 %v2584, %v2581
      %v3401 = vpack.c.b16 %v2585, %v2582
      %v3402 = vpack.c.b16 %v2589, %v2586
      %v3403 = vpack.c.b16 %v2590, %v2587
      %v3404 = vpack.c.b16 %v2591, %v2588
      %v3405 = vpack.c.b16 %v2595, %v2592
      %v3406 = vpack.c.b16 %v2596, %v2593
      %v3407 = vpack.c.b16 %v2597, %v2594
      %v3408 = vpack.c.b16 %v2601, %v2598
      %v3409 = vpack.c.b16 %v2602, %v2599
      %v3410 = vpack.c.b16 %v2603, %v2600
      %v3411 = vpack.c.b16 %v2607, %v2604
      %v3412 = vpack.c.b16 %v2608, %v2605
      %v3413 = vpack.c.b16 %v2609, %v2606
      %v3414 = vpack.c.b16 %v2613, %v2610
      %v3415 = vpack.c.b16 %v2614, %v2611
      %v3416 = vpack.c.b16 %v2615, %v2612
      %v3417 = vpack.c.b16 %v2619, %v2616
      %v3418 = vpack.c.b16 %v2620, %v2617
      %v3419 = vpack.c.b16 %v2621, %v2618
      %v3420 = vpack.c.b16 %v2625, %v2622
      %v3421 = vpack.c.b16 %v2626, %v2623
      %v3422 = vpack.c.b16 %v2627, %v2624
      %v3423 = vpack.c.b16 %v2631, %v2628
      %v3424 = vpack.c.b16 %v2632, %v2629
      %v3425 = vpack.c.b16 %v2633, %v2630
      %v3426 = vpack.c.b16 %v2637, %v2634
      %v3427 = vpack.c.b16 %v2638, %v2635
      %v3428 = vpack.c.b16 %v2639, %v2636
      %v3429 = vpack.c.b16 %v2643, %v2640
      %v3430 = vpack.c.b16 %v2644, %v2641
      %v3431 = vpack.c.b16 %v2645, %v2642
      %v3432 = vpack.c.b16 %v2649, %v2646
      %v3433 = vpack.c.b16 %v2650, %v2647
      %v3434 = vpack.c.b16 %v2651, %v2648
      %v3435 = vpack.c.b16 %v2655, %v2652
      %v3436 = vpack.c.b16 %v2656, %v2653
      %v3437 = vpack.c.b16 %v2657, %v2654
      %v3438 = vpack.c.b16 %v2661, %v2658
      %v3439 = vpack.c.b16 %v2662, %v2659
      %v3440 = vpack.c.b16 %v2663, %v2660
      %v3441 = vpack.c.b16 %v2667, %v2664
      %v3442 = vpack.c.b16 %v2668, %v2665
      %v3443 = vpack.c.b16 %v2669, %v2666
      %v3444 = vpack.c.b16 %v2673, %v2670
      %v3445 = vpack.c.b16 %v2674, %v2671
      %v3446 = vpack.c.b16 %v2675, %v2672
      %v3447 = vpack.c.b16 %v2679, %v2676
      %v3448 = vpack.c.b16 %v2680, %v2677
      %v3449 = vpack.c.b16 %v2681, %v2678
      %v3450 = vpack.c.b16 %v2685, %v2682
      %v3451 = vpack.c.b16 %v2686, %v2683
      %v3452 = vpack.c.b16 %v2687, %v2684
      %v3453 = vpack.c.b16 %v2691, %v2688
      %v3454 = vpack.c.b16 %v2692, %v2689
      %v3455 = vpack.c.b16 %v2693, %v2690
      %v3456 = vpack.c.b16 %v2697, %v2694
      %v3457 = vpack.c.b16 %v2698, %v2695
      %v3458 = vpack.c.b16 %v2699, %v2696
      %v3459 = vpack.c.b16 %v2703, %v2700
      %v3460 = vpack.c.b16 %v2704, %v2701
      %v3461 = vpack.c.b16 %v2705, %v2702
      %v3462 = vpack.c.b16 %v2709, %v2706
      %v3463 = vpack.c.b16 %v2710, %v2707
      %v3464 = vpack.c.b16 %v2711, %v2708
      %v3465 = vpack.c.b16 %v2715, %v2712
      %v3466 = vpack.c.b16 %v2716, %v2713
      %v3467 = vpack.c.b16 %v2717, %v2714
      %v3468 = vpack.c.b16 %v2721, %v2718
      %v3469 = vpack.c.b16 %v2722, %v2719
      %v3470 = vpack.c.b16 %v2723, %v2720
      %v3471 = vpack.c.b16 %v2727, %v2724
      %v3472 = vpack.c.b16 %v2728, %v2725
      %v3473 = vpack.c.b16 %v2729, %v2726
      %v3474 = vpack.c.b16 %v2733, %v2730
      %v3475 = vpack.c.b16 %v2734, %v2731
      %v3476 = vpack.c.b16 %v2735, %v2732
      %v3477 = vpack.c.b16 %v2739, %v2736
      %v3478 = vpack.c.b16 %v2740, %v2737
      %v3479 = vpack.c.b16 %v2741, %v2738
      %v3480 = vpack.c.b16 %v2745, %v2742
      %v3481 = vpack.c.b16 %v2746, %v2743
      %v3482 = vpack.c.b16 %v2747, %v2744
      %v3483 = vpack.c.b16 %v2751, %v2748
      %v3484 = vpack.c.b16 %v2752, %v2749
      %v3485 = vpack.c.b16 %v2753, %v2750
      %v3486 = vpack.c.b16 %v2757, %v2754
      %v3487 = vpack.c.b16 %v2758, %v2755
      %v3488 = vpack.c.b16 %v2759, %v2756
      %v3489 = vpack.c.b16 %v2763, %v2760
      %v3490 = vpack.c.b16 %v2764, %v2761
      %v3491 = vpack.c.b16 %v2765, %v2762
      %v3492 = vpack.c.b16 %v2769, %v2766
      %v3493 = vpack.c.b16 %v2770, %v2767
      %v3494 = vpack.c.b16 %v2771, %v2768
      %v3495 = vpack.c.b16 %v2775, %v2772
      %v3496 = vpack.c.b16 %v2776, %v2773
      %v3497 = vpack.c.b16 %v2777, %v2774
      %v3498 = vpack.c.b16 %v2781, %v2778
      %v3499 = vpack.c.b16 %v2782, %v2779
      %v3500 = vpack.c.b16 %v2783, %v2780
      %v3501 = vpack.c.b16 %v2787, %v2784
      %v3502 = vpack.c.b16 %v2788, %v2785
      %v3503 = vpack.c.b16 %v2789, %v2786
      %v3504 = vpack.c.b16 %v2793, %v2790
      %v3505 = vpack.c.b16 %v2794, %v2791
      %v3506 = vpack.c.b16 %v2795, %v2792
      %v3507 = vpack.c.b16 %v2799, %v2796
      %v3508 = vpack.c.b16 %v2800, %v2797
      %v3509 = vpack.c.b16 %v2801, %v2798
      %v3510 = vpack.c.b16 %v2805, %v2802
      %v3511 = vpack.c.b16 %v2806, %v2803
      %v3512 = vpack.c.b16 %v2807, %v2804
      %v3513 = vpack.c.b16 %v2811, %v2808
      %v3514 = vpack.c.b16 %v2812, %v2809
      %v3515 = vpack.c.b16 %v2813, %v2810
      %v3516 = vpack.c.b16 %v2817, %v2814
      %v3517 = vpack.c.b16 %v2818, %v2815
      %v3518 = vpack.c.b16 %v2819, %v2816
      %v3519 = vpack.c.b16 %v2823, %v2820
      %v3520 = vpack.c.b16 %v2824, %v2821
      %v3521 = vpack.c.b16 %v2825, %v2822
      %v3522 = vpack.c.b16 %v2829, %v2826
      %v3523 = vpack.c.b16 %v2830, %v2827
      %v3524 = vpack.c.b16 %v2831, %v2828
      %v3525 = vpack.c.b16 %v2835, %v2832
      %v3526 = vpack.c.b16 %v2836, %v2833
      %v3527 = vpack.c.b16 %v2837, %v2834
      %v3528 = vpack.c.b16 %v2841, %v2838
      %v3529 = vpack.c.b16 %v2842, %v2839
      %v3530 = vpack.c.b16 %v2843, %v2840
      %v3531 = vpack.c.b16 %v2847, %v2844
      %v3532 = vpack.c.b16 %v2848, %v2845
      %v3533 = vpack.c.b16 %v2849, %v2846
      %v3534 = vpack.c.b16 %v2853, %v2850
      %v3535 = vpack.c.b16 %v2854, %v2851
      %v3536 = vpack.c.b16 %v2855, %v2852
      %v3537 = vpack.c.b16 %v2859, %v2856
      %v3538 = vpack.c.b16 %v2860, %v2857
      %v3539 = vpack.c.b16 %v2861, %v2858
      %v3540 = vpack.c.b16 %v2865, %v2862
      %v3541 = vpack.c.b16 %v2866, %v2863
      %v3542 = vpack.c.b16 %v2867, %v2864
      %v3543 = vpack.c.b16 %v2871, %v2868
      %v3544 = vpack.c.b16 %v2872, %v2869
      %v3545 = vpack.c.b16 %v2873, %v2870
      %v3546 = vpack.c.b16 %v2877, %v2874
      %v3547 = vpack.c.b16 %v2878, %v2875
      %v3548 = vpack.c.b16 %v2879, %v2876
      %v3549 = vpack.c.b16 %v2883, %v2880
      %v3550 = vpack.c.b16 %v2884, %v2881
      %v3551 = vpack.c.b16 %v2885, %v2882
      %v3552 = vpack.c.b16 %v2889, %v2886
      %v3553 = vpack.c.b16 %v2890, %v2887
      %v3554 = vpack.c.b16 %v2891, %v2888
      %v3555 = vpack.c.b16 %v2895, %v2892
      %v3556 = vpack.c.b16 %v2896, %v2893
      %v3557 = vpack.c.b16 %v2897, %v2894
      %v3558 = vpack.c.b16 %v2901, %v2898
      %v3559 = vpack.c.b16 %v2902, %v2899
      %v3560 = vpack.c.b16 %v2903, %v2900
      %v3561 = vpack.c.b16 %v2907, %v2904
      %v3562 = vpack.c.b16 %v2908, %v2905
      %v3563 = vpack.c.b16 %v2909, %v2906
      %v3564 = vpack.c.b16 %v2913, %v2910
      %v3565 = vpack.c.b16 %v2914, %v2911
      %v3566 = vpack.c.b16 %v2915, %v2912
      %v3567 = vpack.c.b16 %v2919, %v2916
      %v3568 = vpack.c.b16 %v2920, %v2917
      %v3569 = vpack.c.b16 %v2921, %v2918
      %v3570 = vpack.c.b16 %v2925, %v2922
      %v3571 = vpack.c.b16 %v2926, %v2923
      %v3572 = vpack.c.b16 %v2927, %v2924
      %v3573 = vpack.c.b16 %v2931, %v2928
      %v3574 = vpack.c.b16 %v2932, %v2929
      %v3575 = vpack.c.b16 %v2933, %v2930
      %v3576 = vpack.c.b16 %v2937, %v2934
      %v3577 = vpack.c.b16 %v2938, %v2935
      %v3578 = vpack.c.b16 %v2939, %v2936
      %v3579 = vpack.c.b16 %v2943, %v2940
      %v3580 = vpack.c.b16 %v2944, %v2941
      %v3581 = vpack.c.b16 %v2945, %v2942
      %v3582 = vpack.c.b16 %v2949, %v2946
      %v3583 = vpack.c.b16 %v2950, %v2947
      %v3584 = vpack.c.b16 %v2951, %v2948
      %v3585 = vpack.c.b16 %v2955, %v2952
      %v3586 = vpack.c.b16 %v2956, %v2953
      %v3587 = vpack.c.b16 %v2957, %v2954
      %v3588 = vpack.c.b16 %v2961, %v2958
      %v3589 = vpack.c.b16 %v2962, %v2959
      %v3590 = vpack.c.b16 %v2963, %v2960
      %v3591 = vpack.c.b16 %v2967, %v2964
      %v3592 = vpack.c.b16 %v2968, %v2965
      %v3593 = vpack.c.b16 %v2969, %v2966
      %v3594 = vpack.c.b16 %v2973, %v2970
      %v3595 = vpack.c.b16 %v2974, %v2971
      %v3596 = vpack.c.b16 %v2975, %v2972
      %v3597 = vpack.c.b16 %v2979, %v2976
      %v3598 = vpack.c.b16 %v2980, %v2977
      %v3599 = vpack.c.b16 %v2981, %v2978
      %v3600 = vpack.c.b16 %v2985, %v2982
      %v3601 = vpack.c.b16 %v2986, %v2983
      %v3602 = vpack.c.b16 %v2987, %v2984
      %v3603 = vpack.c.b16 %v2991, %v2988
      %v3604 = vpack.c.b16 %v2992, %v2989
      %v3605 = vpack.c.b16 %v2993, %v2990
      %v3606 = vpack.c.b16 %v2997, %v2994
      %v3607 = vpack.c.b16 %v2998, %v2995
      %v3608 = vpack.c.b16 %v2999, %v2996
      %v3609 = vpack.c.b16 %v3003, %v3000
      %v3610 = vpack.c.b16 %v3004, %v3001
      %v3611 = vpack.c.b16 %v3005, %v3002
      %v3612 = vpack.c.b16 %v3009, %v3006
      %v3613 = vpack.c.b16 %v3010, %v3007
      %v3614 = vpack.c.b16 %v3011, %v3008
      %v3615 = vpack.c.b16 %v3015, %v3012
      %v3616 = vpack.c.b16 %v3016, %v3013
      %v3617 = vpack.c.b16 %v3017, %v3014
      %v3618 = vpack.c.b16 %v3021, %v3018
      %v3619 = vpack.c.b16 %v3022, %v3019
      %v3620 = vpack.c.b16 %v3023, %v3020
      %v3621 = vpack.c.b16 %v3027, %v3024
      %v3622 = vpack.c.b16 %v3028, %v3025
      %v3623 = vpack.c.b16 %v3029, %v3026
      %v3624 = vpack.c.b16 %v3033, %v3030
      %v3625 = vpack.c.b16 %v3034, %v3031
      %v3626 = vpack.c.b16 %v3035, %v3032
      %v3627 = vpack.c.b16 %v3039, %v3036
      %v3628 = vpack.c.b16 %v3040, %v3037
      %v3629 = vpack.c.b16 %v3041, %v3038
      %v3630 = vpack.c.b16 %v3045, %v3042
      %v3631 = vpack.c.b16 %v3046, %v3043
      %v3632 = vpack.c.b16 %v3047, %v3044
      %v3633 = vpack.c.b16 %v3051, %v3048
      %v3634 = vpack.c.b16 %v3052, %v3049
      %v3635 = vpack.c.b16 %v3053, %v3050
      %v3636 = vpack.c.b16 %v3057, %v3054
      %v3637 = vpack.c.b16 %v3058, %v3055
      %v3638 = vpack.c.b16 %v3059, %v3056
      %v3639 = vpack.c.b16 %v3063, %v3060
      %v3640 = vpack.c.b16 %v3064, %v3061
      %v3641 = vpack.c.b16 %v3065, %v3062
      %v4064 = vunpack.c.l.b16 %v1108
      %v4065 = vunpack.c.l.b16 %v1109
      %v4066 = vunpack.c.l.b16 %v1110
      %v4067 = vunpack.c.l.b16 %v1111
      %v4068 = vunpack.c.l.b16 %v1112
      %v4069 = vunpack.c.l.b16 %v1113
      %v4070 = vunpack.c.l.b16 %v1114
      %v4071 = vunpack.c.l.b16 %v1115
      %v4072 = vunpack.c.l.b16 %v1116
      %v4073 = vunpack.c.l.b16 %v1117
      %v4074 = vunpack.c.l.b16 %v1118
      %v4075 = vunpack.c.l.b16 %v1119
      %v4076 = vunpack.c.l.b16 %v1120
      %v4077 = vunpack.c.l.b16 %v1121
      %v4078 = vunpack.c.l.b16 %v1122
      %v4079 = vunpack.c.l.b16 %v1123
      %v4080 = vunpack.c.l.b16 %v1124
      %v4081 = vunpack.c.l.b16 %v1125
      %v4082 = vunpack.c.l.b16 %v1126
      %v4083 = vunpack.c.l.b16 %v1127
      %v4084 = vunpack.c.l.b16 %v1128
      %v4085 = vunpack.c.l.b16 %v1129
      %v4086 = vunpack.c.l.b16 %v1130
      %v4087 = vunpack.c.l.b16 %v1131
      %v4088 = vunpack.c.l.b16 %v1132
      %v4089 = vunpack.c.l.b16 %v1133
      %v4090 = vunpack.c.l.b16 %v1134
      %v4091 = vunpack.c.l.b16 %v1135
      %v4092 = vunpack.c.l.b16 %v1136
      %v4093 = vunpack.c.l.b16 %v1137
      %v4094 = vunpack.c.l.b16 %v1138
      %v4095 = vunpack.c.l.b16 %v1139
      %v4096 = vunpack.c.l.b16 %v1140
      %v4097 = vunpack.c.l.b16 %v1141
      %v4098 = vunpack.c.l.b16 %v1142
      %v4099 = vunpack.c.l.b16 %v1143
      %v4100 = vunpack.c.l.b16 %v1144
      %v4101 = vunpack.c.l.b16 %v1145
      %v4102 = vpack.c.b16 %v4065, %v4064
      %v4103 = vpack.c.b16 %v4067, %v4066
      %v4104 = vpack.c.b16 %v4069, %v4068
      %v4105 = vpack.c.b16 %v4071, %v4070
      %v4106 = vpack.c.b16 %v4073, %v4072
      %v4107 = vpack.c.b16 %v4075, %v4074
      %v4108 = vpack.c.b16 %v4077, %v4076
      %v4109 = vpack.c.b16 %v4079, %v4078
      %v4110 = vpack.c.b16 %v4081, %v4080
      %v4111 = vpack.c.b16 %v4083, %v4082
      %v4112 = vpack.c.b16 %v4085, %v4084
      %v4113 = vpack.c.b16 %v4087, %v4086
      %v4114 = vpack.c.b16 %v4089, %v4088
      %v4115 = vpack.c.b16 %v4091, %v4090
      %v4116 = vpack.c.b16 %v4093, %v4092
      %v4117 = vpack.c.b16 %v4095, %v4094
      %v4118 = vpack.c.b16 %v4097, %v4096
      %v4119 = vpack.c.b16 %v4099, %v4098
      %v4120 = vpack.c.b16 %v4101, %v4100
      %vm4139 = vcmask 359424
      %v4141 = vsel %vm4139, %v3068, 0
      %v4144 = vsel %vm4139, %v3071, 0
      %v4147 = vsel %vm4139, %v3074, 0
      %v4150 = vsel %vm4139, %v3077, 0
      %v4153 = vsel %vm4139, %v3080, 0
      %v4156 = vsel %vm4139, %v3083, 0
      %v4159 = vsel %vm4139, %v3086, 0
      %v4162 = vsel %vm4139, %v3089, 0
      %v4165 = vsel %vm4139, %v3092, 0
      %v4168 = vsel %vm4139, %v3095, 0
      %v4171 = vsel %vm4139, %v3098, 0
      %v4174 = vsel %vm4139, %v3101, 0
      %v4177 = vsel %vm4139, %v3104, 0
      %v4180 = vsel %vm4139, %v3107, 0
      %v4183 = vsel %vm4139, %v3110, 0
      %v4186 = vsel %vm4139, %v3113, 0
      %v4189 = vsel %vm4139, %v3116, 0
      %v4192 = vsel %vm4139, %v3119, 0
      %v4195 = vsel %vm4139, %v3122, 0
      %v4198 = vsel %vm4139, %v3125, 0
      %v4201 = vsel %vm4139, %v3128, 0
      %v4204 = vsel %vm4139, %v3131, 0
      %v4207 = vsel %vm4139, %v3134, 0
      %v4210 = vsel %vm4139, %v3137, 0
      %v4213 = vsel %vm4139, %v3140, 0
      %v4216 = vsel %vm4139, %v3143, 0
      %v4219 = vsel %vm4139, %v3146, 0
      %v4222 = vsel %vm4139, %v3149, 0
      %v4225 = vsel %vm4139, %v3152, 0
      %v4228 = vsel %vm4139, %v3155, 0
      %v4231 = vsel %vm4139, %v3158, 0
      %v4234 = vsel %vm4139, %v3161, 0
      %v4237 = vsel %vm4139, %v3164, 0
      %v4240 = vsel %vm4139, %v3167, 0
      %v4243 = vsel %vm4139, %v3170, 0
      %v4246 = vsel %vm4139, %v3173, 0
      %v4249 = vsel %vm4139, %v3176, 0
      %v4252 = vsel %vm4139, %v3179, 0
      %v4255 = vsel %vm4139, %v3182, 0
      %v4258 = vsel %vm4139, %v3185, 0
      %v4261 = vsel %vm4139, %v3188, 0
      %v4264 = vsel %vm4139, %v3191, 0
      %v4267 = vsel %vm4139, %v3194, 0
      %v4270 = vsel %vm4139, %v3197, 0
      %v4273 = vsel %vm4139, %v3200, 0
      %v4276 = vsel %vm4139, %v3203, 0
      %v4279 = vsel %vm4139, %v3206, 0
      %v4282 = vsel %vm4139, %v3209, 0
      %v4285 = vsel %vm4139, %v3212, 0
      %v4288 = vsel %vm4139, %v3215, 0
      %v4291 = vsel %vm4139, %v3218, 0
      %v4294 = vsel %vm4139, %v3221, 0
      %v4297 = vsel %vm4139, %v3224, 0
      %v4300 = vsel %vm4139, %v3227, 0
      %v4303 = vsel %vm4139, %v3230, 0
      %v4306 = vsel %vm4139, %v3233, 0
      %v4309 = vsel %vm4139, %v3236, 0
      %v4312 = vsel %vm4139, %v3239, 0
      %v4315 = vsel %vm4139, %v3242, 0
      %v4318 = vsel %vm4139, %v3245, 0
      %v4321 = vsel %vm4139, %v3248, 0
      %v4324 = vsel %vm4139, %v3251, 0
      %v4327 = vsel %vm4139, %v3254, 0
      %v4330 = vsel %vm4139, %v3257, 0
      %v4333 = vsel %vm4139, %v3260, 0
      %v4336 = vsel %vm4139, %v3263, 0
      %v4339 = vsel %vm4139, %v3266, 0
      %v4342 = vsel %vm4139, %v3269, 0
      %v4345 = vsel %vm4139, %v3272, 0
      %v4348 = vsel %vm4139, %v3275, 0
      %v4351 = vsel %vm4139, %v3278, 0
      %v4354 = vsel %vm4139, %v3281, 0
      %v4357 = vsel %vm4139, %v3284, 0
      %v4360 = vsel %vm4139, %v3287, 0
      %v4363 = vsel %vm4139, %v3290, 0
      %v4366 = vsel %vm4139, %v3293, 0
      %v4369 = vsel %vm4139, %v3296, 0
      %v4372 = vsel %vm4139, %v3299, 0
      %v4375 = vsel %vm4139, %v3302, 0
      %v4378 = vsel %vm4139, %v3305, 0
      %v4381 = vsel %vm4139, %v3308, 0
      %v4384 = vsel %vm4139, %v3311, 0
      %v4387 = vsel %vm4139, %v3314, 0
      %v4390 = vsel %vm4139, %v3317, 0
      %v4393 = vsel %vm4139, %v3320, 0
      %v4396 = vsel %vm4139, %v3323, 0
      %v4399 = vsel %vm4139, %v3326, 0
      %v4402 = vsel %vm4139, %v3329, 0
      %v4405 = vsel %vm4139, %v3332, 0
      %v4408 = vsel %vm4139, %v3335, 0
      %v4411 = vsel %vm4139, %v3338, 0
      %v4414 = vsel %vm4139, %v3341, 0
      %v4417 = vsel %vm4139, %v3344, 0
      %v4420 = vsel %vm4139, %v3347, 0
      %v4423 = vsel %vm4139, %v3350, 0
      %v4426 = vsel %vm4139, %v3353, 0
      %v4429 = vsel %vm4139, %v3356, 0
      %v4432 = vsel %vm4139, %v3359, 0
      %v4435 = vsel %vm4139, %v3362, 0
      %v4438 = vsel %vm4139, %v3365, 0
      %v4441 = vsel %vm4139, %v3368, 0
      %v4444 = vsel %vm4139, %v3371, 0
      %v4447 = vsel %vm4139, %v3374, 0
      %v4450 = vsel %vm4139, %v3377, 0
      %v4453 = vsel %vm4139, %v3380, 0
      %v4456 = vsel %vm4139, %v3383, 0
      %v4459 = vsel %vm4139, %v3386, 0
      %v4462 = vsel %vm4139, %v3389, 0
      %v4465 = vsel %vm4139, %v3392, 0
      %v4468 = vsel %vm4139, %v3395, 0
      %v4471 = vsel %vm4139, %v3398, 0
      %v4474 = vsel %vm4139, %v3401, 0
      %v4477 = vsel %vm4139, %v3404, 0
      %v4480 = vsel %vm4139, %v3407, 0
      %v4483 = vsel %vm4139, %v3410, 0
      %v4486 = vsel %vm4139, %v3413, 0
      %v4489 = vsel %vm4139, %v3416, 0
      %v4492 = vsel %vm4139, %v3419, 0
      %v4495 = vsel %vm4139, %v3422, 0
      %v4498 = vsel %vm4139, %v3425, 0
      %v4501 = vsel %vm4139, %v3428, 0
      %v4504 = vsel %vm4139, %v3431, 0
      %v4507 = vsel %vm4139, %v3434, 0
      %v4510 = vsel %vm4139, %v3437, 0
      %v4513 = vsel %vm4139, %v3440, 0
      %v4516 = vsel %vm4139, %v3443, 0
      %v4519 = vsel %vm4139, %v3446, 0
      %v4522 = vsel %vm4139, %v3449, 0
      %v4525 = vsel %vm4139, %v3452, 0
      %v4528 = vsel %vm4139, %v3455, 0
      %v4531 = vsel %vm4139, %v3458, 0
      %v4534 = vsel %vm4139, %v3461, 0
      %v4537 = vsel %vm4139, %v3464, 0
      %v4540 = vsel %vm4139, %v3467, 0
      %v4543 = vsel %vm4139, %v3470, 0
      %v4546 = vsel %vm4139, %v3473, 0
      %v4549 = vsel %vm4139, %v3476, 0
      %v4552 = vsel %vm4139, %v3479, 0
      %v4555 = vsel %vm4139, %v3482, 0
      %v4558 = vsel %vm4139, %v3485, 0
      %v4561 = vsel %vm4139, %v3488, 0
      %v4564 = vsel %vm4139, %v3491, 0
      %v4567 = vsel %vm4139, %v3494, 0
      %v4570 = vsel %vm4139, %v3497, 0
      %v4573 = vsel %vm4139, %v3500, 0
      %v4576 = vsel %vm4139, %v3503, 0
      %v4579 = vsel %vm4139, %v3506, 0
      %v4582 = vsel %vm4139, %v3509, 0
      %v4585 = vsel %vm4139, %v3512, 0
      %v4588 = vsel %vm4139, %v3515, 0
      %v4591 = vsel %vm4139, %v3518, 0
      %v4594 = vsel %vm4139, %v3521, 0
      %v4597 = vsel %vm4139, %v3524, 0
      %v4600 = vsel %vm4139, %v3527, 0
      %v4603 = vsel %vm4139, %v3530, 0
      %v4606 = vsel %vm4139, %v3533, 0
      %v4609 = vsel %vm4139, %v3536, 0
      %v4612 = vsel %vm4139, %v3539, 0
      %v4615 = vsel %vm4139, %v3542, 0
      %v4618 = vsel %vm4139, %v3545, 0
      %v4621 = vsel %vm4139, %v3548, 0
      %v4624 = vsel %vm4139, %v3551, 0
      %v4627 = vsel %vm4139, %v3554, 0
      %v4630 = vsel %vm4139, %v3557, 0
      %v4633 = vsel %vm4139, %v3560, 0
      %v4636 = vsel %vm4139, %v3563, 0
      %v4639 = vsel %vm4139, %v3566, 0
      %v4642 = vsel %vm4139, %v3569, 0
      %v4645 = vsel %vm4139, %v3572, 0
      %v4648 = vsel %vm4139, %v3575, 0
      %v4651 = vsel %vm4139, %v3578, 0
      %v4654 = vsel %vm4139, %v3581, 0
      %v4657 = vsel %vm4139, %v3584, 0
      %v4660 = vsel %vm4139, %v3587, 0
      %v4663 = vsel %vm4139, %v3590, 0
      %v4666 = vsel %vm4139, %v3593, 0
      %v4669 = vsel %vm4139, %v3596, 0
      %v4672 = vsel %vm4139, %v3599, 0
      %v4675 = vsel %vm4139, %v3602, 0
      %v4678 = vsel %vm4139, %v3605, 0
      %v4681 = vsel %vm4139, %v3608, 0
      %v4684 = vsel %vm4139, %v3611, 0
      %v4687 = vsel %vm4139, %v3614, 0
      %v4690 = vsel %vm4139, %v3617, 0
      %v4693 = vsel %vm4139, %v3620, 0
      %v4696 = vsel %vm4139, %v3623, 0
      %v4699 = vsel %vm4139, %v3626, 0
      %v4702 = vsel %vm4139, %v3629, 0
      %v4705 = vsel %vm4139, %v3632, 0
      %v4708 = vsel %vm4139, %v3635, 0
      %v4711 = vsel %vm4139, %v3638, 0
      %v4714 = vsel %vm4139, %v3641, 0
      %vm4716 = vcmask 1045504
      %v4718 = vsel %vm4716, %v4120, 0
      %4720 = vmatprep.subr.bf16.mxu0 0
      %4721 = vmatpush1.bf16.msra.mxu0 %v4102
      %4722 = vmatprep.subr.bf16.mxu0 0
      %4723 = vmatpush1.bf16.msra.mxu0 %v4103
      %4724 = vmatprep.subr.bf16.mxu0 0
      %4725 = vmatpush1.bf16.msra.mxu0 %v4104
      %4726 = vmatprep.subr.bf16.mxu0 0
      %4727 = vmatpush1.bf16.msra.mxu0 %v4105
      %4728 = vmatprep.subr.bf16.mxu0 0
      %4729 = vmatpush1.bf16.msra.mxu0 %v4106
      %4730 = vmatprep.subr.bf16.mxu0 0
      %4731 = vmatpush1.bf16.msra.mxu0 %v4107
      %4732 = vmatprep.subr.bf16.mxu0 0
      %4733 = vmatpush1.bf16.msra.mxu0 %v4108
      %4734 = vmatprep.subr.bf16.mxu0 0
      %4735 = vmatpush1.bf16.msra.mxu0 %v4109
      %4736 = vmatprep.subr.bf16.mxu0 0
      %4737 = vmatpush1.bf16.msra.mxu0 %v4110
      %4738 = vmatprep.subr.bf16.mxu0 0
      %4739 = vmatpush1.bf16.msra.mxu0 %v4111
      %4740 = vmatprep.subr.bf16.mxu0 0
      %4741 = vmatpush1.bf16.msra.mxu0 %v4112
      %4742 = vmatprep.subr.bf16.mxu0 0
      %4743 = vmatpush1.bf16.msra.mxu0 %v4113
      %4744 = vmatprep.subr.bf16.mxu0 0
      %4745 = vmatpush1.bf16.msra.mxu0 %v4114
      %4746 = vmatprep.subr.bf16.mxu0 0
      %4747 = vmatpush1.bf16.msra.mxu0 %v4115
      %4748 = vmatprep.subr.bf16.mxu0 0
      %4749 = vmatpush1.bf16.msra.mxu0 %v4116
      %4750 = vmatprep.subr.bf16.mxu0 0
      %4751 = vmatpush1.bf16.msra.mxu0 %v4117
      %4752 = vmatprep.mubr.bf16.mxu0 %v3067
      %4753 = vmatmul.mubr.bf16.gmra.mrb[0].mxu0 %v3066
      %v4754 = vpop.f32.mrb[0].mxu0
      %v4755 = vadd.f32 0.0, %v4754
      %v4756 = vpop.f32.mrb[0].mxu0
      %v4757 = vpop.f32.mrb[0].mxu0
      %v4758 = vadd.f32 0.0, %v4757
      %v4759 = vpop.f32.mrb[0].mxu0
      %4760 = vmatprep.mubr.bf16.mxu0 %v3070
      %4761 = vmatmul.mubr.bf16.gmra.mrb[0].mxu0 %v3069
      %v4762 = vpop.f32.mrb[0].mxu0
      %v4763 = vadd.f32 0.0, %v4762
      %v4764 = vpop.f32.mrb[0].mxu0
      %v4765 = vpop.f32.mrb[0].mxu0
      %v4766 = vadd.f32 0.0, %v4765
      %v4767 = vpop.f32.mrb[0].mxu0
      %4768 = vmatprep.mubr.bf16.mxu0 %v3073
      %4769 = vmatmul.mubr.bf16.gmra.mrb[0].mxu0 %v3072
      %v4770 = vpop.f32.mrb[0].mxu0
      %v4771 = vadd.f32 0.0, %v4770
      %v4772 = vpop.f32.mrb[0].mxu0
      %v4773 = vpop.f32.mrb[0].mxu0
      %v4774 = vadd.f32 0.0, %v4773
      %v4775 = vpop.f32.mrb[0].mxu0
      %4776 = vmatprep.mubr.bf16.mxu0 %v3076
      %4777 = vmatmul.mubr.bf16.gmra.mrb[0].mxu0 %v3075
      %v4778 = vpop.f32.mrb[0].mxu0
      %v4779 = vadd.f32 0.0, %v4778
      %v4780 = vpop.f32.mrb[0].mxu0
      %v4781 = vpop.f32.mrb[0].mxu0
      %v4782 = vadd.f32 0.0, %v4781
      %v4783 = vpop.f32.mrb[0].mxu0
      %4784 = vmatprep.mubr.bf16.mxu0 %v3079
      %4785 = vmatmul.mubr.bf16.gmra.mrb[0].mxu0 %v3078
      %v4786 = vpop.f32.mrb[0].mxu0
      %v4787 = vadd.f32 0.0, %v4786
      %v4788 = vpop.f32.mrb[0].mxu0
      %v4789 = vpop.f32.mrb[0].mxu0
      %v4790 = vadd.f32 0.0, %v4789
      %v4791 = vpop.f32.mrb[0].mxu0
      %4792 = vmatprep.mubr.bf16.mxu0 %v3082
      %4793 = vmatmul.mubr.bf16.gmra.mrb[0].mxu0 %v3081
      %v4794 = vpop.f32.mrb[0].mxu0
      %v4795 = vadd.f32 0.0, %v4794
      %v4796 = vpop.f32.mrb[0].mxu0
      %v4797 = vpop.f32.mrb[0].mxu0
      %v4798 = vadd.f32 0.0, %v4797
      %v4799 = vpop.f32.mrb[0].mxu0
      %4800 = vmatprep.mubr.bf16.mxu0 %v3085
      %4801 = vmatmul.mubr.bf16.gmra.mrb[0].mxu0 %v3084
      %v4802 = vpop.f32.mrb[0].mxu0
      %v4803 = vadd.f32 0.0, %v4802
      %v4804 = vpop.f32.mrb[0].mxu0
      %v4805 = vpop.f32.mrb[0].mxu0
      %v4806 = vadd.f32 0.0, %v4805
      %v4807 = vpop.f32.mrb[0].mxu0
      %4808 = vmatprep.mubr.bf16.mxu0 %v3088
      %4809 = vmatmul.mubr.bf16.gmra.mrb[0].mxu0 %v3087
      %v4810 = vpop.f32.mrb[0].mxu0
      %v4811 = vadd.f32 0.0, %v4810
      %v4812 = vpop.f32.mrb[0].mxu0
      %v4813 = vpop.f32.mrb[0].mxu0
      %v4814 = vadd.f32 0.0, %v4813
      %v4815 = vpop.f32.mrb[0].mxu0
      %4816 = vmatprep.mubr.bf16.mxu0 %v3091
      %4817 = vmatmul.mubr.bf16.gmra.mrb[0].mxu0 %v3090
      %v4818 = vpop.f32.mrb[0].mxu0
      %v4819 = vadd.f32 0.0, %v4818
      %v4820 = vpop.f32.mrb[0].mxu0
      %v4821 = vpop.f32.mrb[0].mxu0
      %v4822 = vadd.f32 0.0, %v4821
      %v4823 = vpop.f32.mrb[0].mxu0
      %4824 = vmatprep.mubr.bf16.mxu0 %v3094
      %4825 = vmatmul.mubr.bf16.gmra.mrb[0].mxu0 %v3093
      %v4826 = vpop.f32.mrb[0].mxu0
      %v4827 = vadd.f32 0.0, %v4826
      %v4828 = vpop.f32.mrb[0].mxu0
      %v4829 = vpop.f32.mrb[0].mxu0
      %v4830 = vadd.f32 0.0, %v4829
      %v4831 = vpop.f32.mrb[0].mxu0
      %4832 = vmatprep.mubr.bf16.mxu0 %v3097
      %4833 = vmatmul.mubr.bf16.gmra.mrb[0].mxu0 %v3096
      %v4834 = vpop.f32.mrb[0].mxu0
      %v4835 = vadd.f32 0.0, %v4834
      %v4836 = vpop.f32.mrb[0].mxu0
      %v4837 = vpop.f32.mrb[0].mxu0
      %v4838 = vadd.f32 0.0, %v4837
      %v4839 = vpop.f32.mrb[0].mxu0
      %4840 = vmatprep.mubr.bf16.mxu0 %v3100
      %4841 = vmatmul.mubr.bf16.gmra.mrb[0].mxu0 %v3099
      %v4842 = vpop.f32.mrb[0].mxu0
      %v4843 = vadd.f32 0.0, %v4842
      %v4844 = vpop.f32.mrb[0].mxu0
      %v4845 = vpop.f32.mrb[0].mxu0
      %v4846 = vadd.f32 0.0, %v4845
      %v4847 = vpop.f32.mrb[0].mxu0
      %4848 = vmatprep.mubr.bf16.mxu0 %v3103
      %4849 = vmatmul.mubr.bf16.gmra.mrb[0].mxu0 %v3102
      %v4850 = vpop.f32.mrb[0].mxu0
      %v4851 = vadd.f32 0.0, %v4850
      %v4852 = vpop.f32.mrb[0].mxu0
      %v4853 = vpop.f32.mrb[0].mxu0
      %v4854 = vadd.f32 0.0, %v4853
      %v4855 = vpop.f32.mrb[0].mxu0
      %4856 = vmatprep.mubr.bf16.mxu0 %v3106
      %4857 = vmatmul.mubr.bf16.gmra.mrb[0].mxu0 %v3105
      %v4858 = vpop.f32.mrb[0].mxu0
      %v4859 = vadd.f32 0.0, %v4858
      %v4860 = vpop.f32.mrb[0].mxu0
      %v4861 = vpop.f32.mrb[0].mxu0
      %v4862 = vadd.f32 0.0, %v4861
      %v4863 = vpop.f32.mrb[0].mxu0
      %4864 = vmatprep.mubr.bf16.mxu0 %v3109
      %4865 = vmatmul.mubr.bf16.gmra.mrb[0].mxu0 %v3108
      %v4866 = vpop.f32.mrb[0].mxu0
      %v4867 = vadd.f32 0.0, %v4866
      %v4868 = vpop.f32.mrb[0].mxu0
      %v4869 = vpop.f32.mrb[0].mxu0
      %v4870 = vadd.f32 0.0, %v4869
      %v4871 = vpop.f32.mrb[0].mxu0
      %4872 = vmatprep.mubr.bf16.mxu0 %v3112
      %4873 = vmatmul.mubr.bf16.gmra.mrb[0].mxu0 %v3111
      %v4874 = vpop.f32.mrb[0].mxu0
      %v4875 = vadd.f32 0.0, %v4874
      %v4876 = vpop.f32.mrb[0].mxu0
      %v4877 = vpop.f32.mrb[0].mxu0
      %v4878 = vadd.f32 0.0, %v4877
      %v4879 = vpop.f32.mrb[0].mxu0
      %4880 = vmatprep.mubr.bf16.mxu0 %v3115
      %4881 = vmatmul.mubr.bf16.gmra.mrb[0].mxu0 %v3114
      %v4882 = vpop.f32.mrb[0].mxu0
      %v4883 = vadd.f32 0.0, %v4882
      %v4884 = vpop.f32.mrb[0].mxu0
      %v4885 = vpop.f32.mrb[0].mxu0
      %v4886 = vadd.f32 0.0, %v4885
      %v4887 = vpop.f32.mrb[0].mxu0
      %4888 = vmatprep.mubr.bf16.mxu0 %v3118
      %4889 = vmatmul.mubr.bf16.gmra.mrb[0].mxu0 %v3117
      %v4890 = vpop.f32.mrb[0].mxu0
      %v4891 = vadd.f32 0.0, %v4890
      %v4892 = vpop.f32.mrb[0].mxu0
      %v4893 = vpop.f32.mrb[0].mxu0
      %v4894 = vadd.f32 0.0, %v4893
      %v4895 = vpop.f32.mrb[0].mxu0
      %4896 = vmatprep.mubr.bf16.mxu0 %v3121
      %4897 = vmatmul.mubr.bf16.gmra.mrb[0].mxu0 %v3120
      %v4898 = vpop.f32.mrb[0].mxu0
      %v4899 = vadd.f32 0.0, %v4898
      %v4900 = vpop.f32.mrb[0].mxu0
      %v4901 = vpop.f32.mrb[0].mxu0
      %v4902 = vadd.f32 0.0, %v4901
      %v4903 = vpop.f32.mrb[0].mxu0
      %4904 = vmatprep.mubr.bf16.mxu0 %v3124
      %4905 = vmatmul.mubr.bf16.gmra.mrb[0].mxu0 %v3123
      %v4906 = vpop.f32.mrb[0].mxu0
      %v4907 = vadd.f32 0.0, %v4906
      %v4908 = vpop.f32.mrb[0].mxu0
      %v4909 = vpop.f32.mrb[0].mxu0
      %v4910 = vadd.f32 0.0, %v4909
      %v4911 = vpop.f32.mrb[0].mxu0
      %4912 = vmatprep.mubr.bf16.mxu0 %v3127
      %4913 = vmatmul.mubr.bf16.gmra.mrb[0].mxu0 %v3126
      %v4914 = vpop.f32.mrb[0].mxu0
      %v4915 = vadd.f32 0.0, %v4914
      %v4916 = vpop.f32.mrb[0].mxu0
      %v4917 = vpop.f32.mrb[0].mxu0
      %v4918 = vadd.f32 0.0, %v4917
      %v4919 = vpop.f32.mrb[0].mxu0
      %4920 = vmatprep.mubr.bf16.mxu0 %v3130
      %4921 = vmatmul.mubr.bf16.gmra.mrb[0].mxu0 %v3129
      %v4922 = vpop.f32.mrb[0].mxu0
      %v4923 = vadd.f32 0.0, %v4922
      %v4924 = vpop.f32.mrb[0].mxu0
      %v4925 = vpop.f32.mrb[0].mxu0
      %v4926 = vadd.f32 0.0, %v4925
      %v4927 = vpop.f32.mrb[0].mxu0
      %4928 = vmatprep.mubr.bf16.mxu0 %v3133
      %4929 = vmatmul.mubr.bf16.gmra.mrb[0].mxu0 %v3132
      %v4930 = vpop.f32.mrb[0].mxu0
      %v4931 = vadd.f32 0.0, %v4930
      %v4932 = vpop.f32.mrb[0].mxu0
      %v4933 = vpop.f32.mrb[0].mxu0
      %v4934 = vadd.f32 0.0, %v4933
      %v4935 = vpop.f32.mrb[0].mxu0
      %4936 = vmatprep.mubr.bf16.mxu0 %v3136
      %4937 = vmatmul.mubr.bf16.gmra.mrb[0].mxu0 %v3135
      %v4938 = vpop.f32.mrb[0].mxu0
      %v4939 = vadd.f32 0.0, %v4938
      %v4940 = vpop.f32.mrb[0].mxu0
      %v4941 = vpop.f32.mrb[0].mxu0
      %v4942 = vadd.f32 0.0, %v4941
      %v4943 = vpop.f32.mrb[0].mxu0
      %4944 = vmatprep.mubr.bf16.mxu0 %v3139
      %4945 = vmatmul.mubr.bf16.gmra.mrb[0].mxu0 %v3138
      %v4946 = vpop.f32.mrb[0].mxu0
      %v4947 = vadd.f32 0.0, %v4946
      %v4948 = vpop.f32.mrb[0].mxu0
      %v4949 = vpop.f32.mrb[0].mxu0
      %v4950 = vadd.f32 0.0, %v4949
      %v4951 = vpop.f32.mrb[0].mxu0
      %4952 = vmatprep.mubr.bf16.mxu0 %v3142
      %4953 = vmatmul.mubr.bf16.gmra.mrb[0].mxu0 %v3141
      %v4954 = vpop.f32.mrb[0].mxu0
      %v4955 = vadd.f32 0.0, %v4954
      %v4956 = vpop.f32.mrb[0].mxu0
      %v4957 = vpop.f32.mrb[0].mxu0
      %v4958 = vadd.f32 0.0, %v4957
      %v4959 = vpop.f32.mrb[0].mxu0
      %4960 = vmatprep.mubr.bf16.mxu0 %v3145
      %4961 = vmatmul.mubr.bf16.gmra.mrb[0].mxu0 %v3144
      %v4962 = vpop.f32.mrb[0].mxu0
      %v4963 = vadd.f32 0.0, %v4962
      %v4964 = vpop.f32.mrb[0].mxu0
      %v4965 = vpop.f32.mrb[0].mxu0
      %v4966 = vadd.f32 0.0, %v4965
      %v4967 = vpop.f32.mrb[0].mxu0
      %4968 = vmatprep.mubr.bf16.mxu0 %v3148
      %4969 = vmatmul.mubr.bf16.gmra.mrb[0].mxu0 %v3147
      %v4970 = vpop.f32.mrb[0].mxu0
      %v4971 = vadd.f32 0.0, %v4970
      %v4972 = vpop.f32.mrb[0].mxu0
      %v4973 = vpop.f32.mrb[0].mxu0
      %v4974 = vadd.f32 0.0, %v4973
      %v4975 = vpop.f32.mrb[0].mxu0
      %4976 = vmatprep.mubr.bf16.mxu0 %v3151
      %4977 = vmatmul.mubr.bf16.gmra.mrb[0].mxu0 %v3150
      %v4978 = vpop.f32.mrb[0].mxu0
      %v4979 = vadd.f32 0.0, %v4978
      %v4980 = vpop.f32.mrb[0].mxu0
      %v4981 = vpop.f32.mrb[0].mxu0
      %v4982 = vadd.f32 0.0, %v4981
      %v4983 = vpop.f32.mrb[0].mxu0
      %4984 = vmatprep.mubr.bf16.mxu0 %v3154
      %4985 = vmatmul.mubr.bf16.gmra.mrb[0].mxu0 %v3153
      %v4986 = vpop.f32.mrb[0].mxu0
      %v4987 = vadd.f32 0.0, %v4986
      %v4988 = vpop.f32.mrb[0].mxu0
      %v4989 = vpop.f32.mrb[0].mxu0
      %v4990 = vadd.f32 0.0, %v4989
      %v4991 = vpop.f32.mrb[0].mxu0
      %4992 = vmatprep.mubr.bf16.mxu0 %v3157
      %4993 = vmatmul.mubr.bf16.gmra.mrb[0].mxu0 %v3156
      %v4994 = vpop.f32.mrb[0].mxu0
      %v4995 = vadd.f32 0.0, %v4994
      %v4996 = vpop.f32.mrb[0].mxu0
      %v4997 = vpop.f32.mrb[0].mxu0
      %v4998 = vadd.f32 0.0, %v4997
      %v4999 = vpop.f32.mrb[0].mxu0
      %5000 = vmatprep.mubr.bf16.mxu0 %v3160
      %5001 = vmatmul.mubr.bf16.gmra.mrb[0].mxu0 %v3159
      %v5002 = vpop.f32.mrb[0].mxu0
      %v5003 = vadd.f32 0.0, %v5002
      %v5004 = vpop.f32.mrb[0].mxu0
      %v5005 = vpop.f32.mrb[0].mxu0
      %v5006 = vadd.f32 0.0, %v5005
      %v5007 = vpop.f32.mrb[0].mxu0
      %5008 = vmatprep.mubr.bf16.mxu0 %v3163
      %5009 = vmatmul.mubr.bf16.gmra.mrb[0].mxu0 %v3162
      %v5010 = vpop.f32.mrb[0].mxu0
      %v5011 = vadd.f32 0.0, %v5010
      %v5012 = vpop.f32.mrb[0].mxu0
      %v5013 = vpop.f32.mrb[0].mxu0
      %v5014 = vadd.f32 0.0, %v5013
      %v5015 = vpop.f32.mrb[0].mxu0
      %5016 = vmatprep.mubr.bf16.mxu0 %v3166
      %5017 = vmatmul.mubr.bf16.gmra.mrb[0].mxu0 %v3165
      %v5018 = vpop.f32.mrb[0].mxu0
      %v5019 = vadd.f32 0.0, %v5018
      %v5020 = vpop.f32.mrb[0].mxu0
      %v5021 = vpop.f32.mrb[0].mxu0
      %v5022 = vadd.f32 0.0, %v5021
      %v5023 = vpop.f32.mrb[0].mxu0
      %5024 = vmatprep.mubr.bf16.mxu0 %v3169
      %5025 = vmatmul.mubr.bf16.gmra.mrb[0].mxu0 %v3168
      %v5026 = vpop.f32.mrb[0].mxu0
      %v5027 = vadd.f32 0.0, %v5026
      %v5028 = vpop.f32.mrb[0].mxu0
      %v5029 = vpop.f32.mrb[0].mxu0
      %v5030 = vadd.f32 0.0, %v5029
      %v5031 = vpop.f32.mrb[0].mxu0
      %5032 = vmatprep.mubr.bf16.mxu0 %v3172
      %5033 = vmatmul.mubr.bf16.gmra.mrb[0].mxu0 %v3171
      %v5034 = vpop.f32.mrb[0].mxu0
      %v5035 = vadd.f32 0.0, %v5034
      %v5036 = vpop.f32.mrb[0].mxu0
      %v5037 = vpop.f32.mrb[0].mxu0
      %v5038 = vadd.f32 0.0, %v5037
      %v5039 = vpop.f32.mrb[0].mxu0
      %5040 = vmatprep.mubr.bf16.mxu0 %v3175
      %5041 = vmatmul.mubr.bf16.gmra.mrb[0].mxu0 %v3174
      %v5042 = vpop.f32.mrb[0].mxu0
      %v5043 = vadd.f32 0.0, %v5042
      %v5044 = vpop.f32.mrb[0].mxu0
      %v5045 = vpop.f32.mrb[0].mxu0
      %v5046 = vadd.f32 0.0, %v5045
      %v5047 = vpop.f32.mrb[0].mxu0
      %5048 = vmatprep.mubr.bf16.mxu0 %v3178
      %5049 = vmatmul.mubr.bf16.gmra.mrb[0].mxu0 %v3177
      %v5050 = vpop.f32.mrb[0].mxu0
      %v5051 = vadd.f32 0.0, %v5050
      %v5052 = vpop.f32.mrb[0].mxu0
      %v5053 = vpop.f32.mrb[0].mxu0
      %v5054 = vadd.f32 0.0, %v5053
      %v5055 = vpop.f32.mrb[0].mxu0
      %5056 = vmatprep.mubr.bf16.mxu0 %v3181
      %5057 = vmatmul.mubr.bf16.gmra.mrb[0].mxu0 %v3180
      %v5058 = vpop.f32.mrb[0].mxu0
      %v5059 = vadd.f32 0.0, %v5058
      %v5060 = vpop.f32.mrb[0].mxu0
      %v5061 = vpop.f32.mrb[0].mxu0
      %v5062 = vadd.f32 0.0, %v5061
      %v5063 = vpop.f32.mrb[0].mxu0
      %5064 = vmatprep.mubr.bf16.mxu0 %v3184
      %5065 = vmatmul.mubr.bf16.gmra.mrb[0].mxu0 %v3183
      %v5066 = vpop.f32.mrb[0].mxu0
      %v5067 = vadd.f32 0.0, %v5066
      %v5068 = vpop.f32.mrb[0].mxu0
      %v5069 = vpop.f32.mrb[0].mxu0
      %v5070 = vadd.f32 0.0, %v5069
      %v5071 = vpop.f32.mrb[0].mxu0
      %5072 = vmatprep.mubr.bf16.mxu0 %v3187
      %5073 = vmatmul.mubr.bf16.gmra.mrb[0].mxu0 %v3186
      %v5074 = vpop.f32.mrb[0].mxu0
      %v5075 = vadd.f32 0.0, %v5074
      %v5076 = vpop.f32.mrb[0].mxu0
      %v5077 = vpop.f32.mrb[0].mxu0
      %v5078 = vadd.f32 0.0, %v5077
      %v5079 = vpop.f32.mrb[0].mxu0
      %5080 = vmatprep.mubr.bf16.mxu0 %v3190
      %5081 = vmatmul.mubr.bf16.gmra.mrb[0].mxu0 %v3189
      %v5082 = vpop.f32.mrb[0].mxu0
      %v5083 = vadd.f32 0.0, %v5082
      %v5084 = vpop.f32.mrb[0].mxu0
      %v5085 = vpop.f32.mrb[0].mxu0
      %v5086 = vadd.f32 0.0, %v5085
      %v5087 = vpop.f32.mrb[0].mxu0
      %5088 = vmatprep.mubr.bf16.mxu0 %v3193
      %5089 = vmatmul.mubr.bf16.gmra.mrb[0].mxu0 %v3192
      %v5090 = vpop.f32.mrb[0].mxu0
      %v5091 = vadd.f32 0.0, %v5090
      %v5092 = vpop.f32.mrb[0].mxu0
      %v5093 = vpop.f32.mrb[0].mxu0
      %v5094 = vadd.f32 0.0, %v5093
      %v5095 = vpop.f32.mrb[0].mxu0
      %5096 = vmatprep.mubr.bf16.mxu0 %v3196
      %5097 = vmatmul.mubr.bf16.gmra.mrb[0].mxu0 %v3195
      %v5098 = vpop.f32.mrb[0].mxu0
      %v5099 = vadd.f32 0.0, %v5098
      %v5100 = vpop.f32.mrb[0].mxu0
      %v5101 = vpop.f32.mrb[0].mxu0
      %v5102 = vadd.f32 0.0, %v5101
      %v5103 = vpop.f32.mrb[0].mxu0
      %5104 = vmatprep.mubr.bf16.mxu0 %v3199
      %5105 = vmatmul.mubr.bf16.gmra.mrb[0].mxu0 %v3198
      %v5106 = vpop.f32.mrb[0].mxu0
      %v5107 = vadd.f32 0.0, %v5106
      %v5108 = vpop.f32.mrb[0].mxu0
      %v5109 = vpop.f32.mrb[0].mxu0
      %v5110 = vadd.f32 0.0, %v5109
      %v5111 = vpop.f32.mrb[0].mxu0
      %5112 = vmatprep.mubr.bf16.mxu0 %v3202
      %5113 = vmatmul.mubr.bf16.gmra.mrb[0].mxu0 %v3201
      %v5114 = vpop.f32.mrb[0].mxu0
      %v5115 = vadd.f32 0.0, %v5114
      %v5116 = vpop.f32.mrb[0].mxu0
      %v5117 = vpop.f32.mrb[0].mxu0
      %v5118 = vadd.f32 0.0, %v5117
      %v5119 = vpop.f32.mrb[0].mxu0
      %5120 = vmatprep.mubr.bf16.mxu0 %v3205
      %5121 = vmatmul.mubr.bf16.gmra.mrb[0].mxu0 %v3204
      %v5122 = vpop.f32.mrb[0].mxu0
      %v5123 = vadd.f32 0.0, %v5122
      %v5124 = vpop.f32.mrb[0].mxu0
      %v5125 = vpop.f32.mrb[0].mxu0
      %v5126 = vadd.f32 0.0, %v5125
      %v5127 = vpop.f32.mrb[0].mxu0
      %5128 = vmatprep.mubr.bf16.mxu0 %v3208
      %5129 = vmatmul.mubr.bf16.gmra.mrb[0].mxu0 %v3207
      %v5130 = vpop.f32.mrb[0].mxu0
      %v5131 = vadd.f32 0.0, %v5130
      %v5132 = vpop.f32.mrb[0].mxu0
      %v5133 = vpop.f32.mrb[0].mxu0
      %v5134 = vadd.f32 0.0, %v5133
      %v5135 = vpop.f32.mrb[0].mxu0
      %5136 = vmatprep.mubr.bf16.mxu0 %v3211
      %5137 = vmatmul.mubr.bf16.gmra.mrb[0].mxu0 %v3210
      %v5138 = vpop.f32.mrb[0].mxu0
      %v5139 = vadd.f32 0.0, %v5138
      %v5140 = vpop.f32.mrb[0].mxu0
      %v5141 = vpop.f32.mrb[0].mxu0
      %v5142 = vadd.f32 0.0, %v5141
      %v5143 = vpop.f32.mrb[0].mxu0
      %5144 = vmatprep.mubr.bf16.mxu0 %v3214
      %5145 = vmatmul.mubr.bf16.gmra.mrb[0].mxu0 %v3213
      %v5146 = vpop.f32.mrb[0].mxu0
      %v5147 = vadd.f32 0.0, %v5146
      %v5148 = vpop.f32.mrb[0].mxu0
      %v5149 = vpop.f32.mrb[0].mxu0
      %v5150 = vadd.f32 0.0, %v5149
      %v5151 = vpop.f32.mrb[0].mxu0
      %5152 = vmatprep.mubr.bf16.mxu0 %v3217
      %5153 = vmatmul.mubr.bf16.gmra.mrb[0].mxu0 %v3216
      %v5154 = vpop.f32.mrb[0].mxu0
      %v5155 = vadd.f32 0.0, %v5154
      %v5156 = vpop.f32.mrb[0].mxu0
      %v5157 = vpop.f32.mrb[0].mxu0
      %v5158 = vadd.f32 0.0, %v5157
      %v5159 = vpop.f32.mrb[0].mxu0
      %5160 = vmatprep.mubr.bf16.mxu0 %v3220
      %5161 = vmatmul.mubr.bf16.gmra.mrb[0].mxu0 %v3219
      %v5162 = vpop.f32.mrb[0].mxu0
      %v5163 = vadd.f32 0.0, %v5162
      %v5164 = vpop.f32.mrb[0].mxu0
      %v5165 = vpop.f32.mrb[0].mxu0
      %v5166 = vadd.f32 0.0, %v5165
      %v5167 = vpop.f32.mrb[0].mxu0
      %5168 = vmatprep.mubr.bf16.mxu0 %v3223
      %5169 = vmatmul.mubr.bf16.gmra.mrb[0].mxu0 %v3222
      %v5170 = vpop.f32.mrb[0].mxu0
      %v5171 = vadd.f32 0.0, %v5170
      %v5172 = vpop.f32.mrb[0].mxu0
      %v5173 = vpop.f32.mrb[0].mxu0
      %v5174 = vadd.f32 0.0, %v5173
      %v5175 = vpop.f32.mrb[0].mxu0
      %5176 = vmatprep.mubr.bf16.mxu0 %v3226
      %5177 = vmatmul.mubr.bf16.gmra.mrb[0].mxu0 %v3225
      %v5178 = vpop.f32.mrb[0].mxu0
      %v5179 = vadd.f32 0.0, %v5178
      %v5180 = vpop.f32.mrb[0].mxu0
      %v5181 = vpop.f32.mrb[0].mxu0
      %v5182 = vadd.f32 0.0, %v5181
      %v5183 = vpop.f32.mrb[0].mxu0
      %5184 = vmatprep.mubr.bf16.mxu0 %v3229
      %5185 = vmatmul.mubr.bf16.gmra.mrb[0].mxu0 %v3228
      %v5186 = vpop.f32.mrb[0].mxu0
      %v5187 = vadd.f32 0.0, %v5186
      %v5188 = vpop.f32.mrb[0].mxu0
      %v5189 = vpop.f32.mrb[0].mxu0
      %v5190 = vadd.f32 0.0, %v5189
      %v5191 = vpop.f32.mrb[0].mxu0
      %5192 = vmatprep.mubr.bf16.mxu0 %v3232
      %5193 = vmatmul.mubr.bf16.gmra.mrb[0].mxu0 %v3231
      %v5194 = vpop.f32.mrb[0].mxu0
      %v5195 = vadd.f32 0.0, %v5194
      %v5196 = vpop.f32.mrb[0].mxu0
      %v5197 = vpop.f32.mrb[0].mxu0
      %v5198 = vadd.f32 0.0, %v5197
      %v5199 = vpop.f32.mrb[0].mxu0
      %5200 = vmatprep.mubr.bf16.mxu0 %v3235
      %5201 = vmatmul.mubr.bf16.gmra.mrb[0].mxu0 %v3234
      %v5202 = vpop.f32.mrb[0].mxu0
      %v5203 = vadd.f32 0.0, %v5202
      %v5204 = vpop.f32.mrb[0].mxu0
      %v5205 = vpop.f32.mrb[0].mxu0
      %v5206 = vadd.f32 0.0, %v5205
      %v5207 = vpop.f32.mrb[0].mxu0
      %5208 = vmatprep.mubr.bf16.mxu0 %v3238
      %5209 = vmatmul.mubr.bf16.gmra.mrb[0].mxu0 %v3237
      %v5210 = vpop.f32.mrb[0].mxu0
      %v5211 = vadd.f32 0.0, %v5210
      %v5212 = vpop.f32.mrb[0].mxu0
      %v5213 = vpop.f32.mrb[0].mxu0
      %v5214 = vadd.f32 0.0, %v5213
      %v5215 = vpop.f32.mrb[0].mxu0
      %5216 = vmatprep.mubr.bf16.mxu0 %v3241
      %5217 = vmatmul.mubr.bf16.gmra.mrb[0].mxu0 %v3240
      %v5218 = vpop.f32.mrb[0].mxu0
      %v5219 = vadd.f32 0.0, %v5218
      %v5220 = vpop.f32.mrb[0].mxu0
      %v5221 = vpop.f32.mrb[0].mxu0
      %v5222 = vadd.f32 0.0, %v5221
      %v5223 = vpop.f32.mrb[0].mxu0
      %5224 = vmatprep.mubr.bf16.mxu0 %v3244
      %5225 = vmatmul.mubr.bf16.gmra.mrb[0].mxu0 %v3243
      %v5226 = vpop.f32.mrb[0].mxu0
      %v5227 = vadd.f32 0.0, %v5226
      %v5228 = vpop.f32.mrb[0].mxu0
      %v5229 = vpop.f32.mrb[0].mxu0
      %v5230 = vadd.f32 0.0, %v5229
      %v5231 = vpop.f32.mrb[0].mxu0
      %5232 = vmatprep.mubr.bf16.mxu0 %v3247
      %5233 = vmatmul.mubr.bf16.gmra.mrb[0].mxu0 %v3246
      %v5234 = vpop.f32.mrb[0].mxu0
      %v5235 = vadd.f32 0.0, %v5234
      %v5236 = vpop.f32.mrb[0].mxu0
      %v5237 = vpop.f32.mrb[0].mxu0
      %v5238 = vadd.f32 0.0, %v5237
      %v5239 = vpop.f32.mrb[0].mxu0
      %5240 = vmatprep.mubr.bf16.mxu0 %v3250
      %5241 = vmatmul.mubr.bf16.gmra.mrb[0].mxu0 %v3249
      %v5242 = vpop.f32.mrb[0].mxu0
      %v5243 = vadd.f32 0.0, %v5242
      %v5244 = vpop.f32.mrb[0].mxu0
      %v5245 = vpop.f32.mrb[0].mxu0
      %v5246 = vadd.f32 0.0, %v5245
      %v5247 = vpop.f32.mrb[0].mxu0
      %5248 = vmatprep.mubr.bf16.mxu0 %v3253
      %5249 = vmatmul.mubr.bf16.gmra.mrb[0].mxu0 %v3252
      %v5250 = vpop.f32.mrb[0].mxu0
      %v5251 = vadd.f32 0.0, %v5250
      %v5252 = vpop.f32.mrb[0].mxu0
      %v5253 = vpop.f32.mrb[0].mxu0
      %v5254 = vadd.f32 0.0, %v5253
      %v5255 = vpop.f32.mrb[0].mxu0
      %5256 = vmatprep.mubr.bf16.mxu0 %v3256
      %5257 = vmatmul.mubr.bf16.gmra.mrb[0].mxu0 %v3255
      %v5258 = vpop.f32.mrb[0].mxu0
      %v5259 = vadd.f32 0.0, %v5258
      %v5260 = vpop.f32.mrb[0].mxu0
      %v5261 = vpop.f32.mrb[0].mxu0
      %v5262 = vadd.f32 0.0, %v5261
      %v5263 = vpop.f32.mrb[0].mxu0
      %5264 = vmatprep.mubr.bf16.mxu0 %v3259
      %5265 = vmatmul.mubr.bf16.gmra.mrb[0].mxu0 %v3258
      %v5266 = vpop.f32.mrb[0].mxu0
      %v5267 = vadd.f32 0.0, %v5266
      %v5268 = vpop.f32.mrb[0].mxu0
      %v5269 = vpop.f32.mrb[0].mxu0
      %v5270 = vadd.f32 0.0, %v5269
      %v5271 = vpop.f32.mrb[0].mxu0
      %5272 = vmatprep.mubr.bf16.mxu0 %v3262
      %5273 = vmatmul.mubr.bf16.gmra.mrb[0].mxu0 %v3261
      %v5274 = vpop.f32.mrb[0].mxu0
      %v5275 = vadd.f32 0.0, %v5274
      %v5276 = vpop.f32.mrb[0].mxu0
      %v5277 = vpop.f32.mrb[0].mxu0
      %v5278 = vadd.f32 0.0, %v5277
      %v5279 = vpop.f32.mrb[0].mxu0
      %5280 = vmatprep.mubr.bf16.mxu0 %v3265
      %5281 = vmatmul.mubr.bf16.gmra.mrb[0].mxu0 %v3264
      %v5282 = vpop.f32.mrb[0].mxu0
      %v5283 = vadd.f32 0.0, %v5282
      %v5284 = vpop.f32.mrb[0].mxu0
      %v5285 = vpop.f32.mrb[0].mxu0
      %v5286 = vadd.f32 0.0, %v5285
      %v5287 = vpop.f32.mrb[0].mxu0
      %5288 = vmatprep.mubr.bf16.mxu0 %v3268
      %5289 = vmatmul.mubr.bf16.gmra.mrb[0].mxu0 %v3267
      %v5290 = vpop.f32.mrb[0].mxu0
      %v5291 = vadd.f32 0.0, %v5290
      %v5292 = vpop.f32.mrb[0].mxu0
      %v5293 = vpop.f32.mrb[0].mxu0
      %v5294 = vadd.f32 0.0, %v5293
      %v5295 = vpop.f32.mrb[0].mxu0
      %5296 = vmatprep.mubr.bf16.mxu0 %v3271
      %5297 = vmatmul.mubr.bf16.gmra.mrb[0].mxu0 %v3270
      %v5298 = vpop.f32.mrb[0].mxu0
      %v5299 = vadd.f32 0.0, %v5298
      %v5300 = vpop.f32.mrb[0].mxu0
      %v5301 = vpop.f32.mrb[0].mxu0
      %v5302 = vadd.f32 0.0, %v5301
      %v5303 = vpop.f32.mrb[0].mxu0
      %5304 = vmatprep.mubr.bf16.mxu0 %v3274
      %5305 = vmatmul.mubr.bf16.gmra.mrb[0].mxu0 %v3273
      %v5306 = vpop.f32.mrb[0].mxu0
      %v5307 = vadd.f32 0.0, %v5306
      %v5308 = vpop.f32.mrb[0].mxu0
      %v5309 = vpop.f32.mrb[0].mxu0
      %v5310 = vadd.f32 0.0, %v5309
      %v5311 = vpop.f32.mrb[0].mxu0
      %5312 = vmatprep.mubr.bf16.mxu0 %v3277
      %5313 = vmatmul.mubr.bf16.gmra.mrb[0].mxu0 %v3276
      %v5314 = vpop.f32.mrb[0].mxu0
      %v5315 = vadd.f32 0.0, %v5314
      %v5316 = vpop.f32.mrb[0].mxu0
      %v5317 = vpop.f32.mrb[0].mxu0
      %v5318 = vadd.f32 0.0, %v5317
      %v5319 = vpop.f32.mrb[0].mxu0
      %5320 = vmatprep.mubr.bf16.mxu0 %v3280
      %5321 = vmatmul.mubr.bf16.gmra.mrb[0].mxu0 %v3279
      %v5322 = vpop.f32.mrb[0].mxu0
      %v5323 = vadd.f32 0.0, %v5322
      %v5324 = vpop.f32.mrb[0].mxu0
      %v5325 = vpop.f32.mrb[0].mxu0
      %v5326 = vadd.f32 0.0, %v5325
      %v5327 = vpop.f32.mrb[0].mxu0
      %5328 = vmatprep.mubr.bf16.mxu0 %v3283
      %5329 = vmatmul.mubr.bf16.gmra.mrb[0].mxu0 %v3282
      %v5330 = vpop.f32.mrb[0].mxu0
      %v5331 = vadd.f32 0.0, %v5330
      %v5332 = vpop.f32.mrb[0].mxu0
      %v5333 = vpop.f32.mrb[0].mxu0
      %v5334 = vadd.f32 0.0, %v5333
      %v5335 = vpop.f32.mrb[0].mxu0
      %5336 = vmatprep.mubr.bf16.mxu0 %v3286
      %5337 = vmatmul.mubr.bf16.gmra.mrb[0].mxu0 %v3285
      %v5338 = vpop.f32.mrb[0].mxu0
      %v5339 = vadd.f32 0.0, %v5338
      %v5340 = vpop.f32.mrb[0].mxu0
      %v5341 = vpop.f32.mrb[0].mxu0
      %v5342 = vadd.f32 0.0, %v5341
      %v5343 = vpop.f32.mrb[0].mxu0
      %5344 = vmatprep.mubr.bf16.mxu0 %v3289
      %5345 = vmatmul.mubr.bf16.gmra.mrb[0].mxu0 %v3288
      %v5346 = vpop.f32.mrb[0].mxu0
      %v5347 = vadd.f32 0.0, %v5346
      %v5348 = vpop.f32.mrb[0].mxu0
      %v5349 = vpop.f32.mrb[0].mxu0
      %v5350 = vadd.f32 0.0, %v5349
      %v5351 = vpop.f32.mrb[0].mxu0
      %5352 = vmatprep.mubr.bf16.mxu0 %v3292
      %5353 = vmatmul.mubr.bf16.gmra.mrb[0].mxu0 %v3291
      %v5354 = vpop.f32.mrb[0].mxu0
      %v5355 = vadd.f32 0.0, %v5354
      %v5356 = vpop.f32.mrb[0].mxu0
      %v5357 = vpop.f32.mrb[0].mxu0
      %v5358 = vadd.f32 0.0, %v5357
      %v5359 = vpop.f32.mrb[0].mxu0
      %5360 = vmatprep.mubr.bf16.mxu0 %v3295
      %5361 = vmatmul.mubr.bf16.gmra.mrb[0].mxu0 %v3294
      %v5362 = vpop.f32.mrb[0].mxu0
      %v5363 = vadd.f32 0.0, %v5362
      %v5364 = vpop.f32.mrb[0].mxu0
      %v5365 = vpop.f32.mrb[0].mxu0
      %v5366 = vadd.f32 0.0, %v5365
      %v5367 = vpop.f32.mrb[0].mxu0
      %5368 = vmatprep.mubr.bf16.mxu0 %v3298
      %5369 = vmatmul.mubr.bf16.gmra.mrb[0].mxu0 %v3297
      %v5370 = vpop.f32.mrb[0].mxu0
      %v5371 = vadd.f32 0.0, %v5370
      %v5372 = vpop.f32.mrb[0].mxu0
      %v5373 = vpop.f32.mrb[0].mxu0
      %v5374 = vadd.f32 0.0, %v5373
      %v5375 = vpop.f32.mrb[0].mxu0
      %5376 = vmatprep.mubr.bf16.mxu0 %v3301
      %5377 = vmatmul.mubr.bf16.gmra.mrb[0].mxu0 %v3300
      %v5378 = vpop.f32.mrb[0].mxu0
      %v5379 = vadd.f32 0.0, %v5378
      %v5380 = vpop.f32.mrb[0].mxu0
      %v5381 = vpop.f32.mrb[0].mxu0
      %v5382 = vadd.f32 0.0, %v5381
      %v5383 = vpop.f32.mrb[0].mxu0
      %5384 = vmatprep.mubr.bf16.mxu0 %v3304
      %5385 = vmatmul.mubr.bf16.gmra.mrb[0].mxu0 %v3303
      %v5386 = vpop.f32.mrb[0].mxu0
      %v5387 = vadd.f32 0.0, %v5386
      %v5388 = vpop.f32.mrb[0].mxu0
      %v5389 = vpop.f32.mrb[0].mxu0
      %v5390 = vadd.f32 0.0, %v5389
      %v5391 = vpop.f32.mrb[0].mxu0
      %5392 = vmatprep.mubr.bf16.mxu0 %v3307
      %5393 = vmatmul.mubr.bf16.gmra.mrb[0].mxu0 %v3306
      %v5394 = vpop.f32.mrb[0].mxu0
      %v5395 = vadd.f32 0.0, %v5394
      %v5396 = vpop.f32.mrb[0].mxu0
      %v5397 = vpop.f32.mrb[0].mxu0
      %v5398 = vadd.f32 0.0, %v5397
      %v5399 = vpop.f32.mrb[0].mxu0
      %5400 = vmatprep.mubr.bf16.mxu0 %v3310
      %5401 = vmatmul.mubr.bf16.gmra.mrb[0].mxu0 %v3309
      %v5402 = vpop.f32.mrb[0].mxu0
      %v5403 = vadd.f32 0.0, %v5402
      %v5404 = vpop.f32.mrb[0].mxu0
      %v5405 = vpop.f32.mrb[0].mxu0
      %v5406 = vadd.f32 0.0, %v5405
      %v5407 = vpop.f32.mrb[0].mxu0
      %5408 = vmatprep.mubr.bf16.mxu0 %v3313
      %5409 = vmatmul.mubr.bf16.gmra.mrb[0].mxu0 %v3312
      %v5410 = vpop.f32.mrb[0].mxu0
      %v5411 = vadd.f32 0.0, %v5410
      %v5412 = vpop.f32.mrb[0].mxu0
      %v5413 = vpop.f32.mrb[0].mxu0
      %v5414 = vadd.f32 0.0, %v5413
      %v5415 = vpop.f32.mrb[0].mxu0
      %5416 = vmatprep.mubr.bf16.mxu0 %v3316
      %5417 = vmatmul.mubr.bf16.gmra.mrb[0].mxu0 %v3315
      %v5418 = vpop.f32.mrb[0].mxu0
      %v5419 = vadd.f32 0.0, %v5418
      %v5420 = vpop.f32.mrb[0].mxu0
      %v5421 = vpop.f32.mrb[0].mxu0
      %v5422 = vadd.f32 0.0, %v5421
      %v5423 = vpop.f32.mrb[0].mxu0
      %5424 = vmatprep.mubr.bf16.mxu0 %v3319
      %5425 = vmatmul.mubr.bf16.gmra.mrb[0].mxu0 %v3318
      %v5426 = vpop.f32.mrb[0].mxu0
      %v5427 = vadd.f32 0.0, %v5426
      %v5428 = vpop.f32.mrb[0].mxu0
      %v5429 = vpop.f32.mrb[0].mxu0
      %v5430 = vadd.f32 0.0, %v5429
      %v5431 = vpop.f32.mrb[0].mxu0
      %5432 = vmatprep.mubr.bf16.mxu0 %v3322
      %5433 = vmatmul.mubr.bf16.gmra.mrb[0].mxu0 %v3321
      %v5434 = vpop.f32.mrb[0].mxu0
      %v5435 = vadd.f32 0.0, %v5434
      %v5436 = vpop.f32.mrb[0].mxu0
      %v5437 = vpop.f32.mrb[0].mxu0
      %v5438 = vadd.f32 0.0, %v5437
      %v5439 = vpop.f32.mrb[0].mxu0
      %5440 = vmatprep.mubr.bf16.mxu0 %v3325
      %5441 = vmatmul.mubr.bf16.gmra.mrb[0].mxu0 %v3324
      %v5442 = vpop.f32.mrb[0].mxu0
      %v5443 = vadd.f32 0.0, %v5442
      %v5444 = vpop.f32.mrb[0].mxu0
      %v5445 = vpop.f32.mrb[0].mxu0
      %v5446 = vadd.f32 0.0, %v5445
      %v5447 = vpop.f32.mrb[0].mxu0
      %5448 = vmatprep.mubr.bf16.mxu0 %v3328
      %5449 = vmatmul.mubr.bf16.gmra.mrb[0].mxu0 %v3327
      %v5450 = vpop.f32.mrb[0].mxu0
      %v5451 = vadd.f32 0.0, %v5450
      %v5452 = vpop.f32.mrb[0].mxu0
      %v5453 = vpop.f32.mrb[0].mxu0
      %v5454 = vadd.f32 0.0, %v5453
      %v5455 = vpop.f32.mrb[0].mxu0
      %5456 = vmatprep.mubr.bf16.mxu0 %v3331
      %5457 = vmatmul.mubr.bf16.gmra.mrb[0].mxu0 %v3330
      %v5458 = vpop.f32.mrb[0].mxu0
      %v5459 = vadd.f32 0.0, %v5458
      %v5460 = vpop.f32.mrb[0].mxu0
      %v5461 = vpop.f32.mrb[0].mxu0
      %v5462 = vadd.f32 0.0, %v5461
      %v5463 = vpop.f32.mrb[0].mxu0
      %5464 = vmatprep.mubr.bf16.mxu0 %v3334
      %5465 = vmatmul.mubr.bf16.gmra.mrb[0].mxu0 %v3333
      %v5466 = vpop.f32.mrb[0].mxu0
      %v5467 = vadd.f32 0.0, %v5466
      %v5468 = vpop.f32.mrb[0].mxu0
      %v5469 = vpop.f32.mrb[0].mxu0
      %v5470 = vadd.f32 0.0, %v5469
      %v5471 = vpop.f32.mrb[0].mxu0
      %5472 = vmatprep.mubr.bf16.mxu0 %v3337
      %5473 = vmatmul.mubr.bf16.gmra.mrb[0].mxu0 %v3336
      %v5474 = vpop.f32.mrb[0].mxu0
      %v5475 = vadd.f32 0.0, %v5474
      %v5476 = vpop.f32.mrb[0].mxu0
      %v5477 = vpop.f32.mrb[0].mxu0
      %v5478 = vadd.f32 0.0, %v5477
      %v5479 = vpop.f32.mrb[0].mxu0
      %5480 = vmatprep.mubr.bf16.mxu0 %v3340
      %5481 = vmatmul.mubr.bf16.gmra.mrb[0].mxu0 %v3339
      %v5482 = vpop.f32.mrb[0].mxu0
      %v5483 = vadd.f32 0.0, %v5482
      %v5484 = vpop.f32.mrb[0].mxu0
      %v5485 = vpop.f32.mrb[0].mxu0
      %v5486 = vadd.f32 0.0, %v5485
      %v5487 = vpop.f32.mrb[0].mxu0
      %5488 = vmatprep.mubr.bf16.mxu0 %v3343
      %5489 = vmatmul.mubr.bf16.gmra.mrb[0].mxu0 %v3342
      %v5490 = vpop.f32.mrb[0].mxu0
      %v5491 = vadd.f32 0.0, %v5490
      %v5492 = vpop.f32.mrb[0].mxu0
      %v5493 = vpop.f32.mrb[0].mxu0
      %v5494 = vadd.f32 0.0, %v5493
      %v5495 = vpop.f32.mrb[0].mxu0
      %5496 = vmatprep.mubr.bf16.mxu0 %v3346
      %5497 = vmatmul.mubr.bf16.gmra.mrb[0].mxu0 %v3345
      %v5498 = vpop.f32.mrb[0].mxu0
      %v5499 = vadd.f32 0.0, %v5498
      %v5500 = vpop.f32.mrb[0].mxu0
      %v5501 = vpop.f32.mrb[0].mxu0
      %v5502 = vadd.f32 0.0, %v5501
      %v5503 = vpop.f32.mrb[0].mxu0
      %5504 = vmatprep.mubr.bf16.mxu0 %v3349
      %5505 = vmatmul.mubr.bf16.gmra.mrb[0].mxu0 %v3348
      %v5506 = vpop.f32.mrb[0].mxu0
      %v5507 = vadd.f32 0.0, %v5506
      %v5508 = vpop.f32.mrb[0].mxu0
      %v5509 = vpop.f32.mrb[0].mxu0
      %v5510 = vadd.f32 0.0, %v5509
      %v5511 = vpop.f32.mrb[0].mxu0
      %5512 = vmatprep.mubr.bf16.mxu0 %v3352
      %5513 = vmatmul.mubr.bf16.gmra.mrb[0].mxu0 %v3351
      %v5514 = vpop.f32.mrb[0].mxu0
      %v5515 = vadd.f32 0.0, %v5514
      %v5516 = vpop.f32.mrb[0].mxu0
      %v5517 = vpop.f32.mrb[0].mxu0
      %v5518 = vadd.f32 0.0, %v5517
      %v5519 = vpop.f32.mrb[0].mxu0
      %5520 = vmatprep.mubr.bf16.mxu0 %v3355
      %5521 = vmatmul.mubr.bf16.gmra.mrb[0].mxu0 %v3354
      %v5522 = vpop.f32.mrb[0].mxu0
      %v5523 = vadd.f32 0.0, %v5522
      %v5524 = vpop.f32.mrb[0].mxu0
      %v5525 = vpop.f32.mrb[0].mxu0
      %v5526 = vadd.f32 0.0, %v5525
      %v5527 = vpop.f32.mrb[0].mxu0
      %5528 = vmatprep.mubr.bf16.mxu0 %v3358
      %5529 = vmatmul.mubr.bf16.gmra.mrb[0].mxu0 %v3357
      %v5530 = vpop.f32.mrb[0].mxu0
      %v5531 = vadd.f32 0.0, %v5530
      %v5532 = vpop.f32.mrb[0].mxu0
      %v5533 = vpop.f32.mrb[0].mxu0
      %v5534 = vadd.f32 0.0, %v5533
      %v5535 = vpop.f32.mrb[0].mxu0
      %5536 = vmatprep.mubr.bf16.mxu0 %v3361
      %5537 = vmatmul.mubr.bf16.gmra.mrb[0].mxu0 %v3360
      %v5538 = vpop.f32.mrb[0].mxu0
      %v5539 = vadd.f32 0.0, %v5538
      %v5540 = vpop.f32.mrb[0].mxu0
      %v5541 = vpop.f32.mrb[0].mxu0
      %v5542 = vadd.f32 0.0, %v5541
      %v5543 = vpop.f32.mrb[0].mxu0
      %5544 = vmatprep.mubr.bf16.mxu0 %v3364
      %5545 = vmatmul.mubr.bf16.gmra.mrb[0].mxu0 %v3363
      %v5546 = vpop.f32.mrb[0].mxu0
      %v5547 = vadd.f32 0.0, %v5546
      %v5548 = vpop.f32.mrb[0].mxu0
      %v5549 = vpop.f32.mrb[0].mxu0
      %v5550 = vadd.f32 0.0, %v5549
      %v5551 = vpop.f32.mrb[0].mxu0
      %5552 = vmatprep.mubr.bf16.mxu0 %v3367
      %5553 = vmatmul.mubr.bf16.gmra.mrb[0].mxu0 %v3366
      %v5554 = vpop.f32.mrb[0].mxu0
      %v5555 = vadd.f32 0.0, %v5554
      %v5556 = vpop.f32.mrb[0].mxu0
      %v5557 = vpop.f32.mrb[0].mxu0
      %v5558 = vadd.f32 0.0, %v5557
      %v5559 = vpop.f32.mrb[0].mxu0
      %5560 = vmatprep.mubr.bf16.mxu0 %v3370
      %5561 = vmatmul.mubr.bf16.gmra.mrb[0].mxu0 %v3369
      %v5562 = vpop.f32.mrb[0].mxu0
      %v5563 = vadd.f32 0.0, %v5562
      %v5564 = vpop.f32.mrb[0].mxu0
      %v5565 = vpop.f32.mrb[0].mxu0
      %v5566 = vadd.f32 0.0, %v5565
      %v5567 = vpop.f32.mrb[0].mxu0
      %5568 = vmatprep.mubr.bf16.mxu0 %v3373
      %5569 = vmatmul.mubr.bf16.gmra.mrb[0].mxu0 %v3372
      %v5570 = vpop.f32.mrb[0].mxu0
      %v5571 = vadd.f32 0.0, %v5570
      %v5572 = vpop.f32.mrb[0].mxu0
      %v5573 = vpop.f32.mrb[0].mxu0
      %v5574 = vadd.f32 0.0, %v5573
      %v5575 = vpop.f32.mrb[0].mxu0
      %5576 = vmatprep.mubr.bf16.mxu0 %v3376
      %5577 = vmatmul.mubr.bf16.gmra.mrb[0].mxu0 %v3375
      %v5578 = vpop.f32.mrb[0].mxu0
      %v5579 = vadd.f32 0.0, %v5578
      %v5580 = vpop.f32.mrb[0].mxu0
      %v5581 = vpop.f32.mrb[0].mxu0
      %v5582 = vadd.f32 0.0, %v5581
      %v5583 = vpop.f32.mrb[0].mxu0
      %5584 = vmatprep.mubr.bf16.mxu0 %v3379
      %5585 = vmatmul.mubr.bf16.gmra.mrb[0].mxu0 %v3378
      %v5586 = vpop.f32.mrb[0].mxu0
      %v5587 = vadd.f32 0.0, %v5586
      %v5588 = vpop.f32.mrb[0].mxu0
      %v5589 = vpop.f32.mrb[0].mxu0
      %v5590 = vadd.f32 0.0, %v5589
      %v5591 = vpop.f32.mrb[0].mxu0
      %5592 = vmatprep.mubr.bf16.mxu0 %v3382
      %5593 = vmatmul.mubr.bf16.gmra.mrb[0].mxu0 %v3381
      %v5594 = vpop.f32.mrb[0].mxu0
      %v5595 = vadd.f32 0.0, %v5594
      %v5596 = vpop.f32.mrb[0].mxu0
      %v5597 = vpop.f32.mrb[0].mxu0
      %v5598 = vadd.f32 0.0, %v5597
      %v5599 = vpop.f32.mrb[0].mxu0
      %5600 = vmatprep.mubr.bf16.mxu0 %v3385
      %5601 = vmatmul.mubr.bf16.gmra.mrb[0].mxu0 %v3384
      %v5602 = vpop.f32.mrb[0].mxu0
      %v5603 = vadd.f32 0.0, %v5602
      %v5604 = vpop.f32.mrb[0].mxu0
      %v5605 = vpop.f32.mrb[0].mxu0
      %v5606 = vadd.f32 0.0, %v5605
      %v5607 = vpop.f32.mrb[0].mxu0
      %5608 = vmatprep.mubr.bf16.mxu0 %v3388
      %5609 = vmatmul.mubr.bf16.gmra.mrb[0].mxu0 %v3387
      %v5610 = vpop.f32.mrb[0].mxu0
      %v5611 = vadd.f32 0.0, %v5610
      %v5612 = vpop.f32.mrb[0].mxu0
      %v5613 = vpop.f32.mrb[0].mxu0
      %v5614 = vadd.f32 0.0, %v5613
      %v5615 = vpop.f32.mrb[0].mxu0
      %5616 = vmatprep.mubr.bf16.mxu0 %v3391
      %5617 = vmatmul.mubr.bf16.gmra.mrb[0].mxu0 %v3390
      %v5618 = vpop.f32.mrb[0].mxu0
      %v5619 = vadd.f32 0.0, %v5618
      %v5620 = vpop.f32.mrb[0].mxu0
      %v5621 = vpop.f32.mrb[0].mxu0
      %v5622 = vadd.f32 0.0, %v5621
      %v5623 = vpop.f32.mrb[0].mxu0
      %5624 = vmatprep.mubr.bf16.mxu0 %v3394
      %5625 = vmatmul.mubr.bf16.gmra.mrb[0].mxu0 %v3393
      %v5626 = vpop.f32.mrb[0].mxu0
      %v5627 = vadd.f32 0.0, %v5626
      %v5628 = vpop.f32.mrb[0].mxu0
      %v5629 = vpop.f32.mrb[0].mxu0
      %v5630 = vadd.f32 0.0, %v5629
      %v5631 = vpop.f32.mrb[0].mxu0
      %5632 = vmatprep.mubr.bf16.mxu0 %v3397
      %5633 = vmatmul.mubr.bf16.gmra.mrb[0].mxu0 %v3396
      %v5634 = vpop.f32.mrb[0].mxu0
      %v5635 = vadd.f32 0.0, %v5634
      %v5636 = vpop.f32.mrb[0].mxu0
      %v5637 = vpop.f32.mrb[0].mxu0
      %v5638 = vadd.f32 0.0, %v5637
      %v5639 = vpop.f32.mrb[0].mxu0
      %5640 = vmatprep.mubr.bf16.mxu0 %v3400
      %5641 = vmatmul.mubr.bf16.gmra.mrb[0].mxu0 %v3399
      %v5642 = vpop.f32.mrb[0].mxu0
      %v5643 = vadd.f32 0.0, %v5642
      %v5644 = vpop.f32.mrb[0].mxu0
      %v5645 = vpop.f32.mrb[0].mxu0
      %v5646 = vadd.f32 0.0, %v5645
      %v5647 = vpop.f32.mrb[0].mxu0
      %5648 = vmatprep.mubr.bf16.mxu0 %v3403
      %5649 = vmatmul.mubr.bf16.gmra.mrb[0].mxu0 %v3402
      %v5650 = vpop.f32.mrb[0].mxu0
      %v5651 = vadd.f32 0.0, %v5650
      %v5652 = vpop.f32.mrb[0].mxu0
      %v5653 = vpop.f32.mrb[0].mxu0
      %v5654 = vadd.f32 0.0, %v5653
      %v5655 = vpop.f32.mrb[0].mxu0
      %5656 = vmatprep.mubr.bf16.mxu0 %v3406
      %5657 = vmatmul.mubr.bf16.gmra.mrb[0].mxu0 %v3405
      %v5658 = vpop.f32.mrb[0].mxu0
      %v5659 = vadd.f32 0.0, %v5658
      %v5660 = vpop.f32.mrb[0].mxu0
      %v5661 = vpop.f32.mrb[0].mxu0
      %v5662 = vadd.f32 0.0, %v5661
      %v5663 = vpop.f32.mrb[0].mxu0
      %5664 = vmatprep.mubr.bf16.mxu0 %v3409
      %5665 = vmatmul.mubr.bf16.gmra.mrb[0].mxu0 %v3408
      %v5666 = vpop.f32.mrb[0].mxu0
      %v5667 = vadd.f32 0.0, %v5666
      %v5668 = vpop.f32.mrb[0].mxu0
      %v5669 = vpop.f32.mrb[0].mxu0
      %v5670 = vadd.f32 0.0, %v5669
      %v5671 = vpop.f32.mrb[0].mxu0
      %5672 = vmatprep.mubr.bf16.mxu0 %v3412
      %5673 = vmatmul.mubr.bf16.gmra.mrb[0].mxu0 %v3411
      %v5674 = vpop.f32.mrb[0].mxu0
      %v5675 = vadd.f32 0.0, %v5674
      %v5676 = vpop.f32.mrb[0].mxu0
      %v5677 = vpop.f32.mrb[0].mxu0
      %v5678 = vadd.f32 0.0, %v5677
      %v5679 = vpop.f32.mrb[0].mxu0
      %5680 = vmatprep.mubr.bf16.mxu0 %v3415
      %5681 = vmatmul.mubr.bf16.gmra.mrb[0].mxu0 %v3414
      %v5682 = vpop.f32.mrb[0].mxu0
      %v5683 = vadd.f32 0.0, %v5682
      %v5684 = vpop.f32.mrb[0].mxu0
      %v5685 = vpop.f32.mrb[0].mxu0
      %v5686 = vadd.f32 0.0, %v5685
      %v5687 = vpop.f32.mrb[0].mxu0
      %5688 = vmatprep.mubr.bf16.mxu0 %v3418
      %5689 = vmatmul.mubr.bf16.gmra.mrb[0].mxu0 %v3417
      %v5690 = vpop.f32.mrb[0].mxu0
      %v5691 = vadd.f32 0.0, %v5690
      %v5692 = vpop.f32.mrb[0].mxu0
      %v5693 = vpop.f32.mrb[0].mxu0
      %v5694 = vadd.f32 0.0, %v5693
      %v5695 = vpop.f32.mrb[0].mxu0
      %5696 = vmatprep.mubr.bf16.mxu0 %v3421
      %5697 = vmatmul.mubr.bf16.gmra.mrb[0].mxu0 %v3420
      %v5698 = vpop.f32.mrb[0].mxu0
      %v5699 = vadd.f32 0.0, %v5698
      %v5700 = vpop.f32.mrb[0].mxu0
      %v5701 = vpop.f32.mrb[0].mxu0
      %v5702 = vadd.f32 0.0, %v5701
      %v5703 = vpop.f32.mrb[0].mxu0
      %5704 = vmatprep.mubr.bf16.mxu0 %v3424
      %5705 = vmatmul.mubr.bf16.gmra.mrb[0].mxu0 %v3423
      %v5706 = vpop.f32.mrb[0].mxu0
      %v5707 = vadd.f32 0.0, %v5706
      %v5708 = vpop.f32.mrb[0].mxu0
      %v5709 = vpop.f32.mrb[0].mxu0
      %v5710 = vadd.f32 0.0, %v5709
      %v5711 = vpop.f32.mrb[0].mxu0
      %5712 = vmatprep.mubr.bf16.mxu0 %v3427
      %5713 = vmatmul.mubr.bf16.gmra.mrb[0].mxu0 %v3426
      %v5714 = vpop.f32.mrb[0].mxu0
      %v5715 = vadd.f32 0.0, %v5714
      %v5716 = vpop.f32.mrb[0].mxu0
      %v5717 = vpop.f32.mrb[0].mxu0
      %v5718 = vadd.f32 0.0, %v5717
      %v5719 = vpop.f32.mrb[0].mxu0
      %5720 = vmatprep.mubr.bf16.mxu0 %v3430
      %5721 = vmatmul.mubr.bf16.gmra.mrb[0].mxu0 %v3429
      %v5722 = vpop.f32.mrb[0].mxu0
      %v5723 = vadd.f32 0.0, %v5722
      %v5724 = vpop.f32.mrb[0].mxu0
      %v5725 = vpop.f32.mrb[0].mxu0
      %v5726 = vadd.f32 0.0, %v5725
      %v5727 = vpop.f32.mrb[0].mxu0
      %5728 = vmatprep.mubr.bf16.mxu0 %v3433
      %5729 = vmatmul.mubr.bf16.gmra.mrb[0].mxu0 %v3432
      %v5730 = vpop.f32.mrb[0].mxu0
      %v5731 = vadd.f32 0.0, %v5730
      %v5732 = vpop.f32.mrb[0].mxu0
      %v5733 = vpop.f32.mrb[0].mxu0
      %v5734 = vadd.f32 0.0, %v5733
      %v5735 = vpop.f32.mrb[0].mxu0
      %5736 = vmatprep.mubr.bf16.mxu0 %v3436
      %5737 = vmatmul.mubr.bf16.gmra.mrb[0].mxu0 %v3435
      %v5738 = vpop.f32.mrb[0].mxu0
      %v5739 = vadd.f32 0.0, %v5738
      %v5740 = vpop.f32.mrb[0].mxu0
      %v5741 = vpop.f32.mrb[0].mxu0
      %v5742 = vadd.f32 0.0, %v5741
      %v5743 = vpop.f32.mrb[0].mxu0
      %5744 = vmatprep.mubr.bf16.mxu0 %v3439
      %5745 = vmatmul.mubr.bf16.gmra.mrb[0].mxu0 %v3438
      %v5746 = vpop.f32.mrb[0].mxu0
      %v5747 = vadd.f32 0.0, %v5746
      %v5748 = vpop.f32.mrb[0].mxu0
      %v5749 = vpop.f32.mrb[0].mxu0
      %v5750 = vadd.f32 0.0, %v5749
      %v5751 = vpop.f32.mrb[0].mxu0
      %5752 = vmatprep.mubr.bf16.mxu0 %v3442
      %5753 = vmatmul.mubr.bf16.gmra.mrb[0].mxu0 %v3441
      %v5754 = vpop.f32.mrb[0].mxu0
      %v5755 = vadd.f32 0.0, %v5754
      %v5756 = vpop.f32.mrb[0].mxu0
      %v5757 = vpop.f32.mrb[0].mxu0
      %v5758 = vadd.f32 0.0, %v5757
      %v5759 = vpop.f32.mrb[0].mxu0
      %5760 = vmatprep.mubr.bf16.mxu0 %v3445
      %5761 = vmatmul.mubr.bf16.gmra.mrb[0].mxu0 %v3444
      %v5762 = vpop.f32.mrb[0].mxu0
      %v5763 = vadd.f32 0.0, %v5762
      %v5764 = vpop.f32.mrb[0].mxu0
      %v5765 = vpop.f32.mrb[0].mxu0
      %v5766 = vadd.f32 0.0, %v5765
      %v5767 = vpop.f32.mrb[0].mxu0
      %5768 = vmatprep.mubr.bf16.mxu0 %v3448
      %5769 = vmatmul.mubr.bf16.gmra.mrb[0].mxu0 %v3447
      %v5770 = vpop.f32.mrb[0].mxu0
      %v5771 = vadd.f32 0.0, %v5770
      %v5772 = vpop.f32.mrb[0].mxu0
      %v5773 = vpop.f32.mrb[0].mxu0
      %v5774 = vadd.f32 0.0, %v5773
      %v5775 = vpop.f32.mrb[0].mxu0
      %5776 = vmatprep.mubr.bf16.mxu0 %v3451
      %5777 = vmatmul.mubr.bf16.gmra.mrb[0].mxu0 %v3450
      %v5778 = vpop.f32.mrb[0].mxu0
      %v5779 = vadd.f32 0.0, %v5778
      %v5780 = vpop.f32.mrb[0].mxu0
      %v5781 = vpop.f32.mrb[0].mxu0
      %v5782 = vadd.f32 0.0, %v5781
      %v5783 = vpop.f32.mrb[0].mxu0
      %5784 = vmatprep.mubr.bf16.mxu0 %v3454
      %5785 = vmatmul.mubr.bf16.gmra.mrb[0].mxu0 %v3453
      %v5786 = vpop.f32.mrb[0].mxu0
      %v5787 = vadd.f32 0.0, %v5786
      %v5788 = vpop.f32.mrb[0].mxu0
      %v5789 = vpop.f32.mrb[0].mxu0
      %v5790 = vadd.f32 0.0, %v5789
      %v5791 = vpop.f32.mrb[0].mxu0
      %5792 = vmatprep.mubr.bf16.mxu0 %v3457
      %5793 = vmatmul.mubr.bf16.gmra.mrb[0].mxu0 %v3456
      %v5794 = vpop.f32.mrb[0].mxu0
      %v5795 = vadd.f32 0.0, %v5794
      %v5796 = vpop.f32.mrb[0].mxu0
      %v5797 = vpop.f32.mrb[0].mxu0
      %v5798 = vadd.f32 0.0, %v5797
      %v5799 = vpop.f32.mrb[0].mxu0
      %5800 = vmatprep.mubr.bf16.mxu0 %v3460
      %5801 = vmatmul.mubr.bf16.gmra.mrb[0].mxu0 %v3459
      %v5802 = vpop.f32.mrb[0].mxu0
      %v5803 = vadd.f32 0.0, %v5802
      %v5804 = vpop.f32.mrb[0].mxu0
      %v5805 = vpop.f32.mrb[0].mxu0
      %v5806 = vadd.f32 0.0, %v5805
      %v5807 = vpop.f32.mrb[0].mxu0
      %5808 = vmatprep.mubr.bf16.mxu0 %v3463
      %5809 = vmatmul.mubr.bf16.gmra.mrb[0].mxu0 %v3462
      %v5810 = vpop.f32.mrb[0].mxu0
      %v5811 = vadd.f32 0.0, %v5810
      %v5812 = vpop.f32.mrb[0].mxu0
      %v5813 = vpop.f32.mrb[0].mxu0
      %v5814 = vadd.f32 0.0, %v5813
      %v5815 = vpop.f32.mrb[0].mxu0
      %5816 = vmatprep.mubr.bf16.mxu0 %v3466
      %5817 = vmatmul.mubr.bf16.gmra.mrb[0].mxu0 %v3465
      %v5818 = vpop.f32.mrb[0].mxu0
      %v5819 = vadd.f32 0.0, %v5818
      %v5820 = vpop.f32.mrb[0].mxu0
      %v5821 = vpop.f32.mrb[0].mxu0
      %v5822 = vadd.f32 0.0, %v5821
      %v5823 = vpop.f32.mrb[0].mxu0
      %5824 = vmatprep.mubr.bf16.mxu0 %v3469
      %5825 = vmatmul.mubr.bf16.gmra.mrb[0].mxu0 %v3468
      %v5826 = vpop.f32.mrb[0].mxu0
      %v5827 = vadd.f32 0.0, %v5826
      %v5828 = vpop.f32.mrb[0].mxu0
      %v5829 = vpop.f32.mrb[0].mxu0
      %v5830 = vadd.f32 0.0, %v5829
      %v5831 = vpop.f32.mrb[0].mxu0
      %5832 = vmatprep.mubr.bf16.mxu0 %v3472
      %5833 = vmatmul.mubr.bf16.gmra.mrb[0].mxu0 %v3471
      %v5834 = vpop.f32.mrb[0].mxu0
      %v5835 = vadd.f32 0.0, %v5834
      %v5836 = vpop.f32.mrb[0].mxu0
      %v5837 = vpop.f32.mrb[0].mxu0
      %v5838 = vadd.f32 0.0, %v5837
      %v5839 = vpop.f32.mrb[0].mxu0
      %5840 = vmatprep.mubr.bf16.mxu0 %v3475
      %5841 = vmatmul.mubr.bf16.gmra.mrb[0].mxu0 %v3474
      %v5842 = vpop.f32.mrb[0].mxu0
      %v5843 = vadd.f32 0.0, %v5842
      %v5844 = vpop.f32.mrb[0].mxu0
      %v5845 = vpop.f32.mrb[0].mxu0
      %v5846 = vadd.f32 0.0, %v5845
      %v5847 = vpop.f32.mrb[0].mxu0
      %5848 = vmatprep.mubr.bf16.mxu0 %v3478
      %5849 = vmatmul.mubr.bf16.gmra.mrb[0].mxu0 %v3477
      %v5850 = vpop.f32.mrb[0].mxu0
      %v5851 = vadd.f32 0.0, %v5850
      %v5852 = vpop.f32.mrb[0].mxu0
      %v5853 = vpop.f32.mrb[0].mxu0
      %v5854 = vadd.f32 0.0, %v5853
      %v5855 = vpop.f32.mrb[0].mxu0
      %5856 = vmatprep.mubr.bf16.mxu0 %v3481
      %5857 = vmatmul.mubr.bf16.gmra.mrb[0].mxu0 %v3480
      %v5858 = vpop.f32.mrb[0].mxu0
      %v5859 = vadd.f32 0.0, %v5858
      %v5860 = vpop.f32.mrb[0].mxu0
      %v5861 = vpop.f32.mrb[0].mxu0
      %v5862 = vadd.f32 0.0, %v5861
      %v5863 = vpop.f32.mrb[0].mxu0
      %5864 = vmatprep.mubr.bf16.mxu0 %v3484
      %5865 = vmatmul.mubr.bf16.gmra.mrb[0].mxu0 %v3483
      %v5866 = vpop.f32.mrb[0].mxu0
      %v5867 = vadd.f32 0.0, %v5866
      %v5868 = vpop.f32.mrb[0].mxu0
      %v5869 = vpop.f32.mrb[0].mxu0
      %v5870 = vadd.f32 0.0, %v5869
      %v5871 = vpop.f32.mrb[0].mxu0
      %5872 = vmatprep.mubr.bf16.mxu0 %v3487
      %5873 = vmatmul.mubr.bf16.gmra.mrb[0].mxu0 %v3486
      %v5874 = vpop.f32.mrb[0].mxu0
      %v5875 = vadd.f32 0.0, %v5874
      %v5876 = vpop.f32.mrb[0].mxu0
      %v5877 = vpop.f32.mrb[0].mxu0
      %v5878 = vadd.f32 0.0, %v5877
      %v5879 = vpop.f32.mrb[0].mxu0
      %5880 = vmatprep.mubr.bf16.mxu0 %v3490
      %5881 = vmatmul.mubr.bf16.gmra.mrb[0].mxu0 %v3489
      %v5882 = vpop.f32.mrb[0].mxu0
      %v5883 = vadd.f32 0.0, %v5882
      %v5884 = vpop.f32.mrb[0].mxu0
      %v5885 = vpop.f32.mrb[0].mxu0
      %v5886 = vadd.f32 0.0, %v5885
      %v5887 = vpop.f32.mrb[0].mxu0
      %5888 = vmatprep.mubr.bf16.mxu0 %v3493
      %5889 = vmatmul.mubr.bf16.gmra.mrb[0].mxu0 %v3492
      %v5890 = vpop.f32.mrb[0].mxu0
      %v5891 = vadd.f32 0.0, %v5890
      %v5892 = vpop.f32.mrb[0].mxu0
      %v5893 = vpop.f32.mrb[0].mxu0
      %v5894 = vadd.f32 0.0, %v5893
      %v5895 = vpop.f32.mrb[0].mxu0
      %5896 = vmatprep.mubr.bf16.mxu0 %v3496
      %5897 = vmatmul.mubr.bf16.gmra.mrb[0].mxu0 %v3495
      %v5898 = vpop.f32.mrb[0].mxu0
      %v5899 = vadd.f32 0.0, %v5898
      %v5900 = vpop.f32.mrb[0].mxu0
      %v5901 = vpop.f32.mrb[0].mxu0
      %v5902 = vadd.f32 0.0, %v5901
      %v5903 = vpop.f32.mrb[0].mxu0
      %5904 = vmatprep.mubr.bf16.mxu0 %v3499
      %5905 = vmatmul.mubr.bf16.gmra.mrb[0].mxu0 %v3498
      %v5906 = vpop.f32.mrb[0].mxu0
      %v5907 = vadd.f32 0.0, %v5906
      %v5908 = vpop.f32.mrb[0].mxu0
      %v5909 = vpop.f32.mrb[0].mxu0
      %v5910 = vadd.f32 0.0, %v5909
      %v5911 = vpop.f32.mrb[0].mxu0
      %5912 = vmatprep.mubr.bf16.mxu0 %v3502
      %5913 = vmatmul.mubr.bf16.gmra.mrb[0].mxu0 %v3501
      %v5914 = vpop.f32.mrb[0].mxu0
      %v5915 = vadd.f32 0.0, %v5914
      %v5916 = vpop.f32.mrb[0].mxu0
      %v5917 = vpop.f32.mrb[0].mxu0
      %v5918 = vadd.f32 0.0, %v5917
      %v5919 = vpop.f32.mrb[0].mxu0
      %5920 = vmatprep.mubr.bf16.mxu0 %v3505
      %5921 = vmatmul.mubr.bf16.gmra.mrb[0].mxu0 %v3504
      %v5922 = vpop.f32.mrb[0].mxu0
      %v5923 = vadd.f32 0.0, %v5922
      %v5924 = vpop.f32.mrb[0].mxu0
      %v5925 = vpop.f32.mrb[0].mxu0
      %v5926 = vadd.f32 0.0, %v5925
      %v5927 = vpop.f32.mrb[0].mxu0
      %5928 = vmatprep.mubr.bf16.mxu0 %v3508
      %5929 = vmatmul.mubr.bf16.gmra.mrb[0].mxu0 %v3507
      %v5930 = vpop.f32.mrb[0].mxu0
      %v5931 = vadd.f32 0.0, %v5930
      %v5932 = vpop.f32.mrb[0].mxu0
      %v5933 = vpop.f32.mrb[0].mxu0
      %v5934 = vadd.f32 0.0, %v5933
      %v5935 = vpop.f32.mrb[0].mxu0
      %5936 = vmatprep.mubr.bf16.mxu0 %v3511
      %5937 = vmatmul.mubr.bf16.gmra.mrb[0].mxu0 %v3510
      %v5938 = vpop.f32.mrb[0].mxu0
      %v5939 = vadd.f32 0.0, %v5938
      %v5940 = vpop.f32.mrb[0].mxu0
      %v5941 = vpop.f32.mrb[0].mxu0
      %v5942 = vadd.f32 0.0, %v5941
      %v5943 = vpop.f32.mrb[0].mxu0
      %5944 = vmatprep.mubr.bf16.mxu0 %v3514
      %5945 = vmatmul.mubr.bf16.gmra.mrb[0].mxu0 %v3513
      %v5946 = vpop.f32.mrb[0].mxu0
      %v5947 = vadd.f32 0.0, %v5946
      %v5948 = vpop.f32.mrb[0].mxu0
      %v5949 = vpop.f32.mrb[0].mxu0
      %v5950 = vadd.f32 0.0, %v5949
      %v5951 = vpop.f32.mrb[0].mxu0
      %5952 = vmatprep.mubr.bf16.mxu0 %v3517
      %5953 = vmatmul.mubr.bf16.gmra.mrb[0].mxu0 %v3516
      %v5954 = vpop.f32.mrb[0].mxu0
      %v5955 = vadd.f32 0.0, %v5954
      %v5956 = vpop.f32.mrb[0].mxu0
      %v5957 = vpop.f32.mrb[0].mxu0
      %v5958 = vadd.f32 0.0, %v5957
      %v5959 = vpop.f32.mrb[0].mxu0
      %5960 = vmatprep.mubr.bf16.mxu0 %v3520
      %5961 = vmatmul.mubr.bf16.gmra.mrb[0].mxu0 %v3519
      %v5962 = vpop.f32.mrb[0].mxu0
      %v5963 = vadd.f32 0.0, %v5962
      %v5964 = vpop.f32.mrb[0].mxu0
      %v5965 = vpop.f32.mrb[0].mxu0
      %v5966 = vadd.f32 0.0, %v5965
      %v5967 = vpop.f32.mrb[0].mxu0
      %5968 = vmatprep.mubr.bf16.mxu0 %v3523
      %5969 = vmatmul.mubr.bf16.gmra.mrb[0].mxu0 %v3522
      %v5970 = vpop.f32.mrb[0].mxu0
      %v5971 = vadd.f32 0.0, %v5970
      %v5972 = vpop.f32.mrb[0].mxu0
      %v5973 = vpop.f32.mrb[0].mxu0
      %v5974 = vadd.f32 0.0, %v5973
      %v5975 = vpop.f32.mrb[0].mxu0
      %5976 = vmatprep.mubr.bf16.mxu0 %v3526
      %5977 = vmatmul.mubr.bf16.gmra.mrb[0].mxu0 %v3525
      %v5978 = vpop.f32.mrb[0].mxu0
      %v5979 = vadd.f32 0.0, %v5978
      %v5980 = vpop.f32.mrb[0].mxu0
      %v5981 = vpop.f32.mrb[0].mxu0
      %v5982 = vadd.f32 0.0, %v5981
      %v5983 = vpop.f32.mrb[0].mxu0
      %5984 = vmatprep.mubr.bf16.mxu0 %v3529
      %5985 = vmatmul.mubr.bf16.gmra.mrb[0].mxu0 %v3528
      %v5986 = vpop.f32.mrb[0].mxu0
      %v5987 = vadd.f32 0.0, %v5986
      %v5988 = vpop.f32.mrb[0].mxu0
      %v5989 = vpop.f32.mrb[0].mxu0
      %v5990 = vadd.f32 0.0, %v5989
      %v5991 = vpop.f32.mrb[0].mxu0
      %5992 = vmatprep.mubr.bf16.mxu0 %v3532
      %5993 = vmatmul.mubr.bf16.gmra.mrb[0].mxu0 %v3531
      %v5994 = vpop.f32.mrb[0].mxu0
      %v5995 = vadd.f32 0.0, %v5994
      %v5996 = vpop.f32.mrb[0].mxu0
      %v5997 = vpop.f32.mrb[0].mxu0
      %v5998 = vadd.f32 0.0, %v5997
      %v5999 = vpop.f32.mrb[0].mxu0
      %6000 = vmatprep.mubr.bf16.mxu0 %v3535
      %6001 = vmatmul.mubr.bf16.gmra.mrb[0].mxu0 %v3534
      %v6002 = vpop.f32.mrb[0].mxu0
      %v6003 = vadd.f32 0.0, %v6002
      %v6004 = vpop.f32.mrb[0].mxu0
      %v6005 = vpop.f32.mrb[0].mxu0
      %v6006 = vadd.f32 0.0, %v6005
      %v6007 = vpop.f32.mrb[0].mxu0
      %6008 = vmatprep.mubr.bf16.mxu0 %v3538
      %6009 = vmatmul.mubr.bf16.gmra.mrb[0].mxu0 %v3537
      %v6010 = vpop.f32.mrb[0].mxu0
      %v6011 = vadd.f32 0.0, %v6010
      %v6012 = vpop.f32.mrb[0].mxu0
      %v6013 = vpop.f32.mrb[0].mxu0
      %v6014 = vadd.f32 0.0, %v6013
      %v6015 = vpop.f32.mrb[0].mxu0
      %6016 = vmatprep.mubr.bf16.mxu0 %v3541
      %6017 = vmatmul.mubr.bf16.gmra.mrb[0].mxu0 %v3540
      %v6018 = vpop.f32.mrb[0].mxu0
      %v6019 = vadd.f32 0.0, %v6018
      %v6020 = vpop.f32.mrb[0].mxu0
      %v6021 = vpop.f32.mrb[0].mxu0
      %v6022 = vadd.f32 0.0, %v6021
      %v6023 = vpop.f32.mrb[0].mxu0
      %6024 = vmatprep.mubr.bf16.mxu0 %v3544
      %6025 = vmatmul.mubr.bf16.gmra.mrb[0].mxu0 %v3543
      %v6026 = vpop.f32.mrb[0].mxu0
      %v6027 = vadd.f32 0.0, %v6026
      %v6028 = vpop.f32.mrb[0].mxu0
      %v6029 = vpop.f32.mrb[0].mxu0
      %v6030 = vadd.f32 0.0, %v6029
      %v6031 = vpop.f32.mrb[0].mxu0
      %6032 = vmatprep.mubr.bf16.mxu0 %v3547
      %6033 = vmatmul.mubr.bf16.gmra.mrb[0].mxu0 %v3546
      %v6034 = vpop.f32.mrb[0].mxu0
      %v6035 = vadd.f32 0.0, %v6034
      %v6036 = vpop.f32.mrb[0].mxu0
      %v6037 = vpop.f32.mrb[0].mxu0
      %v6038 = vadd.f32 0.0, %v6037
      %v6039 = vpop.f32.mrb[0].mxu0
      %6040 = vmatprep.mubr.bf16.mxu0 %v3550
      %6041 = vmatmul.mubr.bf16.gmra.mrb[0].mxu0 %v3549
      %v6042 = vpop.f32.mrb[0].mxu0
      %v6043 = vadd.f32 0.0, %v6042
      %v6044 = vpop.f32.mrb[0].mxu0
      %v6045 = vpop.f32.mrb[0].mxu0
      %v6046 = vadd.f32 0.0, %v6045
      %v6047 = vpop.f32.mrb[0].mxu0
      %6048 = vmatprep.mubr.bf16.mxu0 %v3553
      %6049 = vmatmul.mubr.bf16.gmra.mrb[0].mxu0 %v3552
      %v6050 = vpop.f32.mrb[0].mxu0
      %v6051 = vadd.f32 0.0, %v6050
      %v6052 = vpop.f32.mrb[0].mxu0
      %v6053 = vpop.f32.mrb[0].mxu0
      %v6054 = vadd.f32 0.0, %v6053
      %v6055 = vpop.f32.mrb[0].mxu0
      %6056 = vmatprep.mubr.bf16.mxu0 %v3556
      %6057 = vmatmul.mubr.bf16.gmra.mrb[0].mxu0 %v3555
      %v6058 = vpop.f32.mrb[0].mxu0
      %v6059 = vadd.f32 0.0, %v6058
      %v6060 = vpop.f32.mrb[0].mxu0
      %v6061 = vpop.f32.mrb[0].mxu0
      %v6062 = vadd.f32 0.0, %v6061
      %v6063 = vpop.f32.mrb[0].mxu0
      %6064 = vmatprep.mubr.bf16.mxu0 %v3559
      %6065 = vmatmul.mubr.bf16.gmra.mrb[0].mxu0 %v3558
      %v6066 = vpop.f32.mrb[0].mxu0
      %v6067 = vadd.f32 0.0, %v6066
      %v6068 = vpop.f32.mrb[0].mxu0
      %v6069 = vpop.f32.mrb[0].mxu0
      %v6070 = vadd.f32 0.0, %v6069
      %v6071 = vpop.f32.mrb[0].mxu0
      %6072 = vmatprep.mubr.bf16.mxu0 %v3562
      %6073 = vmatmul.mubr.bf16.gmra.mrb[0].mxu0 %v3561
      %v6074 = vpop.f32.mrb[0].mxu0
      %v6075 = vadd.f32 0.0, %v6074
      %v6076 = vpop.f32.mrb[0].mxu0
      %v6077 = vpop.f32.mrb[0].mxu0
      %v6078 = vadd.f32 0.0, %v6077
      %v6079 = vpop.f32.mrb[0].mxu0
      %6080 = vmatprep.mubr.bf16.mxu0 %v3565
      %6081 = vmatmul.mubr.bf16.gmra.mrb[0].mxu0 %v3564
      %v6082 = vpop.f32.mrb[0].mxu0
      %v6083 = vadd.f32 0.0, %v6082
      %v6084 = vpop.f32.mrb[0].mxu0
      %v6085 = vpop.f32.mrb[0].mxu0
      %v6086 = vadd.f32 0.0, %v6085
      %v6087 = vpop.f32.mrb[0].mxu0
      %6088 = vmatprep.mubr.bf16.mxu0 %v3568
      %6089 = vmatmul.mubr.bf16.gmra.mrb[0].mxu0 %v3567
      %v6090 = vpop.f32.mrb[0].mxu0
      %v6091 = vadd.f32 0.0, %v6090
      %v6092 = vpop.f32.mrb[0].mxu0
      %v6093 = vpop.f32.mrb[0].mxu0
      %v6094 = vadd.f32 0.0, %v6093
      %v6095 = vpop.f32.mrb[0].mxu0
      %6096 = vmatprep.mubr.bf16.mxu0 %v3571
      %6097 = vmatmul.mubr.bf16.gmra.mrb[0].mxu0 %v3570
      %v6098 = vpop.f32.mrb[0].mxu0
      %v6099 = vadd.f32 0.0, %v6098
      %v6100 = vpop.f32.mrb[0].mxu0
      %v6101 = vpop.f32.mrb[0].mxu0
      %v6102 = vadd.f32 0.0, %v6101
      %v6103 = vpop.f32.mrb[0].mxu0
      %6104 = vmatprep.mubr.bf16.mxu0 %v3574
      %6105 = vmatmul.mubr.bf16.gmra.mrb[0].mxu0 %v3573
      %v6106 = vpop.f32.mrb[0].mxu0
      %v6107 = vadd.f32 0.0, %v6106
      %v6108 = vpop.f32.mrb[0].mxu0
      %v6109 = vpop.f32.mrb[0].mxu0
      %v6110 = vadd.f32 0.0, %v6109
      %v6111 = vpop.f32.mrb[0].mxu0
      %6112 = vmatprep.mubr.bf16.mxu0 %v3577
      %6113 = vmatmul.mubr.bf16.gmra.mrb[0].mxu0 %v3576
      %v6114 = vpop.f32.mrb[0].mxu0
      %v6115 = vadd.f32 0.0, %v6114
      %v6116 = vpop.f32.mrb[0].mxu0
      %v6117 = vpop.f32.mrb[0].mxu0
      %v6118 = vadd.f32 0.0, %v6117
      %v6119 = vpop.f32.mrb[0].mxu0
      %6120 = vmatprep.mubr.bf16.mxu0 %v3580
      %6121 = vmatmul.mubr.bf16.gmra.mrb[0].mxu0 %v3579
      %v6122 = vpop.f32.mrb[0].mxu0
      %v6123 = vadd.f32 0.0, %v6122
      %v6124 = vpop.f32.mrb[0].mxu0
      %v6125 = vpop.f32.mrb[0].mxu0
      %v6126 = vadd.f32 0.0, %v6125
      %v6127 = vpop.f32.mrb[0].mxu0
      %6128 = vmatprep.mubr.bf16.mxu0 %v3583
      %6129 = vmatmul.mubr.bf16.gmra.mrb[0].mxu0 %v3582
      %v6130 = vpop.f32.mrb[0].mxu0
      %v6131 = vadd.f32 0.0, %v6130
      %v6132 = vpop.f32.mrb[0].mxu0
      %v6133 = vpop.f32.mrb[0].mxu0
      %v6134 = vadd.f32 0.0, %v6133
      %v6135 = vpop.f32.mrb[0].mxu0
      %6136 = vmatprep.mubr.bf16.mxu0 %v3586
      %6137 = vmatmul.mubr.bf16.gmra.mrb[0].mxu0 %v3585
      %v6138 = vpop.f32.mrb[0].mxu0
      %v6139 = vadd.f32 0.0, %v6138
      %v6140 = vpop.f32.mrb[0].mxu0
      %v6141 = vpop.f32.mrb[0].mxu0
      %v6142 = vadd.f32 0.0, %v6141
      %v6143 = vpop.f32.mrb[0].mxu0
      %6144 = vmatprep.mubr.bf16.mxu0 %v3589
      %6145 = vmatmul.mubr.bf16.gmra.mrb[0].mxu0 %v3588
      %v6146 = vpop.f32.mrb[0].mxu0
      %v6147 = vadd.f32 0.0, %v6146
      %v6148 = vpop.f32.mrb[0].mxu0
      %v6149 = vpop.f32.mrb[0].mxu0
      %v6150 = vadd.f32 0.0, %v6149
      %v6151 = vpop.f32.mrb[0].mxu0
      %6152 = vmatprep.mubr.bf16.mxu0 %v3592
      %6153 = vmatmul.mubr.bf16.gmra.mrb[0].mxu0 %v3591
      %v6154 = vpop.f32.mrb[0].mxu0
      %v6155 = vadd.f32 0.0, %v6154
      %v6156 = vpop.f32.mrb[0].mxu0
      %v6157 = vpop.f32.mrb[0].mxu0
      %v6158 = vadd.f32 0.0, %v6157
      %v6159 = vpop.f32.mrb[0].mxu0
      %6160 = vmatprep.mubr.bf16.mxu0 %v3595
      %6161 = vmatmul.mubr.bf16.gmra.mrb[0].mxu0 %v3594
      %v6162 = vpop.f32.mrb[0].mxu0
      %v6163 = vadd.f32 0.0, %v6162
      %v6164 = vpop.f32.mrb[0].mxu0
      %v6165 = vpop.f32.mrb[0].mxu0
      %v6166 = vadd.f32 0.0, %v6165
      %v6167 = vpop.f32.mrb[0].mxu0
      %6168 = vmatprep.mubr.bf16.mxu0 %v3598
      %6169 = vmatmul.mubr.bf16.gmra.mrb[0].mxu0 %v3597
      %v6170 = vpop.f32.mrb[0].mxu0
      %v6171 = vadd.f32 0.0, %v6170
      %v6172 = vpop.f32.mrb[0].mxu0
      %v6173 = vpop.f32.mrb[0].mxu0
      %v6174 = vadd.f32 0.0, %v6173
      %v6175 = vpop.f32.mrb[0].mxu0
      %6176 = vmatprep.mubr.bf16.mxu0 %v3601
      %6177 = vmatmul.mubr.bf16.gmra.mrb[0].mxu0 %v3600
      %v6178 = vpop.f32.mrb[0].mxu0
      %v6179 = vadd.f32 0.0, %v6178
      %v6180 = vpop.f32.mrb[0].mxu0
      %v6181 = vpop.f32.mrb[0].mxu0
      %v6182 = vadd.f32 0.0, %v6181
      %v6183 = vpop.f32.mrb[0].mxu0
      %6184 = vmatprep.mubr.bf16.mxu0 %v3604
      %6185 = vmatmul.mubr.bf16.gmra.mrb[0].mxu0 %v3603
      %v6186 = vpop.f32.mrb[0].mxu0
      %v6187 = vadd.f32 0.0, %v6186
      %v6188 = vpop.f32.mrb[0].mxu0
      %v6189 = vpop.f32.mrb[0].mxu0
      %v6190 = vadd.f32 0.0, %v6189
      %v6191 = vpop.f32.mrb[0].mxu0
      %6192 = vmatprep.mubr.bf16.mxu0 %v3607
      %6193 = vmatmul.mubr.bf16.gmra.mrb[0].mxu0 %v3606
      %v6194 = vpop.f32.mrb[0].mxu0
      %v6195 = vadd.f32 0.0, %v6194
      %v6196 = vpop.f32.mrb[0].mxu0
      %v6197 = vpop.f32.mrb[0].mxu0
      %v6198 = vadd.f32 0.0, %v6197
      %v6199 = vpop.f32.mrb[0].mxu0
      %6200 = vmatprep.mubr.bf16.mxu0 %v3610
      %6201 = vmatmul.mubr.bf16.gmra.mrb[0].mxu0 %v3609
      %v6202 = vpop.f32.mrb[0].mxu0
      %v6203 = vadd.f32 0.0, %v6202
      %v6204 = vpop.f32.mrb[0].mxu0
      %v6205 = vpop.f32.mrb[0].mxu0
      %v6206 = vadd.f32 0.0, %v6205
      %v6207 = vpop.f32.mrb[0].mxu0
      %6208 = vmatprep.mubr.bf16.mxu0 %v3613
      %6209 = vmatmul.mubr.bf16.gmra.mrb[0].mxu0 %v3612
      %v6210 = vpop.f32.mrb[0].mxu0
      %v6211 = vadd.f32 0.0, %v6210
      %v6212 = vpop.f32.mrb[0].mxu0
      %v6213 = vpop.f32.mrb[0].mxu0
      %v6214 = vadd.f32 0.0, %v6213
      %v6215 = vpop.f32.mrb[0].mxu0
      %6216 = vmatprep.mubr.bf16.mxu0 %v3616
      %6217 = vmatmul.mubr.bf16.gmra.mrb[0].mxu0 %v3615
      %v6218 = vpop.f32.mrb[0].mxu0
      %v6219 = vadd.f32 0.0, %v6218
      %v6220 = vpop.f32.mrb[0].mxu0
      %v6221 = vpop.f32.mrb[0].mxu0
      %v6222 = vadd.f32 0.0, %v6221
      %v6223 = vpop.f32.mrb[0].mxu0
      %6224 = vmatprep.mubr.bf16.mxu0 %v3619
      %6225 = vmatmul.mubr.bf16.gmra.mrb[0].mxu0 %v3618
      %v6226 = vpop.f32.mrb[0].mxu0
      %v6227 = vadd.f32 0.0, %v6226
      %v6228 = vpop.f32.mrb[0].mxu0
      %v6229 = vpop.f32.mrb[0].mxu0
      %v6230 = vadd.f32 0.0, %v6229
      %v6231 = vpop.f32.mrb[0].mxu0
      %6232 = vmatprep.mubr.bf16.mxu0 %v3622
      %6233 = vmatmul.mubr.bf16.gmra.mrb[0].mxu0 %v3621
      %v6234 = vpop.f32.mrb[0].mxu0
      %v6235 = vadd.f32 0.0, %v6234
      %v6236 = vpop.f32.mrb[0].mxu0
      %v6237 = vpop.f32.mrb[0].mxu0
      %v6238 = vadd.f32 0.0, %v6237
      %v6239 = vpop.f32.mrb[0].mxu0
      %6240 = vmatprep.mubr.bf16.mxu0 %v3625
      %6241 = vmatmul.mubr.bf16.gmra.mrb[0].mxu0 %v3624
      %v6242 = vpop.f32.mrb[0].mxu0
      %v6243 = vadd.f32 0.0, %v6242
      %v6244 = vpop.f32.mrb[0].mxu0
      %v6245 = vpop.f32.mrb[0].mxu0
      %v6246 = vadd.f32 0.0, %v6245
      %v6247 = vpop.f32.mrb[0].mxu0
      %6248 = vmatprep.mubr.bf16.mxu0 %v3628
      %6249 = vmatmul.mubr.bf16.gmra.mrb[0].mxu0 %v3627
      %v6250 = vpop.f32.mrb[0].mxu0
      %v6251 = vadd.f32 0.0, %v6250
      %v6252 = vpop.f32.mrb[0].mxu0
      %v6253 = vpop.f32.mrb[0].mxu0
      %v6254 = vadd.f32 0.0, %v6253
      %v6255 = vpop.f32.mrb[0].mxu0
      %6256 = vmatprep.mubr.bf16.mxu0 %v3631
      %6257 = vmatmul.mubr.bf16.gmra.mrb[0].mxu0 %v3630
      %v6258 = vpop.f32.mrb[0].mxu0
      %v6259 = vadd.f32 0.0, %v6258
      %v6260 = vpop.f32.mrb[0].mxu0
      %v6261 = vpop.f32.mrb[0].mxu0
      %v6262 = vadd.f32 0.0, %v6261
      %v6263 = vpop.f32.mrb[0].mxu0
      %6264 = vmatprep.mubr.bf16.mxu0 %v3634
      %6265 = vmatmul.mubr.bf16.gmra.mrb[0].mxu0 %v3633
      %v6266 = vpop.f32.mrb[0].mxu0
      %v6267 = vadd.f32 0.0, %v6266
      %v6268 = vpop.f32.mrb[0].mxu0
      %v6269 = vpop.f32.mrb[0].mxu0
      %v6270 = vadd.f32 0.0, %v6269
      %v6271 = vpop.f32.mrb[0].mxu0
      %6272 = vmatprep.mubr.bf16.mxu0 %v3637
      %6273 = vmatmul.mubr.bf16.gmra.mrb[0].mxu0 %v3636
      %v6274 = vpop.f32.mrb[0].mxu0
      %v6275 = vadd.f32 0.0, %v6274
      %v6276 = vpop.f32.mrb[0].mxu0
      %v6277 = vpop.f32.mrb[0].mxu0
      %v6278 = vadd.f32 0.0, %v6277
      %v6279 = vpop.f32.mrb[0].mxu0
      %6280 = vmatprep.mubr.bf16.mxu0 %v3640
      %6281 = vmatmul.mubr.bf16.gmra.mrb[0].mxu0 %v3639
      %v6282 = vpop.f32.mrb[0].mxu0
      %v6283 = vadd.f32 0.0, %v6282
      %v6284 = vpop.f32.mrb[0].mxu0
      %v6285 = vpop.f32.mrb[0].mxu0
      %v6286 = vadd.f32 0.0, %v6285
      %v6287 = vpop.f32.mrb[0].mxu0
      %6288 = vdwg.mxu0
      %6289 = vmatprep.subr.bf16.mxu0 0
      %6290 = vmatpush1.bf16.msra.mxu0 %v4118
      %6291 = vmatprep.subr.bf16.mxu0 0
      %6292 = vmatpush1.bf16.msra.mxu0 %v4119
      %6293 = vmatprep.subr.bf16.mxu0 0
      %6294 = vmatpush1.bf16.msra.mxu0 %v4718
      %6295 = vmatprep.subr.bf16.mxu0 0
      %6296 = vmatpush1.bf16.msra.mxu0 0
      %6297 = vmatprep.subr.bf16.mxu0 0
      %6298 = vmatpush1.bf16.msra.mxu0 0
      %6299 = vmatprep.subr.bf16.mxu0 0
      %6300 = vmatpush1.bf16.msra.mxu0 0
      %6301 = vmatprep.subr.bf16.mxu0 0
      %6302 = vmatpush1.bf16.msra.mxu0 0
      %6303 = vmatprep.subr.bf16.mxu0 0
      %6304 = vmatpush1.bf16.msra.mxu0 0
      %6305 = vmatprep.subr.bf16.mxu0 0
      %6306 = vmatpush1.bf16.msra.mxu0 0
      %6307 = vmatprep.subr.bf16.mxu0 0
      %6308 = vmatpush1.bf16.msra.mxu0 0
      %6309 = vmatprep.subr.bf16.mxu0 0
      %6310 = vmatpush1.bf16.msra.mxu0 0
      %6311 = vmatprep.subr.bf16.mxu0 0
      %6312 = vmatpush1.bf16.msra.mxu0 0
      %6313 = vmatprep.subr.bf16.mxu0 0
      %6314 = vmatpush1.bf16.msra.mxu0 0
      %6315 = vmatprep.subr.bf16.mxu0 0
      %6316 = vmatpush1.bf16.msra.mxu0 0
      %6317 = vmatprep.subr.bf16.mxu0 0
      %6318 = vmatpush1.bf16.msra.mxu0 0
      %6319 = vmatprep.subr.bf16.mxu0 0
      %6320 = vmatpush1.bf16.msra.mxu0 0
      %6321 = vmatprep.mubr.bf16.mxu0 0
      %6322 = vmatmul.mubr.bf16.gmra.mrb[0].mxu0 %v4141
      %v6323 = vpop.f32.mrb[0].mxu0
      %v6324 = vadd.f32 %v4755, %v6323
      %v6325 = vpop.f32.mrb[0].mxu0
      %v6326 = vpop.f32.mrb[0].mxu0
      %v6327 = vadd.f32 %v4758, %v6326
      %v6328 = vpop.f32.mrb[0].mxu0
      %6329 = vmatprep.mubr.bf16.mxu0 0
      %6330 = vmatmul.mubr.bf16.gmra.mrb[0].mxu0 %v4144
      %v6331 = vpop.f32.mrb[0].mxu0
      %v6332 = vadd.f32 %v4763, %v6331
      %v6333 = vpop.f32.mrb[0].mxu0
      %v6334 = vpop.f32.mrb[0].mxu0
      %v6335 = vadd.f32 %v4766, %v6334
      %v6336 = vpop.f32.mrb[0].mxu0
      %6337 = vmatprep.mubr.bf16.mxu0 0
      %6338 = vmatmul.mubr.bf16.gmra.mrb[0].mxu0 %v4147
      %v6339 = vpop.f32.mrb[0].mxu0
      %v6340 = vadd.f32 %v4771, %v6339
      %v6341 = vpop.f32.mrb[0].mxu0
      %v6342 = vpop.f32.mrb[0].mxu0
      %v6343 = vadd.f32 %v4774, %v6342
      %v6344 = vpop.f32.mrb[0].mxu0
      %6345 = vmatprep.mubr.bf16.mxu0 0
      %6346 = vmatmul.mubr.bf16.gmra.mrb[0].mxu0 %v4150
      %v6347 = vpop.f32.mrb[0].mxu0
      %v6348 = vadd.f32 %v4779, %v6347
      %v6349 = vpop.f32.mrb[0].mxu0
      %v6350 = vpop.f32.mrb[0].mxu0
      %v6351 = vadd.f32 %v4782, %v6350
      %v6352 = vpop.f32.mrb[0].mxu0
      %6353 = vmatprep.mubr.bf16.mxu0 0
      %6354 = vmatmul.mubr.bf16.gmra.mrb[0].mxu0 %v4153
      %v6355 = vpop.f32.mrb[0].mxu0
      %v6356 = vadd.f32 %v4787, %v6355
      %v6357 = vpop.f32.mrb[0].mxu0
      %v6358 = vpop.f32.mrb[0].mxu0
      %v6359 = vadd.f32 %v4790, %v6358
      %v6360 = vpop.f32.mrb[0].mxu0
      %6361 = vmatprep.mubr.bf16.mxu0 0
      %6362 = vmatmul.mubr.bf16.gmra.mrb[0].mxu0 %v4156
      %v6363 = vpop.f32.mrb[0].mxu0
      %v6364 = vadd.f32 %v4795, %v6363
      %v6365 = vpop.f32.mrb[0].mxu0
      %v6366 = vpop.f32.mrb[0].mxu0
      %v6367 = vadd.f32 %v4798, %v6366
      %v6368 = vpop.f32.mrb[0].mxu0
      %6369 = vmatprep.mubr.bf16.mxu0 0
      %6370 = vmatmul.mubr.bf16.gmra.mrb[0].mxu0 %v4159
      %v6371 = vpop.f32.mrb[0].mxu0
      %v6372 = vadd.f32 %v4803, %v6371
      %v6373 = vpop.f32.mrb[0].mxu0
      %v6374 = vpop.f32.mrb[0].mxu0
      %v6375 = vadd.f32 %v4806, %v6374
      %v6376 = vpop.f32.mrb[0].mxu0
      %6377 = vmatprep.mubr.bf16.mxu0 0
      %6378 = vmatmul.mubr.bf16.gmra.mrb[0].mxu0 %v4162
      %v6379 = vpop.f32.mrb[0].mxu0
      %v6380 = vadd.f32 %v4811, %v6379
      %v6381 = vpop.f32.mrb[0].mxu0
      %v6382 = vpop.f32.mrb[0].mxu0
      %v6383 = vadd.f32 %v4814, %v6382
      %v6384 = vpop.f32.mrb[0].mxu0
      %6385 = vmatprep.mubr.bf16.mxu0 0
      %6386 = vmatmul.mubr.bf16.gmra.mrb[0].mxu0 %v4165
      %v6387 = vpop.f32.mrb[0].mxu0
      %v6388 = vadd.f32 %v4819, %v6387
      %v6389 = vpop.f32.mrb[0].mxu0
      %v6390 = vpop.f32.mrb[0].mxu0
      %v6391 = vadd.f32 %v4822, %v6390
      %v6392 = vpop.f32.mrb[0].mxu0
      %6393 = vmatprep.mubr.bf16.mxu0 0
      %6394 = vmatmul.mubr.bf16.gmra.mrb[0].mxu0 %v4168
      %v6395 = vpop.f32.mrb[0].mxu0
      %v6396 = vadd.f32 %v4827, %v6395
      %v6397 = vpop.f32.mrb[0].mxu0
      %v6398 = vpop.f32.mrb[0].mxu0
      %v6399 = vadd.f32 %v4830, %v6398
      %v6400 = vpop.f32.mrb[0].mxu0
      %6401 = vmatprep.mubr.bf16.mxu0 0
      %6402 = vmatmul.mubr.bf16.gmra.mrb[0].mxu0 %v4171
      %v6403 = vpop.f32.mrb[0].mxu0
      %v6404 = vadd.f32 %v4835, %v6403
      %v6405 = vpop.f32.mrb[0].mxu0
      %v6406 = vpop.f32.mrb[0].mxu0
      %v6407 = vadd.f32 %v4838, %v6406
      %v6408 = vpop.f32.mrb[0].mxu0
      %6409 = vmatprep.mubr.bf16.mxu0 0
      %6410 = vmatmul.mubr.bf16.gmra.mrb[0].mxu0 %v4174
      %v6411 = vpop.f32.mrb[0].mxu0
      %v6412 = vadd.f32 %v4843, %v6411
      %v6413 = vpop.f32.mrb[0].mxu0
      %v6414 = vpop.f32.mrb[0].mxu0
      %v6415 = vadd.f32 %v4846, %v6414
      %v6416 = vpop.f32.mrb[0].mxu0
      %6417 = vmatprep.mubr.bf16.mxu0 0
      %6418 = vmatmul.mubr.bf16.gmra.mrb[0].mxu0 %v4177
      %v6419 = vpop.f32.mrb[0].mxu0
      %v6420 = vadd.f32 %v4851, %v6419
      %v6421 = vpop.f32.mrb[0].mxu0
      %v6422 = vpop.f32.mrb[0].mxu0
      %v6423 = vadd.f32 %v4854, %v6422
      %v6424 = vpop.f32.mrb[0].mxu0
      %6425 = vmatprep.mubr.bf16.mxu0 0
      %6426 = vmatmul.mubr.bf16.gmra.mrb[0].mxu0 %v4180
      %v6427 = vpop.f32.mrb[0].mxu0
      %v6428 = vadd.f32 %v4859, %v6427
      %v6429 = vpop.f32.mrb[0].mxu0
      %v6430 = vpop.f32.mrb[0].mxu0
      %v6431 = vadd.f32 %v4862, %v6430
      %v6432 = vpop.f32.mrb[0].mxu0
      %6433 = vmatprep.mubr.bf16.mxu0 0
      %6434 = vmatmul.mubr.bf16.gmra.mrb[0].mxu0 %v4183
      %v6435 = vpop.f32.mrb[0].mxu0
      %v6436 = vadd.f32 %v4867, %v6435
      %v6437 = vpop.f32.mrb[0].mxu0
      %v6438 = vpop.f32.mrb[0].mxu0
      %v6439 = vadd.f32 %v4870, %v6438
      %v6440 = vpop.f32.mrb[0].mxu0
      %6441 = vmatprep.mubr.bf16.mxu0 0
      %6442 = vmatmul.mubr.bf16.gmra.mrb[0].mxu0 %v4186
      %v6443 = vpop.f32.mrb[0].mxu0
      %v6444 = vadd.f32 %v4875, %v6443
      %v6445 = vpop.f32.mrb[0].mxu0
      %v6446 = vpop.f32.mrb[0].mxu0
      %v6447 = vadd.f32 %v4878, %v6446
      %v6448 = vpop.f32.mrb[0].mxu0
      %6449 = vmatprep.mubr.bf16.mxu0 0
      %6450 = vmatmul.mubr.bf16.gmra.mrb[0].mxu0 %v4189
      %v6451 = vpop.f32.mrb[0].mxu0
      %v6452 = vadd.f32 %v4883, %v6451
      %v6453 = vpop.f32.mrb[0].mxu0
      %v6454 = vpop.f32.mrb[0].mxu0
      %v6455 = vadd.f32 %v4886, %v6454
      %v6456 = vpop.f32.mrb[0].mxu0
      %6457 = vmatprep.mubr.bf16.mxu0 0
      %6458 = vmatmul.mubr.bf16.gmra.mrb[0].mxu0 %v4192
      %v6459 = vpop.f32.mrb[0].mxu0
      %v6460 = vadd.f32 %v4891, %v6459
      %v6461 = vpop.f32.mrb[0].mxu0
      %v6462 = vpop.f32.mrb[0].mxu0
      %v6463 = vadd.f32 %v4894, %v6462
      %v6464 = vpop.f32.mrb[0].mxu0
      %6465 = vmatprep.mubr.bf16.mxu0 0
      %6466 = vmatmul.mubr.bf16.gmra.mrb[0].mxu0 %v4195
      %v6467 = vpop.f32.mrb[0].mxu0
      %v6468 = vadd.f32 %v4899, %v6467
      %v6469 = vpop.f32.mrb[0].mxu0
      %v6470 = vpop.f32.mrb[0].mxu0
      %v6471 = vadd.f32 %v4902, %v6470
      %v6472 = vpop.f32.mrb[0].mxu0
      %6473 = vmatprep.mubr.bf16.mxu0 0
      %6474 = vmatmul.mubr.bf16.gmra.mrb[0].mxu0 %v4198
      %v6475 = vpop.f32.mrb[0].mxu0
      %v6476 = vadd.f32 %v4907, %v6475
      %v6477 = vpop.f32.mrb[0].mxu0
      %v6478 = vpop.f32.mrb[0].mxu0
      %v6479 = vadd.f32 %v4910, %v6478
      %v6480 = vpop.f32.mrb[0].mxu0
      %6481 = vmatprep.mubr.bf16.mxu0 0
      %6482 = vmatmul.mubr.bf16.gmra.mrb[0].mxu0 %v4201
      %v6483 = vpop.f32.mrb[0].mxu0
      %v6484 = vadd.f32 %v4915, %v6483
      %v6485 = vpop.f32.mrb[0].mxu0
      %v6486 = vpop.f32.mrb[0].mxu0
      %v6487 = vadd.f32 %v4918, %v6486
      %v6488 = vpop.f32.mrb[0].mxu0
      %6489 = vmatprep.mubr.bf16.mxu0 0
      %6490 = vmatmul.mubr.bf16.gmra.mrb[0].mxu0 %v4204
      %v6491 = vpop.f32.mrb[0].mxu0
      %v6492 = vadd.f32 %v4923, %v6491
      %v6493 = vpop.f32.mrb[0].mxu0
      %v6494 = vpop.f32.mrb[0].mxu0
      %v6495 = vadd.f32 %v4926, %v6494
      %v6496 = vpop.f32.mrb[0].mxu0
      %6497 = vmatprep.mubr.bf16.mxu0 0
      %6498 = vmatmul.mubr.bf16.gmra.mrb[0].mxu0 %v4207
      %v6499 = vpop.f32.mrb[0].mxu0
      %v6500 = vadd.f32 %v4931, %v6499
      %v6501 = vpop.f32.mrb[0].mxu0
      %v6502 = vpop.f32.mrb[0].mxu0
      %v6503 = vadd.f32 %v4934, %v6502
      %v6504 = vpop.f32.mrb[0].mxu0
      %6505 = vmatprep.mubr.bf16.mxu0 0
      %6506 = vmatmul.mubr.bf16.gmra.mrb[0].mxu0 %v4210
      %v6507 = vpop.f32.mrb[0].mxu0
      %v6508 = vadd.f32 %v4939, %v6507
      %v6509 = vpop.f32.mrb[0].mxu0
      %v6510 = vpop.f32.mrb[0].mxu0
      %v6511 = vadd.f32 %v4942, %v6510
      %v6512 = vpop.f32.mrb[0].mxu0
      %6513 = vmatprep.mubr.bf16.mxu0 0
      %6514 = vmatmul.mubr.bf16.gmra.mrb[0].mxu0 %v4213
      %v6515 = vpop.f32.mrb[0].mxu0
      %v6516 = vadd.f32 %v4947, %v6515
      %v6517 = vpop.f32.mrb[0].mxu0
      %v6518 = vpop.f32.mrb[0].mxu0
      %v6519 = vadd.f32 %v4950, %v6518
      %v6520 = vpop.f32.mrb[0].mxu0
      %6521 = vmatprep.mubr.bf16.mxu0 0
      %6522 = vmatmul.mubr.bf16.gmra.mrb[0].mxu0 %v4216
      %v6523 = vpop.f32.mrb[0].mxu0
      %v6524 = vadd.f32 %v4955, %v6523
      %v6525 = vpop.f32.mrb[0].mxu0
      %v6526 = vpop.f32.mrb[0].mxu0
      %v6527 = vadd.f32 %v4958, %v6526
      %v6528 = vpop.f32.mrb[0].mxu0
      %6529 = vmatprep.mubr.bf16.mxu0 0
      %6530 = vmatmul.mubr.bf16.gmra.mrb[0].mxu0 %v4219
      %v6531 = vpop.f32.mrb[0].mxu0
      %v6532 = vadd.f32 %v4963, %v6531
      %v6533 = vpop.f32.mrb[0].mxu0
      %v6534 = vpop.f32.mrb[0].mxu0
      %v6535 = vadd.f32 %v4966, %v6534
      %v6536 = vpop.f32.mrb[0].mxu0
      %6537 = vmatprep.mubr.bf16.mxu0 0
      %6538 = vmatmul.mubr.bf16.gmra.mrb[0].mxu0 %v4222
      %v6539 = vpop.f32.mrb[0].mxu0
      %v6540 = vadd.f32 %v4971, %v6539
      %v6541 = vpop.f32.mrb[0].mxu0
      %v6542 = vpop.f32.mrb[0].mxu0
      %v6543 = vadd.f32 %v4974, %v6542
      %v6544 = vpop.f32.mrb[0].mxu0
      %6545 = vmatprep.mubr.bf16.mxu0 0
      %6546 = vmatmul.mubr.bf16.gmra.mrb[0].mxu0 %v4225
      %v6547 = vpop.f32.mrb[0].mxu0
      %v6548 = vadd.f32 %v4979, %v6547
      %v6549 = vpop.f32.mrb[0].mxu0
      %v6550 = vpop.f32.mrb[0].mxu0
      %v6551 = vadd.f32 %v4982, %v6550
      %v6552 = vpop.f32.mrb[0].mxu0
      %6553 = vmatprep.mubr.bf16.mxu0 0
      %6554 = vmatmul.mubr.bf16.gmra.mrb[0].mxu0 %v4228
      %v6555 = vpop.f32.mrb[0].mxu0
      %v6556 = vadd.f32 %v4987, %v6555
      %v6557 = vpop.f32.mrb[0].mxu0
      %v6558 = vpop.f32.mrb[0].mxu0
      %v6559 = vadd.f32 %v4990, %v6558
      %v6560 = vpop.f32.mrb[0].mxu0
      %6561 = vmatprep.mubr.bf16.mxu0 0
      %6562 = vmatmul.mubr.bf16.gmra.mrb[0].mxu0 %v4231
      %v6563 = vpop.f32.mrb[0].mxu0
      %v6564 = vadd.f32 %v4995, %v6563
      %v6565 = vpop.f32.mrb[0].mxu0
      %v6566 = vpop.f32.mrb[0].mxu0
      %v6567 = vadd.f32 %v4998, %v6566
      %v6568 = vpop.f32.mrb[0].mxu0
      %6569 = vmatprep.mubr.bf16.mxu0 0
      %6570 = vmatmul.mubr.bf16.gmra.mrb[0].mxu0 %v4234
      %v6571 = vpop.f32.mrb[0].mxu0
      %v6572 = vadd.f32 %v5003, %v6571
      %v6573 = vpop.f32.mrb[0].mxu0
      %v6574 = vpop.f32.mrb[0].mxu0
      %v6575 = vadd.f32 %v5006, %v6574
      %v6576 = vpop.f32.mrb[0].mxu0
      %6577 = vmatprep.mubr.bf16.mxu0 0
      %6578 = vmatmul.mubr.bf16.gmra.mrb[0].mxu0 %v4237
      %v6579 = vpop.f32.mrb[0].mxu0
      %v6580 = vadd.f32 %v5011, %v6579
      %v6581 = vpop.f32.mrb[0].mxu0
      %v6582 = vpop.f32.mrb[0].mxu0
      %v6583 = vadd.f32 %v5014, %v6582
      %v6584 = vpop.f32.mrb[0].mxu0
      %6585 = vmatprep.mubr.bf16.mxu0 0
      %6586 = vmatmul.mubr.bf16.gmra.mrb[0].mxu0 %v4240
      %v6587 = vpop.f32.mrb[0].mxu0
      %v6588 = vadd.f32 %v5019, %v6587
      %v6589 = vpop.f32.mrb[0].mxu0
      %v6590 = vpop.f32.mrb[0].mxu0
      %v6591 = vadd.f32 %v5022, %v6590
      %v6592 = vpop.f32.mrb[0].mxu0
      %6593 = vmatprep.mubr.bf16.mxu0 0
      %6594 = vmatmul.mubr.bf16.gmra.mrb[0].mxu0 %v4243
      %v6595 = vpop.f32.mrb[0].mxu0
      %v6596 = vadd.f32 %v5027, %v6595
      %v6597 = vpop.f32.mrb[0].mxu0
      %v6598 = vpop.f32.mrb[0].mxu0
      %v6599 = vadd.f32 %v5030, %v6598
      %v6600 = vpop.f32.mrb[0].mxu0
      %6601 = vmatprep.mubr.bf16.mxu0 0
      %6602 = vmatmul.mubr.bf16.gmra.mrb[0].mxu0 %v4246
      %v6603 = vpop.f32.mrb[0].mxu0
      %v6604 = vadd.f32 %v5035, %v6603
      %v6605 = vpop.f32.mrb[0].mxu0
      %v6606 = vpop.f32.mrb[0].mxu0
      %v6607 = vadd.f32 %v5038, %v6606
      %v6608 = vpop.f32.mrb[0].mxu0
      %6609 = vmatprep.mubr.bf16.mxu0 0
      %6610 = vmatmul.mubr.bf16.gmra.mrb[0].mxu0 %v4249
      %v6611 = vpop.f32.mrb[0].mxu0
      %v6612 = vadd.f32 %v5043, %v6611
      %v6613 = vpop.f32.mrb[0].mxu0
      %v6614 = vpop.f32.mrb[0].mxu0
      %v6615 = vadd.f32 %v5046, %v6614
      %v6616 = vpop.f32.mrb[0].mxu0
      %6617 = vmatprep.mubr.bf16.mxu0 0
      %6618 = vmatmul.mubr.bf16.gmra.mrb[0].mxu0 %v4252
      %v6619 = vpop.f32.mrb[0].mxu0
      %v6620 = vadd.f32 %v5051, %v6619
      %v6621 = vpop.f32.mrb[0].mxu0
      %v6622 = vpop.f32.mrb[0].mxu0
      %v6623 = vadd.f32 %v5054, %v6622
      %v6624 = vpop.f32.mrb[0].mxu0
      %6625 = vmatprep.mubr.bf16.mxu0 0
      %6626 = vmatmul.mubr.bf16.gmra.mrb[0].mxu0 %v4255
      %v6627 = vpop.f32.mrb[0].mxu0
      %v6628 = vadd.f32 %v5059, %v6627
      %v6629 = vpop.f32.mrb[0].mxu0
      %v6630 = vpop.f32.mrb[0].mxu0
      %v6631 = vadd.f32 %v5062, %v6630
      %v6632 = vpop.f32.mrb[0].mxu0
      %6633 = vmatprep.mubr.bf16.mxu0 0
      %6634 = vmatmul.mubr.bf16.gmra.mrb[0].mxu0 %v4258
      %v6635 = vpop.f32.mrb[0].mxu0
      %v6636 = vadd.f32 %v5067, %v6635
      %v6637 = vpop.f32.mrb[0].mxu0
      %v6638 = vpop.f32.mrb[0].mxu0
      %v6639 = vadd.f32 %v5070, %v6638
      %v6640 = vpop.f32.mrb[0].mxu0
      %6641 = vmatprep.mubr.bf16.mxu0 0
      %6642 = vmatmul.mubr.bf16.gmra.mrb[0].mxu0 %v4261
      %v6643 = vpop.f32.mrb[0].mxu0
      %v6644 = vadd.f32 %v5075, %v6643
      %v6645 = vpop.f32.mrb[0].mxu0
      %v6646 = vpop.f32.mrb[0].mxu0
      %v6647 = vadd.f32 %v5078, %v6646
      %v6648 = vpop.f32.mrb[0].mxu0
      %6649 = vmatprep.mubr.bf16.mxu0 0
      %6650 = vmatmul.mubr.bf16.gmra.mrb[0].mxu0 %v4264
      %v6651 = vpop.f32.mrb[0].mxu0
      %v6652 = vadd.f32 %v5083, %v6651
      %v6653 = vpop.f32.mrb[0].mxu0
      %v6654 = vpop.f32.mrb[0].mxu0
      %v6655 = vadd.f32 %v5086, %v6654
      %v6656 = vpop.f32.mrb[0].mxu0
      %6657 = vmatprep.mubr.bf16.mxu0 0
      %6658 = vmatmul.mubr.bf16.gmra.mrb[0].mxu0 %v4267
      %v6659 = vpop.f32.mrb[0].mxu0
      %v6660 = vadd.f32 %v5091, %v6659
      %v6661 = vpop.f32.mrb[0].mxu0
      %v6662 = vpop.f32.mrb[0].mxu0
      %v6663 = vadd.f32 %v5094, %v6662
      %v6664 = vpop.f32.mrb[0].mxu0
      %6665 = vmatprep.mubr.bf16.mxu0 0
      %6666 = vmatmul.mubr.bf16.gmra.mrb[0].mxu0 %v4270
      %v6667 = vpop.f32.mrb[0].mxu0
      %v6668 = vadd.f32 %v5099, %v6667
      %v6669 = vpop.f32.mrb[0].mxu0
      %v6670 = vpop.f32.mrb[0].mxu0
      %v6671 = vadd.f32 %v5102, %v6670
      %v6672 = vpop.f32.mrb[0].mxu0
      %6673 = vmatprep.mubr.bf16.mxu0 0
      %6674 = vmatmul.mubr.bf16.gmra.mrb[0].mxu0 %v4273
      %v6675 = vpop.f32.mrb[0].mxu0
      %v6676 = vadd.f32 %v5107, %v6675
      %v6677 = vpop.f32.mrb[0].mxu0
      %v6678 = vpop.f32.mrb[0].mxu0
      %v6679 = vadd.f32 %v5110, %v6678
      %v6680 = vpop.f32.mrb[0].mxu0
      %6681 = vmatprep.mubr.bf16.mxu0 0
      %6682 = vmatmul.mubr.bf16.gmra.mrb[0].mxu0 %v4276
      %v6683 = vpop.f32.mrb[0].mxu0
      %v6684 = vadd.f32 %v5115, %v6683
      %v6685 = vpop.f32.mrb[0].mxu0
      %v6686 = vpop.f32.mrb[0].mxu0
      %v6687 = vadd.f32 %v5118, %v6686
      %v6688 = vpop.f32.mrb[0].mxu0
      %6689 = vmatprep.mubr.bf16.mxu0 0
      %6690 = vmatmul.mubr.bf16.gmra.mrb[0].mxu0 %v4279
      %v6691 = vpop.f32.mrb[0].mxu0
      %v6692 = vadd.f32 %v5123, %v6691
      %v6693 = vpop.f32.mrb[0].mxu0
      %v6694 = vpop.f32.mrb[0].mxu0
      %v6695 = vadd.f32 %v5126, %v6694
      %v6696 = vpop.f32.mrb[0].mxu0
      %6697 = vmatprep.mubr.bf16.mxu0 0
      %6698 = vmatmul.mubr.bf16.gmra.mrb[0].mxu0 %v4282
      %v6699 = vpop.f32.mrb[0].mxu0
      %v6700 = vadd.f32 %v5131, %v6699
      %v6701 = vpop.f32.mrb[0].mxu0
      %v6702 = vpop.f32.mrb[0].mxu0
      %v6703 = vadd.f32 %v5134, %v6702
      %v6704 = vpop.f32.mrb[0].mxu0
      %6705 = vmatprep.mubr.bf16.mxu0 0
      %6706 = vmatmul.mubr.bf16.gmra.mrb[0].mxu0 %v4285
      %v6707 = vpop.f32.mrb[0].mxu0
      %v6708 = vadd.f32 %v5139, %v6707
      %v6709 = vpop.f32.mrb[0].mxu0
      %v6710 = vpop.f32.mrb[0].mxu0
      %v6711 = vadd.f32 %v5142, %v6710
      %v6712 = vpop.f32.mrb[0].mxu0
      %6713 = vmatprep.mubr.bf16.mxu0 0
      %6714 = vmatmul.mubr.bf16.gmra.mrb[0].mxu0 %v4288
      %v6715 = vpop.f32.mrb[0].mxu0
      %v6716 = vadd.f32 %v5147, %v6715
      %v6717 = vpop.f32.mrb[0].mxu0
      %v6718 = vpop.f32.mrb[0].mxu0
      %v6719 = vadd.f32 %v5150, %v6718
      %v6720 = vpop.f32.mrb[0].mxu0
      %6721 = vmatprep.mubr.bf16.mxu0 0
      %6722 = vmatmul.mubr.bf16.gmra.mrb[0].mxu0 %v4291
      %v6723 = vpop.f32.mrb[0].mxu0
      %v6724 = vadd.f32 %v5155, %v6723
      %v6725 = vpop.f32.mrb[0].mxu0
      %v6726 = vpop.f32.mrb[0].mxu0
      %v6727 = vadd.f32 %v5158, %v6726
      %v6728 = vpop.f32.mrb[0].mxu0
      %6729 = vmatprep.mubr.bf16.mxu0 0
      %6730 = vmatmul.mubr.bf16.gmra.mrb[0].mxu0 %v4294
      %v6731 = vpop.f32.mrb[0].mxu0
      %v6732 = vadd.f32 %v5163, %v6731
      %v6733 = vpop.f32.mrb[0].mxu0
      %v6734 = vpop.f32.mrb[0].mxu0
      %v6735 = vadd.f32 %v5166, %v6734
      %v6736 = vpop.f32.mrb[0].mxu0
      %6737 = vmatprep.mubr.bf16.mxu0 0
      %6738 = vmatmul.mubr.bf16.gmra.mrb[0].mxu0 %v4297
      %v6739 = vpop.f32.mrb[0].mxu0
      %v6740 = vadd.f32 %v5171, %v6739
      %v6741 = vpop.f32.mrb[0].mxu0
      %v6742 = vpop.f32.mrb[0].mxu0
      %v6743 = vadd.f32 %v5174, %v6742
      %v6744 = vpop.f32.mrb[0].mxu0
      %6745 = vmatprep.mubr.bf16.mxu0 0
      %6746 = vmatmul.mubr.bf16.gmra.mrb[0].mxu0 %v4300
      %v6747 = vpop.f32.mrb[0].mxu0
      %v6748 = vadd.f32 %v5179, %v6747
      %v6749 = vpop.f32.mrb[0].mxu0
      %v6750 = vpop.f32.mrb[0].mxu0
      %v6751 = vadd.f32 %v5182, %v6750
      %v6752 = vpop.f32.mrb[0].mxu0
      %6753 = vmatprep.mubr.bf16.mxu0 0
      %6754 = vmatmul.mubr.bf16.gmra.mrb[0].mxu0 %v4303
      %v6755 = vpop.f32.mrb[0].mxu0
      %v6756 = vadd.f32 %v5187, %v6755
      %v6757 = vpop.f32.mrb[0].mxu0
      %v6758 = vpop.f32.mrb[0].mxu0
      %v6759 = vadd.f32 %v5190, %v6758
      %v6760 = vpop.f32.mrb[0].mxu0
      %6761 = vmatprep.mubr.bf16.mxu0 0
      %6762 = vmatmul.mubr.bf16.gmra.mrb[0].mxu0 %v4306
      %v6763 = vpop.f32.mrb[0].mxu0
      %v6764 = vadd.f32 %v5195, %v6763
      %v6765 = vpop.f32.mrb[0].mxu0
      %v6766 = vpop.f32.mrb[0].mxu0
      %v6767 = vadd.f32 %v5198, %v6766
      %v6768 = vpop.f32.mrb[0].mxu0
      %6769 = vmatprep.mubr.bf16.mxu0 0
      %6770 = vmatmul.mubr.bf16.gmra.mrb[0].mxu0 %v4309
      %v6771 = vpop.f32.mrb[0].mxu0
      %v6772 = vadd.f32 %v5203, %v6771
      %v6773 = vpop.f32.mrb[0].mxu0
      %v6774 = vpop.f32.mrb[0].mxu0
      %v6775 = vadd.f32 %v5206, %v6774
      %v6776 = vpop.f32.mrb[0].mxu0
      %6777 = vmatprep.mubr.bf16.mxu0 0
      %6778 = vmatmul.mubr.bf16.gmra.mrb[0].mxu0 %v4312
      %v6779 = vpop.f32.mrb[0].mxu0
      %v6780 = vadd.f32 %v5211, %v6779
      %v6781 = vpop.f32.mrb[0].mxu0
      %v6782 = vpop.f32.mrb[0].mxu0
      %v6783 = vadd.f32 %v5214, %v6782
      %v6784 = vpop.f32.mrb[0].mxu0
      %6785 = vmatprep.mubr.bf16.mxu0 0
      %6786 = vmatmul.mubr.bf16.gmra.mrb[0].mxu0 %v4315
      %v6787 = vpop.f32.mrb[0].mxu0
      %v6788 = vadd.f32 %v5219, %v6787
      %v6789 = vpop.f32.mrb[0].mxu0
      %v6790 = vpop.f32.mrb[0].mxu0
      %v6791 = vadd.f32 %v5222, %v6790
      %v6792 = vpop.f32.mrb[0].mxu0
      %6793 = vmatprep.mubr.bf16.mxu0 0
      %6794 = vmatmul.mubr.bf16.gmra.mrb[0].mxu0 %v4318
      %v6795 = vpop.f32.mrb[0].mxu0
      %v6796 = vadd.f32 %v5227, %v6795
      %v6797 = vpop.f32.mrb[0].mxu0
      %v6798 = vpop.f32.mrb[0].mxu0
      %v6799 = vadd.f32 %v5230, %v6798
      %v6800 = vpop.f32.mrb[0].mxu0
      %6801 = vmatprep.mubr.bf16.mxu0 0
      %6802 = vmatmul.mubr.bf16.gmra.mrb[0].mxu0 %v4321
      %v6803 = vpop.f32.mrb[0].mxu0
      %v6804 = vadd.f32 %v5235, %v6803
      %v6805 = vpop.f32.mrb[0].mxu0
      %v6806 = vpop.f32.mrb[0].mxu0
      %v6807 = vadd.f32 %v5238, %v6806
      %v6808 = vpop.f32.mrb[0].mxu0
      %6809 = vmatprep.mubr.bf16.mxu0 0
      %6810 = vmatmul.mubr.bf16.gmra.mrb[0].mxu0 %v4324
      %v6811 = vpop.f32.mrb[0].mxu0
      %v6812 = vadd.f32 %v5243, %v6811
      %v6813 = vpop.f32.mrb[0].mxu0
      %v6814 = vpop.f32.mrb[0].mxu0
      %v6815 = vadd.f32 %v5246, %v6814
      %v6816 = vpop.f32.mrb[0].mxu0
      %6817 = vmatprep.mubr.bf16.mxu0 0
      %6818 = vmatmul.mubr.bf16.gmra.mrb[0].mxu0 %v4327
      %v6819 = vpop.f32.mrb[0].mxu0
      %v6820 = vadd.f32 %v5251, %v6819
      %v6821 = vpop.f32.mrb[0].mxu0
      %v6822 = vpop.f32.mrb[0].mxu0
      %v6823 = vadd.f32 %v5254, %v6822
      %v6824 = vpop.f32.mrb[0].mxu0
      %6825 = vmatprep.mubr.bf16.mxu0 0
      %6826 = vmatmul.mubr.bf16.gmra.mrb[0].mxu0 %v4330
      %v6827 = vpop.f32.mrb[0].mxu0
      %v6828 = vadd.f32 %v5259, %v6827
      %v6829 = vpop.f32.mrb[0].mxu0
      %v6830 = vpop.f32.mrb[0].mxu0
      %v6831 = vadd.f32 %v5262, %v6830
      %v6832 = vpop.f32.mrb[0].mxu0
      %6833 = vmatprep.mubr.bf16.mxu0 0
      %6834 = vmatmul.mubr.bf16.gmra.mrb[0].mxu0 %v4333
      %v6835 = vpop.f32.mrb[0].mxu0
      %v6836 = vadd.f32 %v5267, %v6835
      %v6837 = vpop.f32.mrb[0].mxu0
      %v6838 = vpop.f32.mrb[0].mxu0
      %v6839 = vadd.f32 %v5270, %v6838
      %v6840 = vpop.f32.mrb[0].mxu0
      %6841 = vmatprep.mubr.bf16.mxu0 0
      %6842 = vmatmul.mubr.bf16.gmra.mrb[0].mxu0 %v4336
      %v6843 = vpop.f32.mrb[0].mxu0
      %v6844 = vadd.f32 %v5275, %v6843
      %v6845 = vpop.f32.mrb[0].mxu0
      %v6846 = vpop.f32.mrb[0].mxu0
      %v6847 = vadd.f32 %v5278, %v6846
      %v6848 = vpop.f32.mrb[0].mxu0
      %6849 = vmatprep.mubr.bf16.mxu0 0
      %6850 = vmatmul.mubr.bf16.gmra.mrb[0].mxu0 %v4339
      %v6851 = vpop.f32.mrb[0].mxu0
      %v6852 = vadd.f32 %v5283, %v6851
      %v6853 = vpop.f32.mrb[0].mxu0
      %v6854 = vpop.f32.mrb[0].mxu0
      %v6855 = vadd.f32 %v5286, %v6854
      %v6856 = vpop.f32.mrb[0].mxu0
      %6857 = vmatprep.mubr.bf16.mxu0 0
      %6858 = vmatmul.mubr.bf16.gmra.mrb[0].mxu0 %v4342
      %v6859 = vpop.f32.mrb[0].mxu0
      %v6860 = vadd.f32 %v5291, %v6859
      %v6861 = vpop.f32.mrb[0].mxu0
      %v6862 = vpop.f32.mrb[0].mxu0
      %v6863 = vadd.f32 %v5294, %v6862
      %v6864 = vpop.f32.mrb[0].mxu0
      %6865 = vmatprep.mubr.bf16.mxu0 0
      %6866 = vmatmul.mubr.bf16.gmra.mrb[0].mxu0 %v4345
      %v6867 = vpop.f32.mrb[0].mxu0
      %v6868 = vadd.f32 %v5299, %v6867
      %v6869 = vpop.f32.mrb[0].mxu0
      %v6870 = vpop.f32.mrb[0].mxu0
      %v6871 = vadd.f32 %v5302, %v6870
      %v6872 = vpop.f32.mrb[0].mxu0
      %6873 = vmatprep.mubr.bf16.mxu0 0
      %6874 = vmatmul.mubr.bf16.gmra.mrb[0].mxu0 %v4348
      %v6875 = vpop.f32.mrb[0].mxu0
      %v6876 = vadd.f32 %v5307, %v6875
      %v6877 = vpop.f32.mrb[0].mxu0
      %v6878 = vpop.f32.mrb[0].mxu0
      %v6879 = vadd.f32 %v5310, %v6878
      %v6880 = vpop.f32.mrb[0].mxu0
      %6881 = vmatprep.mubr.bf16.mxu0 0
      %6882 = vmatmul.mubr.bf16.gmra.mrb[0].mxu0 %v4351
      %v6883 = vpop.f32.mrb[0].mxu0
      %v6884 = vadd.f32 %v5315, %v6883
      %v6885 = vpop.f32.mrb[0].mxu0
      %v6886 = vpop.f32.mrb[0].mxu0
      %v6887 = vadd.f32 %v5318, %v6886
      %v6888 = vpop.f32.mrb[0].mxu0
      %6889 = vmatprep.mubr.bf16.mxu0 0
      %6890 = vmatmul.mubr.bf16.gmra.mrb[0].mxu0 %v4354
      %v6891 = vpop.f32.mrb[0].mxu0
      %v6892 = vadd.f32 %v5323, %v6891
      %v6893 = vpop.f32.mrb[0].mxu0
      %v6894 = vpop.f32.mrb[0].mxu0
      %v6895 = vadd.f32 %v5326, %v6894
      %v6896 = vpop.f32.mrb[0].mxu0
      %6897 = vmatprep.mubr.bf16.mxu0 0
      %6898 = vmatmul.mubr.bf16.gmra.mrb[0].mxu0 %v4357
      %v6899 = vpop.f32.mrb[0].mxu0
      %v6900 = vadd.f32 %v5331, %v6899
      %v6901 = vpop.f32.mrb[0].mxu0
      %v6902 = vpop.f32.mrb[0].mxu0
      %v6903 = vadd.f32 %v5334, %v6902
      %v6904 = vpop.f32.mrb[0].mxu0
      %6905 = vmatprep.mubr.bf16.mxu0 0
      %6906 = vmatmul.mubr.bf16.gmra.mrb[0].mxu0 %v4360
      %v6907 = vpop.f32.mrb[0].mxu0
      %v6908 = vadd.f32 %v5339, %v6907
      %v6909 = vpop.f32.mrb[0].mxu0
      %v6910 = vpop.f32.mrb[0].mxu0
      %v6911 = vadd.f32 %v5342, %v6910
      %v6912 = vpop.f32.mrb[0].mxu0
      %6913 = vmatprep.mubr.bf16.mxu0 0
      %6914 = vmatmul.mubr.bf16.gmra.mrb[0].mxu0 %v4363
      %v6915 = vpop.f32.mrb[0].mxu0
      %v6916 = vadd.f32 %v5347, %v6915
      %v6917 = vpop.f32.mrb[0].mxu0
      %v6918 = vpop.f32.mrb[0].mxu0
      %v6919 = vadd.f32 %v5350, %v6918
      %v6920 = vpop.f32.mrb[0].mxu0
      %6921 = vmatprep.mubr.bf16.mxu0 0
      %6922 = vmatmul.mubr.bf16.gmra.mrb[0].mxu0 %v4366
      %v6923 = vpop.f32.mrb[0].mxu0
      %v6924 = vadd.f32 %v5355, %v6923
      %v6925 = vpop.f32.mrb[0].mxu0
      %v6926 = vpop.f32.mrb[0].mxu0
      %v6927 = vadd.f32 %v5358, %v6926
      %v6928 = vpop.f32.mrb[0].mxu0
      %6929 = vmatprep.mubr.bf16.mxu0 0
      %6930 = vmatmul.mubr.bf16.gmra.mrb[0].mxu0 %v4369
      %v6931 = vpop.f32.mrb[0].mxu0
      %v6932 = vadd.f32 %v5363, %v6931
      %v6933 = vpop.f32.mrb[0].mxu0
      %v6934 = vpop.f32.mrb[0].mxu0
      %v6935 = vadd.f32 %v5366, %v6934
      %v6936 = vpop.f32.mrb[0].mxu0
      %6937 = vmatprep.mubr.bf16.mxu0 0
      %6938 = vmatmul.mubr.bf16.gmra.mrb[0].mxu0 %v4372
      %v6939 = vpop.f32.mrb[0].mxu0
      %v6940 = vadd.f32 %v5371, %v6939
      %v6941 = vpop.f32.mrb[0].mxu0
      %v6942 = vpop.f32.mrb[0].mxu0
      %v6943 = vadd.f32 %v5374, %v6942
      %v6944 = vpop.f32.mrb[0].mxu0
      %6945 = vmatprep.mubr.bf16.mxu0 0
      %6946 = vmatmul.mubr.bf16.gmra.mrb[0].mxu0 %v4375
      %v6947 = vpop.f32.mrb[0].mxu0
      %v6948 = vadd.f32 %v5379, %v6947
      %v6949 = vpop.f32.mrb[0].mxu0
      %v6950 = vpop.f32.mrb[0].mxu0
      %v6951 = vadd.f32 %v5382, %v6950
      %v6952 = vpop.f32.mrb[0].mxu0
      %6953 = vmatprep.mubr.bf16.mxu0 0
      %6954 = vmatmul.mubr.bf16.gmra.mrb[0].mxu0 %v4378
      %v6955 = vpop.f32.mrb[0].mxu0
      %v6956 = vadd.f32 %v5387, %v6955
      %v6957 = vpop.f32.mrb[0].mxu0
      %v6958 = vpop.f32.mrb[0].mxu0
      %v6959 = vadd.f32 %v5390, %v6958
      %v6960 = vpop.f32.mrb[0].mxu0
      %6961 = vmatprep.mubr.bf16.mxu0 0
      %6962 = vmatmul.mubr.bf16.gmra.mrb[0].mxu0 %v4381
      %v6963 = vpop.f32.mrb[0].mxu0
      %v6964 = vadd.f32 %v5395, %v6963
      %v6965 = vpop.f32.mrb[0].mxu0
      %v6966 = vpop.f32.mrb[0].mxu0
      %v6967 = vadd.f32 %v5398, %v6966
      %v6968 = vpop.f32.mrb[0].mxu0
      %6969 = vmatprep.mubr.bf16.mxu0 0
      %6970 = vmatmul.mubr.bf16.gmra.mrb[0].mxu0 %v4384
      %v6971 = vpop.f32.mrb[0].mxu0
      %v6972 = vadd.f32 %v5403, %v6971
      %v6973 = vpop.f32.mrb[0].mxu0
      %v6974 = vpop.f32.mrb[0].mxu0
      %v6975 = vadd.f32 %v5406, %v6974
      %v6976 = vpop.f32.mrb[0].mxu0
      %6977 = vmatprep.mubr.bf16.mxu0 0
      %6978 = vmatmul.mubr.bf16.gmra.mrb[0].mxu0 %v4387
      %v6979 = vpop.f32.mrb[0].mxu0
      %v6980 = vadd.f32 %v5411, %v6979
      %v6981 = vpop.f32.mrb[0].mxu0
      %v6982 = vpop.f32.mrb[0].mxu0
      %v6983 = vadd.f32 %v5414, %v6982
      %v6984 = vpop.f32.mrb[0].mxu0
      %6985 = vmatprep.mubr.bf16.mxu0 0
      %6986 = vmatmul.mubr.bf16.gmra.mrb[0].mxu0 %v4390
      %v6987 = vpop.f32.mrb[0].mxu0
      %v6988 = vadd.f32 %v5419, %v6987
      %v6989 = vpop.f32.mrb[0].mxu0
      %v6990 = vpop.f32.mrb[0].mxu0
      %v6991 = vadd.f32 %v5422, %v6990
      %v6992 = vpop.f32.mrb[0].mxu0
      %6993 = vmatprep.mubr.bf16.mxu0 0
      %6994 = vmatmul.mubr.bf16.gmra.mrb[0].mxu0 %v4393
      %v6995 = vpop.f32.mrb[0].mxu0
      %v6996 = vadd.f32 %v5427, %v6995
      %v6997 = vpop.f32.mrb[0].mxu0
      %v6998 = vpop.f32.mrb[0].mxu0
      %v6999 = vadd.f32 %v5430, %v6998
      %v7000 = vpop.f32.mrb[0].mxu0
      %7001 = vmatprep.mubr.bf16.mxu0 0
      %7002 = vmatmul.mubr.bf16.gmra.mrb[0].mxu0 %v4396
      %v7003 = vpop.f32.mrb[0].mxu0
      %v7004 = vadd.f32 %v5435, %v7003
      %v7005 = vpop.f32.mrb[0].mxu0
      %v7006 = vpop.f32.mrb[0].mxu0
      %v7007 = vadd.f32 %v5438, %v7006
      %v7008 = vpop.f32.mrb[0].mxu0
      %7009 = vmatprep.mubr.bf16.mxu0 0
      %7010 = vmatmul.mubr.bf16.gmra.mrb[0].mxu0 %v4399
      %v7011 = vpop.f32.mrb[0].mxu0
      %v7012 = vadd.f32 %v5443, %v7011
      %v7013 = vpop.f32.mrb[0].mxu0
      %v7014 = vpop.f32.mrb[0].mxu0
      %v7015 = vadd.f32 %v5446, %v7014
      %v7016 = vpop.f32.mrb[0].mxu0
      %7017 = vmatprep.mubr.bf16.mxu0 0
      %7018 = vmatmul.mubr.bf16.gmra.mrb[0].mxu0 %v4402
      %v7019 = vpop.f32.mrb[0].mxu0
      %v7020 = vadd.f32 %v5451, %v7019
      %v7021 = vpop.f32.mrb[0].mxu0
      %v7022 = vpop.f32.mrb[0].mxu0
      %v7023 = vadd.f32 %v5454, %v7022
      %v7024 = vpop.f32.mrb[0].mxu0
      %7025 = vmatprep.mubr.bf16.mxu0 0
      %7026 = vmatmul.mubr.bf16.gmra.mrb[0].mxu0 %v4405
      %v7027 = vpop.f32.mrb[0].mxu0
      %v7028 = vadd.f32 %v5459, %v7027
      %v7029 = vpop.f32.mrb[0].mxu0
      %v7030 = vpop.f32.mrb[0].mxu0
      %v7031 = vadd.f32 %v5462, %v7030
      %v7032 = vpop.f32.mrb[0].mxu0
      %7033 = vmatprep.mubr.bf16.mxu0 0
      %7034 = vmatmul.mubr.bf16.gmra.mrb[0].mxu0 %v4408
      %v7035 = vpop.f32.mrb[0].mxu0
      %v7036 = vadd.f32 %v5467, %v7035
      %v7037 = vpop.f32.mrb[0].mxu0
      %v7038 = vpop.f32.mrb[0].mxu0
      %v7039 = vadd.f32 %v5470, %v7038
      %v7040 = vpop.f32.mrb[0].mxu0
      %7041 = vmatprep.mubr.bf16.mxu0 0
      %7042 = vmatmul.mubr.bf16.gmra.mrb[0].mxu0 %v4411
      %v7043 = vpop.f32.mrb[0].mxu0
      %v7044 = vadd.f32 %v5475, %v7043
      %v7045 = vpop.f32.mrb[0].mxu0
      %v7046 = vpop.f32.mrb[0].mxu0
      %v7047 = vadd.f32 %v5478, %v7046
      %v7048 = vpop.f32.mrb[0].mxu0
      %7049 = vmatprep.mubr.bf16.mxu0 0
      %7050 = vmatmul.mubr.bf16.gmra.mrb[0].mxu0 %v4414
      %v7051 = vpop.f32.mrb[0].mxu0
      %v7052 = vadd.f32 %v5483, %v7051
      %v7053 = vpop.f32.mrb[0].mxu0
      %v7054 = vpop.f32.mrb[0].mxu0
      %v7055 = vadd.f32 %v5486, %v7054
      %v7056 = vpop.f32.mrb[0].mxu0
      %7057 = vmatprep.mubr.bf16.mxu0 0
      %7058 = vmatmul.mubr.bf16.gmra.mrb[0].mxu0 %v4417
      %v7059 = vpop.f32.mrb[0].mxu0
      %v7060 = vadd.f32 %v5491, %v7059
      %v7061 = vpop.f32.mrb[0].mxu0
      %v7062 = vpop.f32.mrb[0].mxu0
      %v7063 = vadd.f32 %v5494, %v7062
      %v7064 = vpop.f32.mrb[0].mxu0
      %7065 = vmatprep.mubr.bf16.mxu0 0
      %7066 = vmatmul.mubr.bf16.gmra.mrb[0].mxu0 %v4420
      %v7067 = vpop.f32.mrb[0].mxu0
      %v7068 = vadd.f32 %v5499, %v7067
      %v7069 = vpop.f32.mrb[0].mxu0
      %v7070 = vpop.f32.mrb[0].mxu0
      %v7071 = vadd.f32 %v5502, %v7070
      %v7072 = vpop.f32.mrb[0].mxu0
      %7073 = vmatprep.mubr.bf16.mxu0 0
      %7074 = vmatmul.mubr.bf16.gmra.mrb[0].mxu0 %v4423
      %v7075 = vpop.f32.mrb[0].mxu0
      %v7076 = vadd.f32 %v5507, %v7075
      %v7077 = vpop.f32.mrb[0].mxu0
      %v7078 = vpop.f32.mrb[0].mxu0
      %v7079 = vadd.f32 %v5510, %v7078
      %v7080 = vpop.f32.mrb[0].mxu0
      %7081 = vmatprep.mubr.bf16.mxu0 0
      %7082 = vmatmul.mubr.bf16.gmra.mrb[0].mxu0 %v4426
      %v7083 = vpop.f32.mrb[0].mxu0
      %v7084 = vadd.f32 %v5515, %v7083
      %v7085 = vpop.f32.mrb[0].mxu0
      %v7086 = vpop.f32.mrb[0].mxu0
      %v7087 = vadd.f32 %v5518, %v7086
      %v7088 = vpop.f32.mrb[0].mxu0
      %7089 = vmatprep.mubr.bf16.mxu0 0
      %7090 = vmatmul.mubr.bf16.gmra.mrb[0].mxu0 %v4429
      %v7091 = vpop.f32.mrb[0].mxu0
      %v7092 = vadd.f32 %v5523, %v7091
      %v7093 = vpop.f32.mrb[0].mxu0
      %v7094 = vpop.f32.mrb[0].mxu0
      %v7095 = vadd.f32 %v5526, %v7094
      %v7096 = vpop.f32.mrb[0].mxu0
      %7097 = vmatprep.mubr.bf16.mxu0 0
      %7098 = vmatmul.mubr.bf16.gmra.mrb[0].mxu0 %v4432
      %v7099 = vpop.f32.mrb[0].mxu0
      %v7100 = vadd.f32 %v5531, %v7099
      %v7101 = vpop.f32.mrb[0].mxu0
      %v7102 = vpop.f32.mrb[0].mxu0
      %v7103 = vadd.f32 %v5534, %v7102
      %v7104 = vpop.f32.mrb[0].mxu0
      %7105 = vmatprep.mubr.bf16.mxu0 0
      %7106 = vmatmul.mubr.bf16.gmra.mrb[0].mxu0 %v4435
      %v7107 = vpop.f32.mrb[0].mxu0
      %v7108 = vadd.f32 %v5539, %v7107
      %v7109 = vpop.f32.mrb[0].mxu0
      %v7110 = vpop.f32.mrb[0].mxu0
      %v7111 = vadd.f32 %v5542, %v7110
      %v7112 = vpop.f32.mrb[0].mxu0
      %7113 = vmatprep.mubr.bf16.mxu0 0
      %7114 = vmatmul.mubr.bf16.gmra.mrb[0].mxu0 %v4438
      %v7115 = vpop.f32.mrb[0].mxu0
      %v7116 = vadd.f32 %v5547, %v7115
      %v7117 = vpop.f32.mrb[0].mxu0
      %v7118 = vpop.f32.mrb[0].mxu0
      %v7119 = vadd.f32 %v5550, %v7118
      %v7120 = vpop.f32.mrb[0].mxu0
      %7121 = vmatprep.mubr.bf16.mxu0 0
      %7122 = vmatmul.mubr.bf16.gmra.mrb[0].mxu0 %v4441
      %v7123 = vpop.f32.mrb[0].mxu0
      %v7124 = vadd.f32 %v5555, %v7123
      %v7125 = vpop.f32.mrb[0].mxu0
      %v7126 = vpop.f32.mrb[0].mxu0
      %v7127 = vadd.f32 %v5558, %v7126
      %v7128 = vpop.f32.mrb[0].mxu0
      %7129 = vmatprep.mubr.bf16.mxu0 0
      %7130 = vmatmul.mubr.bf16.gmra.mrb[0].mxu0 %v4444
      %v7131 = vpop.f32.mrb[0].mxu0
      %v7132 = vadd.f32 %v5563, %v7131
      %v7133 = vpop.f32.mrb[0].mxu0
      %v7134 = vpop.f32.mrb[0].mxu0
      %v7135 = vadd.f32 %v5566, %v7134
      %v7136 = vpop.f32.mrb[0].mxu0
      %7137 = vmatprep.mubr.bf16.mxu0 0
      %7138 = vmatmul.mubr.bf16.gmra.mrb[0].mxu0 %v4447
      %v7139 = vpop.f32.mrb[0].mxu0
      %v7140 = vadd.f32 %v5571, %v7139
      %v7141 = vpop.f32.mrb[0].mxu0
      %v7142 = vpop.f32.mrb[0].mxu0
      %v7143 = vadd.f32 %v5574, %v7142
      %v7144 = vpop.f32.mrb[0].mxu0
      %7145 = vmatprep.mubr.bf16.mxu0 0
      %7146 = vmatmul.mubr.bf16.gmra.mrb[0].mxu0 %v4450
      %v7147 = vpop.f32.mrb[0].mxu0
      %v7148 = vadd.f32 %v5579, %v7147
      %v7149 = vpop.f32.mrb[0].mxu0
      %v7150 = vpop.f32.mrb[0].mxu0
      %v7151 = vadd.f32 %v5582, %v7150
      %v7152 = vpop.f32.mrb[0].mxu0
      %7153 = vmatprep.mubr.bf16.mxu0 0
      %7154 = vmatmul.mubr.bf16.gmra.mrb[0].mxu0 %v4453
      %v7155 = vpop.f32.mrb[0].mxu0
      %v7156 = vadd.f32 %v5587, %v7155
      %v7157 = vpop.f32.mrb[0].mxu0
      %v7158 = vpop.f32.mrb[0].mxu0
      %v7159 = vadd.f32 %v5590, %v7158
      %v7160 = vpop.f32.mrb[0].mxu0
      %7161 = vmatprep.mubr.bf16.mxu0 0
      %7162 = vmatmul.mubr.bf16.gmra.mrb[0].mxu0 %v4456
      %v7163 = vpop.f32.mrb[0].mxu0
      %v7164 = vadd.f32 %v5595, %v7163
      %v7165 = vpop.f32.mrb[0].mxu0
      %v7166 = vpop.f32.mrb[0].mxu0
      %v7167 = vadd.f32 %v5598, %v7166
      %v7168 = vpop.f32.mrb[0].mxu0
      %7169 = vmatprep.mubr.bf16.mxu0 0
      %7170 = vmatmul.mubr.bf16.gmra.mrb[0].mxu0 %v4459
      %v7171 = vpop.f32.mrb[0].mxu0
      %v7172 = vadd.f32 %v5603, %v7171
      %v7173 = vpop.f32.mrb[0].mxu0
      %v7174 = vpop.f32.mrb[0].mxu0
      %v7175 = vadd.f32 %v5606, %v7174
      %v7176 = vpop.f32.mrb[0].mxu0
      %7177 = vmatprep.mubr.bf16.mxu0 0
      %7178 = vmatmul.mubr.bf16.gmra.mrb[0].mxu0 %v4462
      %v7179 = vpop.f32.mrb[0].mxu0
      %v7180 = vadd.f32 %v5611, %v7179
      %v7181 = vpop.f32.mrb[0].mxu0
      %v7182 = vpop.f32.mrb[0].mxu0
      %v7183 = vadd.f32 %v5614, %v7182
      %v7184 = vpop.f32.mrb[0].mxu0
      %7185 = vmatprep.mubr.bf16.mxu0 0
      %7186 = vmatmul.mubr.bf16.gmra.mrb[0].mxu0 %v4465
      %v7187 = vpop.f32.mrb[0].mxu0
      %v7188 = vadd.f32 %v5619, %v7187
      %v7189 = vpop.f32.mrb[0].mxu0
      %v7190 = vpop.f32.mrb[0].mxu0
      %v7191 = vadd.f32 %v5622, %v7190
      %v7192 = vpop.f32.mrb[0].mxu0
      %7193 = vmatprep.mubr.bf16.mxu0 0
      %7194 = vmatmul.mubr.bf16.gmra.mrb[0].mxu0 %v4468
      %v7195 = vpop.f32.mrb[0].mxu0
      %v7196 = vadd.f32 %v5627, %v7195
      %v7197 = vpop.f32.mrb[0].mxu0
      %v7198 = vpop.f32.mrb[0].mxu0
      %v7199 = vadd.f32 %v5630, %v7198
      %v7200 = vpop.f32.mrb[0].mxu0
      %7201 = vmatprep.mubr.bf16.mxu0 0
      %7202 = vmatmul.mubr.bf16.gmra.mrb[0].mxu0 %v4471
      %v7203 = vpop.f32.mrb[0].mxu0
      %v7204 = vadd.f32 %v5635, %v7203
      %v7205 = vpop.f32.mrb[0].mxu0
      %v7206 = vpop.f32.mrb[0].mxu0
      %v7207 = vadd.f32 %v5638, %v7206
      %v7208 = vpop.f32.mrb[0].mxu0
      %7209 = vmatprep.mubr.bf16.mxu0 0
      %7210 = vmatmul.mubr.bf16.gmra.mrb[0].mxu0 %v4474
      %v7211 = vpop.f32.mrb[0].mxu0
      %v7212 = vadd.f32 %v5643, %v7211
      %v7213 = vpop.f32.mrb[0].mxu0
      %v7214 = vpop.f32.mrb[0].mxu0
      %v7215 = vadd.f32 %v5646, %v7214
      %v7216 = vpop.f32.mrb[0].mxu0
      %7217 = vmatprep.mubr.bf16.mxu0 0
      %7218 = vmatmul.mubr.bf16.gmra.mrb[0].mxu0 %v4477
      %v7219 = vpop.f32.mrb[0].mxu0
      %v7220 = vadd.f32 %v5651, %v7219
      %v7221 = vpop.f32.mrb[0].mxu0
      %v7222 = vpop.f32.mrb[0].mxu0
      %v7223 = vadd.f32 %v5654, %v7222
      %v7224 = vpop.f32.mrb[0].mxu0
      %7225 = vmatprep.mubr.bf16.mxu0 0
      %7226 = vmatmul.mubr.bf16.gmra.mrb[0].mxu0 %v4480
      %v7227 = vpop.f32.mrb[0].mxu0
      %v7228 = vadd.f32 %v5659, %v7227
      %v7229 = vpop.f32.mrb[0].mxu0
      %v7230 = vpop.f32.mrb[0].mxu0
      %v7231 = vadd.f32 %v5662, %v7230
      %v7232 = vpop.f32.mrb[0].mxu0
      %7233 = vmatprep.mubr.bf16.mxu0 0
      %7234 = vmatmul.mubr.bf16.gmra.mrb[0].mxu0 %v4483
      %v7235 = vpop.f32.mrb[0].mxu0
      %v7236 = vadd.f32 %v5667, %v7235
      %v7237 = vpop.f32.mrb[0].mxu0
      %v7238 = vpop.f32.mrb[0].mxu0
      %v7239 = vadd.f32 %v5670, %v7238
      %v7240 = vpop.f32.mrb[0].mxu0
      %7241 = vmatprep.mubr.bf16.mxu0 0
      %7242 = vmatmul.mubr.bf16.gmra.mrb[0].mxu0 %v4486
      %v7243 = vpop.f32.mrb[0].mxu0
      %v7244 = vadd.f32 %v5675, %v7243
      %v7245 = vpop.f32.mrb[0].mxu0
      %v7246 = vpop.f32.mrb[0].mxu0
      %v7247 = vadd.f32 %v5678, %v7246
      %v7248 = vpop.f32.mrb[0].mxu0
      %7249 = vmatprep.mubr.bf16.mxu0 0
      %7250 = vmatmul.mubr.bf16.gmra.mrb[0].mxu0 %v4489
      %v7251 = vpop.f32.mrb[0].mxu0
      %v7252 = vadd.f32 %v5683, %v7251
      %v7253 = vpop.f32.mrb[0].mxu0
      %v7254 = vpop.f32.mrb[0].mxu0
      %v7255 = vadd.f32 %v5686, %v7254
      %v7256 = vpop.f32.mrb[0].mxu0
      %7257 = vmatprep.mubr.bf16.mxu0 0
      %7258 = vmatmul.mubr.bf16.gmra.mrb[0].mxu0 %v4492
      %v7259 = vpop.f32.mrb[0].mxu0
      %v7260 = vadd.f32 %v5691, %v7259
      %v7261 = vpop.f32.mrb[0].mxu0
      %v7262 = vpop.f32.mrb[0].mxu0
      %v7263 = vadd.f32 %v5694, %v7262
      %v7264 = vpop.f32.mrb[0].mxu0
      %7265 = vmatprep.mubr.bf16.mxu0 0
      %7266 = vmatmul.mubr.bf16.gmra.mrb[0].mxu0 %v4495
      %v7267 = vpop.f32.mrb[0].mxu0
      %v7268 = vadd.f32 %v5699, %v7267
      %v7269 = vpop.f32.mrb[0].mxu0
      %v7270 = vpop.f32.mrb[0].mxu0
      %v7271 = vadd.f32 %v5702, %v7270
      %v7272 = vpop.f32.mrb[0].mxu0
      %7273 = vmatprep.mubr.bf16.mxu0 0
      %7274 = vmatmul.mubr.bf16.gmra.mrb[0].mxu0 %v4498
      %v7275 = vpop.f32.mrb[0].mxu0
      %v7276 = vadd.f32 %v5707, %v7275
      %v7277 = vpop.f32.mrb[0].mxu0
      %v7278 = vpop.f32.mrb[0].mxu0
      %v7279 = vadd.f32 %v5710, %v7278
      %v7280 = vpop.f32.mrb[0].mxu0
      %7281 = vmatprep.mubr.bf16.mxu0 0
      %7282 = vmatmul.mubr.bf16.gmra.mrb[0].mxu0 %v4501
      %v7283 = vpop.f32.mrb[0].mxu0
      %v7284 = vadd.f32 %v5715, %v7283
      %v7285 = vpop.f32.mrb[0].mxu0
      %v7286 = vpop.f32.mrb[0].mxu0
      %v7287 = vadd.f32 %v5718, %v7286
      %v7288 = vpop.f32.mrb[0].mxu0
      %7289 = vmatprep.mubr.bf16.mxu0 0
      %7290 = vmatmul.mubr.bf16.gmra.mrb[0].mxu0 %v4504
      %v7291 = vpop.f32.mrb[0].mxu0
      %v7292 = vadd.f32 %v5723, %v7291
      %v7293 = vpop.f32.mrb[0].mxu0
      %v7294 = vpop.f32.mrb[0].mxu0
      %v7295 = vadd.f32 %v5726, %v7294
      %v7296 = vpop.f32.mrb[0].mxu0
      %7297 = vmatprep.mubr.bf16.mxu0 0
      %7298 = vmatmul.mubr.bf16.gmra.mrb[0].mxu0 %v4507
      %v7299 = vpop.f32.mrb[0].mxu0
      %v7300 = vadd.f32 %v5731, %v7299
      %v7301 = vpop.f32.mrb[0].mxu0
      %v7302 = vpop.f32.mrb[0].mxu0
      %v7303 = vadd.f32 %v5734, %v7302
      %v7304 = vpop.f32.mrb[0].mxu0
      %7305 = vmatprep.mubr.bf16.mxu0 0
      %7306 = vmatmul.mubr.bf16.gmra.mrb[0].mxu0 %v4510
      %v7307 = vpop.f32.mrb[0].mxu0
      %v7308 = vadd.f32 %v5739, %v7307
      %v7309 = vpop.f32.mrb[0].mxu0
      %v7310 = vpop.f32.mrb[0].mxu0
      %v7311 = vadd.f32 %v5742, %v7310
      %v7312 = vpop.f32.mrb[0].mxu0
      %7313 = vmatprep.mubr.bf16.mxu0 0
      %7314 = vmatmul.mubr.bf16.gmra.mrb[0].mxu0 %v4513
      %v7315 = vpop.f32.mrb[0].mxu0
      %v7316 = vadd.f32 %v5747, %v7315
      %v7317 = vpop.f32.mrb[0].mxu0
      %v7318 = vpop.f32.mrb[0].mxu0
      %v7319 = vadd.f32 %v5750, %v7318
      %v7320 = vpop.f32.mrb[0].mxu0
      %7321 = vmatprep.mubr.bf16.mxu0 0
      %7322 = vmatmul.mubr.bf16.gmra.mrb[0].mxu0 %v4516
      %v7323 = vpop.f32.mrb[0].mxu0
      %v7324 = vadd.f32 %v5755, %v7323
      %v7325 = vpop.f32.mrb[0].mxu0
      %v7326 = vpop.f32.mrb[0].mxu0
      %v7327 = vadd.f32 %v5758, %v7326
      %v7328 = vpop.f32.mrb[0].mxu0
      %7329 = vmatprep.mubr.bf16.mxu0 0
      %7330 = vmatmul.mubr.bf16.gmra.mrb[0].mxu0 %v4519
      %v7331 = vpop.f32.mrb[0].mxu0
      %v7332 = vadd.f32 %v5763, %v7331
      %v7333 = vpop.f32.mrb[0].mxu0
      %v7334 = vpop.f32.mrb[0].mxu0
      %v7335 = vadd.f32 %v5766, %v7334
      %v7336 = vpop.f32.mrb[0].mxu0
      %7337 = vmatprep.mubr.bf16.mxu0 0
      %7338 = vmatmul.mubr.bf16.gmra.mrb[0].mxu0 %v4522
      %v7339 = vpop.f32.mrb[0].mxu0
      %v7340 = vadd.f32 %v5771, %v7339
      %v7341 = vpop.f32.mrb[0].mxu0
      %v7342 = vpop.f32.mrb[0].mxu0
      %v7343 = vadd.f32 %v5774, %v7342
      %v7344 = vpop.f32.mrb[0].mxu0
      %7345 = vmatprep.mubr.bf16.mxu0 0
      %7346 = vmatmul.mubr.bf16.gmra.mrb[0].mxu0 %v4525
      %v7347 = vpop.f32.mrb[0].mxu0
      %v7348 = vadd.f32 %v5779, %v7347
      %v7349 = vpop.f32.mrb[0].mxu0
      %v7350 = vpop.f32.mrb[0].mxu0
      %v7351 = vadd.f32 %v5782, %v7350
      %v7352 = vpop.f32.mrb[0].mxu0
      %7353 = vmatprep.mubr.bf16.mxu0 0
      %7354 = vmatmul.mubr.bf16.gmra.mrb[0].mxu0 %v4528
      %v7355 = vpop.f32.mrb[0].mxu0
      %v7356 = vadd.f32 %v5787, %v7355
      %v7357 = vpop.f32.mrb[0].mxu0
      %v7358 = vpop.f32.mrb[0].mxu0
      %v7359 = vadd.f32 %v5790, %v7358
      %v7360 = vpop.f32.mrb[0].mxu0
      %7361 = vmatprep.mubr.bf16.mxu0 0
      %7362 = vmatmul.mubr.bf16.gmra.mrb[0].mxu0 %v4531
      %v7363 = vpop.f32.mrb[0].mxu0
      %v7364 = vadd.f32 %v5795, %v7363
      %v7365 = vpop.f32.mrb[0].mxu0
      %v7366 = vpop.f32.mrb[0].mxu0
      %v7367 = vadd.f32 %v5798, %v7366
      %v7368 = vpop.f32.mrb[0].mxu0
      %7369 = vmatprep.mubr.bf16.mxu0 0
      %7370 = vmatmul.mubr.bf16.gmra.mrb[0].mxu0 %v4534
      %v7371 = vpop.f32.mrb[0].mxu0
      %v7372 = vadd.f32 %v5803, %v7371
      %v7373 = vpop.f32.mrb[0].mxu0
      %v7374 = vpop.f32.mrb[0].mxu0
      %v7375 = vadd.f32 %v5806, %v7374
      %v7376 = vpop.f32.mrb[0].mxu0
      %7377 = vmatprep.mubr.bf16.mxu0 0
      %7378 = vmatmul.mubr.bf16.gmra.mrb[0].mxu0 %v4537
      %v7379 = vpop.f32.mrb[0].mxu0
      %v7380 = vadd.f32 %v5811, %v7379
      %v7381 = vpop.f32.mrb[0].mxu0
      %v7382 = vpop.f32.mrb[0].mxu0
      %v7383 = vadd.f32 %v5814, %v7382
      %v7384 = vpop.f32.mrb[0].mxu0
      %7385 = vmatprep.mubr.bf16.mxu0 0
      %7386 = vmatmul.mubr.bf16.gmra.mrb[0].mxu0 %v4540
      %v7387 = vpop.f32.mrb[0].mxu0
      %v7388 = vadd.f32 %v5819, %v7387
      %v7389 = vpop.f32.mrb[0].mxu0
      %v7390 = vpop.f32.mrb[0].mxu0
      %v7391 = vadd.f32 %v5822, %v7390
      %v7392 = vpop.f32.mrb[0].mxu0
      %7393 = vmatprep.mubr.bf16.mxu0 0
      %7394 = vmatmul.mubr.bf16.gmra.mrb[0].mxu0 %v4543
      %v7395 = vpop.f32.mrb[0].mxu0
      %v7396 = vadd.f32 %v5827, %v7395
      %v7397 = vpop.f32.mrb[0].mxu0
      %v7398 = vpop.f32.mrb[0].mxu0
      %v7399 = vadd.f32 %v5830, %v7398
      %v7400 = vpop.f32.mrb[0].mxu0
      %7401 = vmatprep.mubr.bf16.mxu0 0
      %7402 = vmatmul.mubr.bf16.gmra.mrb[0].mxu0 %v4546
      %v7403 = vpop.f32.mrb[0].mxu0
      %v7404 = vadd.f32 %v5835, %v7403
      %v7405 = vpop.f32.mrb[0].mxu0
      %v7406 = vpop.f32.mrb[0].mxu0
      %v7407 = vadd.f32 %v5838, %v7406
      %v7408 = vpop.f32.mrb[0].mxu0
      %7409 = vmatprep.mubr.bf16.mxu0 0
      %7410 = vmatmul.mubr.bf16.gmra.mrb[0].mxu0 %v4549
      %v7411 = vpop.f32.mrb[0].mxu0
      %v7412 = vadd.f32 %v5843, %v7411
      %v7413 = vpop.f32.mrb[0].mxu0
      %v7414 = vpop.f32.mrb[0].mxu0
      %v7415 = vadd.f32 %v5846, %v7414
      %v7416 = vpop.f32.mrb[0].mxu0
      %7417 = vmatprep.mubr.bf16.mxu0 0
      %7418 = vmatmul.mubr.bf16.gmra.mrb[0].mxu0 %v4552
      %v7419 = vpop.f32.mrb[0].mxu0
      %v7420 = vadd.f32 %v5851, %v7419
      %v7421 = vpop.f32.mrb[0].mxu0
      %v7422 = vpop.f32.mrb[0].mxu0
      %v7423 = vadd.f32 %v5854, %v7422
      %v7424 = vpop.f32.mrb[0].mxu0
      %7425 = vmatprep.mubr.bf16.mxu0 0
      %7426 = vmatmul.mubr.bf16.gmra.mrb[0].mxu0 %v4555
      %v7427 = vpop.f32.mrb[0].mxu0
      %v7428 = vadd.f32 %v5859, %v7427
      %v7429 = vpop.f32.mrb[0].mxu0
      %v7430 = vpop.f32.mrb[0].mxu0
      %v7431 = vadd.f32 %v5862, %v7430
      %v7432 = vpop.f32.mrb[0].mxu0
      %7433 = vmatprep.mubr.bf16.mxu0 0
      %7434 = vmatmul.mubr.bf16.gmra.mrb[0].mxu0 %v4558
      %v7435 = vpop.f32.mrb[0].mxu0
      %v7436 = vadd.f32 %v5867, %v7435
      %v7437 = vpop.f32.mrb[0].mxu0
      %v7438 = vpop.f32.mrb[0].mxu0
      %v7439 = vadd.f32 %v5870, %v7438
      %v7440 = vpop.f32.mrb[0].mxu0
      %7441 = vmatprep.mubr.bf16.mxu0 0
      %7442 = vmatmul.mubr.bf16.gmra.mrb[0].mxu0 %v4561
      %v7443 = vpop.f32.mrb[0].mxu0
      %v7444 = vadd.f32 %v5875, %v7443
      %v7445 = vpop.f32.mrb[0].mxu0
      %v7446 = vpop.f32.mrb[0].mxu0
      %v7447 = vadd.f32 %v5878, %v7446
      %v7448 = vpop.f32.mrb[0].mxu0
      %7449 = vmatprep.mubr.bf16.mxu0 0
      %7450 = vmatmul.mubr.bf16.gmra.mrb[0].mxu0 %v4564
      %v7451 = vpop.f32.mrb[0].mxu0
      %v7452 = vadd.f32 %v5883, %v7451
      %v7453 = vpop.f32.mrb[0].mxu0
      %v7454 = vpop.f32.mrb[0].mxu0
      %v7455 = vadd.f32 %v5886, %v7454
      %v7456 = vpop.f32.mrb[0].mxu0
      %7457 = vmatprep.mubr.bf16.mxu0 0
      %7458 = vmatmul.mubr.bf16.gmra.mrb[0].mxu0 %v4567
      %v7459 = vpop.f32.mrb[0].mxu0
      %v7460 = vadd.f32 %v5891, %v7459
      %v7461 = vpop.f32.mrb[0].mxu0
      %v7462 = vpop.f32.mrb[0].mxu0
      %v7463 = vadd.f32 %v5894, %v7462
      %v7464 = vpop.f32.mrb[0].mxu0
      %7465 = vmatprep.mubr.bf16.mxu0 0
      %7466 = vmatmul.mubr.bf16.gmra.mrb[0].mxu0 %v4570
      %v7467 = vpop.f32.mrb[0].mxu0
      %v7468 = vadd.f32 %v5899, %v7467
      %v7469 = vpop.f32.mrb[0].mxu0
      %v7470 = vpop.f32.mrb[0].mxu0
      %v7471 = vadd.f32 %v5902, %v7470
      %v7472 = vpop.f32.mrb[0].mxu0
      %7473 = vmatprep.mubr.bf16.mxu0 0
      %7474 = vmatmul.mubr.bf16.gmra.mrb[0].mxu0 %v4573
      %v7475 = vpop.f32.mrb[0].mxu0
      %v7476 = vadd.f32 %v5907, %v7475
      %v7477 = vpop.f32.mrb[0].mxu0
      %v7478 = vpop.f32.mrb[0].mxu0
      %v7479 = vadd.f32 %v5910, %v7478
      %v7480 = vpop.f32.mrb[0].mxu0
      %7481 = vmatprep.mubr.bf16.mxu0 0
      %7482 = vmatmul.mubr.bf16.gmra.mrb[0].mxu0 %v4576
      %v7483 = vpop.f32.mrb[0].mxu0
      %v7484 = vadd.f32 %v5915, %v7483
      %v7485 = vpop.f32.mrb[0].mxu0
      %v7486 = vpop.f32.mrb[0].mxu0
      %v7487 = vadd.f32 %v5918, %v7486
      %v7488 = vpop.f32.mrb[0].mxu0
      %7489 = vmatprep.mubr.bf16.mxu0 0
      %7490 = vmatmul.mubr.bf16.gmra.mrb[0].mxu0 %v4579
      %v7491 = vpop.f32.mrb[0].mxu0
      %v7492 = vadd.f32 %v5923, %v7491
      %v7493 = vpop.f32.mrb[0].mxu0
      %v7494 = vpop.f32.mrb[0].mxu0
      %v7495 = vadd.f32 %v5926, %v7494
      %v7496 = vpop.f32.mrb[0].mxu0
      %7497 = vmatprep.mubr.bf16.mxu0 0
      %7498 = vmatmul.mubr.bf16.gmra.mrb[0].mxu0 %v4582
      %v7499 = vpop.f32.mrb[0].mxu0
      %v7500 = vadd.f32 %v5931, %v7499
      %v7501 = vpop.f32.mrb[0].mxu0
      %v7502 = vpop.f32.mrb[0].mxu0
      %v7503 = vadd.f32 %v5934, %v7502
      %v7504 = vpop.f32.mrb[0].mxu0
      %7505 = vmatprep.mubr.bf16.mxu0 0
      %7506 = vmatmul.mubr.bf16.gmra.mrb[0].mxu0 %v4585
      %v7507 = vpop.f32.mrb[0].mxu0
      %v7508 = vadd.f32 %v5939, %v7507
      %v7509 = vpop.f32.mrb[0].mxu0
      %v7510 = vpop.f32.mrb[0].mxu0
      %v7511 = vadd.f32 %v5942, %v7510
      %v7512 = vpop.f32.mrb[0].mxu0
      %7513 = vmatprep.mubr.bf16.mxu0 0
      %7514 = vmatmul.mubr.bf16.gmra.mrb[0].mxu0 %v4588
      %v7515 = vpop.f32.mrb[0].mxu0
      %v7516 = vadd.f32 %v5947, %v7515
      %v7517 = vpop.f32.mrb[0].mxu0
      %v7518 = vpop.f32.mrb[0].mxu0
      %v7519 = vadd.f32 %v5950, %v7518
      %v7520 = vpop.f32.mrb[0].mxu0
      %7521 = vmatprep.mubr.bf16.mxu0 0
      %7522 = vmatmul.mubr.bf16.gmra.mrb[0].mxu0 %v4591
      %v7523 = vpop.f32.mrb[0].mxu0
      %v7524 = vadd.f32 %v5955, %v7523
      %v7525 = vpop.f32.mrb[0].mxu0
      %v7526 = vpop.f32.mrb[0].mxu0
      %v7527 = vadd.f32 %v5958, %v7526
      %v7528 = vpop.f32.mrb[0].mxu0
      %7529 = vmatprep.mubr.bf16.mxu0 0
      %7530 = vmatmul.mubr.bf16.gmra.mrb[0].mxu0 %v4594
      %v7531 = vpop.f32.mrb[0].mxu0
      %v7532 = vadd.f32 %v5963, %v7531
      %v7533 = vpop.f32.mrb[0].mxu0
      %v7534 = vpop.f32.mrb[0].mxu0
      %v7535 = vadd.f32 %v5966, %v7534
      %v7536 = vpop.f32.mrb[0].mxu0
      %7537 = vmatprep.mubr.bf16.mxu0 0
      %7538 = vmatmul.mubr.bf16.gmra.mrb[0].mxu0 %v4597
      %v7539 = vpop.f32.mrb[0].mxu0
      %v7540 = vadd.f32 %v5971, %v7539
      %v7541 = vpop.f32.mrb[0].mxu0
      %v7542 = vpop.f32.mrb[0].mxu0
      %v7543 = vadd.f32 %v5974, %v7542
      %v7544 = vpop.f32.mrb[0].mxu0
      %7545 = vmatprep.mubr.bf16.mxu0 0
      %7546 = vmatmul.mubr.bf16.gmra.mrb[0].mxu0 %v4600
      %v7547 = vpop.f32.mrb[0].mxu0
      %v7548 = vadd.f32 %v5979, %v7547
      %v7549 = vpop.f32.mrb[0].mxu0
      %v7550 = vpop.f32.mrb[0].mxu0
      %v7551 = vadd.f32 %v5982, %v7550
      %v7552 = vpop.f32.mrb[0].mxu0
      %7553 = vmatprep.mubr.bf16.mxu0 0
      %7554 = vmatmul.mubr.bf16.gmra.mrb[0].mxu0 %v4603
      %v7555 = vpop.f32.mrb[0].mxu0
      %v7556 = vadd.f32 %v5987, %v7555
      %v7557 = vpop.f32.mrb[0].mxu0
      %v7558 = vpop.f32.mrb[0].mxu0
      %v7559 = vadd.f32 %v5990, %v7558
      %v7560 = vpop.f32.mrb[0].mxu0
      %7561 = vmatprep.mubr.bf16.mxu0 0
      %7562 = vmatmul.mubr.bf16.gmra.mrb[0].mxu0 %v4606
      %v7563 = vpop.f32.mrb[0].mxu0
      %v7564 = vadd.f32 %v5995, %v7563
      %v7565 = vpop.f32.mrb[0].mxu0
      %v7566 = vpop.f32.mrb[0].mxu0
      %v7567 = vadd.f32 %v5998, %v7566
      %v7568 = vpop.f32.mrb[0].mxu0
      %7569 = vmatprep.mubr.bf16.mxu0 0
      %7570 = vmatmul.mubr.bf16.gmra.mrb[0].mxu0 %v4609
      %v7571 = vpop.f32.mrb[0].mxu0
      %v7572 = vadd.f32 %v6003, %v7571
      %v7573 = vpop.f32.mrb[0].mxu0
      %v7574 = vpop.f32.mrb[0].mxu0
      %v7575 = vadd.f32 %v6006, %v7574
      %v7576 = vpop.f32.mrb[0].mxu0
      %7577 = vmatprep.mubr.bf16.mxu0 0
      %7578 = vmatmul.mubr.bf16.gmra.mrb[0].mxu0 %v4612
      %v7579 = vpop.f32.mrb[0].mxu0
      %v7580 = vadd.f32 %v6011, %v7579
      %v7581 = vpop.f32.mrb[0].mxu0
      %v7582 = vpop.f32.mrb[0].mxu0
      %v7583 = vadd.f32 %v6014, %v7582
      %v7584 = vpop.f32.mrb[0].mxu0
      %7585 = vmatprep.mubr.bf16.mxu0 0
      %7586 = vmatmul.mubr.bf16.gmra.mrb[0].mxu0 %v4615
      %v7587 = vpop.f32.mrb[0].mxu0
      %v7588 = vadd.f32 %v6019, %v7587
      %v7589 = vpop.f32.mrb[0].mxu0
      %v7590 = vpop.f32.mrb[0].mxu0
      %v7591 = vadd.f32 %v6022, %v7590
      %v7592 = vpop.f32.mrb[0].mxu0
      %7593 = vmatprep.mubr.bf16.mxu0 0
      %7594 = vmatmul.mubr.bf16.gmra.mrb[0].mxu0 %v4618
      %v7595 = vpop.f32.mrb[0].mxu0
      %v7596 = vadd.f32 %v6027, %v7595
      %v7597 = vpop.f32.mrb[0].mxu0
      %v7598 = vpop.f32.mrb[0].mxu0
      %v7599 = vadd.f32 %v6030, %v7598
      %v7600 = vpop.f32.mrb[0].mxu0
      %7601 = vmatprep.mubr.bf16.mxu0 0
      %7602 = vmatmul.mubr.bf16.gmra.mrb[0].mxu0 %v4621
      %v7603 = vpop.f32.mrb[0].mxu0
      %v7604 = vadd.f32 %v6035, %v7603
      %v7605 = vpop.f32.mrb[0].mxu0
      %v7606 = vpop.f32.mrb[0].mxu0
      %v7607 = vadd.f32 %v6038, %v7606
      %v7608 = vpop.f32.mrb[0].mxu0
      %7609 = vmatprep.mubr.bf16.mxu0 0
      %7610 = vmatmul.mubr.bf16.gmra.mrb[0].mxu0 %v4624
      %v7611 = vpop.f32.mrb[0].mxu0
      %v7612 = vadd.f32 %v6043, %v7611
      %v7613 = vpop.f32.mrb[0].mxu0
      %v7614 = vpop.f32.mrb[0].mxu0
      %v7615 = vadd.f32 %v6046, %v7614
      %v7616 = vpop.f32.mrb[0].mxu0
      %7617 = vmatprep.mubr.bf16.mxu0 0
      %7618 = vmatmul.mubr.bf16.gmra.mrb[0].mxu0 %v4627
      %v7619 = vpop.f32.mrb[0].mxu0
      %v7620 = vadd.f32 %v6051, %v7619
      %v7621 = vpop.f32.mrb[0].mxu0
      %v7622 = vpop.f32.mrb[0].mxu0
      %v7623 = vadd.f32 %v6054, %v7622
      %v7624 = vpop.f32.mrb[0].mxu0
      %7625 = vmatprep.mubr.bf16.mxu0 0
      %7626 = vmatmul.mubr.bf16.gmra.mrb[0].mxu0 %v4630
      %v7627 = vpop.f32.mrb[0].mxu0
      %v7628 = vadd.f32 %v6059, %v7627
      %v7629 = vpop.f32.mrb[0].mxu0
      %v7630 = vpop.f32.mrb[0].mxu0
      %v7631 = vadd.f32 %v6062, %v7630
      %v7632 = vpop.f32.mrb[0].mxu0
      %7633 = vmatprep.mubr.bf16.mxu0 0
      %7634 = vmatmul.mubr.bf16.gmra.mrb[0].mxu0 %v4633
      %v7635 = vpop.f32.mrb[0].mxu0
      %v7636 = vadd.f32 %v6067, %v7635
      %v7637 = vpop.f32.mrb[0].mxu0
      %v7638 = vpop.f32.mrb[0].mxu0
      %v7639 = vadd.f32 %v6070, %v7638
      %v7640 = vpop.f32.mrb[0].mxu0
      %7641 = vmatprep.mubr.bf16.mxu0 0
      %7642 = vmatmul.mubr.bf16.gmra.mrb[0].mxu0 %v4636
      %v7643 = vpop.f32.mrb[0].mxu0
      %v7644 = vadd.f32 %v6075, %v7643
      %v7645 = vpop.f32.mrb[0].mxu0
      %v7646 = vpop.f32.mrb[0].mxu0
      %v7647 = vadd.f32 %v6078, %v7646
      %v7648 = vpop.f32.mrb[0].mxu0
      %7649 = vmatprep.mubr.bf16.mxu0 0
      %7650 = vmatmul.mubr.bf16.gmra.mrb[0].mxu0 %v4639
      %v7651 = vpop.f32.mrb[0].mxu0
      %v7652 = vadd.f32 %v6083, %v7651
      %v7653 = vpop.f32.mrb[0].mxu0
      %v7654 = vpop.f32.mrb[0].mxu0
      %v7655 = vadd.f32 %v6086, %v7654
      %v7656 = vpop.f32.mrb[0].mxu0
      %7657 = vmatprep.mubr.bf16.mxu0 0
      %7658 = vmatmul.mubr.bf16.gmra.mrb[0].mxu0 %v4642
      %v7659 = vpop.f32.mrb[0].mxu0
      %v7660 = vadd.f32 %v6091, %v7659
      %v7661 = vpop.f32.mrb[0].mxu0
      %v7662 = vpop.f32.mrb[0].mxu0
      %v7663 = vadd.f32 %v6094, %v7662
      %v7664 = vpop.f32.mrb[0].mxu0
      %7665 = vmatprep.mubr.bf16.mxu0 0
      %7666 = vmatmul.mubr.bf16.gmra.mrb[0].mxu0 %v4645
      %v7667 = vpop.f32.mrb[0].mxu0
      %v7668 = vadd.f32 %v6099, %v7667
      %v7669 = vpop.f32.mrb[0].mxu0
      %v7670 = vpop.f32.mrb[0].mxu0
      %v7671 = vadd.f32 %v6102, %v7670
      %v7672 = vpop.f32.mrb[0].mxu0
      %7673 = vmatprep.mubr.bf16.mxu0 0
      %7674 = vmatmul.mubr.bf16.gmra.mrb[0].mxu0 %v4648
      %v7675 = vpop.f32.mrb[0].mxu0
      %v7676 = vadd.f32 %v6107, %v7675
      %v7677 = vpop.f32.mrb[0].mxu0
      %v7678 = vpop.f32.mrb[0].mxu0
      %v7679 = vadd.f32 %v6110, %v7678
      %v7680 = vpop.f32.mrb[0].mxu0
      %7681 = vmatprep.mubr.bf16.mxu0 0
      %7682 = vmatmul.mubr.bf16.gmra.mrb[0].mxu0 %v4651
      %v7683 = vpop.f32.mrb[0].mxu0
      %v7684 = vadd.f32 %v6115, %v7683
      %v7685 = vpop.f32.mrb[0].mxu0
      %v7686 = vpop.f32.mrb[0].mxu0
      %v7687 = vadd.f32 %v6118, %v7686
      %v7688 = vpop.f32.mrb[0].mxu0
      %7689 = vmatprep.mubr.bf16.mxu0 0
      %7690 = vmatmul.mubr.bf16.gmra.mrb[0].mxu0 %v4654
      %v7691 = vpop.f32.mrb[0].mxu0
      %v7692 = vadd.f32 %v6123, %v7691
      %v7693 = vpop.f32.mrb[0].mxu0
      %v7694 = vpop.f32.mrb[0].mxu0
      %v7695 = vadd.f32 %v6126, %v7694
      %v7696 = vpop.f32.mrb[0].mxu0
      %7697 = vmatprep.mubr.bf16.mxu0 0
      %7698 = vmatmul.mubr.bf16.gmra.mrb[0].mxu0 %v4657
      %v7699 = vpop.f32.mrb[0].mxu0
      %v7700 = vadd.f32 %v6131, %v7699
      %v7701 = vpop.f32.mrb[0].mxu0
      %v7702 = vpop.f32.mrb[0].mxu0
      %v7703 = vadd.f32 %v6134, %v7702
      %v7704 = vpop.f32.mrb[0].mxu0
      %7705 = vmatprep.mubr.bf16.mxu0 0
      %7706 = vmatmul.mubr.bf16.gmra.mrb[0].mxu0 %v4660
      %v7707 = vpop.f32.mrb[0].mxu0
      %v7708 = vadd.f32 %v6139, %v7707
      %v7709 = vpop.f32.mrb[0].mxu0
      %v7710 = vpop.f32.mrb[0].mxu0
      %v7711 = vadd.f32 %v6142, %v7710
      %v7712 = vpop.f32.mrb[0].mxu0
      %7713 = vmatprep.mubr.bf16.mxu0 0
      %7714 = vmatmul.mubr.bf16.gmra.mrb[0].mxu0 %v4663
      %v7715 = vpop.f32.mrb[0].mxu0
      %v7716 = vadd.f32 %v6147, %v7715
      %v7717 = vpop.f32.mrb[0].mxu0
      %v7718 = vpop.f32.mrb[0].mxu0
      %v7719 = vadd.f32 %v6150, %v7718
      %v7720 = vpop.f32.mrb[0].mxu0
      %7721 = vmatprep.mubr.bf16.mxu0 0
      %7722 = vmatmul.mubr.bf16.gmra.mrb[0].mxu0 %v4666
      %v7723 = vpop.f32.mrb[0].mxu0
      %v7724 = vadd.f32 %v6155, %v7723
      %v7725 = vpop.f32.mrb[0].mxu0
      %v7726 = vpop.f32.mrb[0].mxu0
      %v7727 = vadd.f32 %v6158, %v7726
      %v7728 = vpop.f32.mrb[0].mxu0
      %7729 = vmatprep.mubr.bf16.mxu0 0
      %7730 = vmatmul.mubr.bf16.gmra.mrb[0].mxu0 %v4669
      %v7731 = vpop.f32.mrb[0].mxu0
      %v7732 = vadd.f32 %v6163, %v7731
      %v7733 = vpop.f32.mrb[0].mxu0
      %v7734 = vpop.f32.mrb[0].mxu0
      %v7735 = vadd.f32 %v6166, %v7734
      %v7736 = vpop.f32.mrb[0].mxu0
      %7737 = vmatprep.mubr.bf16.mxu0 0
      %7738 = vmatmul.mubr.bf16.gmra.mrb[0].mxu0 %v4672
      %v7739 = vpop.f32.mrb[0].mxu0
      %v7740 = vadd.f32 %v6171, %v7739
      %v7741 = vpop.f32.mrb[0].mxu0
      %v7742 = vpop.f32.mrb[0].mxu0
      %v7743 = vadd.f32 %v6174, %v7742
      %v7744 = vpop.f32.mrb[0].mxu0
      %7745 = vmatprep.mubr.bf16.mxu0 0
      %7746 = vmatmul.mubr.bf16.gmra.mrb[0].mxu0 %v4675
      %v7747 = vpop.f32.mrb[0].mxu0
      %v7748 = vadd.f32 %v6179, %v7747
      %v7749 = vpop.f32.mrb[0].mxu0
      %v7750 = vpop.f32.mrb[0].mxu0
      %v7751 = vadd.f32 %v6182, %v7750
      %v7752 = vpop.f32.mrb[0].mxu0
      %7753 = vmatprep.mubr.bf16.mxu0 0
      %7754 = vmatmul.mubr.bf16.gmra.mrb[0].mxu0 %v4678
      %v7755 = vpop.f32.mrb[0].mxu0
      %v7756 = vadd.f32 %v6187, %v7755
      %v7757 = vpop.f32.mrb[0].mxu0
      %v7758 = vpop.f32.mrb[0].mxu0
      %v7759 = vadd.f32 %v6190, %v7758
      %v7760 = vpop.f32.mrb[0].mxu0
      %7761 = vmatprep.mubr.bf16.mxu0 0
      %7762 = vmatmul.mubr.bf16.gmra.mrb[0].mxu0 %v4681
      %v7763 = vpop.f32.mrb[0].mxu0
      %v7764 = vadd.f32 %v6195, %v7763
      %v7765 = vpop.f32.mrb[0].mxu0
      %v7766 = vpop.f32.mrb[0].mxu0
      %v7767 = vadd.f32 %v6198, %v7766
      %v7768 = vpop.f32.mrb[0].mxu0
      %7769 = vmatprep.mubr.bf16.mxu0 0
      %7770 = vmatmul.mubr.bf16.gmra.mrb[0].mxu0 %v4684
      %v7771 = vpop.f32.mrb[0].mxu0
      %v7772 = vadd.f32 %v6203, %v7771
      %v7773 = vpop.f32.mrb[0].mxu0
      %v7774 = vpop.f32.mrb[0].mxu0
      %v7775 = vadd.f32 %v6206, %v7774
      %v7776 = vpop.f32.mrb[0].mxu0
      %7777 = vmatprep.mubr.bf16.mxu0 0
      %7778 = vmatmul.mubr.bf16.gmra.mrb[0].mxu0 %v4687
      %v7779 = vpop.f32.mrb[0].mxu0
      %v7780 = vadd.f32 %v6211, %v7779
      %v7781 = vpop.f32.mrb[0].mxu0
      %v7782 = vpop.f32.mrb[0].mxu0
      %v7783 = vadd.f32 %v6214, %v7782
      %v7784 = vpop.f32.mrb[0].mxu0
      %7785 = vmatprep.mubr.bf16.mxu0 0
      %7786 = vmatmul.mubr.bf16.gmra.mrb[0].mxu0 %v4690
      %v7787 = vpop.f32.mrb[0].mxu0
      %v7788 = vadd.f32 %v6219, %v7787
      %v7789 = vpop.f32.mrb[0].mxu0
      %v7790 = vpop.f32.mrb[0].mxu0
      %v7791 = vadd.f32 %v6222, %v7790
      %v7792 = vpop.f32.mrb[0].mxu0
      %7793 = vmatprep.mubr.bf16.mxu0 0
      %7794 = vmatmul.mubr.bf16.gmra.mrb[0].mxu0 %v4693
      %v7795 = vpop.f32.mrb[0].mxu0
      %v7796 = vadd.f32 %v6227, %v7795
      %v7797 = vpop.f32.mrb[0].mxu0
      %v7798 = vpop.f32.mrb[0].mxu0
      %v7799 = vadd.f32 %v6230, %v7798
      %v7800 = vpop.f32.mrb[0].mxu0
      %7801 = vmatprep.mubr.bf16.mxu0 0
      %7802 = vmatmul.mubr.bf16.gmra.mrb[0].mxu0 %v4696
      %v7803 = vpop.f32.mrb[0].mxu0
      %v7804 = vadd.f32 %v6235, %v7803
      %v7805 = vpop.f32.mrb[0].mxu0
      %v7806 = vpop.f32.mrb[0].mxu0
      %v7807 = vadd.f32 %v6238, %v7806
      %v7808 = vpop.f32.mrb[0].mxu0
      %7809 = vmatprep.mubr.bf16.mxu0 0
      %7810 = vmatmul.mubr.bf16.gmra.mrb[0].mxu0 %v4699
      %v7811 = vpop.f32.mrb[0].mxu0
      %v7812 = vadd.f32 %v6243, %v7811
      %v7813 = vpop.f32.mrb[0].mxu0
      %v7814 = vpop.f32.mrb[0].mxu0
      %v7815 = vadd.f32 %v6246, %v7814
      %v7816 = vpop.f32.mrb[0].mxu0
      %7817 = vmatprep.mubr.bf16.mxu0 0
      %7818 = vmatmul.mubr.bf16.gmra.mrb[0].mxu0 %v4702
      %v7819 = vpop.f32.mrb[0].mxu0
      %v7820 = vadd.f32 %v6251, %v7819
      %v7821 = vpop.f32.mrb[0].mxu0
      %v7822 = vpop.f32.mrb[0].mxu0
      %v7823 = vadd.f32 %v6254, %v7822
      %v7824 = vpop.f32.mrb[0].mxu0
      %7825 = vmatprep.mubr.bf16.mxu0 0
      %7826 = vmatmul.mubr.bf16.gmra.mrb[0].mxu0 %v4705
      %v7827 = vpop.f32.mrb[0].mxu0
      %v7828 = vadd.f32 %v6259, %v7827
      %v7829 = vpop.f32.mrb[0].mxu0
      %v7830 = vpop.f32.mrb[0].mxu0
      %v7831 = vadd.f32 %v6262, %v7830
      %v7832 = vpop.f32.mrb[0].mxu0
      %7833 = vmatprep.mubr.bf16.mxu0 0
      %7834 = vmatmul.mubr.bf16.gmra.mrb[0].mxu0 %v4708
      %v7835 = vpop.f32.mrb[0].mxu0
      %v7836 = vadd.f32 %v6267, %v7835
      %v7837 = vpop.f32.mrb[0].mxu0
      %v7838 = vpop.f32.mrb[0].mxu0
      %v7839 = vadd.f32 %v6270, %v7838
      %v7840 = vpop.f32.mrb[0].mxu0
      %7841 = vmatprep.mubr.bf16.mxu0 0
      %7842 = vmatmul.mubr.bf16.gmra.mrb[0].mxu0 %v4711
      %v7843 = vpop.f32.mrb[0].mxu0
      %v7844 = vadd.f32 %v6275, %v7843
      %v7845 = vpop.f32.mrb[0].mxu0
      %v7846 = vpop.f32.mrb[0].mxu0
      %v7847 = vadd.f32 %v6278, %v7846
      %v7848 = vpop.f32.mrb[0].mxu0
      %7849 = vmatprep.mubr.bf16.mxu0 0
      %7850 = vmatmul.mubr.bf16.gmra.mrb[0].mxu0 %v4714
      %v7851 = vpop.f32.mrb[0].mxu0
      %v7852 = vadd.f32 %v6283, %v7851
      %v7853 = vpop.f32.mrb[0].mxu0
      %v7854 = vpop.f32.mrb[0].mxu0
      %v7855 = vadd.f32 %v6286, %v7854
      %v7856 = vpop.f32.mrb[0].mxu0
      %7857 = vdwg.mxu0
      %v7858 = vmax.f32 %v6324, %v6708
      %v7859 = vmax.f32 %v6327, %v6711
      %v7860 = vmax.f32 %v6332, %v6716
      %v7861 = vmax.f32 %v6335, %v6719
      %v7862 = vmax.f32 %v6340, %v6724
      %v7863 = vmax.f32 %v6343, %v6727
      %v7864 = vmax.f32 %v6348, %v6732
      %v7865 = vmax.f32 %v6351, %v6735
      %v7866 = vmax.f32 %v6356, %v6740
      %v7867 = vmax.f32 %v6359, %v6743
      %v7868 = vmax.f32 %v6364, %v6748
      %v7869 = vmax.f32 %v6367, %v6751
      %v7870 = vmax.f32 %v6372, %v6756
      %v7871 = vmax.f32 %v6375, %v6759
      %v7872 = vmax.f32 %v6380, %v6764
      %v7873 = vmax.f32 %v6383, %v6767
      %v7874 = vmax.f32 %v6388, %v6772
      %v7875 = vmax.f32 %v6391, %v6775
      %v7876 = vmax.f32 %v6396, %v6780
      %v7877 = vmax.f32 %v6399, %v6783
      %v7878 = vmax.f32 %v6404, %v6788
      %v7879 = vmax.f32 %v6407, %v6791
      %v7880 = vmax.f32 %v6412, %v6796
      %v7881 = vmax.f32 %v6415, %v6799
      %v7882 = vmax.f32 %v6420, %v6804
      %v7883 = vmax.f32 %v6423, %v6807
      %v7884 = vmax.f32 %v6428, %v6812
      %v7885 = vmax.f32 %v6431, %v6815
      %v7886 = vmax.f32 %v6436, %v6820
      %v7887 = vmax.f32 %v6439, %v6823
      %v7888 = vmax.f32 %v6444, %v6828
      %v7889 = vmax.f32 %v6447, %v6831
      %v7890 = vmax.f32 %v6452, %v6836
      %v7891 = vmax.f32 %v6455, %v6839
      %v7892 = vmax.f32 %v6460, %v6844
      %v7893 = vmax.f32 %v6463, %v6847
      %v7894 = vmax.f32 %v6468, %v6852
      %v7895 = vmax.f32 %v6471, %v6855
      %v7896 = vmax.f32 %v6476, %v6860
      %v7897 = vmax.f32 %v6479, %v6863
      %v7898 = vmax.f32 %v6484, %v6868
      %v7899 = vmax.f32 %v6487, %v6871
      %v7900 = vmax.f32 %v6492, %v6876
      %v7901 = vmax.f32 %v6495, %v6879
      %v7902 = vmax.f32 %v6500, %v6884
      %v7903 = vmax.f32 %v6503, %v6887
      %v7904 = vmax.f32 %v6508, %v6892
      %v7905 = vmax.f32 %v6511, %v6895
      %v7906 = vmax.f32 %v6516, %v6900
      %v7907 = vmax.f32 %v6519, %v6903
      %v7908 = vmax.f32 %v6524, %v6908
      %v7909 = vmax.f32 %v6527, %v6911
      %v7910 = vmax.f32 %v6532, %v6916
      %v7911 = vmax.f32 %v6535, %v6919
      %v7912 = vmax.f32 %v6540, %v6924
      %v7913 = vmax.f32 %v6543, %v6927
      %v7914 = vmax.f32 %v6548, %v6932
      %v7915 = vmax.f32 %v6551, %v6935
      %v7916 = vmax.f32 %v6556, %v6940
      %v7917 = vmax.f32 %v6559, %v6943
      %v7918 = vmax.f32 %v6564, %v6948
      %v7919 = vmax.f32 %v6567, %v6951
      %v7920 = vmax.f32 %v6572, %v6956
      %v7921 = vmax.f32 %v6575, %v6959
      %v7922 = vmax.f32 %v6580, %v6964
      %v7923 = vmax.f32 %v6583, %v6967
      %v7924 = vmax.f32 %v6588, %v6972
      %v7925 = vmax.f32 %v6591, %v6975
      %v7926 = vmax.f32 %v6596, %v6980
      %v7927 = vmax.f32 %v6599, %v6983
      %v7928 = vmax.f32 %v6604, %v6988
      %v7929 = vmax.f32 %v6607, %v6991
      %v7930 = vmax.f32 %v6612, %v6996
      %v7931 = vmax.f32 %v6615, %v6999
      %v7932 = vmax.f32 %v6620, %v7004
      %v7933 = vmax.f32 %v6623, %v7007
      %v7934 = vmax.f32 %v6628, %v7012
      %v7935 = vmax.f32 %v6631, %v7015
      %v7936 = vmax.f32 %v6636, %v7020
      %v7937 = vmax.f32 %v6639, %v7023
      %v7938 = vmax.f32 %v6644, %v7028
      %v7939 = vmax.f32 %v6647, %v7031
      %v7940 = vmax.f32 %v6652, %v7036
      %v7941 = vmax.f32 %v6655, %v7039
      %v7942 = vmax.f32 %v6660, %v7044
      %v7943 = vmax.f32 %v6663, %v7047
      %v7944 = vmax.f32 %v6668, %v7052
      %v7945 = vmax.f32 %v6671, %v7055
      %v7946 = vmax.f32 %v6676, %v7060
      %v7947 = vmax.f32 %v6679, %v7063
      %v7948 = vmax.f32 %v6684, %v7068
      %v7949 = vmax.f32 %v6687, %v7071
      %v7950 = vmax.f32 %v6692, %v7076
      %v7951 = vmax.f32 %v6695, %v7079
      %v7952 = vmax.f32 %v6700, %v7084
      %v7953 = vmax.f32 %v6703, %v7087
      %v7954 = vmax.f32 %v7092, %v7476
      %v7955 = vmax.f32 %v7095, %v7479
      %v7956 = vmax.f32 %v7100, %v7484
      %v7957 = vmax.f32 %v7103, %v7487
      %v7958 = vmax.f32 %v7108, %v7492
      %v7959 = vmax.f32 %v7111, %v7495
      %v7960 = vmax.f32 %v7116, %v7500
      %v7961 = vmax.f32 %v7119, %v7503
      %v7962 = vmax.f32 %v7124, %v7508
      %v7963 = vmax.f32 %v7127, %v7511
      %v7964 = vmax.f32 %v7132, %v7516
      %v7965 = vmax.f32 %v7135, %v7519
      %v7966 = vmax.f32 %v7140, %v7524
      %v7967 = vmax.f32 %v7143, %v7527
      %v7968 = vmax.f32 %v7148, %v7532
      %v7969 = vmax.f32 %v7151, %v7535
      %v7970 = vmax.f32 %v7156, %v7540
      %v7971 = vmax.f32 %v7159, %v7543
      %v7972 = vmax.f32 %v7164, %v7548
      %v7973 = vmax.f32 %v7167, %v7551
      %v7974 = vmax.f32 %v7172, %v7556
      %v7975 = vmax.f32 %v7175, %v7559
      %v7976 = vmax.f32 %v7180, %v7564
      %v7977 = vmax.f32 %v7183, %v7567
      %v7978 = vmax.f32 %v7188, %v7572
      %v7979 = vmax.f32 %v7191, %v7575
      %v7980 = vmax.f32 %v7196, %v7580
      %v7981 = vmax.f32 %v7199, %v7583
      %v7982 = vmax.f32 %v7204, %v7588
      %v7983 = vmax.f32 %v7207, %v7591
      %v7984 = vmax.f32 %v7212, %v7596
      %v7985 = vmax.f32 %v7215, %v7599
      %v7986 = vmax.f32 %v7220, %v7604
      %v7987 = vmax.f32 %v7223, %v7607
      %v7988 = vmax.f32 %v7228, %v7612
      %v7989 = vmax.f32 %v7231, %v7615
      %v7990 = vmax.f32 %v7236, %v7620
      %v7991 = vmax.f32 %v7239, %v7623
      %v7992 = vmax.f32 %v7244, %v7628
      %v7993 = vmax.f32 %v7247, %v7631
      %v7994 = vmax.f32 %v7252, %v7636
      %v7995 = vmax.f32 %v7255, %v7639
      %v7996 = vmax.f32 %v7260, %v7644
      %v7997 = vmax.f32 %v7263, %v7647
      %v7998 = vmax.f32 %v7268, %v7652
      %v7999 = vmax.f32 %v7271, %v7655
      %v8000 = vmax.f32 %v7276, %v7660
      %v8001 = vmax.f32 %v7279, %v7663
      %v8002 = vmax.f32 %v7284, %v7668
      %v8003 = vmax.f32 %v7287, %v7671
      %v8004 = vmax.f32 %v7292, %v7676
      %v8005 = vmax.f32 %v7295, %v7679
      %v8006 = vmax.f32 %v7300, %v7684
      %v8007 = vmax.f32 %v7303, %v7687
      %v8008 = vmax.f32 %v7308, %v7692
      %v8009 = vmax.f32 %v7311, %v7695
      %v8010 = vmax.f32 %v7316, %v7700
      %v8011 = vmax.f32 %v7319, %v7703
      %v8012 = vmax.f32 %v7324, %v7708
      %v8013 = vmax.f32 %v7327, %v7711
      %v8014 = vmax.f32 %v7332, %v7716
      %v8015 = vmax.f32 %v7335, %v7719
      %v8016 = vmax.f32 %v7340, %v7724
      %v8017 = vmax.f32 %v7343, %v7727
      %v8018 = vmax.f32 %v7348, %v7732
      %v8019 = vmax.f32 %v7351, %v7735
      %v8020 = vmax.f32 %v7356, %v7740
      %v8021 = vmax.f32 %v7359, %v7743
      %v8022 = vmax.f32 %v7364, %v7748
      %v8023 = vmax.f32 %v7367, %v7751
      %v8024 = vmax.f32 %v7372, %v7756
      %v8025 = vmax.f32 %v7375, %v7759
      %v8026 = vmax.f32 %v7380, %v7764
      %v8027 = vmax.f32 %v7383, %v7767
      %v8028 = vmax.f32 %v7388, %v7772
      %v8029 = vmax.f32 %v7391, %v7775
      %v8030 = vmax.f32 %v7396, %v7780
      %v8031 = vmax.f32 %v7399, %v7783
      %v8032 = vmax.f32 %v7404, %v7788
      %v8033 = vmax.f32 %v7407, %v7791
      %v8034 = vmax.f32 %v7412, %v7796
      %v8035 = vmax.f32 %v7415, %v7799
      %v8036 = vmax.f32 %v7420, %v7804
      %v8037 = vmax.f32 %v7423, %v7807
      %v8038 = vmax.f32 %v7428, %v7812
      %v8039 = vmax.f32 %v7431, %v7815
      %v8040 = vmax.f32 %v7436, %v7820
      %v8041 = vmax.f32 %v7439, %v7823
      %v8042 = vmax.f32 %v7444, %v7828
      %v8043 = vmax.f32 %v7447, %v7831
      %v8044 = vmax.f32 %v7452, %v7836
      %v8045 = vmax.f32 %v7455, %v7839
      %v8046 = vmax.f32 %v7460, %v7844
      %v8047 = vmax.f32 %v7463, %v7847
      %v8048 = vmax.f32 %v7468, %v7852
      %v8049 = vmax.f32 %v7471, %v7855
      %v8050 = vmax.f32 %v7858, %v7954
      %v8051 = vmax.f32 %v7859, %v7955
      %v8052 = vmax.f32 %v7860, %v7956
      %v8053 = vmax.f32 %v7861, %v7957
      %v8054 = vmax.f32 %v7862, %v7958
      %v8055 = vmax.f32 %v7863, %v7959
      %v8056 = vmax.f32 %v7864, %v7960
      %v8057 = vmax.f32 %v7865, %v7961
      %v8058 = vmax.f32 %v7866, %v7962
      %v8059 = vmax.f32 %v7867, %v7963
      %v8060 = vmax.f32 %v7868, %v7964
      %v8061 = vmax.f32 %v7869, %v7965
      %v8062 = vmax.f32 %v7870, %v7966
      %v8063 = vmax.f32 %v7871, %v7967
      %v8064 = vmax.f32 %v7872, %v7968
      %v8065 = vmax.f32 %v7873, %v7969
      %v8066 = vmax.f32 %v7874, %v7970
      %v8067 = vmax.f32 %v7875, %v7971
      %v8068 = vmax.f32 %v7876, %v7972
      %v8069 = vmax.f32 %v7877, %v7973
      %v8070 = vmax.f32 %v7878, %v7974
      %v8071 = vmax.f32 %v7879, %v7975
      %v8072 = vmax.f32 %v7880, %v7976
      %v8073 = vmax.f32 %v7881, %v7977
      %v8074 = vmax.f32 %v7882, %v7978
      %v8075 = vmax.f32 %v7883, %v7979
      %v8076 = vmax.f32 %v7884, %v7980
      %v8077 = vmax.f32 %v7885, %v7981
      %v8078 = vmax.f32 %v7886, %v7982
      %v8079 = vmax.f32 %v7887, %v7983
      %v8080 = vmax.f32 %v7888, %v7984
      %v8081 = vmax.f32 %v7889, %v7985
      %v8082 = vmax.f32 %v7890, %v7986
      %v8083 = vmax.f32 %v7891, %v7987
      %v8084 = vmax.f32 %v7892, %v7988
      %v8085 = vmax.f32 %v7893, %v7989
      %v8086 = vmax.f32 %v7894, %v7990
      %v8087 = vmax.f32 %v7895, %v7991
      %v8088 = vmax.f32 %v7896, %v7992
      %v8089 = vmax.f32 %v7897, %v7993
      %v8090 = vmax.f32 %v7898, %v7994
      %v8091 = vmax.f32 %v7899, %v7995
      %v8092 = vmax.f32 %v7900, %v7996
      %v8093 = vmax.f32 %v7901, %v7997
      %v8094 = vmax.f32 %v7902, %v7998
      %v8095 = vmax.f32 %v7903, %v7999
      %v8096 = vmax.f32 %v7904, %v8000
      %v8097 = vmax.f32 %v7905, %v8001
      %v8098 = vmax.f32 %v7906, %v8002
      %v8099 = vmax.f32 %v7907, %v8003
      %v8100 = vmax.f32 %v7908, %v8004
      %v8101 = vmax.f32 %v7909, %v8005
      %v8102 = vmax.f32 %v7910, %v8006
      %v8103 = vmax.f32 %v7911, %v8007
      %v8104 = vmax.f32 %v7912, %v8008
      %v8105 = vmax.f32 %v7913, %v8009
      %v8106 = vmax.f32 %v7914, %v8010
      %v8107 = vmax.f32 %v7915, %v8011
      %v8108 = vmax.f32 %v7916, %v8012
      %v8109 = vmax.f32 %v7917, %v8013
      %v8110 = vmax.f32 %v7918, %v8014
      %v8111 = vmax.f32 %v7919, %v8015
      %v8112 = vmax.f32 %v7920, %v8016
      %v8113 = vmax.f32 %v7921, %v8017
      %v8114 = vmax.f32 %v7922, %v8018
      %v8115 = vmax.f32 %v7923, %v8019
      %v8116 = vmax.f32 %v7924, %v8020
      %v8117 = vmax.f32 %v7925, %v8021
      %v8118 = vmax.f32 %v7926, %v8022
      %v8119 = vmax.f32 %v7927, %v8023
      %v8120 = vmax.f32 %v7928, %v8024
      %v8121 = vmax.f32 %v7929, %v8025
      %v8122 = vmax.f32 %v7930, %v8026
      %v8123 = vmax.f32 %v7931, %v8027
      %v8124 = vmax.f32 %v7932, %v8028
      %v8125 = vmax.f32 %v7933, %v8029
      %v8126 = vmax.f32 %v7934, %v8030
      %v8127 = vmax.f32 %v7935, %v8031
      %v8128 = vmax.f32 %v7936, %v8032
      %v8129 = vmax.f32 %v7937, %v8033
      %v8130 = vmax.f32 %v7938, %v8034
      %v8131 = vmax.f32 %v7939, %v8035
      %v8132 = vmax.f32 %v7940, %v8036
      %v8133 = vmax.f32 %v7941, %v8037
      %v8134 = vmax.f32 %v7942, %v8038
      %v8135 = vmax.f32 %v7943, %v8039
      %v8136 = vmax.f32 %v7944, %v8040
      %v8137 = vmax.f32 %v7945, %v8041
      %v8138 = vmax.f32 %v7946, %v8042
      %v8139 = vmax.f32 %v7947, %v8043
      %v8140 = vmax.f32 %v7948, %v8044
      %v8141 = vmax.f32 %v7949, %v8045
      %v8142 = vmax.f32 %v7950, %v8046
      %v8143 = vmax.f32 %v7951, %v8047
      %v8144 = vmax.f32 %v7952, %v8048
      %v8145 = vmax.f32 %v7953, %v8049
      %v8146 = vld [vmem:[%s2] sm:$0x1]
      %v8148 = vlaneseq
      %v8149 = vshrl.u32 %v8148, 7
      %v8150 = vsub.s32 0, %v8149
      %v8151 = vrot.slane %v8146, %v8150
      %v8153 = vadd.f32 %v8050, %v8151
      %v8154 = vadd.f32 %v8051, %v8151
      %v8155 = vadd.f32 %v8052, %v8151
      %v8156 = vadd.f32 %v8053, %v8151
      %v8157 = vadd.f32 %v8054, %v8151
      %v8158 = vadd.f32 %v8055, %v8151
      %v8159 = vadd.f32 %v8056, %v8151
      %v8160 = vadd.f32 %v8057, %v8151
      %v8161 = vadd.f32 %v8058, %v8151
      %v8162 = vadd.f32 %v8059, %v8151
      %v8163 = vadd.f32 %v8060, %v8151
      %v8164 = vadd.f32 %v8061, %v8151
      %v8165 = vadd.f32 %v8062, %v8151
      %v8166 = vadd.f32 %v8063, %v8151
      %v8167 = vadd.f32 %v8064, %v8151
      %v8168 = vadd.f32 %v8065, %v8151
      %v8169 = vadd.f32 %v8066, %v8151
      %v8170 = vadd.f32 %v8067, %v8151
      %v8171 = vadd.f32 %v8068, %v8151
      %v8172 = vadd.f32 %v8069, %v8151
      %v8173 = vadd.f32 %v8070, %v8151
      %v8174 = vadd.f32 %v8071, %v8151
      %v8175 = vadd.f32 %v8072, %v8151
      %v8176 = vadd.f32 %v8073, %v8151
      %v8177 = vadd.f32 %v8074, %v8151
      %v8178 = vadd.f32 %v8075, %v8151
      %v8179 = vadd.f32 %v8076, %v8151
      %v8180 = vadd.f32 %v8077, %v8151
      %v8181 = vadd.f32 %v8078, %v8151
      %v8182 = vadd.f32 %v8079, %v8151
      %v8183 = vadd.f32 %v8080, %v8151
      %v8184 = vadd.f32 %v8081, %v8151
      %v8185 = vadd.f32 %v8082, %v8151
      %v8186 = vadd.f32 %v8083, %v8151
      %v8187 = vadd.f32 %v8084, %v8151
      %v8188 = vadd.f32 %v8085, %v8151
      %v8189 = vadd.f32 %v8086, %v8151
      %v8190 = vadd.f32 %v8087, %v8151
      %v8191 = vadd.f32 %v8088, %v8151
      %v8192 = vadd.f32 %v8089, %v8151
      %v8193 = vadd.f32 %v8090, %v8151
      %v8194 = vadd.f32 %v8091, %v8151
      %v8195 = vadd.f32 %v8092, %v8151
      %v8196 = vadd.f32 %v8093, %v8151
      %v8197 = vadd.f32 %v8094, %v8151
      %v8198 = vadd.f32 %v8095, %v8151
      %v8199 = vadd.f32 %v8096, %v8151
      %v8200 = vadd.f32 %v8097, %v8151
      %v8201 = vadd.f32 %v8098, %v8151
      %v8202 = vadd.f32 %v8099, %v8151
      %v8203 = vadd.f32 %v8100, %v8151
      %v8204 = vadd.f32 %v8101, %v8151
      %v8205 = vadd.f32 %v8102, %v8151
      %v8206 = vadd.f32 %v8103, %v8151
      %v8207 = vadd.f32 %v8104, %v8151
      %v8208 = vadd.f32 %v8105, %v8151
      %v8209 = vadd.f32 %v8106, %v8151
      %v8210 = vadd.f32 %v8107, %v8151
      %v8211 = vadd.f32 %v8108, %v8151
      %v8212 = vadd.f32 %v8109, %v8151
      %v8213 = vadd.f32 %v8110, %v8151
      %v8214 = vadd.f32 %v8111, %v8151
      %v8215 = vadd.f32 %v8112, %v8151
      %v8216 = vadd.f32 %v8113, %v8151
      %v8217 = vadd.f32 %v8114, %v8151
      %v8218 = vadd.f32 %v8115, %v8151
      %v8219 = vadd.f32 %v8116, %v8151
      %v8220 = vadd.f32 %v8117, %v8151
      %v8221 = vadd.f32 %v8118, %v8151
      %v8222 = vadd.f32 %v8119, %v8151
      %v8223 = vadd.f32 %v8120, %v8151
      %v8224 = vadd.f32 %v8121, %v8151
      %v8225 = vadd.f32 %v8122, %v8151
      %v8226 = vadd.f32 %v8123, %v8151
      %v8227 = vadd.f32 %v8124, %v8151
      %v8228 = vadd.f32 %v8125, %v8151
      %v8229 = vadd.f32 %v8126, %v8151
      %v8230 = vadd.f32 %v8127, %v8151
      %v8231 = vadd.f32 %v8128, %v8151
      %v8232 = vadd.f32 %v8129, %v8151
      %v8233 = vadd.f32 %v8130, %v8151
      %v8234 = vadd.f32 %v8131, %v8151
      %v8235 = vadd.f32 %v8132, %v8151
      %v8236 = vadd.f32 %v8133, %v8151
      %v8237 = vadd.f32 %v8134, %v8151
      %v8238 = vadd.f32 %v8135, %v8151
      %v8239 = vadd.f32 %v8136, %v8151
      %v8240 = vadd.f32 %v8137, %v8151
      %v8241 = vadd.f32 %v8138, %v8151
      %v8242 = vadd.f32 %v8139, %v8151
      %v8243 = vadd.f32 %v8140, %v8151
      %v8244 = vadd.f32 %v8141, %v8151
      %v8245 = vadd.f32 %v8142, %v8151
      %v8246 = vadd.f32 %v8143, %v8151
      %v8247 = vadd.f32 %v8144, %v8151
      %v8248 = vadd.f32 %v8145, %v8151
      %v8249 = vmax.f32 %v8153, 0.0
      %v8250 = vmax.f32 %v8154, 0.0
      %v8251 = vmax.f32 %v8155, 0.0
      %v8252 = vmax.f32 %v8156, 0.0
      %v8253 = vmax.f32 %v8157, 0.0
      %v8254 = vmax.f32 %v8158, 0.0
      %v8255 = vmax.f32 %v8159, 0.0
      %v8256 = vmax.f32 %v8160, 0.0
      %v8257 = vmax.f32 %v8161, 0.0
      %v8258 = vmax.f32 %v8162, 0.0
      %v8259 = vmax.f32 %v8163, 0.0
      %v8260 = vmax.f32 %v8164, 0.0
      %v8261 = vmax.f32 %v8165, 0.0
      %v8262 = vmax.f32 %v8166, 0.0
      %v8263 = vmax.f32 %v8167, 0.0
      %v8264 = vmax.f32 %v8168, 0.0
      %v8265 = vmax.f32 %v8169, 0.0
      %v8266 = vmax.f32 %v8170, 0.0
      %v8267 = vmax.f32 %v8171, 0.0
      %v8268 = vmax.f32 %v8172, 0.0
      %v8269 = vmax.f32 %v8173, 0.0
      %v8270 = vmax.f32 %v8174, 0.0
      %v8271 = vmax.f32 %v8175, 0.0
      %v8272 = vmax.f32 %v8176, 0.0
      %v8273 = vmax.f32 %v8177, 0.0
      %v8274 = vmax.f32 %v8178, 0.0
      %v8275 = vmax.f32 %v8179, 0.0
      %v8276 = vmax.f32 %v8180, 0.0
      %v8277 = vmax.f32 %v8181, 0.0
      %v8278 = vmax.f32 %v8182, 0.0
      %v8279 = vmax.f32 %v8183, 0.0
      %v8280 = vmax.f32 %v8184, 0.0
      %v8281 = vmax.f32 %v8185, 0.0
      %v8282 = vmax.f32 %v8186, 0.0
      %v8283 = vmax.f32 %v8187, 0.0
      %v8284 = vmax.f32 %v8188, 0.0
      %v8285 = vmax.f32 %v8189, 0.0
      %v8286 = vmax.f32 %v8190, 0.0
      %v8287 = vmax.f32 %v8191, 0.0
      %v8288 = vmax.f32 %v8192, 0.0
      %v8289 = vmax.f32 %v8193, 0.0
      %v8290 = vmax.f32 %v8194, 0.0
      %v8291 = vmax.f32 %v8195, 0.0
      %v8292 = vmax.f32 %v8196, 0.0
      %v8293 = vmax.f32 %v8197, 0.0
      %v8294 = vmax.f32 %v8198, 0.0
      %v8295 = vmax.f32 %v8199, 0.0
      %v8296 = vmax.f32 %v8200, 0.0
      %v8297 = vmax.f32 %v8201, 0.0
      %v8298 = vmax.f32 %v8202, 0.0
      %v8299 = vmax.f32 %v8203, 0.0
      %v8300 = vmax.f32 %v8204, 0.0
      %v8301 = vmax.f32 %v8205, 0.0
      %v8302 = vmax.f32 %v8206, 0.0
      %v8303 = vmax.f32 %v8207, 0.0
      %v8304 = vmax.f32 %v8208, 0.0
      %v8305 = vmax.f32 %v8209, 0.0
      %v8306 = vmax.f32 %v8210, 0.0
      %v8307 = vmax.f32 %v8211, 0.0
      %v8308 = vmax.f32 %v8212, 0.0
      %v8309 = vmax.f32 %v8213, 0.0
      %v8310 = vmax.f32 %v8214, 0.0
      %v8311 = vmax.f32 %v8215, 0.0
      %v8312 = vmax.f32 %v8216, 0.0
      %v8313 = vmax.f32 %v8217, 0.0
      %v8314 = vmax.f32 %v8218, 0.0
      %v8315 = vmax.f32 %v8219, 0.0
      %v8316 = vmax.f32 %v8220, 0.0
      %v8317 = vmax.f32 %v8221, 0.0
      %v8318 = vmax.f32 %v8222, 0.0
      %v8319 = vmax.f32 %v8223, 0.0
      %v8320 = vmax.f32 %v8224, 0.0
      %v8321 = vmax.f32 %v8225, 0.0
      %v8322 = vmax.f32 %v8226, 0.0
      %v8323 = vmax.f32 %v8227, 0.0
      %v8324 = vmax.f32 %v8228, 0.0
      %v8325 = vmax.f32 %v8229, 0.0
      %v8326 = vmax.f32 %v8230, 0.0
      %v8327 = vmax.f32 %v8231, 0.0
      %v8328 = vmax.f32 %v8232, 0.0
      %v8329 = vmax.f32 %v8233, 0.0
      %v8330 = vmax.f32 %v8234, 0.0
      %v8331 = vmax.f32 %v8235, 0.0
      %v8332 = vmax.f32 %v8236, 0.0
      %v8333 = vmax.f32 %v8237, 0.0
      %v8334 = vmax.f32 %v8238, 0.0
      %v8335 = vmax.f32 %v8239, 0.0
      %v8336 = vmax.f32 %v8240, 0.0
      %v8337 = vmax.f32 %v8241, 0.0
      %v8338 = vmax.f32 %v8242, 0.0
      %v8339 = vmax.f32 %v8243, 0.0
      %v8340 = vmax.f32 %v8244, 0.0
      %v8341 = vmax.f32 %v8245, 0.0
      %v8342 = vmax.f32 %v8246, 0.0
      %v8343 = vmax.f32 %v8247, 0.0
      %v8344 = vmax.f32 %v8248, 0.0
      %v8345 = vpack.c.bf16 %v8250, %v8249
      %v8346 = vpack.c.bf16 %v8298, %v8297
      %v8347 = vpack.c.bf16 %v8258, %v8257
      %v8348 = vpack.c.bf16 %v8306, %v8305
      %v8349 = vpack.c.bf16 %v8266, %v8265
      %v8350 = vpack.c.bf16 %v8314, %v8313
      %v8351 = vpack.c.bf16 %v8252, %v8251
      %v8352 = vpack.c.bf16 %v8300, %v8299
      %v8353 = vpack.c.bf16 %v8260, %v8259
      %v8354 = vpack.c.bf16 %v8308, %v8307
      %v8355 = vpack.c.bf16 %v8268, %v8267
      %v8356 = vpack.c.bf16 %v8316, %v8315
      %v8357 = vpack.c.bf16 %v8254, %v8253
      %v8358 = vpack.c.bf16 %v8302, %v8301
      %v8359 = vpack.c.bf16 %v8262, %v8261
      %v8360 = vpack.c.bf16 %v8310, %v8309
      %v8361 = vpack.c.bf16 %v8270, %v8269
      %v8362 = vpack.c.bf16 %v8318, %v8317
      %v8363 = vpack.c.bf16 %v8256, %v8255
      %v8364 = vpack.c.bf16 %v8304, %v8303
      %v8365 = vpack.c.bf16 %v8264, %v8263
      %v8366 = vpack.c.bf16 %v8312, %v8311
      %v8367 = vpack.c.bf16 %v8272, %v8271
      %v8368 = vpack.c.bf16 %v8320, %v8319
      %v8369 = vpack.c.bf16 %v8274, %v8273
      %v8370 = vpack.c.bf16 %v8322, %v8321
      %v8371 = vpack.c.bf16 %v8276, %v8275
      %v8372 = vpack.c.bf16 %v8324, %v8323
      %v8373 = vpack.c.bf16 %v8278, %v8277
      %v8374 = vpack.c.bf16 %v8326, %v8325
      %v8375 = vpack.c.bf16 %v8280, %v8279
      %v8376 = vpack.c.bf16 %v8328, %v8327
      %v8377 = vpack.c.bf16 %v8282, %v8281
      %v8378 = vpack.c.bf16 %v8330, %v8329
      %v8379 = vpack.c.bf16 %v8284, %v8283
      %v8380 = vpack.c.bf16 %v8332, %v8331
      %v8381 = vpack.c.bf16 %v8286, %v8285
      %v8382 = vpack.c.bf16 %v8334, %v8333
      %v8383 = vpack.c.bf16 %v8288, %v8287
      %v8384 = vpack.c.bf16 %v8336, %v8335
      %v8385 = vpack.c.bf16 %v8290, %v8289
      %v8386 = vpack.c.bf16 %v8338, %v8337
      %v8387 = vpack.c.bf16 %v8292, %v8291
      %v8388 = vpack.c.bf16 %v8340, %v8339
      %v8389 = vpack.c.bf16 %v8294, %v8293
      %v8390 = vpack.c.bf16 %v8342, %v8341
      %v8391 = vpack.c.bf16 %v8296, %v8295
      %v8392 = vpack.c.bf16 %v8344, %v8343
      %v8393 = vld [vmem:[%s3] sm:$0xff]
      %v8394 = vld [vmem:[%s3 + $0x8] sm:$0xff]
      %v8395 = vld [vmem:[%s3 + $0x10] sm:$0xff]
      %v8396 = vld [vmem:[%s3 + $0x18] sm:$0xff]
      %v8397 = vld [vmem:[%s3 + $0x20] sm:$0xff]
      %v8398 = vld [vmem:[%s3 + $0x28] sm:$0xff]
      %v8399 = vld [vmem:[%s3 + $0x30] sm:$0xff]
      %v8400 = vld [vmem:[%s3 + $0x38] sm:$0xff]
      %v8401 = vld [vmem:[%s3 + $0x40] sm:$0xff]
      %v8402 = vld [vmem:[%s3 + $0x48] sm:$0xff]
      %v8403 = vld [vmem:[%s3 + $0x50] sm:$0xff]
      %v8404 = vld [vmem:[%s3 + $0x58] sm:$0xff]
      %v8405 = vld [vmem:[%s3 + $0x60] sm:$0xff]
      %v8406 = vld [vmem:[%s3 + $0x68] sm:$0xff]
      %v8407 = vld [vmem:[%s3 + $0x70] sm:$0xff]
      %v8408 = vld [vmem:[%s3 + $0x78] sm:$0xff]
      %v8409 = vld [vmem:[%s3 + $0x80] sm:$0xff]
      %v8410 = vld [vmem:[%s3 + $0x88] sm:$0xff]
      %v8411 = vld [vmem:[%s3 + $0x90] sm:$0xff]
      %v8412 = vld [vmem:[%s3 + $0x98] sm:$0xff]
      %v8413 = vld [vmem:[%s3 + $0xa0] sm:$0xff]
      %v8414 = vld [vmem:[%s3 + $0xa8] sm:$0xff]
      %v8415 = vld [vmem:[%s3 + $0xb0] sm:$0xff]
      %v8416 = vld [vmem:[%s3 + $0xb8] sm:$0xff]
      %v8417 = vld [vmem:[%s3 + $0xc0] sm:$0xff]
      %v8418 = vld [vmem:[%s3 + $0xc8] sm:$0xff]
      %v8419 = vld [vmem:[%s3 + $0xd0] sm:$0xff]
      %v8420 = vld [vmem:[%s3 + $0xd8] sm:$0xff]
      %v8421 = vld [vmem:[%s3 + $0xe0] sm:$0xff]
      %v8422 = vld [vmem:[%s3 + $0xe8] sm:$0xff]
      %v8423 = vld [vmem:[%s3 + $0xf0] sm:$0xff]
      %v8424 = vld [vmem:[%s3 + $0xf8] sm:$0xff]
      %v8425 = vld [vmem:[%s3 + $0x100] sm:$0xff]
      %v8426 = vld [vmem:[%s3 + $0x108] sm:$0xff]
      %v8427 = vld [vmem:[%s3 + $0x110] sm:$0xff]
      %v8428 = vld [vmem:[%s3 + $0x118] sm:$0xff]
      %v8429 = vld [vmem:[%s3 + $0x120] sm:$0xff]
      %v8430 = vld [vmem:[%s3 + $0x128] sm:$0xff]
      %v8431 = vld [vmem:[%s3 + $0x130] sm:$0xff]
      %v8432 = vld [vmem:[%s3 + $0x138] sm:$0xff]
      %v8433 = vld [vmem:[%s3 + $0x140] sm:$0xff]
      %v8434 = vld [vmem:[%s3 + $0x148] sm:$0xff]
      %v8435 = vld [vmem:[%s3 + $0x150] sm:$0xff]
      %v8436 = vld [vmem:[%s3 + $0x158] sm:$0xff]
      %v8437 = vld [vmem:[%s3 + $0x160] sm:$0xff]
      %v8438 = vld [vmem:[%s3 + $0x168] sm:$0xff]
      %v8439 = vld [vmem:[%s3 + $0x170] sm:$0xff]
      %v8440 = vld [vmem:[%s3 + $0x178] sm:$0xff]
      %v8441 = vld [vmem:[%s3 + $0x180] sm:$0xff]
      %v8442 = vld [vmem:[%s3 + $0x188] sm:$0xff]
      %v8443 = vld [vmem:[%s3 + $0x190] sm:$0xff]
      %v8444 = vld [vmem:[%s3 + $0x198] sm:$0xff]
      %v8445 = vld [vmem:[%s3 + $0x1a0] sm:$0xff]
      %v8446 = vld [vmem:[%s3 + $0x1a8] sm:$0xff]
      %v8447 = vld [vmem:[%s3 + $0x1b0] sm:$0xff]
      %v8448 = vld [vmem:[%s3 + $0x1b8] sm:$0xff]
      %v8449 = vld [vmem:[%s3 + $0x1c0] sm:$0xff]
      %v8450 = vld [vmem:[%s3 + $0x1c8] sm:$0xff]
      %v8451 = vld [vmem:[%s3 + $0x1d0] sm:$0xff]
      %v8452 = vld [vmem:[%s3 + $0x1d8] sm:$0xff]
      %v8453 = vld [vmem:[%s3 + $0x1e0] sm:$0xff]
      %v8454 = vld [vmem:[%s3 + $0x1e8] sm:$0xff]
      %v8455 = vld [vmem:[%s3 + $0x1f0] sm:$0xff]
      %v8456 = vld [vmem:[%s3 + $0x1f8] sm:$0xff]
      %v8457 = vld [vmem:[%s3 + $0x200] sm:$0xff]
      %v8458 = vld [vmem:[%s3 + $0x208] sm:$0xff]
      %v8459 = vld [vmem:[%s3 + $0x210] sm:$0xff]
      %v8460 = vld [vmem:[%s3 + $0x218] sm:$0xff]
      %v8461 = vld [vmem:[%s3 + $0x220] sm:$0xff]
      %v8462 = vld [vmem:[%s3 + $0x228] sm:$0xff]
      %v8463 = vld [vmem:[%s3 + $0x230] sm:$0xff]
      %v8464 = vld [vmem:[%s3 + $0x238] sm:$0xff]
      %v8465 = vld [vmem:[%s3 + $0x240] sm:$0xff]
      %v8466 = vld [vmem:[%s3 + $0x248] sm:$0xff]
      %v8467 = vld [vmem:[%s3 + $0x250] sm:$0xff]
      %v8468 = vld [vmem:[%s3 + $0x258] sm:$0xff]
      %v8469 = vld [vmem:[%s3 + $0x260] sm:$0xff]
      %v8470 = vld [vmem:[%s3 + $0x268] sm:$0xff]
      %v8471 = vld [vmem:[%s3 + $0x270] sm:$0xff]
      %v8472 = vld [vmem:[%s3 + $0x278] sm:$0xff]
      %v8473 = vld [vmem:[%s3 + $0x280] sm:$0xff]
      %v8474 = vld [vmem:[%s3 + $0x288] sm:$0xff]
      %v8475 = vld [vmem:[%s3 + $0x290] sm:$0xff]
      %v8476 = vld [vmem:[%s3 + $0x298] sm:$0xff]
      %v8477 = vld [vmem:[%s3 + $0x2a0] sm:$0xff]
      %v8478 = vld [vmem:[%s3 + $0x2a8] sm:$0xff]
      %v8479 = vld [vmem:[%s3 + $0x2b0] sm:$0xff]
      %v8480 = vld [vmem:[%s3 + $0x2b8] sm:$0xff]
      %v8481 = vld [vmem:[%s3 + $0x2c0] sm:$0xff]
      %v8482 = vld [vmem:[%s3 + $0x2c8] sm:$0xff]
      %v8483 = vld [vmem:[%s3 + $0x2d0] sm:$0xff]
      %v8484 = vld [vmem:[%s3 + $0x2d8] sm:$0xff]
      %v8485 = vld [vmem:[%s3 + $0x2e0] sm:$0xff]
      %v8486 = vld [vmem:[%s3 + $0x2e8] sm:$0xff]
      %v8487 = vld [vmem:[%s3 + $0x2f0] sm:$0xff]
      %v8488 = vld [vmem:[%s3 + $0x2f8] sm:$0xff]
      %v8489 = vld [vmem:[%s3 + $0x300] sm:$0xff]
      %v8490 = vld [vmem:[%s3 + $0x308] sm:$0xff]
      %v8491 = vld [vmem:[%s3 + $0x310] sm:$0xff]
      %v8492 = vld [vmem:[%s3 + $0x318] sm:$0xff]
      %v8493 = vld [vmem:[%s3 + $0x320] sm:$0xff]
      %v8494 = vld [vmem:[%s3 + $0x328] sm:$0xff]
      %v8495 = vld [vmem:[%s3 + $0x330] sm:$0xff]
      %v8496 = vld [vmem:[%s3 + $0x338] sm:$0xff]
      %v8497 = vld [vmem:[%s3 + $0x340] sm:$0xff]
      %v8498 = vld [vmem:[%s3 + $0x348] sm:$0xff]
      %v8499 = vld [vmem:[%s3 + $0x350] sm:$0xff]
      %v8500 = vld [vmem:[%s3 + $0x358] sm:$0xff]
      %v8501 = vld [vmem:[%s3 + $0x360] sm:$0xff]
      %v8502 = vld [vmem:[%s3 + $0x368] sm:$0xff]
      %v8503 = vld [vmem:[%s3 + $0x370] sm:$0xff]
      %v8504 = vld [vmem:[%s3 + $0x378] sm:$0xff]
      %v8505 = vld [vmem:[%s3 + $0x380] sm:$0xff]
      %v8506 = vld [vmem:[%s3 + $0x388] sm:$0xff]
      %v8507 = vld [vmem:[%s3 + $0x390] sm:$0xff]
      %v8508 = vld [vmem:[%s3 + $0x398] sm:$0xff]
      %v8509 = vld [vmem:[%s3 + $0x3a0] sm:$0xff]
      %v8510 = vld [vmem:[%s3 + $0x3a8] sm:$0xff]
      %v8511 = vld [vmem:[%s3 + $0x3b0] sm:$0xff]
      %v8512 = vld [vmem:[%s3 + $0x3b8] sm:$0xff]
      %v8513 = vld [vmem:[%s3 + $0x3c0] sm:$0xff]
      %v8514 = vld [vmem:[%s3 + $0x3c8] sm:$0xff]
      %v8515 = vld [vmem:[%s3 + $0x3d0] sm:$0xff]
      %v8516 = vld [vmem:[%s3 + $0x3d8] sm:$0xff]
      %v8517 = vld [vmem:[%s3 + $0x3e0] sm:$0xff]
      %v8518 = vld [vmem:[%s3 + $0x3e8] sm:$0xff]
      %v8519 = vld [vmem:[%s3 + $0x3f0] sm:$0xff]
      %v8520 = vld [vmem:[%s3 + $0x3f8] sm:$0xff]
      %v8521 = vld [vmem:[%s3 + $0x400] sm:$0xff]
      %v8522 = vld [vmem:[%s3 + $0x408] sm:$0xff]
      %v8523 = vld [vmem:[%s3 + $0x410] sm:$0xff]
      %v8524 = vld [vmem:[%s3 + $0x418] sm:$0xff]
      %v8525 = vld [vmem:[%s3 + $0x420] sm:$0xff]
      %v8526 = vld [vmem:[%s3 + $0x428] sm:$0xff]
      %v8527 = vld [vmem:[%s3 + $0x430] sm:$0xff]
      %v8528 = vld [vmem:[%s3 + $0x438] sm:$0xff]
      %v8529 = vld [vmem:[%s3 + $0x440] sm:$0xff]
      %v8530 = vld [vmem:[%s3 + $0x448] sm:$0xff]
      %v8531 = vld [vmem:[%s3 + $0x450] sm:$0xff]
      %v8532 = vld [vmem:[%s3 + $0x458] sm:$0xff]
      %v8533 = vld [vmem:[%s3 + $0x460] sm:$0xff]
      %v8534 = vld [vmem:[%s3 + $0x468] sm:$0xff]
      %v8535 = vld [vmem:[%s3 + $0x470] sm:$0xff]
      %v8536 = vld [vmem:[%s3 + $0x478] sm:$0xff]
      %v8537 = vld [vmem:[%s3 + $0x480] sm:$0xff]
      %v8538 = vld [vmem:[%s3 + $0x488] sm:$0xff]
      %v8539 = vld [vmem:[%s3 + $0x490] sm:$0xff]
      %v8540 = vld [vmem:[%s3 + $0x498] sm:$0xff]
      %v8541 = vld [vmem:[%s3 + $0x4a0] sm:$0xff]
      %v8542 = vld [vmem:[%s3 + $0x4a8] sm:$0xff]
      %v8543 = vld [vmem:[%s3 + $0x4b0] sm:$0xff]
      %v8544 = vld [vmem:[%s3 + $0x4b8] sm:$0xff]
      %v8545 = vld [vmem:[%s3 + $0x4c0] sm:$0xff]
      %v8546 = vld [vmem:[%s3 + $0x4c8] sm:$0xff]
      %v8547 = vld [vmem:[%s3 + $0x4d0] sm:$0xff]
      %v8548 = vld [vmem:[%s3 + $0x4d8] sm:$0xff]
      %v8549 = vld [vmem:[%s3 + $0x4e0] sm:$0xff]
      %v8550 = vld [vmem:[%s3 + $0x4e8] sm:$0xff]
      %v8551 = vld [vmem:[%s3 + $0x4f0] sm:$0xff]
      %v8552 = vld [vmem:[%s3 + $0x4f8] sm:$0xff]
      %v8553 = vld [vmem:[%s3 + $0x500] sm:$0xff]
      %v8554 = vld [vmem:[%s3 + $0x508] sm:$0xff]
      %v8555 = vld [vmem:[%s3 + $0x510] sm:$0xff]
      %v8556 = vld [vmem:[%s3 + $0x518] sm:$0xff]
      %v8557 = vld [vmem:[%s3 + $0x520] sm:$0xff]
      %v8558 = vld [vmem:[%s3 + $0x528] sm:$0xff]
      %v8559 = vld [vmem:[%s3 + $0x530] sm:$0xff]
      %v8560 = vld [vmem:[%s3 + $0x538] sm:$0xff]
      %v8561 = vld [vmem:[%s3 + $0x540] sm:$0xff]
      %v8562 = vld [vmem:[%s3 + $0x548] sm:$0xff]
      %v8563 = vld [vmem:[%s3 + $0x550] sm:$0xff]
      %v8564 = vld [vmem:[%s3 + $0x558] sm:$0xff]
      %v8565 = vld [vmem:[%s3 + $0x560] sm:$0xff]
      %v8566 = vld [vmem:[%s3 + $0x568] sm:$0xff]
      %v8567 = vld [vmem:[%s3 + $0x570] sm:$0xff]
      %v8568 = vld [vmem:[%s3 + $0x578] sm:$0xff]
      %v8569 = vld [vmem:[%s3 + $0x580] sm:$0xff]
      %v8570 = vld [vmem:[%s3 + $0x588] sm:$0xff]
      %v8571 = vld [vmem:[%s3 + $0x590] sm:$0xff]
      %v8572 = vld [vmem:[%s3 + $0x598] sm:$0xff]
      %v8573 = vld [vmem:[%s3 + $0x5a0] sm:$0xff]
      %v8574 = vld [vmem:[%s3 + $0x5a8] sm:$0xff]
      %v8575 = vld [vmem:[%s3 + $0x5b0] sm:$0xff]
      %v8576 = vld [vmem:[%s3 + $0x5b8] sm:$0xff]
      %v8577 = vld [vmem:[%s3 + $0x5c0] sm:$0xff]
      %v8578 = vld [vmem:[%s3 + $0x5c8] sm:$0xff]
      %v8579 = vld [vmem:[%s3 + $0x5d0] sm:$0xff]
      %v8580 = vld [vmem:[%s3 + $0x5d8] sm:$0xff]
      %v8581 = vld [vmem:[%s3 + $0x5e0] sm:$0xff]
      %v8582 = vld [vmem:[%s3 + $0x5e8] sm:$0xff]
      %v8583 = vld [vmem:[%s3 + $0x5f0] sm:$0xff]
      %v8584 = vld [vmem:[%s3 + $0x5f8] sm:$0xff]
      %v8777 = vunpack.c.l.b16 %v8393
      %v8778 = vunpack.c.h.b16 %v8393
      %v8779 = vunpack.c.l.b16 %v8394
      %v8780 = vunpack.c.h.b16 %v8394
      %v8781 = vunpack.c.l.b16 %v8395
      %v8782 = vunpack.c.h.b16 %v8395
      %v8783 = vunpack.c.l.b16 %v8396
      %v8784 = vunpack.c.h.b16 %v8396
      %v8785 = vunpack.c.l.b16 %v8397
      %v8786 = vunpack.c.h.b16 %v8397
      %v8787 = vunpack.c.l.b16 %v8398
      %v8788 = vunpack.c.h.b16 %v8398
      %v8789 = vunpack.c.l.b16 %v8399
      %v8790 = vunpack.c.h.b16 %v8399
      %v8791 = vunpack.c.l.b16 %v8400
      %v8792 = vunpack.c.h.b16 %v8400
      %v8793 = vunpack.c.l.b16 %v8401
      %v8794 = vunpack.c.h.b16 %v8401
      %v8795 = vunpack.c.l.b16 %v8402
      %v8796 = vunpack.c.h.b16 %v8402
      %v8797 = vunpack.c.l.b16 %v8403
      %v8798 = vunpack.c.h.b16 %v8403
      %v8799 = vunpack.c.l.b16 %v8404
      %v8800 = vunpack.c.h.b16 %v8404
      %v8801 = vunpack.c.l.b16 %v8405
      %v8802 = vunpack.c.h.b16 %v8405
      %v8803 = vunpack.c.l.b16 %v8406
      %v8804 = vunpack.c.h.b16 %v8406
      %v8805 = vunpack.c.l.b16 %v8407
      %v8806 = vunpack.c.h.b16 %v8407
      %v8807 = vunpack.c.l.b16 %v8408
      %v8808 = vunpack.c.h.b16 %v8408
      %v8809 = vunpack.c.l.b16 %v8409
      %v8810 = vunpack.c.h.b16 %v8409
      %v8811 = vunpack.c.l.b16 %v8410
      %v8812 = vunpack.c.h.b16 %v8410
      %v8813 = vunpack.c.l.b16 %v8411
      %v8814 = vunpack.c.h.b16 %v8411
      %v8815 = vunpack.c.l.b16 %v8412
      %v8816 = vunpack.c.h.b16 %v8412
      %v8817 = vunpack.c.l.b16 %v8413
      %v8818 = vunpack.c.h.b16 %v8413
      %v8819 = vunpack.c.l.b16 %v8414
      %v8820 = vunpack.c.h.b16 %v8414
      %v8821 = vunpack.c.l.b16 %v8415
      %v8822 = vunpack.c.h.b16 %v8415
      %v8823 = vunpack.c.l.b16 %v8416
      %v8824 = vunpack.c.h.b16 %v8416
      %v8825 = vunpack.c.l.b16 %v8417
      %v8826 = vunpack.c.h.b16 %v8417
      %v8827 = vunpack.c.l.b16 %v8418
      %v8828 = vunpack.c.h.b16 %v8418
      %v8829 = vunpack.c.l.b16 %v8419
      %v8830 = vunpack.c.h.b16 %v8419
      %v8831 = vunpack.c.l.b16 %v8420
      %v8832 = vunpack.c.h.b16 %v8420
      %v8833 = vunpack.c.l.b16 %v8421
      %v8834 = vunpack.c.h.b16 %v8421
      %v8835 = vunpack.c.l.b16 %v8422
      %v8836 = vunpack.c.h.b16 %v8422
      %v8837 = vunpack.c.l.b16 %v8423
      %v8838 = vunpack.c.h.b16 %v8423
      %v8839 = vunpack.c.l.b16 %v8424
      %v8840 = vunpack.c.h.b16 %v8424
      %v8841 = vunpack.c.l.b16 %v8425
      %v8842 = vunpack.c.h.b16 %v8425
      %v8843 = vunpack.c.l.b16 %v8426
      %v8844 = vunpack.c.h.b16 %v8426
      %v8845 = vunpack.c.l.b16 %v8427
      %v8846 = vunpack.c.h.b16 %v8427
      %v8847 = vunpack.c.l.b16 %v8428
      %v8848 = vunpack.c.h.b16 %v8428
      %v8849 = vunpack.c.l.b16 %v8429
      %v8850 = vunpack.c.h.b16 %v8429
      %v8851 = vunpack.c.l.b16 %v8430
      %v8852 = vunpack.c.h.b16 %v8430
      %v8853 = vunpack.c.l.b16 %v8431
      %v8854 = vunpack.c.h.b16 %v8431
      %v8855 = vunpack.c.l.b16 %v8432
      %v8856 = vunpack.c.h.b16 %v8432
      %v8857 = vunpack.c.l.b16 %v8433
      %v8858 = vunpack.c.h.b16 %v8433
      %v8859 = vunpack.c.l.b16 %v8434
      %v8860 = vunpack.c.h.b16 %v8434
      %v8861 = vunpack.c.l.b16 %v8435
      %v8862 = vunpack.c.h.b16 %v8435
      %v8863 = vunpack.c.l.b16 %v8436
      %v8864 = vunpack.c.h.b16 %v8436
      %v8865 = vunpack.c.l.b16 %v8437
      %v8866 = vunpack.c.h.b16 %v8437
      %v8867 = vunpack.c.l.b16 %v8438
      %v8868 = vunpack.c.h.b16 %v8438
      %v8869 = vunpack.c.l.b16 %v8439
      %v8870 = vunpack.c.h.b16 %v8439
      %v8871 = vunpack.c.l.b16 %v8440
      %v8872 = vunpack.c.h.b16 %v8440
      %v8873 = vunpack.c.l.b16 %v8441
      %v8874 = vunpack.c.h.b16 %v8441
      %v8875 = vunpack.c.l.b16 %v8442
      %v8876 = vunpack.c.h.b16 %v8442
      %v8877 = vunpack.c.l.b16 %v8443
      %v8878 = vunpack.c.h.b16 %v8443
      %v8879 = vunpack.c.l.b16 %v8444
      %v8880 = vunpack.c.h.b16 %v8444
      %v8881 = vunpack.c.l.b16 %v8445
      %v8882 = vunpack.c.h.b16 %v8445
      %v8883 = vunpack.c.l.b16 %v8446
      %v8884 = vunpack.c.h.b16 %v8446
      %v8885 = vunpack.c.l.b16 %v8447
      %v8886 = vunpack.c.h.b16 %v8447
      %v8887 = vunpack.c.l.b16 %v8448
      %v8888 = vunpack.c.h.b16 %v8448
      %v8889 = vunpack.c.l.b16 %v8449
      %v8890 = vunpack.c.h.b16 %v8449
      %v8891 = vunpack.c.l.b16 %v8450
      %v8892 = vunpack.c.h.b16 %v8450
      %v8893 = vunpack.c.l.b16 %v8451
      %v8894 = vunpack.c.h.b16 %v8451
      %v8895 = vunpack.c.l.b16 %v8452
      %v8896 = vunpack.c.h.b16 %v8452
      %v8897 = vunpack.c.l.b16 %v8453
      %v8898 = vunpack.c.h.b16 %v8453
      %v8899 = vunpack.c.l.b16 %v8454
      %v8900 = vunpack.c.h.b16 %v8454
      %v8901 = vunpack.c.l.b16 %v8455
      %v8902 = vunpack.c.h.b16 %v8455
      %v8903 = vunpack.c.l.b16 %v8456
      %v8904 = vunpack.c.h.b16 %v8456
      %v8905 = vunpack.c.l.b16 %v8457
      %v8906 = vunpack.c.h.b16 %v8457
      %v8907 = vunpack.c.l.b16 %v8458
      %v8908 = vunpack.c.h.b16 %v8458
      %v8909 = vunpack.c.l.b16 %v8459
      %v8910 = vunpack.c.h.b16 %v8459
      %v8911 = vunpack.c.l.b16 %v8460
      %v8912 = vunpack.c.h.b16 %v8460
      %v8913 = vunpack.c.l.b16 %v8461
      %v8914 = vunpack.c.h.b16 %v8461
      %v8915 = vunpack.c.l.b16 %v8462
      %v8916 = vunpack.c.h.b16 %v8462
      %v8917 = vunpack.c.l.b16 %v8463
      %v8918 = vunpack.c.h.b16 %v8463
      %v8919 = vunpack.c.l.b16 %v8464
      %v8920 = vunpack.c.h.b16 %v8464
      %v8921 = vunpack.c.l.b16 %v8465
      %v8922 = vunpack.c.h.b16 %v8465
      %v8923 = vunpack.c.l.b16 %v8466
      %v8924 = vunpack.c.h.b16 %v8466
      %v8925 = vunpack.c.l.b16 %v8467
      %v8926 = vunpack.c.h.b16 %v8467
      %v8927 = vunpack.c.l.b16 %v8468
      %v8928 = vunpack.c.h.b16 %v8468
      %v8929 = vunpack.c.l.b16 %v8469
      %v8930 = vunpack.c.h.b16 %v8469
      %v8931 = vunpack.c.l.b16 %v8470
      %v8932 = vunpack.c.h.b16 %v8470
      %v8933 = vunpack.c.l.b16 %v8471
      %v8934 = vunpack.c.h.b16 %v8471
      %v8935 = vunpack.c.l.b16 %v8472
      %v8936 = vunpack.c.h.b16 %v8472
      %v8937 = vunpack.c.l.b16 %v8473
      %v8938 = vunpack.c.h.b16 %v8473
      %v8939 = vunpack.c.l.b16 %v8474
      %v8940 = vunpack.c.h.b16 %v8474
      %v8941 = vunpack.c.l.b16 %v8475
      %v8942 = vunpack.c.h.b16 %v8475
      %v8943 = vunpack.c.l.b16 %v8476
      %v8944 = vunpack.c.h.b16 %v8476
      %v8945 = vunpack.c.l.b16 %v8477
      %v8946 = vunpack.c.h.b16 %v8477
      %v8947 = vunpack.c.l.b16 %v8478
      %v8948 = vunpack.c.h.b16 %v8478
      %v8949 = vunpack.c.l.b16 %v8479
      %v8950 = vunpack.c.h.b16 %v8479
      %v8951 = vunpack.c.l.b16 %v8480
      %v8952 = vunpack.c.h.b16 %v8480
      %v8953 = vunpack.c.l.b16 %v8481
      %v8954 = vunpack.c.h.b16 %v8481
      %v8955 = vunpack.c.l.b16 %v8482
      %v8956 = vunpack.c.h.b16 %v8482
      %v8957 = vunpack.c.l.b16 %v8483
      %v8958 = vunpack.c.h.b16 %v8483
      %v8959 = vunpack.c.l.b16 %v8484
      %v8960 = vunpack.c.h.b16 %v8484
      %v8961 = vunpack.c.l.b16 %v8485
      %v8962 = vunpack.c.h.b16 %v8485
      %v8963 = vunpack.c.l.b16 %v8486
      %v8964 = vunpack.c.h.b16 %v8486
      %v8965 = vunpack.c.l.b16 %v8487
      %v8966 = vunpack.c.h.b16 %v8487
      %v8967 = vunpack.c.l.b16 %v8488
      %v8968 = vunpack.c.h.b16 %v8488
      %v8969 = vunpack.c.l.b16 %v8489
      %v8970 = vunpack.c.h.b16 %v8489
      %v8971 = vunpack.c.l.b16 %v8490
      %v8972 = vunpack.c.h.b16 %v8490
      %v8973 = vunpack.c.l.b16 %v8491
      %v8974 = vunpack.c.h.b16 %v8491
      %v8975 = vunpack.c.l.b16 %v8492
      %v8976 = vunpack.c.h.b16 %v8492
      %v8977 = vunpack.c.l.b16 %v8493
      %v8978 = vunpack.c.h.b16 %v8493
      %v8979 = vunpack.c.l.b16 %v8494
      %v8980 = vunpack.c.h.b16 %v8494
      %v8981 = vunpack.c.l.b16 %v8495
      %v8982 = vunpack.c.h.b16 %v8495
      %v8983 = vunpack.c.l.b16 %v8496
      %v8984 = vunpack.c.h.b16 %v8496
      %v8985 = vunpack.c.l.b16 %v8497
      %v8986 = vunpack.c.h.b16 %v8497
      %v8987 = vunpack.c.l.b16 %v8498
      %v8988 = vunpack.c.h.b16 %v8498
      %v8989 = vunpack.c.l.b16 %v8499
      %v8990 = vunpack.c.h.b16 %v8499
      %v8991 = vunpack.c.l.b16 %v8500
      %v8992 = vunpack.c.h.b16 %v8500
      %v8993 = vunpack.c.l.b16 %v8501
      %v8994 = vunpack.c.h.b16 %v8501
      %v8995 = vunpack.c.l.b16 %v8502
      %v8996 = vunpack.c.h.b16 %v8502
      %v8997 = vunpack.c.l.b16 %v8503
      %v8998 = vunpack.c.h.b16 %v8503
      %v8999 = vunpack.c.l.b16 %v8504
      %v9000 = vunpack.c.h.b16 %v8504
      %v9001 = vunpack.c.l.b16 %v8505
      %v9002 = vunpack.c.h.b16 %v8505
      %v9003 = vunpack.c.l.b16 %v8506
      %v9004 = vunpack.c.h.b16 %v8506
      %v9005 = vunpack.c.l.b16 %v8507
      %v9006 = vunpack.c.h.b16 %v8507
      %v9007 = vunpack.c.l.b16 %v8508
      %v9008 = vunpack.c.h.b16 %v8508
      %v9009 = vunpack.c.l.b16 %v8509
      %v9010 = vunpack.c.h.b16 %v8509
      %v9011 = vunpack.c.l.b16 %v8510
      %v9012 = vunpack.c.h.b16 %v8510
      %v9013 = vunpack.c.l.b16 %v8511
      %v9014 = vunpack.c.h.b16 %v8511
      %v9015 = vunpack.c.l.b16 %v8512
      %v9016 = vunpack.c.h.b16 %v8512
      %v9017 = vunpack.c.l.b16 %v8513
      %v9018 = vunpack.c.h.b16 %v8513
      %v9019 = vunpack.c.l.b16 %v8514
      %v9020 = vunpack.c.h.b16 %v8514
      %v9021 = vunpack.c.l.b16 %v8515
      %v9022 = vunpack.c.h.b16 %v8515
      %v9023 = vunpack.c.l.b16 %v8516
      %v9024 = vunpack.c.h.b16 %v8516
      %v9025 = vunpack.c.l.b16 %v8517
      %v9026 = vunpack.c.h.b16 %v8517
      %v9027 = vunpack.c.l.b16 %v8518
      %v9028 = vunpack.c.h.b16 %v8518
      %v9029 = vunpack.c.l.b16 %v8519
      %v9030 = vunpack.c.h.b16 %v8519
      %v9031 = vunpack.c.l.b16 %v8520
      %v9032 = vunpack.c.h.b16 %v8520
      %v9033 = vunpack.c.l.b16 %v8521
      %v9034 = vunpack.c.h.b16 %v8521
      %v9035 = vunpack.c.l.b16 %v8522
      %v9036 = vunpack.c.h.b16 %v8522
      %v9037 = vunpack.c.l.b16 %v8523
      %v9038 = vunpack.c.h.b16 %v8523
      %v9039 = vunpack.c.l.b16 %v8524
      %v9040 = vunpack.c.h.b16 %v8524
      %v9041 = vunpack.c.l.b16 %v8525
      %v9042 = vunpack.c.h.b16 %v8525
      %v9043 = vunpack.c.l.b16 %v8526
      %v9044 = vunpack.c.h.b16 %v8526
      %v9045 = vunpack.c.l.b16 %v8527
      %v9046 = vunpack.c.h.b16 %v8527
      %v9047 = vunpack.c.l.b16 %v8528
      %v9048 = vunpack.c.h.b16 %v8528
      %v9049 = vunpack.c.l.b16 %v8529
      %v9050 = vunpack.c.h.b16 %v8529
      %v9051 = vunpack.c.l.b16 %v8530
      %v9052 = vunpack.c.h.b16 %v8530
      %v9053 = vunpack.c.l.b16 %v8531
      %v9054 = vunpack.c.h.b16 %v8531
      %v9055 = vunpack.c.l.b16 %v8532
      %v9056 = vunpack.c.h.b16 %v8532
      %v9057 = vunpack.c.l.b16 %v8533
      %v9058 = vunpack.c.h.b16 %v8533
      %v9059 = vunpack.c.l.b16 %v8534
      %v9060 = vunpack.c.h.b16 %v8534
      %v9061 = vunpack.c.l.b16 %v8535
      %v9062 = vunpack.c.h.b16 %v8535
      %v9063 = vunpack.c.l.b16 %v8536
      %v9064 = vunpack.c.h.b16 %v8536
      %v9065 = vunpack.c.l.b16 %v8537
      %v9066 = vunpack.c.h.b16 %v8537
      %v9067 = vunpack.c.l.b16 %v8538
      %v9068 = vunpack.c.h.b16 %v8538
      %v9069 = vunpack.c.l.b16 %v8539
      %v9070 = vunpack.c.h.b16 %v8539
      %v9071 = vunpack.c.l.b16 %v8540
      %v9072 = vunpack.c.h.b16 %v8540
      %v9073 = vunpack.c.l.b16 %v8541
      %v9074 = vunpack.c.h.b16 %v8541
      %v9075 = vunpack.c.l.b16 %v8542
      %v9076 = vunpack.c.h.b16 %v8542
      %v9077 = vunpack.c.l.b16 %v8543
      %v9078 = vunpack.c.h.b16 %v8543
      %v9079 = vunpack.c.l.b16 %v8544
      %v9080 = vunpack.c.h.b16 %v8544
      %v9081 = vunpack.c.l.b16 %v8545
      %v9082 = vunpack.c.h.b16 %v8545
      %v9083 = vunpack.c.l.b16 %v8546
      %v9084 = vunpack.c.h.b16 %v8546
      %v9085 = vunpack.c.l.b16 %v8547
      %v9086 = vunpack.c.h.b16 %v8547
      %v9087 = vunpack.c.l.b16 %v8548
      %v9088 = vunpack.c.h.b16 %v8548
      %v9089 = vunpack.c.l.b16 %v8549
      %v9090 = vunpack.c.h.b16 %v8549
      %v9091 = vunpack.c.l.b16 %v8550
      %v9092 = vunpack.c.h.b16 %v8550
      %v9093 = vunpack.c.l.b16 %v8551
      %v9094 = vunpack.c.h.b16 %v8551
      %v9095 = vunpack.c.l.b16 %v8552
      %v9096 = vunpack.c.h.b16 %v8552
      %v9097 = vunpack.c.l.b16 %v8553
      %v9098 = vunpack.c.h.b16 %v8553
      %v9099 = vunpack.c.l.b16 %v8554
      %v9100 = vunpack.c.h.b16 %v8554
      %v9101 = vunpack.c.l.b16 %v8555
      %v9102 = vunpack.c.h.b16 %v8555
      %v9103 = vunpack.c.l.b16 %v8556
      %v9104 = vunpack.c.h.b16 %v8556
      %v9105 = vunpack.c.l.b16 %v8557
      %v9106 = vunpack.c.h.b16 %v8557
      %v9107 = vunpack.c.l.b16 %v8558
      %v9108 = vunpack.c.h.b16 %v8558
      %v9109 = vunpack.c.l.b16 %v8559
      %v9110 = vunpack.c.h.b16 %v8559
      %v9111 = vunpack.c.l.b16 %v8560
      %v9112 = vunpack.c.h.b16 %v8560
      %v9113 = vunpack.c.l.b16 %v8561
      %v9114 = vunpack.c.h.b16 %v8561
      %v9115 = vunpack.c.l.b16 %v8562
      %v9116 = vunpack.c.h.b16 %v8562
      %v9117 = vunpack.c.l.b16 %v8563
      %v9118 = vunpack.c.h.b16 %v8563
      %v9119 = vunpack.c.l.b16 %v8564
      %v9120 = vunpack.c.h.b16 %v8564
      %v9121 = vunpack.c.l.b16 %v8565
      %v9122 = vunpack.c.h.b16 %v8565
      %v9123 = vunpack.c.l.b16 %v8566
      %v9124 = vunpack.c.h.b16 %v8566
      %v9125 = vunpack.c.l.b16 %v8567
      %v9126 = vunpack.c.h.b16 %v8567
      %v9127 = vunpack.c.l.b16 %v8568
      %v9128 = vunpack.c.h.b16 %v8568
      %v9129 = vunpack.c.l.b16 %v8569
      %v9130 = vunpack.c.h.b16 %v8569
      %v9131 = vunpack.c.l.b16 %v8570
      %v9132 = vunpack.c.h.b16 %v8570
      %v9133 = vunpack.c.l.b16 %v8571
      %v9134 = vunpack.c.h.b16 %v8571
      %v9135 = vunpack.c.l.b16 %v8572
      %v9136 = vunpack.c.h.b16 %v8572
      %v9137 = vunpack.c.l.b16 %v8573
      %v9138 = vunpack.c.h.b16 %v8573
      %v9139 = vunpack.c.l.b16 %v8574
      %v9140 = vunpack.c.h.b16 %v8574
      %v9141 = vunpack.c.l.b16 %v8575
      %v9142 = vunpack.c.h.b16 %v8575
      %v9143 = vunpack.c.l.b16 %v8576
      %v9144 = vunpack.c.h.b16 %v8576
      %v9145 = vunpack.c.l.b16 %v8577
      %v9146 = vunpack.c.h.b16 %v8577
      %v9147 = vunpack.c.l.b16 %v8578
      %v9148 = vunpack.c.h.b16 %v8578
      %v9149 = vunpack.c.l.b16 %v8579
      %v9150 = vunpack.c.h.b16 %v8579
      %v9151 = vunpack.c.l.b16 %v8580
      %v9152 = vunpack.c.h.b16 %v8580
      %v9153 = vunpack.c.l.b16 %v8581
      %v9154 = vunpack.c.h.b16 %v8581
      %v9155 = vunpack.c.l.b16 %v8582
      %v9156 = vunpack.c.h.b16 %v8582
      %v9157 = vunpack.c.l.b16 %v8583
      %v9158 = vunpack.c.h.b16 %v8583
      %v9159 = vunpack.c.l.b16 %v8584
      %v9160 = vunpack.c.h.b16 %v8584
      %v9161 = vpack.c.b16 %v8781, %v8777
      %v9162 = vpack.c.b16 %v8782, %v8778
      %v9163 = vpack.c.b16 %v8783, %v8779
      %v9164 = vpack.c.b16 %v8784, %v8780
      %v9165 = vpack.c.b16 %v8789, %v8785
      %v9166 = vpack.c.b16 %v8790, %v8786
      %v9167 = vpack.c.b16 %v8791, %v8787
      %v9168 = vpack.c.b16 %v8792, %v8788
      %v9169 = vpack.c.b16 %v8797, %v8793
      %v9170 = vpack.c.b16 %v8798, %v8794
      %v9171 = vpack.c.b16 %v8799, %v8795
      %v9172 = vpack.c.b16 %v8800, %v8796
      %v9173 = vpack.c.b16 %v8805, %v8801
      %v9174 = vpack.c.b16 %v8806, %v8802
      %v9175 = vpack.c.b16 %v8807, %v8803
      %v9176 = vpack.c.b16 %v8808, %v8804
      %v9177 = vpack.c.b16 %v8813, %v8809
      %v9178 = vpack.c.b16 %v8814, %v8810
      %v9179 = vpack.c.b16 %v8815, %v8811
      %v9180 = vpack.c.b16 %v8816, %v8812
      %v9181 = vpack.c.b16 %v8821, %v8817
      %v9182 = vpack.c.b16 %v8822, %v8818
      %v9183 = vpack.c.b16 %v8823, %v8819
      %v9184 = vpack.c.b16 %v8824, %v8820
      %v9185 = vpack.c.b16 %v8829, %v8825
      %v9186 = vpack.c.b16 %v8830, %v8826
      %v9187 = vpack.c.b16 %v8831, %v8827
      %v9188 = vpack.c.b16 %v8832, %v8828
      %v9189 = vpack.c.b16 %v8837, %v8833
      %v9190 = vpack.c.b16 %v8838, %v8834
      %v9191 = vpack.c.b16 %v8839, %v8835
      %v9192 = vpack.c.b16 %v8840, %v8836
      %v9193 = vpack.c.b16 %v8845, %v8841
      %v9194 = vpack.c.b16 %v8846, %v8842
      %v9195 = vpack.c.b16 %v8847, %v8843
      %v9196 = vpack.c.b16 %v8848, %v8844
      %v9197 = vpack.c.b16 %v8853, %v8849
      %v9198 = vpack.c.b16 %v8854, %v8850
      %v9199 = vpack.c.b16 %v8855, %v8851
      %v9200 = vpack.c.b16 %v8856, %v8852
      %v9201 = vpack.c.b16 %v8861, %v8857
      %v9202 = vpack.c.b16 %v8862, %v8858
      %v9203 = vpack.c.b16 %v8863, %v8859
      %v9204 = vpack.c.b16 %v8864, %v8860
      %v9205 = vpack.c.b16 %v8869, %v8865
      %v9206 = vpack.c.b16 %v8870, %v8866
      %v9207 = vpack.c.b16 %v8871, %v8867
      %v9208 = vpack.c.b16 %v8872, %v8868
      %v9209 = vpack.c.b16 %v8877, %v8873
      %v9210 = vpack.c.b16 %v8878, %v8874
      %v9211 = vpack.c.b16 %v8879, %v8875
      %v9212 = vpack.c.b16 %v8880, %v8876
      %v9213 = vpack.c.b16 %v8885, %v8881
      %v9214 = vpack.c.b16 %v8886, %v8882
      %v9215 = vpack.c.b16 %v8887, %v8883
      %v9216 = vpack.c.b16 %v8888, %v8884
      %v9217 = vpack.c.b16 %v8893, %v8889
      %v9218 = vpack.c.b16 %v8894, %v8890
      %v9219 = vpack.c.b16 %v8895, %v8891
      %v9220 = vpack.c.b16 %v8896, %v8892
      %v9221 = vpack.c.b16 %v8901, %v8897
      %v9222 = vpack.c.b16 %v8902, %v8898
      %v9223 = vpack.c.b16 %v8903, %v8899
      %v9224 = vpack.c.b16 %v8904, %v8900
      %v9225 = vpack.c.b16 %v8909, %v8905
      %v9226 = vpack.c.b16 %v8910, %v8906
      %v9227 = vpack.c.b16 %v8911, %v8907
      %v9228 = vpack.c.b16 %v8912, %v8908
      %v9229 = vpack.c.b16 %v8917, %v8913
      %v9230 = vpack.c.b16 %v8918, %v8914
      %v9231 = vpack.c.b16 %v8919, %v8915
      %v9232 = vpack.c.b16 %v8920, %v8916
      %v9233 = vpack.c.b16 %v8925, %v8921
      %v9234 = vpack.c.b16 %v8926, %v8922
      %v9235 = vpack.c.b16 %v8927, %v8923
      %v9236 = vpack.c.b16 %v8928, %v8924
      %v9237 = vpack.c.b16 %v8933, %v8929
      %v9238 = vpack.c.b16 %v8934, %v8930
      %v9239 = vpack.c.b16 %v8935, %v8931
      %v9240 = vpack.c.b16 %v8936, %v8932
      %v9241 = vpack.c.b16 %v8941, %v8937
      %v9242 = vpack.c.b16 %v8942, %v8938
      %v9243 = vpack.c.b16 %v8943, %v8939
      %v9244 = vpack.c.b16 %v8944, %v8940
      %v9245 = vpack.c.b16 %v8949, %v8945
      %v9246 = vpack.c.b16 %v8950, %v8946
      %v9247 = vpack.c.b16 %v8951, %v8947
      %v9248 = vpack.c.b16 %v8952, %v8948
      %v9249 = vpack.c.b16 %v8957, %v8953
      %v9250 = vpack.c.b16 %v8958, %v8954
      %v9251 = vpack.c.b16 %v8959, %v8955
      %v9252 = vpack.c.b16 %v8960, %v8956
      %v9253 = vpack.c.b16 %v8965, %v8961
      %v9254 = vpack.c.b16 %v8966, %v8962
      %v9255 = vpack.c.b16 %v8967, %v8963
      %v9256 = vpack.c.b16 %v8968, %v8964
      %v9257 = vpack.c.b16 %v8973, %v8969
      %v9258 = vpack.c.b16 %v8974, %v8970
      %v9259 = vpack.c.b16 %v8975, %v8971
      %v9260 = vpack.c.b16 %v8976, %v8972
      %v9261 = vpack.c.b16 %v8981, %v8977
      %v9262 = vpack.c.b16 %v8982, %v8978
      %v9263 = vpack.c.b16 %v8983, %v8979
      %v9264 = vpack.c.b16 %v8984, %v8980
      %v9265 = vpack.c.b16 %v8989, %v8985
      %v9266 = vpack.c.b16 %v8990, %v8986
      %v9267 = vpack.c.b16 %v8991, %v8987
      %v9268 = vpack.c.b16 %v8992, %v8988
      %v9269 = vpack.c.b16 %v8997, %v8993
      %v9270 = vpack.c.b16 %v8998, %v8994
      %v9271 = vpack.c.b16 %v8999, %v8995
      %v9272 = vpack.c.b16 %v9000, %v8996
      %v9273 = vpack.c.b16 %v9005, %v9001
      %v9274 = vpack.c.b16 %v9006, %v9002
      %v9275 = vpack.c.b16 %v9007, %v9003
      %v9276 = vpack.c.b16 %v9008, %v9004
      %v9277 = vpack.c.b16 %v9013, %v9009
      %v9278 = vpack.c.b16 %v9014, %v9010
      %v9279 = vpack.c.b16 %v9015, %v9011
      %v9280 = vpack.c.b16 %v9016, %v9012
      %v9281 = vpack.c.b16 %v9021, %v9017
      %v9282 = vpack.c.b16 %v9022, %v9018
      %v9283 = vpack.c.b16 %v9023, %v9019
      %v9284 = vpack.c.b16 %v9024, %v9020
      %v9285 = vpack.c.b16 %v9029, %v9025
      %v9286 = vpack.c.b16 %v9030, %v9026
      %v9287 = vpack.c.b16 %v9031, %v9027
      %v9288 = vpack.c.b16 %v9032, %v9028
      %v9289 = vpack.c.b16 %v9037, %v9033
      %v9290 = vpack.c.b16 %v9038, %v9034
      %v9291 = vpack.c.b16 %v9039, %v9035
      %v9292 = vpack.c.b16 %v9040, %v9036
      %v9293 = vpack.c.b16 %v9045, %v9041
      %v9294 = vpack.c.b16 %v9046, %v9042
      %v9295 = vpack.c.b16 %v9047, %v9043
      %v9296 = vpack.c.b16 %v9048, %v9044
      %v9297 = vpack.c.b16 %v9053, %v9049
      %v9298 = vpack.c.b16 %v9054, %v9050
      %v9299 = vpack.c.b16 %v9055, %v9051
      %v9300 = vpack.c.b16 %v9056, %v9052
      %v9301 = vpack.c.b16 %v9061, %v9057
      %v9302 = vpack.c.b16 %v9062, %v9058
      %v9303 = vpack.c.b16 %v9063, %v9059
      %v9304 = vpack.c.b16 %v9064, %v9060
      %v9305 = vpack.c.b16 %v9069, %v9065
      %v9306 = vpack.c.b16 %v9070, %v9066
      %v9307 = vpack.c.b16 %v9071, %v9067
      %v9308 = vpack.c.b16 %v9072, %v9068
      %v9309 = vpack.c.b16 %v9077, %v9073
      %v9310 = vpack.c.b16 %v9078, %v9074
      %v9311 = vpack.c.b16 %v9079, %v9075
      %v9312 = vpack.c.b16 %v9080, %v9076
      %v9313 = vpack.c.b16 %v9085, %v9081
      %v9314 = vpack.c.b16 %v9086, %v9082
      %v9315 = vpack.c.b16 %v9087, %v9083
      %v9316 = vpack.c.b16 %v9088, %v9084
      %v9317 = vpack.c.b16 %v9093, %v9089
      %v9318 = vpack.c.b16 %v9094, %v9090
      %v9319 = vpack.c.b16 %v9095, %v9091
      %v9320 = vpack.c.b16 %v9096, %v9092
      %v9321 = vpack.c.b16 %v9101, %v9097
      %v9322 = vpack.c.b16 %v9102, %v9098
      %v9323 = vpack.c.b16 %v9103, %v9099
      %v9324 = vpack.c.b16 %v9104, %v9100
      %v9325 = vpack.c.b16 %v9109, %v9105
      %v9326 = vpack.c.b16 %v9110, %v9106
      %v9327 = vpack.c.b16 %v9111, %v9107
      %v9328 = vpack.c.b16 %v9112, %v9108
      %v9329 = vpack.c.b16 %v9117, %v9113
      %v9330 = vpack.c.b16 %v9118, %v9114
      %v9331 = vpack.c.b16 %v9119, %v9115
      %v9332 = vpack.c.b16 %v9120, %v9116
      %v9333 = vpack.c.b16 %v9125, %v9121
      %v9334 = vpack.c.b16 %v9126, %v9122
      %v9335 = vpack.c.b16 %v9127, %v9123
      %v9336 = vpack.c.b16 %v9128, %v9124
      %v9337 = vpack.c.b16 %v9133, %v9129
      %v9338 = vpack.c.b16 %v9134, %v9130
      %v9339 = vpack.c.b16 %v9135, %v9131
      %v9340 = vpack.c.b16 %v9136, %v9132
      %v9341 = vpack.c.b16 %v9141, %v9137
      %v9342 = vpack.c.b16 %v9142, %v9138
      %v9343 = vpack.c.b16 %v9143, %v9139
      %v9344 = vpack.c.b16 %v9144, %v9140
      %v9345 = vpack.c.b16 %v9149, %v9145
      %v9346 = vpack.c.b16 %v9150, %v9146
      %v9347 = vpack.c.b16 %v9151, %v9147
      %v9348 = vpack.c.b16 %v9152, %v9148
      %v9349 = vpack.c.b16 %v9157, %v9153
      %v9350 = vpack.c.b16 %v9158, %v9154
      %v9351 = vpack.c.b16 %v9159, %v9155
      %v9352 = vpack.c.b16 %v9160, %v9156
      %9545 = vmatprep.subr.bf16.mxu0 %v9162
      %9546 = vmatpush1.bf16.msra.mxu0 %v9161
      %9547 = vmatprep.subr.bf16.mxu0 %v9166
      %9548 = vmatpush1.bf16.msra.mxu0 %v9165
      %9549 = vmatprep.subr.bf16.mxu0 %v9170
      %9550 = vmatpush1.bf16.msra.mxu0 %v9169
      %9551 = vmatprep.subr.bf16.mxu0 %v9174
      %9552 = vmatpush1.bf16.msra.mxu0 %v9173
      %9553 = vmatprep.subr.bf16.mxu0 %v9178
      %9554 = vmatpush1.bf16.msra.mxu0 %v9177
      %9555 = vmatprep.subr.bf16.mxu0 %v9182
      %9556 = vmatpush1.bf16.msra.mxu0 %v9181
      %9557 = vmatprep.subr.bf16.mxu0 %v9186
      %9558 = vmatpush1.bf16.msra.mxu0 %v9185
      %9559 = vmatprep.subr.bf16.mxu0 %v9190
      %9560 = vmatpush1.bf16.msra.mxu0 %v9189
      %9561 = vmatprep.subr.bf16.mxu0 %v9194
      %9562 = vmatpush1.bf16.msra.mxu0 %v9193
      %9563 = vmatprep.subr.bf16.mxu0 %v9198
      %9564 = vmatpush1.bf16.msra.mxu0 %v9197
      %9565 = vmatprep.subr.bf16.mxu0 %v9202
      %9566 = vmatpush1.bf16.msra.mxu0 %v9201
      %9567 = vmatprep.subr.bf16.mxu0 %v9206
      %9568 = vmatpush1.bf16.msra.mxu0 %v9205
      %9569 = vmatprep.subr.bf16.mxu0 %v9210
      %9570 = vmatpush1.bf16.msra.mxu0 %v9209
      %9571 = vmatprep.subr.bf16.mxu0 %v9214
      %9572 = vmatpush1.bf16.msra.mxu0 %v9213
      %9573 = vmatprep.subr.bf16.mxu0 %v9218
      %9574 = vmatpush1.bf16.msra.mxu0 %v9217
      %9575 = vmatprep.subr.bf16.mxu0 %v9222
      %9576 = vmatpush1.bf16.msra.mxu0 %v9221
      %9577 = vmatprep.mubr.bf16.mxu0 %v8346
      %9578 = vmatmul.mubr.bf16.gmra.mrb[0].mxu0 %v8345
      %v9579 = vpop.f32.mrb[0].mxu0
      %v9580 = vadd.f32 0.0, %v9579
      %v9581 = vpop.f32.mrb[0].mxu0
      %v9582 = vadd.f32 0.0, %v9581
      %v9583 = vpop.f32.mrb[0].mxu0
      %v9584 = vadd.f32 0.0, %v9583
      %v9585 = vpop.f32.mrb[0].mxu0
      %v9586 = vadd.f32 0.0, %v9585
      %9587 = vmatprep.mubr.bf16.mxu0 %v8352
      %9588 = vmatmul.mubr.bf16.gmra.mrb[0].mxu0 %v8351
      %v9589 = vpop.f32.mrb[0].mxu0
      %v9590 = vadd.f32 0.0, %v9589
      %v9591 = vpop.f32.mrb[0].mxu0
      %v9592 = vadd.f32 0.0, %v9591
      %v9593 = vpop.f32.mrb[0].mxu0
      %v9594 = vadd.f32 0.0, %v9593
      %v9595 = vpop.f32.mrb[0].mxu0
      %v9596 = vadd.f32 0.0, %v9595
      %9597 = vmatprep.mubr.bf16.mxu0 %v8358
      %9598 = vmatmul.mubr.bf16.gmra.mrb[0].mxu0 %v8357
      %v9599 = vpop.f32.mrb[0].mxu0
      %v9600 = vadd.f32 0.0, %v9599
      %v9601 = vpop.f32.mrb[0].mxu0
      %v9602 = vadd.f32 0.0, %v9601
      %v9603 = vpop.f32.mrb[0].mxu0
      %v9604 = vadd.f32 0.0, %v9603
      %v9605 = vpop.f32.mrb[0].mxu0
      %v9606 = vadd.f32 0.0, %v9605
      %9607 = vmatprep.mubr.bf16.mxu0 %v8364
      %9608 = vmatmul.mubr.bf16.gmra.mrb[0].mxu0 %v8363
      %v9609 = vpop.f32.mrb[0].mxu0
      %v9610 = vadd.f32 0.0, %v9609
      %v9611 = vpop.f32.mrb[0].mxu0
      %v9612 = vadd.f32 0.0, %v9611
      %v9613 = vpop.f32.mrb[0].mxu0
      %v9614 = vadd.f32 0.0, %v9613
      %v9615 = vpop.f32.mrb[0].mxu0
      %v9616 = vadd.f32 0.0, %v9615
      %9617 = vmatprep.mubr.bf16.mxu0 %v8348
      %9618 = vmatmul.mubr.bf16.gmra.mrb[0].mxu0 %v8347
      %v9619 = vpop.f32.mrb[0].mxu0
      %v9620 = vadd.f32 0.0, %v9619
      %v9621 = vpop.f32.mrb[0].mxu0
      %v9622 = vadd.f32 0.0, %v9621
      %v9623 = vpop.f32.mrb[0].mxu0
      %v9624 = vadd.f32 0.0, %v9623
      %v9625 = vpop.f32.mrb[0].mxu0
      %v9626 = vadd.f32 0.0, %v9625
      %9627 = vmatprep.mubr.bf16.mxu0 %v8354
      %9628 = vmatmul.mubr.bf16.gmra.mrb[0].mxu0 %v8353
      %v9629 = vpop.f32.mrb[0].mxu0
      %v9630 = vadd.f32 0.0, %v9629
      %v9631 = vpop.f32.mrb[0].mxu0
      %v9632 = vadd.f32 0.0, %v9631
      %v9633 = vpop.f32.mrb[0].mxu0
      %v9634 = vadd.f32 0.0, %v9633
      %v9635 = vpop.f32.mrb[0].mxu0
      %v9636 = vadd.f32 0.0, %v9635
      %9637 = vmatprep.mubr.bf16.mxu0 %v8360
      %9638 = vmatmul.mubr.bf16.gmra.mrb[0].mxu0 %v8359
      %v9639 = vpop.f32.mrb[0].mxu0
      %v9640 = vadd.f32 0.0, %v9639
      %v9641 = vpop.f32.mrb[0].mxu0
      %v9642 = vadd.f32 0.0, %v9641
      %v9643 = vpop.f32.mrb[0].mxu0
      %v9644 = vadd.f32 0.0, %v9643
      %v9645 = vpop.f32.mrb[0].mxu0
      %v9646 = vadd.f32 0.0, %v9645
      %9647 = vmatprep.mubr.bf16.mxu0 %v8366
      %9648 = vmatmul.mubr.bf16.gmra.mrb[0].mxu0 %v8365
      %v9649 = vpop.f32.mrb[0].mxu0
      %v9650 = vadd.f32 0.0, %v9649
      %v9651 = vpop.f32.mrb[0].mxu0
      %v9652 = vadd.f32 0.0, %v9651
      %v9653 = vpop.f32.mrb[0].mxu0
      %v9654 = vadd.f32 0.0, %v9653
      %v9655 = vpop.f32.mrb[0].mxu0
      %v9656 = vadd.f32 0.0, %v9655
      %9657 = vmatprep.mubr.bf16.mxu0 %v8350
      %9658 = vmatmul.mubr.bf16.gmra.mrb[0].mxu0 %v8349
      %v9659 = vpop.f32.mrb[0].mxu0
      %v9660 = vadd.f32 0.0, %v9659
      %v9661 = vpop.f32.mrb[0].mxu0
      %v9662 = vadd.f32 0.0, %v9661
      %v9663 = vpop.f32.mrb[0].mxu0
      %v9664 = vadd.f32 0.0, %v9663
      %v9665 = vpop.f32.mrb[0].mxu0
      %v9666 = vadd.f32 0.0, %v9665
      %9667 = vmatprep.mubr.bf16.mxu0 %v8356
      %9668 = vmatmul.mubr.bf16.gmra.mrb[0].mxu0 %v8355
      %v9669 = vpop.f32.mrb[0].mxu0
      %v9670 = vadd.f32 0.0, %v9669
      %v9671 = vpop.f32.mrb[0].mxu0
      %v9672 = vadd.f32 0.0, %v9671
      %v9673 = vpop.f32.mrb[0].mxu0
      %v9674 = vadd.f32 0.0, %v9673
      %v9675 = vpop.f32.mrb[0].mxu0
      %v9676 = vadd.f32 0.0, %v9675
      %9677 = vmatprep.mubr.bf16.mxu0 %v8362
      %9678 = vmatmul.mubr.bf16.gmra.mrb[0].mxu0 %v8361
      %v9679 = vpop.f32.mrb[0].mxu0
      %v9680 = vadd.f32 0.0, %v9679
      %v9681 = vpop.f32.mrb[0].mxu0
      %v9682 = vadd.f32 0.0, %v9681
      %v9683 = vpop.f32.mrb[0].mxu0
      %v9684 = vadd.f32 0.0, %v9683
      %v9685 = vpop.f32.mrb[0].mxu0
      %v9686 = vadd.f32 0.0, %v9685
      %9687 = vmatprep.mubr.bf16.mxu0 %v8368
      %9688 = vmatmul.mubr.bf16.gmra.mrb[0].mxu0 %v8367
      %v9689 = vpop.f32.mrb[0].mxu0
      %v9690 = vadd.f32 0.0, %v9689
      %v9691 = vpop.f32.mrb[0].mxu0
      %v9692 = vadd.f32 0.0, %v9691
      %v9693 = vpop.f32.mrb[0].mxu0
      %v9694 = vadd.f32 0.0, %v9693
      %v9695 = vpop.f32.mrb[0].mxu0
      %v9696 = vadd.f32 0.0, %v9695
      %9697 = vmatprep.mubr.bf16.mxu0 %v8370
      %9698 = vmatmul.mubr.bf16.gmra.mrb[0].mxu0 %v8369
      %v9699 = vpop.f32.mrb[0].mxu0
      %v9700 = vadd.f32 0.0, %v9699
      %v9701 = vpop.f32.mrb[0].mxu0
      %v9702 = vadd.f32 0.0, %v9701
      %v9703 = vpop.f32.mrb[0].mxu0
      %v9704 = vadd.f32 0.0, %v9703
      %v9705 = vpop.f32.mrb[0].mxu0
      %v9706 = vadd.f32 0.0, %v9705
      %9707 = vmatprep.mubr.bf16.mxu0 %v8372
      %9708 = vmatmul.mubr.bf16.gmra.mrb[0].mxu0 %v8371
      %v9709 = vpop.f32.mrb[0].mxu0
      %v9710 = vadd.f32 0.0, %v9709
      %v9711 = vpop.f32.mrb[0].mxu0
      %v9712 = vadd.f32 0.0, %v9711
      %v9713 = vpop.f32.mrb[0].mxu0
      %v9714 = vadd.f32 0.0, %v9713
      %v9715 = vpop.f32.mrb[0].mxu0
      %v9716 = vadd.f32 0.0, %v9715
      %9717 = vmatprep.mubr.bf16.mxu0 %v8374
      %9718 = vmatmul.mubr.bf16.gmra.mrb[0].mxu0 %v8373
      %v9719 = vpop.f32.mrb[0].mxu0
      %v9720 = vadd.f32 0.0, %v9719
      %v9721 = vpop.f32.mrb[0].mxu0
      %v9722 = vadd.f32 0.0, %v9721
      %v9723 = vpop.f32.mrb[0].mxu0
      %v9724 = vadd.f32 0.0, %v9723
      %v9725 = vpop.f32.mrb[0].mxu0
      %v9726 = vadd.f32 0.0, %v9725
      %9727 = vmatprep.mubr.bf16.mxu0 %v8376
      %9728 = vmatmul.mubr.bf16.gmra.mrb[0].mxu0 %v8375
      %v9729 = vpop.f32.mrb[0].mxu0
      %v9730 = vadd.f32 0.0, %v9729
      %v9731 = vpop.f32.mrb[0].mxu0
      %v9732 = vadd.f32 0.0, %v9731
      %v9733 = vpop.f32.mrb[0].mxu0
      %v9734 = vadd.f32 0.0, %v9733
      %v9735 = vpop.f32.mrb[0].mxu0
      %v9736 = vadd.f32 0.0, %v9735
      %9737 = vdwg.mxu0
      %9738 = vmatprep.subr.bf16.mxu0 %v9226
      %9739 = vmatpush1.bf16.msra.mxu0 %v9225
      %9740 = vmatprep.subr.bf16.mxu0 %v9230
      %9741 = vmatpush1.bf16.msra.mxu0 %v9229
      %9742 = vmatprep.subr.bf16.mxu0 %v9234
      %9743 = vmatpush1.bf16.msra.mxu0 %v9233
      %9744 = vmatprep.subr.bf16.mxu0 %v9238
      %9745 = vmatpush1.bf16.msra.mxu0 %v9237
      %9746 = vmatprep.subr.bf16.mxu0 %v9242
      %9747 = vmatpush1.bf16.msra.mxu0 %v9241
      %9748 = vmatprep.subr.bf16.mxu0 %v9246
      %9749 = vmatpush1.bf16.msra.mxu0 %v9245
      %9750 = vmatprep.subr.bf16.mxu0 %v9250
      %9751 = vmatpush1.bf16.msra.mxu0 %v9249
      %9752 = vmatprep.subr.bf16.mxu0 %v9254
      %9753 = vmatpush1.bf16.msra.mxu0 %v9253
      %9754 = vmatprep.subr.bf16.mxu0 %v9258
      %9755 = vmatpush1.bf16.msra.mxu0 %v9257
      %9756 = vmatprep.subr.bf16.mxu0 %v9262
      %9757 = vmatpush1.bf16.msra.mxu0 %v9261
      %9758 = vmatprep.subr.bf16.mxu0 %v9266
      %9759 = vmatpush1.bf16.msra.mxu0 %v9265
      %9760 = vmatprep.subr.bf16.mxu0 %v9270
      %9761 = vmatpush1.bf16.msra.mxu0 %v9269
      %9762 = vmatprep.subr.bf16.mxu0 %v9274
      %9763 = vmatpush1.bf16.msra.mxu0 %v9273
      %9764 = vmatprep.subr.bf16.mxu0 %v9278
      %9765 = vmatpush1.bf16.msra.mxu0 %v9277
      %9766 = vmatprep.subr.bf16.mxu0 %v9282
      %9767 = vmatpush1.bf16.msra.mxu0 %v9281
      %9768 = vmatprep.subr.bf16.mxu0 %v9286
      %9769 = vmatpush1.bf16.msra.mxu0 %v9285
      %9770 = vmatprep.mubr.bf16.mxu0 %v8348
      %9771 = vmatmul.mubr.bf16.gmra.mrb[0].mxu0 %v8347
      %v9772 = vpop.f32.mrb[0].mxu0
      %v9773 = vadd.f32 %v9580, %v9772
      %v9774 = vpop.f32.mrb[0].mxu0
      %v9775 = vadd.f32 %v9582, %v9774
      %v9776 = vpop.f32.mrb[0].mxu0
      %v9777 = vadd.f32 %v9584, %v9776
      %v9778 = vpop.f32.mrb[0].mxu0
      %v9779 = vadd.f32 %v9586, %v9778
      %9780 = vmatprep.mubr.bf16.mxu0 %v8354
      %9781 = vmatmul.mubr.bf16.gmra.mrb[0].mxu0 %v8353
      %v9782 = vpop.f32.mrb[0].mxu0
      %v9783 = vadd.f32 %v9590, %v9782
      %v9784 = vpop.f32.mrb[0].mxu0
      %v9785 = vadd.f32 %v9592, %v9784
      %v9786 = vpop.f32.mrb[0].mxu0
      %v9787 = vadd.f32 %v9594, %v9786
      %v9788 = vpop.f32.mrb[0].mxu0
      %v9789 = vadd.f32 %v9596, %v9788
      %9790 = vmatprep.mubr.bf16.mxu0 %v8360
      %9791 = vmatmul.mubr.bf16.gmra.mrb[0].mxu0 %v8359
      %v9792 = vpop.f32.mrb[0].mxu0
      %v9793 = vadd.f32 %v9600, %v9792
      %v9794 = vpop.f32.mrb[0].mxu0
      %v9795 = vadd.f32 %v9602, %v9794
      %v9796 = vpop.f32.mrb[0].mxu0
      %v9797 = vadd.f32 %v9604, %v9796
      %v9798 = vpop.f32.mrb[0].mxu0
      %v9799 = vadd.f32 %v9606, %v9798
      %9800 = vmatprep.mubr.bf16.mxu0 %v8366
      %9801 = vmatmul.mubr.bf16.gmra.mrb[0].mxu0 %v8365
      %v9802 = vpop.f32.mrb[0].mxu0
      %v9803 = vadd.f32 %v9610, %v9802
      %v9804 = vpop.f32.mrb[0].mxu0
      %v9805 = vadd.f32 %v9612, %v9804
      %v9806 = vpop.f32.mrb[0].mxu0
      %v9807 = vadd.f32 %v9614, %v9806
      %v9808 = vpop.f32.mrb[0].mxu0
      %v9809 = vadd.f32 %v9616, %v9808
      %9810 = vmatprep.mubr.bf16.mxu0 %v8350
      %9811 = vmatmul.mubr.bf16.gmra.mrb[0].mxu0 %v8349
      %v9812 = vpop.f32.mrb[0].mxu0
      %v9813 = vadd.f32 %v9620, %v9812
      %v9814 = vpop.f32.mrb[0].mxu0
      %v9815 = vadd.f32 %v9622, %v9814
      %v9816 = vpop.f32.mrb[0].mxu0
      %v9817 = vadd.f32 %v9624, %v9816
      %v9818 = vpop.f32.mrb[0].mxu0
      %v9819 = vadd.f32 %v9626, %v9818
      %9820 = vmatprep.mubr.bf16.mxu0 %v8356
      %9821 = vmatmul.mubr.bf16.gmra.mrb[0].mxu0 %v8355
      %v9822 = vpop.f32.mrb[0].mxu0
      %v9823 = vadd.f32 %v9630, %v9822
      %v9824 = vpop.f32.mrb[0].mxu0
      %v9825 = vadd.f32 %v9632, %v9824
      %v9826 = vpop.f32.mrb[0].mxu0
      %v9827 = vadd.f32 %v9634, %v9826
      %v9828 = vpop.f32.mrb[0].mxu0
      %v9829 = vadd.f32 %v9636, %v9828
      %9830 = vmatprep.mubr.bf16.mxu0 %v8362
      %9831 = vmatmul.mubr.bf16.gmra.mrb[0].mxu0 %v8361
      %v9832 = vpop.f32.mrb[0].mxu0
      %v9833 = vadd.f32 %v9640, %v9832
      %v9834 = vpop.f32.mrb[0].mxu0
      %v9835 = vadd.f32 %v9642, %v9834
      %v9836 = vpop.f32.mrb[0].mxu0
      %v9837 = vadd.f32 %v9644, %v9836
      %v9838 = vpop.f32.mrb[0].mxu0
      %v9839 = vadd.f32 %v9646, %v9838
      %9840 = vmatprep.mubr.bf16.mxu0 %v8368
      %9841 = vmatmul.mubr.bf16.gmra.mrb[0].mxu0 %v8367
      %v9842 = vpop.f32.mrb[0].mxu0
      %v9843 = vadd.f32 %v9650, %v9842
      %v9844 = vpop.f32.mrb[0].mxu0
      %v9845 = vadd.f32 %v9652, %v9844
      %v9846 = vpop.f32.mrb[0].mxu0
      %v9847 = vadd.f32 %v9654, %v9846
      %v9848 = vpop.f32.mrb[0].mxu0
      %v9849 = vadd.f32 %v9656, %v9848
      %9850 = vmatprep.mubr.bf16.mxu0 %v8370
      %9851 = vmatmul.mubr.bf16.gmra.mrb[0].mxu0 %v8369
      %v9852 = vpop.f32.mrb[0].mxu0
      %v9853 = vadd.f32 %v9660, %v9852
      %v9854 = vpop.f32.mrb[0].mxu0
      %v9855 = vadd.f32 %v9662, %v9854
      %v9856 = vpop.f32.mrb[0].mxu0
      %v9857 = vadd.f32 %v9664, %v9856
      %v9858 = vpop.f32.mrb[0].mxu0
      %v9859 = vadd.f32 %v9666, %v9858
      %9860 = vmatprep.mubr.bf16.mxu0 %v8372
      %9861 = vmatmul.mubr.bf16.gmra.mrb[0].mxu0 %v8371
      %v9862 = vpop.f32.mrb[0].mxu0
      %v9863 = vadd.f32 %v9670, %v9862
      %v9864 = vpop.f32.mrb[0].mxu0
      %v9865 = vadd.f32 %v9672, %v9864
      %v9866 = vpop.f32.mrb[0].mxu0
      %v9867 = vadd.f32 %v9674, %v9866
      %v9868 = vpop.f32.mrb[0].mxu0
      %v9869 = vadd.f32 %v9676, %v9868
      %9870 = vmatprep.mubr.bf16.mxu0 %v8374
      %9871 = vmatmul.mubr.bf16.gmra.mrb[0].mxu0 %v8373
      %v9872 = vpop.f32.mrb[0].mxu0
      %v9873 = vadd.f32 %v9680, %v9872
      %v9874 = vpop.f32.mrb[0].mxu0
      %v9875 = vadd.f32 %v9682, %v9874
      %v9876 = vpop.f32.mrb[0].mxu0
      %v9877 = vadd.f32 %v9684, %v9876
      %v9878 = vpop.f32.mrb[0].mxu0
      %v9879 = vadd.f32 %v9686, %v9878
      %9880 = vmatprep.mubr.bf16.mxu0 %v8376
      %9881 = vmatmul.mubr.bf16.gmra.mrb[0].mxu0 %v8375
      %v9882 = vpop.f32.mrb[0].mxu0
      %v9883 = vadd.f32 %v9690, %v9882
      %v9884 = vpop.f32.mrb[0].mxu0
      %v9885 = vadd.f32 %v9692, %v9884
      %v9886 = vpop.f32.mrb[0].mxu0
      %v9887 = vadd.f32 %v9694, %v9886
      %v9888 = vpop.f32.mrb[0].mxu0
      %v9889 = vadd.f32 %v9696, %v9888
      %9890 = vmatprep.mubr.bf16.mxu0 %v8378
      %9891 = vmatmul.mubr.bf16.gmra.mrb[0].mxu0 %v8377
      %v9892 = vpop.f32.mrb[0].mxu0
      %v9893 = vadd.f32 %v9700, %v9892
      %v9894 = vpop.f32.mrb[0].mxu0
      %v9895 = vadd.f32 %v9702, %v9894
      %v9896 = vpop.f32.mrb[0].mxu0
      %v9897 = vadd.f32 %v9704, %v9896
      %v9898 = vpop.f32.mrb[0].mxu0
      %v9899 = vadd.f32 %v9706, %v9898
      %9900 = vmatprep.mubr.bf16.mxu0 %v8380
      %9901 = vmatmul.mubr.bf16.gmra.mrb[0].mxu0 %v8379
      %v9902 = vpop.f32.mrb[0].mxu0
      %v9903 = vadd.f32 %v9710, %v9902
      %v9904 = vpop.f32.mrb[0].mxu0
      %v9905 = vadd.f32 %v9712, %v9904
      %v9906 = vpop.f32.mrb[0].mxu0
      %v9907 = vadd.f32 %v9714, %v9906
      %v9908 = vpop.f32.mrb[0].mxu0
      %v9909 = vadd.f32 %v9716, %v9908
      %9910 = vmatprep.mubr.bf16.mxu0 %v8382
      %9911 = vmatmul.mubr.bf16.gmra.mrb[0].mxu0 %v8381
      %v9912 = vpop.f32.mrb[0].mxu0
      %v9913 = vadd.f32 %v9720, %v9912
      %v9914 = vpop.f32.mrb[0].mxu0
      %v9915 = vadd.f32 %v9722, %v9914
      %v9916 = vpop.f32.mrb[0].mxu0
      %v9917 = vadd.f32 %v9724, %v9916
      %v9918 = vpop.f32.mrb[0].mxu0
      %v9919 = vadd.f32 %v9726, %v9918
      %9920 = vmatprep.mubr.bf16.mxu0 %v8384
      %9921 = vmatmul.mubr.bf16.gmra.mrb[0].mxu0 %v8383
      %v9922 = vpop.f32.mrb[0].mxu0
      %v9923 = vadd.f32 %v9730, %v9922
      %v9924 = vpop.f32.mrb[0].mxu0
      %v9925 = vadd.f32 %v9732, %v9924
      %v9926 = vpop.f32.mrb[0].mxu0
      %v9927 = vadd.f32 %v9734, %v9926
      %v9928 = vpop.f32.mrb[0].mxu0
      %v9929 = vadd.f32 %v9736, %v9928
      %9930 = vdwg.mxu0
      %9931 = vmatprep.subr.bf16.mxu0 %v9290
      %9932 = vmatpush1.bf16.msra.mxu0 %v9289
      %9933 = vmatprep.subr.bf16.mxu0 %v9294
      %9934 = vmatpush1.bf16.msra.mxu0 %v9293
      %9935 = vmatprep.subr.bf16.mxu0 %v9298
      %9936 = vmatpush1.bf16.msra.mxu0 %v9297
      %9937 = vmatprep.subr.bf16.mxu0 %v9302
      %9938 = vmatpush1.bf16.msra.mxu0 %v9301
      %9939 = vmatprep.subr.bf16.mxu0 %v9306
      %9940 = vmatpush1.bf16.msra.mxu0 %v9305
      %9941 = vmatprep.subr.bf16.mxu0 %v9310
      %9942 = vmatpush1.bf16.msra.mxu0 %v9309
      %9943 = vmatprep.subr.bf16.mxu0 %v9314
      %9944 = vmatpush1.bf16.msra.mxu0 %v9313
      %9945 = vmatprep.subr.bf16.mxu0 %v9318
      %9946 = vmatpush1.bf16.msra.mxu0 %v9317
      %9947 = vmatprep.subr.bf16.mxu0 %v9322
      %9948 = vmatpush1.bf16.msra.mxu0 %v9321
      %9949 = vmatprep.subr.bf16.mxu0 %v9326
      %9950 = vmatpush1.bf16.msra.mxu0 %v9325
      %9951 = vmatprep.subr.bf16.mxu0 %v9330
      %9952 = vmatpush1.bf16.msra.mxu0 %v9329
      %9953 = vmatprep.subr.bf16.mxu0 %v9334
      %9954 = vmatpush1.bf16.msra.mxu0 %v9333
      %9955 = vmatprep.subr.bf16.mxu0 %v9338
      %9956 = vmatpush1.bf16.msra.mxu0 %v9337
      %9957 = vmatprep.subr.bf16.mxu0 %v9342
      %9958 = vmatpush1.bf16.msra.mxu0 %v9341
      %9959 = vmatprep.subr.bf16.mxu0 %v9346
      %9960 = vmatpush1.bf16.msra.mxu0 %v9345
      %9961 = vmatprep.subr.bf16.mxu0 %v9350
      %9962 = vmatpush1.bf16.msra.mxu0 %v9349
      %9963 = vmatprep.mubr.bf16.mxu0 %v8350
      %9964 = vmatmul.mubr.bf16.gmra.mrb[0].mxu0 %v8349
      %v9965 = vpop.f32.mrb[0].mxu0
      %v9966 = vadd.f32 %v9773, %v9965
      %v9967 = vpop.f32.mrb[0].mxu0
      %v9968 = vadd.f32 %v9775, %v9967
      %v9969 = vpop.f32.mrb[0].mxu0
      %v9970 = vadd.f32 %v9777, %v9969
      %v9971 = vpop.f32.mrb[0].mxu0
      %v9972 = vadd.f32 %v9779, %v9971
      %9973 = vmatprep.mubr.bf16.mxu0 %v8356
      %9974 = vmatmul.mubr.bf16.gmra.mrb[0].mxu0 %v8355
      %v9975 = vpop.f32.mrb[0].mxu0
      %v9976 = vadd.f32 %v9783, %v9975
      %v9977 = vpop.f32.mrb[0].mxu0
      %v9978 = vadd.f32 %v9785, %v9977
      %v9979 = vpop.f32.mrb[0].mxu0
      %v9980 = vadd.f32 %v9787, %v9979
      %v9981 = vpop.f32.mrb[0].mxu0
      %v9982 = vadd.f32 %v9789, %v9981
      %9983 = vmatprep.mubr.bf16.mxu0 %v8362
      %9984 = vmatmul.mubr.bf16.gmra.mrb[0].mxu0 %v8361
      %v9985 = vpop.f32.mrb[0].mxu0
      %v9986 = vadd.f32 %v9793, %v9985
      %v9987 = vpop.f32.mrb[0].mxu0
      %v9988 = vadd.f32 %v9795, %v9987
      %v9989 = vpop.f32.mrb[0].mxu0
      %v9990 = vadd.f32 %v9797, %v9989
      %v9991 = vpop.f32.mrb[0].mxu0
      %v9992 = vadd.f32 %v9799, %v9991
      %9993 = vmatprep.mubr.bf16.mxu0 %v8368
      %9994 = vmatmul.mubr.bf16.gmra.mrb[0].mxu0 %v8367
      %v9995 = vpop.f32.mrb[0].mxu0
      %v9996 = vadd.f32 %v9803, %v9995
      %v9997 = vpop.f32.mrb[0].mxu0
      %v9998 = vadd.f32 %v9805, %v9997
      %v9999 = vpop.f32.mrb[0].mxu0
      %v10000 = vadd.f32 %v9807, %v9999
      %v10001 = vpop.f32.mrb[0].mxu0
      %v10002 = vadd.f32 %v9809, %v10001
      %10003 = vmatprep.mubr.bf16.mxu0 %v8370
      %10004 = vmatmul.mubr.bf16.gmra.mrb[0].mxu0 %v8369
      %v10005 = vpop.f32.mrb[0].mxu0
      %v10006 = vadd.f32 %v9813, %v10005
      %v10007 = vpop.f32.mrb[0].mxu0
      %v10008 = vadd.f32 %v9815, %v10007
      %v10009 = vpop.f32.mrb[0].mxu0
      %v10010 = vadd.f32 %v9817, %v10009
      %v10011 = vpop.f32.mrb[0].mxu0
      %v10012 = vadd.f32 %v9819, %v10011
      %10013 = vmatprep.mubr.bf16.mxu0 %v8372
      %10014 = vmatmul.mubr.bf16.gmra.mrb[0].mxu0 %v8371
      %v10015 = vpop.f32.mrb[0].mxu0
      %v10016 = vadd.f32 %v9823, %v10015
      %v10017 = vpop.f32.mrb[0].mxu0
      %v10018 = vadd.f32 %v9825, %v10017
      %v10019 = vpop.f32.mrb[0].mxu0
      %v10020 = vadd.f32 %v9827, %v10019
      %v10021 = vpop.f32.mrb[0].mxu0
      %v10022 = vadd.f32 %v9829, %v10021
      %10023 = vmatprep.mubr.bf16.mxu0 %v8374
      %10024 = vmatmul.mubr.bf16.gmra.mrb[0].mxu0 %v8373
      %v10025 = vpop.f32.mrb[0].mxu0
      %v10026 = vadd.f32 %v9833, %v10025
      %v10027 = vpop.f32.mrb[0].mxu0
      %v10028 = vadd.f32 %v9835, %v10027
      %v10029 = vpop.f32.mrb[0].mxu0
      %v10030 = vadd.f32 %v9837, %v10029
      %v10031 = vpop.f32.mrb[0].mxu0
      %v10032 = vadd.f32 %v9839, %v10031
      %10033 = vmatprep.mubr.bf16.mxu0 %v8376
      %10034 = vmatmul.mubr.bf16.gmra.mrb[0].mxu0 %v8375
      %v10035 = vpop.f32.mrb[0].mxu0
      %v10036 = vadd.f32 %v9843, %v10035
      %v10037 = vpop.f32.mrb[0].mxu0
      %v10038 = vadd.f32 %v9845, %v10037
      %v10039 = vpop.f32.mrb[0].mxu0
      %v10040 = vadd.f32 %v9847, %v10039
      %v10041 = vpop.f32.mrb[0].mxu0
      %v10042 = vadd.f32 %v9849, %v10041
      %10043 = vmatprep.mubr.bf16.mxu0 %v8378
      %10044 = vmatmul.mubr.bf16.gmra.mrb[0].mxu0 %v8377
      %v10045 = vpop.f32.mrb[0].mxu0
      %v10046 = vadd.f32 %v9853, %v10045
      %v10047 = vpop.f32.mrb[0].mxu0
      %v10048 = vadd.f32 %v9855, %v10047
      %v10049 = vpop.f32.mrb[0].mxu0
      %v10050 = vadd.f32 %v9857, %v10049
      %v10051 = vpop.f32.mrb[0].mxu0
      %v10052 = vadd.f32 %v9859, %v10051
      %10053 = vmatprep.mubr.bf16.mxu0 %v8380
      %10054 = vmatmul.mubr.bf16.gmra.mrb[0].mxu0 %v8379
      %v10055 = vpop.f32.mrb[0].mxu0
      %v10056 = vadd.f32 %v9863, %v10055
      %v10057 = vpop.f32.mrb[0].mxu0
      %v10058 = vadd.f32 %v9865, %v10057
      %v10059 = vpop.f32.mrb[0].mxu0
      %v10060 = vadd.f32 %v9867, %v10059
      %v10061 = vpop.f32.mrb[0].mxu0
      %v10062 = vadd.f32 %v9869, %v10061
      %10063 = vmatprep.mubr.bf16.mxu0 %v8382
      %10064 = vmatmul.mubr.bf16.gmra.mrb[0].mxu0 %v8381
      %v10065 = vpop.f32.mrb[0].mxu0
      %v10066 = vadd.f32 %v9873, %v10065
      %v10067 = vpop.f32.mrb[0].mxu0
      %v10068 = vadd.f32 %v9875, %v10067
      %v10069 = vpop.f32.mrb[0].mxu0
      %v10070 = vadd.f32 %v9877, %v10069
      %v10071 = vpop.f32.mrb[0].mxu0
      %v10072 = vadd.f32 %v9879, %v10071
      %10073 = vmatprep.mubr.bf16.mxu0 %v8384
      %10074 = vmatmul.mubr.bf16.gmra.mrb[0].mxu0 %v8383
      %v10075 = vpop.f32.mrb[0].mxu0
      %v10076 = vadd.f32 %v9883, %v10075
      %v10077 = vpop.f32.mrb[0].mxu0
      %v10078 = vadd.f32 %v9885, %v10077
      %v10079 = vpop.f32.mrb[0].mxu0
      %v10080 = vadd.f32 %v9887, %v10079
      %v10081 = vpop.f32.mrb[0].mxu0
      %v10082 = vadd.f32 %v9889, %v10081
      %10083 = vmatprep.mubr.bf16.mxu0 %v8386
      %10084 = vmatmul.mubr.bf16.gmra.mrb[0].mxu0 %v8385
      %v10085 = vpop.f32.mrb[0].mxu0
      %v10086 = vadd.f32 %v9893, %v10085
      %v10087 = vpop.f32.mrb[0].mxu0
      %v10088 = vadd.f32 %v9895, %v10087
      %v10089 = vpop.f32.mrb[0].mxu0
      %v10090 = vadd.f32 %v9897, %v10089
      %v10091 = vpop.f32.mrb[0].mxu0
      %v10092 = vadd.f32 %v9899, %v10091
      %10093 = vmatprep.mubr.bf16.mxu0 %v8388
      %10094 = vmatmul.mubr.bf16.gmra.mrb[0].mxu0 %v8387
      %v10095 = vpop.f32.mrb[0].mxu0
      %v10096 = vadd.f32 %v9903, %v10095
      %v10097 = vpop.f32.mrb[0].mxu0
      %v10098 = vadd.f32 %v9905, %v10097
      %v10099 = vpop.f32.mrb[0].mxu0
      %v10100 = vadd.f32 %v9907, %v10099
      %v10101 = vpop.f32.mrb[0].mxu0
      %v10102 = vadd.f32 %v9909, %v10101
      %10103 = vmatprep.mubr.bf16.mxu0 %v8390
      %10104 = vmatmul.mubr.bf16.gmra.mrb[0].mxu0 %v8389
      %v10105 = vpop.f32.mrb[0].mxu0
      %v10106 = vadd.f32 %v9913, %v10105
      %v10107 = vpop.f32.mrb[0].mxu0
      %v10108 = vadd.f32 %v9915, %v10107
      %v10109 = vpop.f32.mrb[0].mxu0
      %v10110 = vadd.f32 %v9917, %v10109
      %v10111 = vpop.f32.mrb[0].mxu0
      %v10112 = vadd.f32 %v9919, %v10111
      %10113 = vmatprep.mubr.bf16.mxu0 %v8392
      %10114 = vmatmul.mubr.bf16.gmra.mrb[0].mxu0 %v8391
      %v10115 = vpop.f32.mrb[0].mxu0
      %v10116 = vadd.f32 %v9923, %v10115
      %v10117 = vpop.f32.mrb[0].mxu0
      %v10118 = vadd.f32 %v9925, %v10117
      %v10119 = vpop.f32.mrb[0].mxu0
      %v10120 = vadd.f32 %v9927, %v10119
      %v10121 = vpop.f32.mrb[0].mxu0
      %v10122 = vadd.f32 %v9929, %v10121
      %10123 = vdwg.mxu0
      %10124 = vmatprep.subr.bf16.mxu0 %v9164
      %10125 = vmatpush1.bf16.msra.mxu0 %v9163
      %10126 = vmatprep.subr.bf16.mxu0 %v9168
      %10127 = vmatpush1.bf16.msra.mxu0 %v9167
      %10128 = vmatprep.subr.bf16.mxu0 %v9172
      %10129 = vmatpush1.bf16.msra.mxu0 %v9171
      %10130 = vmatprep.subr.bf16.mxu0 %v9176
      %10131 = vmatpush1.bf16.msra.mxu0 %v9175
      %10132 = vmatprep.subr.bf16.mxu0 %v9180
      %10133 = vmatpush1.bf16.msra.mxu0 %v9179
      %10134 = vmatprep.subr.bf16.mxu0 %v9184
      %10135 = vmatpush1.bf16.msra.mxu0 %v9183
      %10136 = vmatprep.subr.bf16.mxu0 %v9188
      %10137 = vmatpush1.bf16.msra.mxu0 %v9187
      %10138 = vmatprep.subr.bf16.mxu0 %v9192
      %10139 = vmatpush1.bf16.msra.mxu0 %v9191
      %10140 = vmatprep.subr.bf16.mxu0 %v9196
      %10141 = vmatpush1.bf16.msra.mxu0 %v9195
      %10142 = vmatprep.subr.bf16.mxu0 %v9200
      %10143 = vmatpush1.bf16.msra.mxu0 %v9199
      %10144 = vmatprep.subr.bf16.mxu0 %v9204
      %10145 = vmatpush1.bf16.msra.mxu0 %v9203
      %10146 = vmatprep.subr.bf16.mxu0 %v9208
      %10147 = vmatpush1.bf16.msra.mxu0 %v9207
      %10148 = vmatprep.subr.bf16.mxu0 %v9212
      %10149 = vmatpush1.bf16.msra.mxu0 %v9211
      %10150 = vmatprep.subr.bf16.mxu0 %v9216
      %10151 = vmatpush1.bf16.msra.mxu0 %v9215
      %10152 = vmatprep.subr.bf16.mxu0 %v9220
      %10153 = vmatpush1.bf16.msra.mxu0 %v9219
      %10154 = vmatprep.subr.bf16.mxu0 %v9224
      %10155 = vmatpush1.bf16.msra.mxu0 %v9223
      %10156 = vmatprep.mubr.bf16.mxu0 %v8346
      %10157 = vmatmul.mubr.bf16.gmra.mrb[0].mxu0 %v8345
      %v10158 = vpop.f32.mrb[0].mxu0
      %v10159 = vadd.f32 0.0, %v10158
      %v10160 = vpop.f32.mrb[0].mxu0
      %v10161 = vadd.f32 0.0, %v10160
      %v10162 = vpop.f32.mrb[0].mxu0
      %v10163 = vadd.f32 0.0, %v10162
      %v10164 = vpop.f32.mrb[0].mxu0
      %v10165 = vadd.f32 0.0, %v10164
      %10166 = vmatprep.mubr.bf16.mxu0 %v8352
      %10167 = vmatmul.mubr.bf16.gmra.mrb[0].mxu0 %v8351
      %v10168 = vpop.f32.mrb[0].mxu0
      %v10169 = vadd.f32 0.0, %v10168
      %v10170 = vpop.f32.mrb[0].mxu0
      %v10171 = vadd.f32 0.0, %v10170
      %v10172 = vpop.f32.mrb[0].mxu0
      %v10173 = vadd.f32 0.0, %v10172
      %v10174 = vpop.f32.mrb[0].mxu0
      %v10175 = vadd.f32 0.0, %v10174
      %10176 = vmatprep.mubr.bf16.mxu0 %v8358
      %10177 = vmatmul.mubr.bf16.gmra.mrb[0].mxu0 %v8357
      %v10178 = vpop.f32.mrb[0].mxu0
      %v10179 = vadd.f32 0.0, %v10178
      %v10180 = vpop.f32.mrb[0].mxu0
      %v10181 = vadd.f32 0.0, %v10180
      %v10182 = vpop.f32.mrb[0].mxu0
      %v10183 = vadd.f32 0.0, %v10182
      %v10184 = vpop.f32.mrb[0].mxu0
      %v10185 = vadd.f32 0.0, %v10184
      %10186 = vmatprep.mubr.bf16.mxu0 %v8364
      %10187 = vmatmul.mubr.bf16.gmra.mrb[0].mxu0 %v8363
      %v10188 = vpop.f32.mrb[0].mxu0
      %v10189 = vadd.f32 0.0, %v10188
      %v10190 = vpop.f32.mrb[0].mxu0
      %v10191 = vadd.f32 0.0, %v10190
      %v10192 = vpop.f32.mrb[0].mxu0
      %v10193 = vadd.f32 0.0, %v10192
      %v10194 = vpop.f32.mrb[0].mxu0
      %v10195 = vadd.f32 0.0, %v10194
      %10196 = vmatprep.mubr.bf16.mxu0 %v8348
      %10197 = vmatmul.mubr.bf16.gmra.mrb[0].mxu0 %v8347
      %v10198 = vpop.f32.mrb[0].mxu0
      %v10199 = vadd.f32 0.0, %v10198
      %v10200 = vpop.f32.mrb[0].mxu0
      %v10201 = vadd.f32 0.0, %v10200
      %v10202 = vpop.f32.mrb[0].mxu0
      %v10203 = vadd.f32 0.0, %v10202
      %v10204 = vpop.f32.mrb[0].mxu0
      %v10205 = vadd.f32 0.0, %v10204
      %10206 = vmatprep.mubr.bf16.mxu0 %v8354
      %10207 = vmatmul.mubr.bf16.gmra.mrb[0].mxu0 %v8353
      %v10208 = vpop.f32.mrb[0].mxu0
      %v10209 = vadd.f32 0.0, %v10208
      %v10210 = vpop.f32.mrb[0].mxu0
      %v10211 = vadd.f32 0.0, %v10210
      %v10212 = vpop.f32.mrb[0].mxu0
      %v10213 = vadd.f32 0.0, %v10212
      %v10214 = vpop.f32.mrb[0].mxu0
      %v10215 = vadd.f32 0.0, %v10214
      %10216 = vmatprep.mubr.bf16.mxu0 %v8360
      %10217 = vmatmul.mubr.bf16.gmra.mrb[0].mxu0 %v8359
      %v10218 = vpop.f32.mrb[0].mxu0
      %v10219 = vadd.f32 0.0, %v10218
      %v10220 = vpop.f32.mrb[0].mxu0
      %v10221 = vadd.f32 0.0, %v10220
      %v10222 = vpop.f32.mrb[0].mxu0
      %v10223 = vadd.f32 0.0, %v10222
      %v10224 = vpop.f32.mrb[0].mxu0
      %v10225 = vadd.f32 0.0, %v10224
      %10226 = vmatprep.mubr.bf16.mxu0 %v8366
      %10227 = vmatmul.mubr.bf16.gmra.mrb[0].mxu0 %v8365
      %v10228 = vpop.f32.mrb[0].mxu0
      %v10229 = vadd.f32 0.0, %v10228
      %v10230 = vpop.f32.mrb[0].mxu0
      %v10231 = vadd.f32 0.0, %v10230
      %v10232 = vpop.f32.mrb[0].mxu0
      %v10233 = vadd.f32 0.0, %v10232
      %v10234 = vpop.f32.mrb[0].mxu0
      %v10235 = vadd.f32 0.0, %v10234
      %10236 = vmatprep.mubr.bf16.mxu0 %v8350
      %10237 = vmatmul.mubr.bf16.gmra.mrb[0].mxu0 %v8349
      %v10238 = vpop.f32.mrb[0].mxu0
      %v10239 = vadd.f32 0.0, %v10238
      %v10240 = vpop.f32.mrb[0].mxu0
      %v10241 = vadd.f32 0.0, %v10240
      %v10242 = vpop.f32.mrb[0].mxu0
      %v10243 = vadd.f32 0.0, %v10242
      %v10244 = vpop.f32.mrb[0].mxu0
      %v10245 = vadd.f32 0.0, %v10244
      %10246 = vmatprep.mubr.bf16.mxu0 %v8356
      %10247 = vmatmul.mubr.bf16.gmra.mrb[0].mxu0 %v8355
      %v10248 = vpop.f32.mrb[0].mxu0
      %v10249 = vadd.f32 0.0, %v10248
      %v10250 = vpop.f32.mrb[0].mxu0
      %v10251 = vadd.f32 0.0, %v10250
      %v10252 = vpop.f32.mrb[0].mxu0
      %v10253 = vadd.f32 0.0, %v10252
      %v10254 = vpop.f32.mrb[0].mxu0
      %v10255 = vadd.f32 0.0, %v10254
      %10256 = vmatprep.mubr.bf16.mxu0 %v8362
      %10257 = vmatmul.mubr.bf16.gmra.mrb[0].mxu0 %v8361
      %v10258 = vpop.f32.mrb[0].mxu0
      %v10259 = vadd.f32 0.0, %v10258
      %v10260 = vpop.f32.mrb[0].mxu0
      %v10261 = vadd.f32 0.0, %v10260
      %v10262 = vpop.f32.mrb[0].mxu0
      %v10263 = vadd.f32 0.0, %v10262
      %v10264 = vpop.f32.mrb[0].mxu0
      %v10265 = vadd.f32 0.0, %v10264
      %10266 = vmatprep.mubr.bf16.mxu0 %v8368
      %10267 = vmatmul.mubr.bf16.gmra.mrb[0].mxu0 %v8367
      %v10268 = vpop.f32.mrb[0].mxu0
      %v10269 = vadd.f32 0.0, %v10268
      %v10270 = vpop.f32.mrb[0].mxu0
      %v10271 = vadd.f32 0.0, %v10270
      %v10272 = vpop.f32.mrb[0].mxu0
      %v10273 = vadd.f32 0.0, %v10272
      %v10274 = vpop.f32.mrb[0].mxu0
      %v10275 = vadd.f32 0.0, %v10274
      %10276 = vmatprep.mubr.bf16.mxu0 %v8370
      %10277 = vmatmul.mubr.bf16.gmra.mrb[0].mxu0 %v8369
      %v10278 = vpop.f32.mrb[0].mxu0
      %v10279 = vadd.f32 0.0, %v10278
      %v10280 = vpop.f32.mrb[0].mxu0
      %v10281 = vadd.f32 0.0, %v10280
      %v10282 = vpop.f32.mrb[0].mxu0
      %v10283 = vadd.f32 0.0, %v10282
      %v10284 = vpop.f32.mrb[0].mxu0
      %v10285 = vadd.f32 0.0, %v10284
      %10286 = vmatprep.mubr.bf16.mxu0 %v8372
      %10287 = vmatmul.mubr.bf16.gmra.mrb[0].mxu0 %v8371
      %v10288 = vpop.f32.mrb[0].mxu0
      %v10289 = vadd.f32 0.0, %v10288
      %v10290 = vpop.f32.mrb[0].mxu0
      %v10291 = vadd.f32 0.0, %v10290
      %v10292 = vpop.f32.mrb[0].mxu0
      %v10293 = vadd.f32 0.0, %v10292
      %v10294 = vpop.f32.mrb[0].mxu0
      %v10295 = vadd.f32 0.0, %v10294
      %10296 = vmatprep.mubr.bf16.mxu0 %v8374
      %10297 = vmatmul.mubr.bf16.gmra.mrb[0].mxu0 %v8373
      %v10298 = vpop.f32.mrb[0].mxu0
      %v10299 = vadd.f32 0.0, %v10298
      %v10300 = vpop.f32.mrb[0].mxu0
      %v10301 = vadd.f32 0.0, %v10300
      %v10302 = vpop.f32.mrb[0].mxu0
      %v10303 = vadd.f32 0.0, %v10302
      %v10304 = vpop.f32.mrb[0].mxu0
      %v10305 = vadd.f32 0.0, %v10304
      %10306 = vmatprep.mubr.bf16.mxu0 %v8376
      %10307 = vmatmul.mubr.bf16.gmra.mrb[0].mxu0 %v8375
      %v10308 = vpop.f32.mrb[0].mxu0
      %v10309 = vadd.f32 0.0, %v10308
      %v10310 = vpop.f32.mrb[0].mxu0
      %v10311 = vadd.f32 0.0, %v10310
      %v10312 = vpop.f32.mrb[0].mxu0
      %v10313 = vadd.f32 0.0, %v10312
      %v10314 = vpop.f32.mrb[0].mxu0
      %v10315 = vadd.f32 0.0, %v10314
      %10316 = vdwg.mxu0
      %10317 = vmatprep.subr.bf16.mxu0 %v9228
      %10318 = vmatpush1.bf16.msra.mxu0 %v9227
      %10319 = vmatprep.subr.bf16.mxu0 %v9232
      %10320 = vmatpush1.bf16.msra.mxu0 %v9231
      %10321 = vmatprep.subr.bf16.mxu0 %v9236
      %10322 = vmatpush1.bf16.msra.mxu0 %v9235
      %10323 = vmatprep.subr.bf16.mxu0 %v9240
      %10324 = vmatpush1.bf16.msra.mxu0 %v9239
      %10325 = vmatprep.subr.bf16.mxu0 %v9244
      %10326 = vmatpush1.bf16.msra.mxu0 %v9243
      %10327 = vmatprep.subr.bf16.mxu0 %v9248
      %10328 = vmatpush1.bf16.msra.mxu0 %v9247
      %10329 = vmatprep.subr.bf16.mxu0 %v9252
      %10330 = vmatpush1.bf16.msra.mxu0 %v9251
      %10331 = vmatprep.subr.bf16.mxu0 %v9256
      %10332 = vmatpush1.bf16.msra.mxu0 %v9255
      %10333 = vmatprep.subr.bf16.mxu0 %v9260
      %10334 = vmatpush1.bf16.msra.mxu0 %v9259
      %10335 = vmatprep.subr.bf16.mxu0 %v9264
      %10336 = vmatpush1.bf16.msra.mxu0 %v9263
      %10337 = vmatprep.subr.bf16.mxu0 %v9268
      %10338 = vmatpush1.bf16.msra.mxu0 %v9267
      %10339 = vmatprep.subr.bf16.mxu0 %v9272
      %10340 = vmatpush1.bf16.msra.mxu0 %v9271
      %10341 = vmatprep.subr.bf16.mxu0 %v9276
      %10342 = vmatpush1.bf16.msra.mxu0 %v9275
      %10343 = vmatprep.subr.bf16.mxu0 %v9280
      %10344 = vmatpush1.bf16.msra.mxu0 %v9279
      %10345 = vmatprep.subr.bf16.mxu0 %v9284
      %10346 = vmatpush1.bf16.msra.mxu0 %v9283
      %10347 = vmatprep.subr.bf16.mxu0 %v9288
      %10348 = vmatpush1.bf16.msra.mxu0 %v9287
      %10349 = vmatprep.mubr.bf16.mxu0 %v8348
      %10350 = vmatmul.mubr.bf16.gmra.mrb[0].mxu0 %v8347
      %v10351 = vpop.f32.mrb[0].mxu0
      %v10352 = vadd.f32 %v10159, %v10351
      %v10353 = vpop.f32.mrb[0].mxu0
      %v10354 = vadd.f32 %v10161, %v10353
      %v10355 = vpop.f32.mrb[0].mxu0
      %v10356 = vadd.f32 %v10163, %v10355
      %v10357 = vpop.f32.mrb[0].mxu0
      %v10358 = vadd.f32 %v10165, %v10357
      %10359 = vmatprep.mubr.bf16.mxu0 %v8354
      %10360 = vmatmul.mubr.bf16.gmra.mrb[0].mxu0 %v8353
      %v10361 = vpop.f32.mrb[0].mxu0
      %v10362 = vadd.f32 %v10169, %v10361
      %v10363 = vpop.f32.mrb[0].mxu0
      %v10364 = vadd.f32 %v10171, %v10363
      %v10365 = vpop.f32.mrb[0].mxu0
      %v10366 = vadd.f32 %v10173, %v10365
      %v10367 = vpop.f32.mrb[0].mxu0
      %v10368 = vadd.f32 %v10175, %v10367
      %10369 = vmatprep.mubr.bf16.mxu0 %v8360
      %10370 = vmatmul.mubr.bf16.gmra.mrb[0].mxu0 %v8359
      %v10371 = vpop.f32.mrb[0].mxu0
      %v10372 = vadd.f32 %v10179, %v10371
      %v10373 = vpop.f32.mrb[0].mxu0
      %v10374 = vadd.f32 %v10181, %v10373
      %v10375 = vpop.f32.mrb[0].mxu0
      %v10376 = vadd.f32 %v10183, %v10375
      %v10377 = vpop.f32.mrb[0].mxu0
      %v10378 = vadd.f32 %v10185, %v10377
      %10379 = vmatprep.mubr.bf16.mxu0 %v8366
      %10380 = vmatmul.mubr.bf16.gmra.mrb[0].mxu0 %v8365
      %v10381 = vpop.f32.mrb[0].mxu0
      %v10382 = vadd.f32 %v10189, %v10381
      %v10383 = vpop.f32.mrb[0].mxu0
      %v10384 = vadd.f32 %v10191, %v10383
      %v10385 = vpop.f32.mrb[0].mxu0
      %v10386 = vadd.f32 %v10193, %v10385
      %v10387 = vpop.f32.mrb[0].mxu0
      %v10388 = vadd.f32 %v10195, %v10387
      %10389 = vmatprep.mubr.bf16.mxu0 %v8350
      %10390 = vmatmul.mubr.bf16.gmra.mrb[0].mxu0 %v8349
      %v10391 = vpop.f32.mrb[0].mxu0
      %v10392 = vadd.f32 %v10199, %v10391
      %v10393 = vpop.f32.mrb[0].mxu0
      %v10394 = vadd.f32 %v10201, %v10393
      %v10395 = vpop.f32.mrb[0].mxu0
      %v10396 = vadd.f32 %v10203, %v10395
      %v10397 = vpop.f32.mrb[0].mxu0
      %v10398 = vadd.f32 %v10205, %v10397
      %10399 = vmatprep.mubr.bf16.mxu0 %v8356
      %10400 = vmatmul.mubr.bf16.gmra.mrb[0].mxu0 %v8355
      %v10401 = vpop.f32.mrb[0].mxu0
      %v10402 = vadd.f32 %v10209, %v10401
      %v10403 = vpop.f32.mrb[0].mxu0
      %v10404 = vadd.f32 %v10211, %v10403
      %v10405 = vpop.f32.mrb[0].mxu0
      %v10406 = vadd.f32 %v10213, %v10405
      %v10407 = vpop.f32.mrb[0].mxu0
      %v10408 = vadd.f32 %v10215, %v10407
      %10409 = vmatprep.mubr.bf16.mxu0 %v8362
      %10410 = vmatmul.mubr.bf16.gmra.mrb[0].mxu0 %v8361
      %v10411 = vpop.f32.mrb[0].mxu0
      %v10412 = vadd.f32 %v10219, %v10411
      %v10413 = vpop.f32.mrb[0].mxu0
      %v10414 = vadd.f32 %v10221, %v10413
      %v10415 = vpop.f32.mrb[0].mxu0
      %v10416 = vadd.f32 %v10223, %v10415
      %v10417 = vpop.f32.mrb[0].mxu0
      %v10418 = vadd.f32 %v10225, %v10417
      %10419 = vmatprep.mubr.bf16.mxu0 %v8368
      %10420 = vmatmul.mubr.bf16.gmra.mrb[0].mxu0 %v8367
      %v10421 = vpop.f32.mrb[0].mxu0
      %v10422 = vadd.f32 %v10229, %v10421
      %v10423 = vpop.f32.mrb[0].mxu0
      %v10424 = vadd.f32 %v10231, %v10423
      %v10425 = vpop.f32.mrb[0].mxu0
      %v10426 = vadd.f32 %v10233, %v10425
      %v10427 = vpop.f32.mrb[0].mxu0
      %v10428 = vadd.f32 %v10235, %v10427
      %10429 = vmatprep.mubr.bf16.mxu0 %v8370
      %10430 = vmatmul.mubr.bf16.gmra.mrb[0].mxu0 %v8369
      %v10431 = vpop.f32.mrb[0].mxu0
      %v10432 = vadd.f32 %v10239, %v10431
      %v10433 = vpop.f32.mrb[0].mxu0
      %v10434 = vadd.f32 %v10241, %v10433
      %v10435 = vpop.f32.mrb[0].mxu0
      %v10436 = vadd.f32 %v10243, %v10435
      %v10437 = vpop.f32.mrb[0].mxu0
      %v10438 = vadd.f32 %v10245, %v10437
      %10439 = vmatprep.mubr.bf16.mxu0 %v8372
      %10440 = vmatmul.mubr.bf16.gmra.mrb[0].mxu0 %v8371
      %v10441 = vpop.f32.mrb[0].mxu0
      %v10442 = vadd.f32 %v10249, %v10441
      %v10443 = vpop.f32.mrb[0].mxu0
      %v10444 = vadd.f32 %v10251, %v10443
      %v10445 = vpop.f32.mrb[0].mxu0
      %v10446 = vadd.f32 %v10253, %v10445
      %v10447 = vpop.f32.mrb[0].mxu0
      %v10448 = vadd.f32 %v10255, %v10447
      %10449 = vmatprep.mubr.bf16.mxu0 %v8374
      %10450 = vmatmul.mubr.bf16.gmra.mrb[0].mxu0 %v8373
      %v10451 = vpop.f32.mrb[0].mxu0
      %v10452 = vadd.f32 %v10259, %v10451
      %v10453 = vpop.f32.mrb[0].mxu0
      %v10454 = vadd.f32 %v10261, %v10453
      %v10455 = vpop.f32.mrb[0].mxu0
      %v10456 = vadd.f32 %v10263, %v10455
      %v10457 = vpop.f32.mrb[0].mxu0
      %v10458 = vadd.f32 %v10265, %v10457
      %10459 = vmatprep.mubr.bf16.mxu0 %v8376
      %10460 = vmatmul.mubr.bf16.gmra.mrb[0].mxu0 %v8375
      %v10461 = vpop.f32.mrb[0].mxu0
      %v10462 = vadd.f32 %v10269, %v10461
      %v10463 = vpop.f32.mrb[0].mxu0
      %v10464 = vadd.f32 %v10271, %v10463
      %v10465 = vpop.f32.mrb[0].mxu0
      %v10466 = vadd.f32 %v10273, %v10465
      %v10467 = vpop.f32.mrb[0].mxu0
      %v10468 = vadd.f32 %v10275, %v10467
      %10469 = vmatprep.mubr.bf16.mxu0 %v8378
      %10470 = vmatmul.mubr.bf16.gmra.mrb[0].mxu0 %v8377
      %v10471 = vpop.f32.mrb[0].mxu0
      %v10472 = vadd.f32 %v10279, %v10471
      %v10473 = vpop.f32.mrb[0].mxu0
      %v10474 = vadd.f32 %v10281, %v10473
      %v10475 = vpop.f32.mrb[0].mxu0
      %v10476 = vadd.f32 %v10283, %v10475
      %v10477 = vpop.f32.mrb[0].mxu0
      %v10478 = vadd.f32 %v10285, %v10477
      %10479 = vmatprep.mubr.bf16.mxu0 %v8380
      %10480 = vmatmul.mubr.bf16.gmra.mrb[0].mxu0 %v8379
      %v10481 = vpop.f32.mrb[0].mxu0
      %v10482 = vadd.f32 %v10289, %v10481
      %v10483 = vpop.f32.mrb[0].mxu0
      %v10484 = vadd.f32 %v10291, %v10483
      %v10485 = vpop.f32.mrb[0].mxu0
      %v10486 = vadd.f32 %v10293, %v10485
      %v10487 = vpop.f32.mrb[0].mxu0
      %v10488 = vadd.f32 %v10295, %v10487
      %10489 = vmatprep.mubr.bf16.mxu0 %v8382
      %10490 = vmatmul.mubr.bf16.gmra.mrb[0].mxu0 %v8381
      %v10491 = vpop.f32.mrb[0].mxu0
      %v10492 = vadd.f32 %v10299, %v10491
      %v10493 = vpop.f32.mrb[0].mxu0
      %v10494 = vadd.f32 %v10301, %v10493
      %v10495 = vpop.f32.mrb[0].mxu0
      %v10496 = vadd.f32 %v10303, %v10495
      %v10497 = vpop.f32.mrb[0].mxu0
      %v10498 = vadd.f32 %v10305, %v10497
      %10499 = vmatprep.mubr.bf16.mxu0 %v8384
      %10500 = vmatmul.mubr.bf16.gmra.mrb[0].mxu0 %v8383
      %v10501 = vpop.f32.mrb[0].mxu0
      %v10502 = vadd.f32 %v10309, %v10501
      %v10503 = vpop.f32.mrb[0].mxu0
      %v10504 = vadd.f32 %v10311, %v10503
      %v10505 = vpop.f32.mrb[0].mxu0
      %v10506 = vadd.f32 %v10313, %v10505
      %v10507 = vpop.f32.mrb[0].mxu0
      %v10508 = vadd.f32 %v10315, %v10507
      %10509 = vdwg.mxu0
      %10510 = vmatprep.subr.bf16.mxu0 %v9292
      %10511 = vmatpush1.bf16.msra.mxu0 %v9291
      %10512 = vmatprep.subr.bf16.mxu0 %v9296
      %10513 = vmatpush1.bf16.msra.mxu0 %v9295
      %10514 = vmatprep.subr.bf16.mxu0 %v9300
      %10515 = vmatpush1.bf16.msra.mxu0 %v9299
      %10516 = vmatprep.subr.bf16.mxu0 %v9304
      %10517 = vmatpush1.bf16.msra.mxu0 %v9303
      %10518 = vmatprep.subr.bf16.mxu0 %v9308
      %10519 = vmatpush1.bf16.msra.mxu0 %v9307
      %10520 = vmatprep.subr.bf16.mxu0 %v9312
      %10521 = vmatpush1.bf16.msra.mxu0 %v9311
      %10522 = vmatprep.subr.bf16.mxu0 %v9316
      %10523 = vmatpush1.bf16.msra.mxu0 %v9315
      %10524 = vmatprep.subr.bf16.mxu0 %v9320
      %10525 = vmatpush1.bf16.msra.mxu0 %v9319
      %10526 = vmatprep.subr.bf16.mxu0 %v9324
      %10527 = vmatpush1.bf16.msra.mxu0 %v9323
      %10528 = vmatprep.subr.bf16.mxu0 %v9328
      %10529 = vmatpush1.bf16.msra.mxu0 %v9327
      %10530 = vmatprep.subr.bf16.mxu0 %v9332
      %10531 = vmatpush1.bf16.msra.mxu0 %v9331
      %10532 = vmatprep.subr.bf16.mxu0 %v9336
      %10533 = vmatpush1.bf16.msra.mxu0 %v9335
      %10534 = vmatprep.subr.bf16.mxu0 %v9340
      %10535 = vmatpush1.bf16.msra.mxu0 %v9339
      %10536 = vmatprep.subr.bf16.mxu0 %v9344
      %10537 = vmatpush1.bf16.msra.mxu0 %v9343
      %10538 = vmatprep.subr.bf16.mxu0 %v9348
      %10539 = vmatpush1.bf16.msra.mxu0 %v9347
      %10540 = vmatprep.subr.bf16.mxu0 %v9352
      %10541 = vmatpush1.bf16.msra.mxu0 %v9351
      %10542 = vmatprep.mubr.bf16.mxu0 %v8350
      %10543 = vmatmul.mubr.bf16.gmra.mrb[0].mxu0 %v8349
      %v10544 = vpop.f32.mrb[0].mxu0
      %v10545 = vadd.f32 %v10352, %v10544
      %v10546 = vpop.f32.mrb[0].mxu0
      %v10547 = vadd.f32 %v10354, %v10546
      %v10548 = vpop.f32.mrb[0].mxu0
      %v10549 = vadd.f32 %v10356, %v10548
      %v10550 = vpop.f32.mrb[0].mxu0
      %v10551 = vadd.f32 %v10358, %v10550
      %10552 = vmatprep.mubr.bf16.mxu0 %v8356
      %10553 = vmatmul.mubr.bf16.gmra.mrb[0].mxu0 %v8355
      %v10554 = vpop.f32.mrb[0].mxu0
      %v10555 = vadd.f32 %v10362, %v10554
      %v10556 = vpop.f32.mrb[0].mxu0
      %v10557 = vadd.f32 %v10364, %v10556
      %v10558 = vpop.f32.mrb[0].mxu0
      %v10559 = vadd.f32 %v10366, %v10558
      %v10560 = vpop.f32.mrb[0].mxu0
      %v10561 = vadd.f32 %v10368, %v10560
      %10562 = vmatprep.mubr.bf16.mxu0 %v8362
      %10563 = vmatmul.mubr.bf16.gmra.mrb[0].mxu0 %v8361
      %v10564 = vpop.f32.mrb[0].mxu0
      %v10565 = vadd.f32 %v10372, %v10564
      %v10566 = vpop.f32.mrb[0].mxu0
      %v10567 = vadd.f32 %v10374, %v10566
      %v10568 = vpop.f32.mrb[0].mxu0
      %v10569 = vadd.f32 %v10376, %v10568
      %v10570 = vpop.f32.mrb[0].mxu0
      %v10571 = vadd.f32 %v10378, %v10570
      %10572 = vmatprep.mubr.bf16.mxu0 %v8368
      %10573 = vmatmul.mubr.bf16.gmra.mrb[0].mxu0 %v8367
      %v10574 = vpop.f32.mrb[0].mxu0
      %v10575 = vadd.f32 %v10382, %v10574
      %v10576 = vpop.f32.mrb[0].mxu0
      %v10577 = vadd.f32 %v10384, %v10576
      %v10578 = vpop.f32.mrb[0].mxu0
      %v10579 = vadd.f32 %v10386, %v10578
      %v10580 = vpop.f32.mrb[0].mxu0
      %v10581 = vadd.f32 %v10388, %v10580
      %10582 = vmatprep.mubr.bf16.mxu0 %v8370
      %10583 = vmatmul.mubr.bf16.gmra.mrb[0].mxu0 %v8369
      %v10584 = vpop.f32.mrb[0].mxu0
      %v10585 = vadd.f32 %v10392, %v10584
      %v10586 = vpop.f32.mrb[0].mxu0
      %v10587 = vadd.f32 %v10394, %v10586
      %v10588 = vpop.f32.mrb[0].mxu0
      %v10589 = vadd.f32 %v10396, %v10588
      %v10590 = vpop.f32.mrb[0].mxu0
      %v10591 = vadd.f32 %v10398, %v10590
      %10592 = vmatprep.mubr.bf16.mxu0 %v8372
      %10593 = vmatmul.mubr.bf16.gmra.mrb[0].mxu0 %v8371
      %v10594 = vpop.f32.mrb[0].mxu0
      %v10595 = vadd.f32 %v10402, %v10594
      %v10596 = vpop.f32.mrb[0].mxu0
      %v10597 = vadd.f32 %v10404, %v10596
      %v10598 = vpop.f32.mrb[0].mxu0
      %v10599 = vadd.f32 %v10406, %v10598
      %v10600 = vpop.f32.mrb[0].mxu0
      %v10601 = vadd.f32 %v10408, %v10600
      %10602 = vmatprep.mubr.bf16.mxu0 %v8374
      %10603 = vmatmul.mubr.bf16.gmra.mrb[0].mxu0 %v8373
      %v10604 = vpop.f32.mrb[0].mxu0
      %v10605 = vadd.f32 %v10412, %v10604
      %v10606 = vpop.f32.mrb[0].mxu0
      %v10607 = vadd.f32 %v10414, %v10606
      %v10608 = vpop.f32.mrb[0].mxu0
      %v10609 = vadd.f32 %v10416, %v10608
      %v10610 = vpop.f32.mrb[0].mxu0
      %v10611 = vadd.f32 %v10418, %v10610
      %10612 = vmatprep.mubr.bf16.mxu0 %v8376
      %10613 = vmatmul.mubr.bf16.gmra.mrb[0].mxu0 %v8375
      %v10614 = vpop.f32.mrb[0].mxu0
      %v10615 = vadd.f32 %v10422, %v10614
      %v10616 = vpop.f32.mrb[0].mxu0
      %v10617 = vadd.f32 %v10424, %v10616
      %v10618 = vpop.f32.mrb[0].mxu0
      %v10619 = vadd.f32 %v10426, %v10618
      %v10620 = vpop.f32.mrb[0].mxu0
      %v10621 = vadd.f32 %v10428, %v10620
      %10622 = vmatprep.mubr.bf16.mxu0 %v8378
      %10623 = vmatmul.mubr.bf16.gmra.mrb[0].mxu0 %v8377
      %v10624 = vpop.f32.mrb[0].mxu0
      %v10625 = vadd.f32 %v10432, %v10624
      %v10626 = vpop.f32.mrb[0].mxu0
      %v10627 = vadd.f32 %v10434, %v10626
      %v10628 = vpop.f32.mrb[0].mxu0
      %v10629 = vadd.f32 %v10436, %v10628
      %v10630 = vpop.f32.mrb[0].mxu0
      %v10631 = vadd.f32 %v10438, %v10630
      %10632 = vmatprep.mubr.bf16.mxu0 %v8380
      %10633 = vmatmul.mubr.bf16.gmra.mrb[0].mxu0 %v8379
      %v10634 = vpop.f32.mrb[0].mxu0
      %v10635 = vadd.f32 %v10442, %v10634
      %v10636 = vpop.f32.mrb[0].mxu0
      %v10637 = vadd.f32 %v10444, %v10636
      %v10638 = vpop.f32.mrb[0].mxu0
      %v10639 = vadd.f32 %v10446, %v10638
      %v10640 = vpop.f32.mrb[0].mxu0
      %v10641 = vadd.f32 %v10448, %v10640
      %10642 = vmatprep.mubr.bf16.mxu0 %v8382
      %10643 = vmatmul.mubr.bf16.gmra.mrb[0].mxu0 %v8381
      %v10644 = vpop.f32.mrb[0].mxu0
      %v10645 = vadd.f32 %v10452, %v10644
      %v10646 = vpop.f32.mrb[0].mxu0
      %v10647 = vadd.f32 %v10454, %v10646
      %v10648 = vpop.f32.mrb[0].mxu0
      %v10649 = vadd.f32 %v10456, %v10648
      %v10650 = vpop.f32.mrb[0].mxu0
      %v10651 = vadd.f32 %v10458, %v10650
      %10652 = vmatprep.mubr.bf16.mxu0 %v8384
      %10653 = vmatmul.mubr.bf16.gmra.mrb[0].mxu0 %v8383
      %v10654 = vpop.f32.mrb[0].mxu0
      %v10655 = vadd.f32 %v10462, %v10654
      %v10656 = vpop.f32.mrb[0].mxu0
      %v10657 = vadd.f32 %v10464, %v10656
      %v10658 = vpop.f32.mrb[0].mxu0
      %v10659 = vadd.f32 %v10466, %v10658
      %v10660 = vpop.f32.mrb[0].mxu0
      %v10661 = vadd.f32 %v10468, %v10660
      %10662 = vmatprep.mubr.bf16.mxu0 %v8386
      %10663 = vmatmul.mubr.bf16.gmra.mrb[0].mxu0 %v8385
      %v10664 = vpop.f32.mrb[0].mxu0
      %v10665 = vadd.f32 %v10472, %v10664
      %v10666 = vpop.f32.mrb[0].mxu0
      %v10667 = vadd.f32 %v10474, %v10666
      %v10668 = vpop.f32.mrb[0].mxu0
      %v10669 = vadd.f32 %v10476, %v10668
      %v10670 = vpop.f32.mrb[0].mxu0
      %v10671 = vadd.f32 %v10478, %v10670
      %10672 = vmatprep.mubr.bf16.mxu0 %v8388
      %10673 = vmatmul.mubr.bf16.gmra.mrb[0].mxu0 %v8387
      %v10674 = vpop.f32.mrb[0].mxu0
      %v10675 = vadd.f32 %v10482, %v10674
      %v10676 = vpop.f32.mrb[0].mxu0
      %v10677 = vadd.f32 %v10484, %v10676
      %v10678 = vpop.f32.mrb[0].mxu0
      %v10679 = vadd.f32 %v10486, %v10678
      %v10680 = vpop.f32.mrb[0].mxu0
      %v10681 = vadd.f32 %v10488, %v10680
      %10682 = vmatprep.mubr.bf16.mxu0 %v8390
      %10683 = vmatmul.mubr.bf16.gmra.mrb[0].mxu0 %v8389
      %v10684 = vpop.f32.mrb[0].mxu0
      %v10685 = vadd.f32 %v10492, %v10684
      %v10686 = vpop.f32.mrb[0].mxu0
      %v10687 = vadd.f32 %v10494, %v10686
      %v10688 = vpop.f32.mrb[0].mxu0
      %v10689 = vadd.f32 %v10496, %v10688
      %v10690 = vpop.f32.mrb[0].mxu0
      %v10691 = vadd.f32 %v10498, %v10690
      %10692 = vmatprep.mubr.bf16.mxu0 %v8392
      %10693 = vmatmul.mubr.bf16.gmra.mrb[0].mxu0 %v8391
      %v10694 = vpop.f32.mrb[0].mxu0
      %v10695 = vadd.f32 %v10502, %v10694
      %v10696 = vpop.f32.mrb[0].mxu0
      %v10697 = vadd.f32 %v10504, %v10696
      %v10698 = vpop.f32.mrb[0].mxu0
      %v10699 = vadd.f32 %v10506, %v10698
      %v10700 = vpop.f32.mrb[0].mxu0
      %v10701 = vadd.f32 %v10508, %v10700
      %10702 = vdwg.mxu0
      %v10703 = vmax.f32 %v9966, %v9968
      %v10704 = vmax.f32 %v9970, %v9972
      %v10705 = vmax.f32 %v9976, %v9978
      %v10706 = vmax.f32 %v9980, %v9982
      %v10707 = vmax.f32 %v9986, %v9988
      %v10708 = vmax.f32 %v9990, %v9992
      %v10709 = vmax.f32 %v9996, %v9998
      %v10710 = vmax.f32 %v10000, %v10002
      %v10711 = vmax.f32 %v10006, %v10008
      %v10712 = vmax.f32 %v10010, %v10012
      %v10713 = vmax.f32 %v10016, %v10018
      %v10714 = vmax.f32 %v10020, %v10022
      %v10715 = vmax.f32 %v10026, %v10028
      %v10716 = vmax.f32 %v10030, %v10032
      %v10717 = vmax.f32 %v10036, %v10038
      %v10718 = vmax.f32 %v10040, %v10042
      %v10719 = vmax.f32 %v10046, %v10048
      %v10720 = vmax.f32 %v10050, %v10052
      %v10721 = vmax.f32 %v10056, %v10058
      %v10722 = vmax.f32 %v10060, %v10062
      %v10723 = vmax.f32 %v10066, %v10068
      %v10724 = vmax.f32 %v10070, %v10072
      %v10725 = vmax.f32 %v10076, %v10078
      %v10726 = vmax.f32 %v10080, %v10082
      %v10727 = vmax.f32 %v10086, %v10088
      %v10728 = vmax.f32 %v10090, %v10092
      %v10729 = vmax.f32 %v10096, %v10098
      %v10730 = vmax.f32 %v10100, %v10102
      %v10731 = vmax.f32 %v10106, %v10108
      %v10732 = vmax.f32 %v10110, %v10112
      %v10733 = vmax.f32 %v10116, %v10118
      %v10734 = vmax.f32 %v10120, %v10122
      %v10735 = vmax.f32 %v10545, %v10547
      %v10736 = vmax.f32 %v10549, %v10551
      %v10737 = vmax.f32 %v10555, %v10557
      %v10738 = vmax.f32 %v10559, %v10561
      %v10739 = vmax.f32 %v10565, %v10567
      %v10740 = vmax.f32 %v10569, %v10571
      %v10741 = vmax.f32 %v10575, %v10577
      %v10742 = vmax.f32 %v10579, %v10581
      %v10743 = vmax.f32 %v10585, %v10587
      %v10744 = vmax.f32 %v10589, %v10591
      %v10745 = vmax.f32 %v10595, %v10597
      %v10746 = vmax.f32 %v10599, %v10601
      %v10747 = vmax.f32 %v10605, %v10607
      %v10748 = vmax.f32 %v10609, %v10611
      %v10749 = vmax.f32 %v10615, %v10617
      %v10750 = vmax.f32 %v10619, %v10621
      %v10751 = vmax.f32 %v10625, %v10627
      %v10752 = vmax.f32 %v10629, %v10631
      %v10753 = vmax.f32 %v10635, %v10637
      %v10754 = vmax.f32 %v10639, %v10641
      %v10755 = vmax.f32 %v10645, %v10647
      %v10756 = vmax.f32 %v10649, %v10651
      %v10757 = vmax.f32 %v10655, %v10657
      %v10758 = vmax.f32 %v10659, %v10661
      %v10759 = vmax.f32 %v10665, %v10667
      %v10760 = vmax.f32 %v10669, %v10671
      %v10761 = vmax.f32 %v10675, %v10677
      %v10762 = vmax.f32 %v10679, %v10681
      %v10763 = vmax.f32 %v10685, %v10687
      %v10764 = vmax.f32 %v10689, %v10691
      %v10765 = vmax.f32 %v10695, %v10697
      %v10766 = vmax.f32 %v10699, %v10701
      %v10767 = vmax.f32 %v10703, %v10735
      %v10768 = vmax.f32 %v10704, %v10736
      %v10769 = vmax.f32 %v10705, %v10737
      %v10770 = vmax.f32 %v10706, %v10738
      %v10771 = vmax.f32 %v10707, %v10739
      %v10772 = vmax.f32 %v10708, %v10740
      %v10773 = vmax.f32 %v10709, %v10741
      %v10774 = vmax.f32 %v10710, %v10742
      %v10775 = vmax.f32 %v10711, %v10743
      %v10776 = vmax.f32 %v10712, %v10744
      %v10777 = vmax.f32 %v10713, %v10745
      %v10778 = vmax.f32 %v10714, %v10746
      %v10779 = vmax.f32 %v10715, %v10747
      %v10780 = vmax.f32 %v10716, %v10748
      %v10781 = vmax.f32 %v10717, %v10749
      %v10782 = vmax.f32 %v10718, %v10750
      %v10783 = vmax.f32 %v10719, %v10751
      %v10784 = vmax.f32 %v10720, %v10752
      %v10785 = vmax.f32 %v10721, %v10753
      %v10786 = vmax.f32 %v10722, %v10754
      %v10787 = vmax.f32 %v10723, %v10755
      %v10788 = vmax.f32 %v10724, %v10756
      %v10789 = vmax.f32 %v10725, %v10757
      %v10790 = vmax.f32 %v10726, %v10758
      %v10791 = vmax.f32 %v10727, %v10759
      %v10792 = vmax.f32 %v10728, %v10760
      %v10793 = vmax.f32 %v10729, %v10761
      %v10794 = vmax.f32 %v10730, %v10762
      %v10795 = vmax.f32 %v10731, %v10763
      %v10796 = vmax.f32 %v10732, %v10764
      %v10797 = vmax.f32 %v10733, %v10765
      %v10798 = vmax.f32 %v10734, %v10766
      %v10799 = vld [vmem:[%s4] sm:$0x1]
      %v10801 = vlaneseq
      %v10802 = vshrl.u32 %v10801, 7
      %v10803 = vsub.s32 0, %v10802
      %v10804 = vrot.slane %v10799, %v10803
      %v10806 = vadd.f32 %v10767, %v10804
      %v10807 = vadd.f32 %v10768, %v10804
      %v10808 = vadd.f32 %v10769, %v10804
      %v10809 = vadd.f32 %v10770, %v10804
      %v10810 = vadd.f32 %v10771, %v10804
      %v10811 = vadd.f32 %v10772, %v10804
      %v10812 = vadd.f32 %v10773, %v10804
      %v10813 = vadd.f32 %v10774, %v10804
      %v10814 = vadd.f32 %v10775, %v10804
      %v10815 = vadd.f32 %v10776, %v10804
      %v10816 = vadd.f32 %v10777, %v10804
      %v10817 = vadd.f32 %v10778, %v10804
      %v10818 = vadd.f32 %v10779, %v10804
      %v10819 = vadd.f32 %v10780, %v10804
      %v10820 = vadd.f32 %v10781, %v10804
      %v10821 = vadd.f32 %v10782, %v10804
      %v10822 = vadd.f32 %v10783, %v10804
      %v10823 = vadd.f32 %v10784, %v10804
      %v10824 = vadd.f32 %v10785, %v10804
      %v10825 = vadd.f32 %v10786, %v10804
      %v10826 = vadd.f32 %v10787, %v10804
      %v10827 = vadd.f32 %v10788, %v10804
      %v10828 = vadd.f32 %v10789, %v10804
      %v10829 = vadd.f32 %v10790, %v10804
      %v10830 = vadd.f32 %v10791, %v10804
      %v10831 = vadd.f32 %v10792, %v10804
      %v10832 = vadd.f32 %v10793, %v10804
      %v10833 = vadd.f32 %v10794, %v10804
      %v10834 = vadd.f32 %v10795, %v10804
      %v10835 = vadd.f32 %v10796, %v10804
      %v10836 = vadd.f32 %v10797, %v10804
      %v10837 = vadd.f32 %v10798, %v10804
      %v10838 = vmax.f32 %v10806, 0.0
      %v10839 = vmax.f32 %v10807, 0.0
      %v10840 = vmax.f32 %v10808, 0.0
      %v10841 = vmax.f32 %v10809, 0.0
      %v10842 = vmax.f32 %v10810, 0.0
      %v10843 = vmax.f32 %v10811, 0.0
      %v10844 = vmax.f32 %v10812, 0.0
      %v10845 = vmax.f32 %v10813, 0.0
      %v10846 = vmax.f32 %v10814, 0.0
      %v10847 = vmax.f32 %v10815, 0.0
      %v10848 = vmax.f32 %v10816, 0.0
      %v10849 = vmax.f32 %v10817, 0.0
      %v10850 = vmax.f32 %v10818, 0.0
      %v10851 = vmax.f32 %v10819, 0.0
      %v10852 = vmax.f32 %v10820, 0.0
      %v10853 = vmax.f32 %v10821, 0.0
      %v10854 = vmax.f32 %v10822, 0.0
      %v10855 = vmax.f32 %v10823, 0.0
      %v10856 = vmax.f32 %v10824, 0.0
      %v10857 = vmax.f32 %v10825, 0.0
      %v10858 = vmax.f32 %v10826, 0.0
      %v10859 = vmax.f32 %v10827, 0.0
      %v10860 = vmax.f32 %v10828, 0.0
      %v10861 = vmax.f32 %v10829, 0.0
      %v10862 = vmax.f32 %v10830, 0.0
      %v10863 = vmax.f32 %v10831, 0.0
      %v10864 = vmax.f32 %v10832, 0.0
      %v10865 = vmax.f32 %v10833, 0.0
      %v10866 = vmax.f32 %v10834, 0.0
      %v10867 = vmax.f32 %v10835, 0.0
      %v10868 = vmax.f32 %v10836, 0.0
      %v10869 = vmax.f32 %v10837, 0.0
      %v10870 = vpack.c.bf16 %v10839, %v10838
      %v10871 = vpack.c.bf16 %v10847, %v10846
      %v10872 = vpack.c.bf16 %v10855, %v10854
      %v10873 = vpack.c.bf16 %v10863, %v10862
      %v10874 = vpack.c.bf16 %v10841, %v10840
      %v10875 = vpack.c.bf16 %v10849, %v10848
      %v10876 = vpack.c.bf16 %v10857, %v10856
      %v10877 = vpack.c.bf16 %v10865, %v10864
      %v10878 = vpack.c.bf16 %v10843, %v10842
      %v10879 = vpack.c.bf16 %v10851, %v10850
      %v10880 = vpack.c.bf16 %v10859, %v10858
      %v10881 = vpack.c.bf16 %v10867, %v10866
      %v10882 = vpack.c.bf16 %v10845, %v10844
      %v10883 = vpack.c.bf16 %v10853, %v10852
      %v10884 = vpack.c.bf16 %v10861, %v10860
      %v10885 = vpack.c.bf16 %v10869, %v10868
      %v10886 = vld [vmem:[%s5] sm:$0xf]
      %v10887 = vld [vmem:[%s5 + $0x4] sm:$0xf]
      %v10888 = vld [vmem:[%s5 + $0x8] sm:$0xf]
      %v10889 = vld [vmem:[%s5 + $0xc] sm:$0xf]
      %v10890 = vld [vmem:[%s5 + $0x10] sm:$0xf]
      %v10891 = vld [vmem:[%s5 + $0x14] sm:$0xf]
      %v10892 = vld [vmem:[%s5 + $0x18] sm:$0xf]
      %v10893 = vld [vmem:[%s5 + $0x1c] sm:$0xf]
      %v10894 = vld [vmem:[%s5 + $0x20] sm:$0xf]
      %v10895 = vld [vmem:[%s5 + $0x24] sm:$0xf]
      %v10896 = vld [vmem:[%s5 + $0x28] sm:$0xf]
      %v10897 = vld [vmem:[%s5 + $0x2c] sm:$0xf]
      %v10898 = vld [vmem:[%s5 + $0x30] sm:$0xf]
      %v10899 = vld [vmem:[%s5 + $0x34] sm:$0xf]
      %v10900 = vld [vmem:[%s5 + $0x38] sm:$0xf]
      %v10901 = vld [vmem:[%s5 + $0x3c] sm:$0xf]
      %v10902 = vld [vmem:[%s5 + $0x40] sm:$0xf]
      %v10903 = vld [vmem:[%s5 + $0x44] sm:$0xf]
      %v10904 = vld [vmem:[%s5 + $0x48] sm:$0xf]
      %v10905 = vld [vmem:[%s5 + $0x4c] sm:$0xf]
      %v10906 = vld [vmem:[%s5 + $0x50] sm:$0xf]
      %v10907 = vld [vmem:[%s5 + $0x54] sm:$0xf]
      %v10908 = vld [vmem:[%s5 + $0x58] sm:$0xf]
      %v10909 = vld [vmem:[%s5 + $0x5c] sm:$0xf]
      %v10910 = vld [vmem:[%s5 + $0x60] sm:$0xf]
      %v10911 = vld [vmem:[%s5 + $0x64] sm:$0xf]
      %v10912 = vld [vmem:[%s5 + $0x68] sm:$0xf]
      %v10913 = vld [vmem:[%s5 + $0x6c] sm:$0xf]
      %v10914 = vld [vmem:[%s5 + $0x70] sm:$0xf]
      %v10915 = vld [vmem:[%s5 + $0x74] sm:$0xf]
      %v10916 = vld [vmem:[%s5 + $0x78] sm:$0xf]
      %v10917 = vld [vmem:[%s5 + $0x7c] sm:$0xf]
      %v10918 = vld [vmem:[%s5 + $0x80] sm:$0xf]
      %v10919 = vld [vmem:[%s5 + $0x84] sm:$0xf]
      %v10920 = vld [vmem:[%s5 + $0x88] sm:$0xf]
      %v10921 = vld [vmem:[%s5 + $0x8c] sm:$0xf]
      %v10922 = vld [vmem:[%s5 + $0x90] sm:$0xf]
      %v10923 = vld [vmem:[%s5 + $0x94] sm:$0xf]
      %v10924 = vld [vmem:[%s5 + $0x98] sm:$0xf]
      %v10925 = vld [vmem:[%s5 + $0x9c] sm:$0xf]
      %v10926 = vld [vmem:[%s5 + $0xa0] sm:$0xf]
      %v10927 = vld [vmem:[%s5 + $0xa4] sm:$0xf]
      %v10928 = vld [vmem:[%s5 + $0xa8] sm:$0xf]
      %v10929 = vld [vmem:[%s5 + $0xac] sm:$0xf]
      %v10930 = vld [vmem:[%s5 + $0xb0] sm:$0xf]
      %v10931 = vld [vmem:[%s5 + $0xb4] sm:$0xf]
      %v10932 = vld [vmem:[%s5 + $0xb8] sm:$0xf]
      %v10933 = vld [vmem:[%s5 + $0xbc] sm:$0xf]
      %v10934 = vld [vmem:[%s5 + $0xc0] sm:$0xf]
      %v10935 = vld [vmem:[%s5 + $0xc4] sm:$0xf]
      %v10936 = vld [vmem:[%s5 + $0xc8] sm:$0xf]
      %v10937 = vld [vmem:[%s5 + $0xcc] sm:$0xf]
      %v10938 = vld [vmem:[%s5 + $0xd0] sm:$0xf]
      %v10939 = vld [vmem:[%s5 + $0xd4] sm:$0xf]
      %v10940 = vld [vmem:[%s5 + $0xd8] sm:$0xf]
      %v10941 = vld [vmem:[%s5 + $0xdc] sm:$0xf]
      %v10942 = vld [vmem:[%s5 + $0xe0] sm:$0xf]
      %v10943 = vld [vmem:[%s5 + $0xe4] sm:$0xf]
      %v10944 = vld [vmem:[%s5 + $0xe8] sm:$0xf]
      %v10945 = vld [vmem:[%s5 + $0xec] sm:$0xf]
      %v10946 = vld [vmem:[%s5 + $0xf0] sm:$0xf]
      %v10947 = vld [vmem:[%s5 + $0xf4] sm:$0xf]
      %v10948 = vld [vmem:[%s5 + $0xf8] sm:$0xf]
      %v10949 = vld [vmem:[%s5 + $0xfc] sm:$0xf]
      %v10950 = vld [vmem:[%s6] sm:$0x1]
      %v10952 = vlaneseq
      %v10953 = vshrl.u32 %v10952, 7
      %v10954 = vsub.s32 0, %v10953
      %v10955 = vrot.slane %v10950, %v10954
      %v11021 = vunpack.c.l.b16 %v10886
      %v11022 = vunpack.c.l.b16 %v10887
      %v11023 = vunpack.c.l.b16 %v10888
      %v11024 = vunpack.c.l.b16 %v10889
      %v11025 = vunpack.c.l.b16 %v10890
      %v11026 = vunpack.c.l.b16 %v10891
      %v11027 = vunpack.c.l.b16 %v10892
      %v11028 = vunpack.c.l.b16 %v10893
      %v11029 = vunpack.c.l.b16 %v10894
      %v11030 = vunpack.c.l.b16 %v10895
      %v11031 = vunpack.c.l.b16 %v10896
      %v11032 = vunpack.c.l.b16 %v10897
      %v11033 = vunpack.c.l.b16 %v10898
      %v11034 = vunpack.c.l.b16 %v10899
      %v11035 = vunpack.c.l.b16 %v10900
      %v11036 = vunpack.c.l.b16 %v10901
      %v11037 = vunpack.c.l.b16 %v10902
      %v11038 = vunpack.c.l.b16 %v10903
      %v11039 = vunpack.c.l.b16 %v10904
      %v11040 = vunpack.c.l.b16 %v10905
      %v11041 = vunpack.c.l.b16 %v10906
      %v11042 = vunpack.c.l.b16 %v10907
      %v11043 = vunpack.c.l.b16 %v10908
      %v11044 = vunpack.c.l.b16 %v10909
      %v11045 = vunpack.c.l.b16 %v10910
      %v11046 = vunpack.c.l.b16 %v10911
      %v11047 = vunpack.c.l.b16 %v10912
      %v11048 = vunpack.c.l.b16 %v10913
      %v11049 = vunpack.c.l.b16 %v10914
      %v11050 = vunpack.c.l.b16 %v10915
      %v11051 = vunpack.c.l.b16 %v10916
      %v11052 = vunpack.c.l.b16 %v10917
      %v11053 = vunpack.c.l.b16 %v10918
      %v11054 = vunpack.c.l.b16 %v10919
      %v11055 = vunpack.c.l.b16 %v10920
      %v11056 = vunpack.c.l.b16 %v10921
      %v11057 = vunpack.c.l.b16 %v10922
      %v11058 = vunpack.c.l.b16 %v10923
      %v11059 = vunpack.c.l.b16 %v10924
      %v11060 = vunpack.c.l.b16 %v10925
      %v11061 = vunpack.c.l.b16 %v10926
      %v11062 = vunpack.c.l.b16 %v10927
      %v11063 = vunpack.c.l.b16 %v10928
      %v11064 = vunpack.c.l.b16 %v10929
      %v11065 = vunpack.c.l.b16 %v10930
      %v11066 = vunpack.c.l.b16 %v10931
      %v11067 = vunpack.c.l.b16 %v10932
      %v11068 = vunpack.c.l.b16 %v10933
      %v11069 = vunpack.c.l.b16 %v10934
      %v11070 = vunpack.c.l.b16 %v10935
      %v11071 = vunpack.c.l.b16 %v10936
      %v11072 = vunpack.c.l.b16 %v10937
      %v11073 = vunpack.c.l.b16 %v10938
      %v11074 = vunpack.c.l.b16 %v10939
      %v11075 = vunpack.c.l.b16 %v10940
      %v11076 = vunpack.c.l.b16 %v10941
      %v11077 = vunpack.c.l.b16 %v10942
      %v11078 = vunpack.c.l.b16 %v10943
      %v11079 = vunpack.c.l.b16 %v10944
      %v11080 = vunpack.c.l.b16 %v10945
      %v11081 = vunpack.c.l.b16 %v10946
      %v11082 = vunpack.c.l.b16 %v10947
      %v11083 = vunpack.c.l.b16 %v10948
      %v11084 = vunpack.c.l.b16 %v10949
      %v11085 = vpack.c.b16 %v11022, %v11021
      %v11086 = vpack.c.b16 %v11024, %v11023
      %v11087 = vpack.c.b16 %v11026, %v11025
      %v11088 = vpack.c.b16 %v11028, %v11027
      %v11089 = vpack.c.b16 %v11030, %v11029
      %v11090 = vpack.c.b16 %v11032, %v11031
      %v11091 = vpack.c.b16 %v11034, %v11033
      %v11092 = vpack.c.b16 %v11036, %v11035
      %v11093 = vpack.c.b16 %v11038, %v11037
      %v11094 = vpack.c.b16 %v11040, %v11039
      %v11095 = vpack.c.b16 %v11042, %v11041
      %v11096 = vpack.c.b16 %v11044, %v11043
      %v11097 = vpack.c.b16 %v11046, %v11045
      %v11098 = vpack.c.b16 %v11048, %v11047
      %v11099 = vpack.c.b16 %v11050, %v11049
      %v11100 = vpack.c.b16 %v11052, %v11051
      %v11101 = vpack.c.b16 %v11054, %v11053
      %v11102 = vpack.c.b16 %v11056, %v11055
      %v11103 = vpack.c.b16 %v11058, %v11057
      %v11104 = vpack.c.b16 %v11060, %v11059
      %v11105 = vpack.c.b16 %v11062, %v11061
      %v11106 = vpack.c.b16 %v11064, %v11063
      %v11107 = vpack.c.b16 %v11066, %v11065
      %v11108 = vpack.c.b16 %v11068, %v11067
      %v11109 = vpack.c.b16 %v11070, %v11069
      %v11110 = vpack.c.b16 %v11072, %v11071
      %v11111 = vpack.c.b16 %v11074, %v11073
      %v11112 = vpack.c.b16 %v11076, %v11075
      %v11113 = vpack.c.b16 %v11078, %v11077
      %v11114 = vpack.c.b16 %v11080, %v11079
      %v11115 = vpack.c.b16 %v11082, %v11081
      %v11116 = vpack.c.b16 %v11084, %v11083
      %11149 = vmatprep.subr.bf16.mxu0 0
      %11150 = vmatpush1.bf16.msra.mxu0 %v11085
      %11151 = vmatprep.subr.bf16.mxu0 0
      %11152 = vmatpush1.bf16.msra.mxu0 %v11086
      %11153 = vmatprep.subr.bf16.mxu0 0
      %11154 = vmatpush1.bf16.msra.mxu0 %v11087
      %11155 = vmatprep.subr.bf16.mxu0 0
      %11156 = vmatpush1.bf16.msra.mxu0 %v11088
      %11157 = vmatprep.subr.bf16.mxu0 0
      %11158 = vmatpush1.bf16.msra.mxu0 %v11089
      %11159 = vmatprep.subr.bf16.mxu0 0
      %11160 = vmatpush1.bf16.msra.mxu0 %v11090
      %11161 = vmatprep.subr.bf16.mxu0 0
      %11162 = vmatpush1.bf16.msra.mxu0 %v11091
      %11163 = vmatprep.subr.bf16.mxu0 0
      %11164 = vmatpush1.bf16.msra.mxu0 %v11092
      %11165 = vmatprep.subr.bf16.mxu0 0
      %11166 = vmatpush1.bf16.msra.mxu0 %v11093
      %11167 = vmatprep.subr.bf16.mxu0 0
      %11168 = vmatpush1.bf16.msra.mxu0 %v11094
      %11169 = vmatprep.subr.bf16.mxu0 0
      %11170 = vmatpush1.bf16.msra.mxu0 %v11095
      %11171 = vmatprep.subr.bf16.mxu0 0
      %11172 = vmatpush1.bf16.msra.mxu0 %v11096
      %11173 = vmatprep.subr.bf16.mxu0 0
      %11174 = vmatpush1.bf16.msra.mxu0 %v11097
      %11175 = vmatprep.subr.bf16.mxu0 0
      %11176 = vmatpush1.bf16.msra.mxu0 %v11098
      %11177 = vmatprep.subr.bf16.mxu0 0
      %11178 = vmatpush1.bf16.msra.mxu0 %v11099
      %11179 = vmatprep.subr.bf16.mxu0 0
      %11180 = vmatpush1.bf16.msra.mxu0 %v11100
      %11181 = vmatprep.mubr.bf16.mxu0 %v10871
      %11182 = vmatmul.mubr.bf16.gmra.mrb[0].mxu0 %v10870
      %v11183 = vpop.f32.mrb[0].mxu0
      %v11184 = vadd.f32 %v10955, %v11183
      %v11185 = vpop.f32.mrb[0].mxu0
      %v11186 = vpop.f32.mrb[0].mxu0
      %v11187 = vadd.f32 %v10955, %v11186
      %v11188 = vpop.f32.mrb[0].mxu0
      %11189 = vmatprep.mubr.bf16.mxu0 %v10875
      %11190 = vmatmul.mubr.bf16.gmra.mrb[0].mxu0 %v10874
      %v11191 = vpop.f32.mrb[0].mxu0
      %v11192 = vadd.f32 %v10955, %v11191
      %v11193 = vpop.f32.mrb[0].mxu0
      %v11194 = vpop.f32.mrb[0].mxu0
      %v11195 = vadd.f32 %v10955, %v11194
      %v11196 = vpop.f32.mrb[0].mxu0
      %11197 = vmatprep.mubr.bf16.mxu0 %v10879
      %11198 = vmatmul.mubr.bf16.gmra.mrb[0].mxu0 %v10878
      %v11199 = vpop.f32.mrb[0].mxu0
      %v11200 = vadd.f32 %v10955, %v11199
      %v11201 = vpop.f32.mrb[0].mxu0
      %v11202 = vpop.f32.mrb[0].mxu0
      %v11203 = vadd.f32 %v10955, %v11202
      %v11204 = vpop.f32.mrb[0].mxu0
      %11205 = vmatprep.mubr.bf16.mxu0 %v10883
      %11206 = vmatmul.mubr.bf16.gmra.mrb[0].mxu0 %v10882
      %v11207 = vpop.f32.mrb[0].mxu0
      %v11208 = vadd.f32 %v10955, %v11207
      %v11209 = vpop.f32.mrb[0].mxu0
      %v11210 = vpop.f32.mrb[0].mxu0
      %v11211 = vadd.f32 %v10955, %v11210
      %v11212 = vpop.f32.mrb[0].mxu0
      %11213 = vdwg.mxu0
      %11214 = vmatprep.subr.bf16.mxu0 0
      %11215 = vmatpush1.bf16.msra.mxu0 %v11101
      %11216 = vmatprep.subr.bf16.mxu0 0
      %11217 = vmatpush1.bf16.msra.mxu0 %v11102
      %11218 = vmatprep.subr.bf16.mxu0 0
      %11219 = vmatpush1.bf16.msra.mxu0 %v11103
      %11220 = vmatprep.subr.bf16.mxu0 0
      %11221 = vmatpush1.bf16.msra.mxu0 %v11104
      %11222 = vmatprep.subr.bf16.mxu0 0
      %11223 = vmatpush1.bf16.msra.mxu0 %v11105
      %11224 = vmatprep.subr.bf16.mxu0 0
      %11225 = vmatpush1.bf16.msra.mxu0 %v11106
      %11226 = vmatprep.subr.bf16.mxu0 0
      %11227 = vmatpush1.bf16.msra.mxu0 %v11107
      %11228 = vmatprep.subr.bf16.mxu0 0
      %11229 = vmatpush1.bf16.msra.mxu0 %v11108
      %11230 = vmatprep.subr.bf16.mxu0 0
      %11231 = vmatpush1.bf16.msra.mxu0 %v11109
      %11232 = vmatprep.subr.bf16.mxu0 0
      %11233 = vmatpush1.bf16.msra.mxu0 %v11110
      %11234 = vmatprep.subr.bf16.mxu0 0
      %11235 = vmatpush1.bf16.msra.mxu0 %v11111
      %11236 = vmatprep.subr.bf16.mxu0 0
      %11237 = vmatpush1.bf16.msra.mxu0 %v11112
      %11238 = vmatprep.subr.bf16.mxu0 0
      %11239 = vmatpush1.bf16.msra.mxu0 %v11113
      %11240 = vmatprep.subr.bf16.mxu0 0
      %11241 = vmatpush1.bf16.msra.mxu0 %v11114
      %11242 = vmatprep.subr.bf16.mxu0 0
      %11243 = vmatpush1.bf16.msra.mxu0 %v11115
      %11244 = vmatprep.subr.bf16.mxu0 0
      %11245 = vmatpush1.bf16.msra.mxu0 %v11116
      %11246 = vmatprep.mubr.bf16.mxu0 %v10873
      %11247 = vmatmul.mubr.bf16.gmra.mrb[0].mxu0 %v10872
      %v11248 = vpop.f32.mrb[0].mxu0
      %v11249 = vadd.f32 %v11184, %v11248
      %v11250 = vpop.f32.mrb[0].mxu0
      %v11251 = vpop.f32.mrb[0].mxu0
      %v11252 = vadd.f32 %v11187, %v11251
      %v11253 = vpop.f32.mrb[0].mxu0
      %11254 = vmatprep.mubr.bf16.mxu0 %v10877
      %11255 = vmatmul.mubr.bf16.gmra.mrb[0].mxu0 %v10876
      %v11256 = vpop.f32.mrb[0].mxu0
      %v11257 = vadd.f32 %v11192, %v11256
      %v11258 = vpop.f32.mrb[0].mxu0
      %v11259 = vpop.f32.mrb[0].mxu0
      %v11260 = vadd.f32 %v11195, %v11259
      %v11261 = vpop.f32.mrb[0].mxu0
      %11262 = vmatprep.mubr.bf16.mxu0 %v10881
      %11263 = vmatmul.mubr.bf16.gmra.mrb[0].mxu0 %v10880
      %v11264 = vpop.f32.mrb[0].mxu0
      %v11265 = vadd.f32 %v11200, %v11264
      %v11266 = vpop.f32.mrb[0].mxu0
      %v11267 = vpop.f32.mrb[0].mxu0
      %v11268 = vadd.f32 %v11203, %v11267
      %v11269 = vpop.f32.mrb[0].mxu0
      %11270 = vmatprep.mubr.bf16.mxu0 %v10885
      %11271 = vmatmul.mubr.bf16.gmra.mrb[0].mxu0 %v10884
      %v11272 = vpop.f32.mrb[0].mxu0
      %v11273 = vadd.f32 %v11208, %v11272
      %v11274 = vpop.f32.mrb[0].mxu0
      %v11275 = vpop.f32.mrb[0].mxu0
      %v11276 = vadd.f32 %v11211, %v11275
      %v11277 = vpop.f32.mrb[0].mxu0
      %11278 = vdwg.mxu0
      %v11279 = vmax.f32 %v11249, 0.0
      %v11280 = vmax.f32 %v11252, 0.0
      %v11281 = vmax.f32 %v11257, 0.0
      %v11282 = vmax.f32 %v11260, 0.0
      %v11283 = vmax.f32 %v11265, 0.0
      %v11284 = vmax.f32 %v11268, 0.0
      %v11285 = vmax.f32 %v11273, 0.0
      %v11286 = vmax.f32 %v11276, 0.0
      %v11287 = vpack.c.bf16 %v11280, %v11279
      %v11288 = vpack.c.bf16 %v11282, %v11281
      %v11289 = vpack.c.bf16 %v11284, %v11283
      %v11290 = vpack.c.bf16 %v11286, %v11285
      %v11291 = vld [vmem:[%s7] sm:$0xf]
      %v11292 = vld [vmem:[%s7 + $0x4] sm:$0xf]
      %v11293 = vld [vmem:[%s7 + $0x8] sm:$0xf]
      %v11294 = vld [vmem:[%s7 + $0xc] sm:$0xf]
      %v11295 = vld [vmem:[%s7 + $0x10] sm:$0xf]
      %v11296 = vld [vmem:[%s7 + $0x14] sm:$0xf]
      %v11297 = vld [vmem:[%s7 + $0x18] sm:$0xf]
      %v11298 = vld [vmem:[%s7 + $0x1c] sm:$0xf]
      %v11299 = vld [vmem:[%s7 + $0x20] sm:$0xf]
      %v11300 = vld [vmem:[%s7 + $0x24] sm:$0xf]
      %v11301 = vld [vmem:[%s7 + $0x28] sm:$0xf]
      %v11302 = vld [vmem:[%s7 + $0x2c] sm:$0xf]
      %v11303 = vld [vmem:[%s7 + $0x30] sm:$0xf]
      %v11304 = vld [vmem:[%s7 + $0x34] sm:$0xf]
      %v11305 = vld [vmem:[%s7 + $0x38] sm:$0xf]
      %v11306 = vld [vmem:[%s7 + $0x3c] sm:$0xf]
      %v11307 = vld [vmem:[%s8] sm:$0x1]
      %v11309 = vlaneseq
      %v11310 = vshrl.u32 %v11309, 7
      %v11311 = vsub.s32 0, %v11310
      %v11312 = vrot.slane %v11307, %v11311
      %v11330 = vunpack.c.l.b16 %v11291
      %v11331 = vunpack.c.l.b16 %v11292
      %v11332 = vunpack.c.l.b16 %v11293
      %v11333 = vunpack.c.l.b16 %v11294
      %v11334 = vunpack.c.l.b16 %v11295
      %v11335 = vunpack.c.l.b16 %v11296
      %v11336 = vunpack.c.l.b16 %v11297
      %v11337 = vunpack.c.l.b16 %v11298
      %v11338 = vunpack.c.l.b16 %v11299
      %v11339 = vunpack.c.l.b16 %v11300
      %v11340 = vunpack.c.l.b16 %v11301
      %v11341 = vunpack.c.l.b16 %v11302
      %v11342 = vunpack.c.l.b16 %v11303
      %v11343 = vunpack.c.l.b16 %v11304
      %v11344 = vunpack.c.l.b16 %v11305
      %v11345 = vunpack.c.l.b16 %v11306
      %v11346 = vpack.c.b16 %v11331, %v11330
      %v11347 = vpack.c.b16 %v11333, %v11332
      %v11348 = vpack.c.b16 %v11335, %v11334
      %v11349 = vpack.c.b16 %v11337, %v11336
      %v11350 = vpack.c.b16 %v11339, %v11338
      %v11351 = vpack.c.b16 %v11341, %v11340
      %v11352 = vpack.c.b16 %v11343, %v11342
      %v11353 = vpack.c.b16 %v11345, %v11344
      %11362 = vmatprep.subr.bf16.mxu0 0
      %11363 = vmatpush1.bf16.msra.mxu0 %v11346
      %11364 = vmatprep.subr.bf16.mxu0 0
      %11365 = vmatpush1.bf16.msra.mxu0 %v11347
      %11366 = vmatprep.subr.bf16.mxu0 0
      %11367 = vmatpush1.bf16.msra.mxu0 %v11348
      %11368 = vmatprep.subr.bf16.mxu0 0
      %11369 = vmatpush1.bf16.msra.mxu0 %v11349
      %11370 = vmatprep.subr.bf16.mxu0 0
      %11371 = vmatpush1.bf16.msra.mxu0 %v11350
      %11372 = vmatprep.subr.bf16.mxu0 0
      %11373 = vmatpush1.bf16.msra.mxu0 %v11351
      %11374 = vmatprep.subr.bf16.mxu0 0
      %11375 = vmatpush1.bf16.msra.mxu0 %v11352
      %11376 = vmatprep.subr.bf16.mxu0 0
      %11377 = vmatpush1.bf16.msra.mxu0 %v11353
      %11378 = vmatprep.subr.bf16.mxu0 0
      %11379 = vmatpush1.bf16.msra.mxu0 0
      %11380 = vmatprep.subr.bf16.mxu0 0
      %11381 = vmatpush1.bf16.msra.mxu0 0
      %11382 = vmatprep.subr.bf16.mxu0 0
      %11383 = vmatpush1.bf16.msra.mxu0 0
      %11384 = vmatprep.subr.bf16.mxu0 0
      %11385 = vmatpush1.bf16.msra.mxu0 0
      %11386 = vmatprep.subr.bf16.mxu0 0
      %11387 = vmatpush1.bf16.msra.mxu0 0
      %11388 = vmatprep.subr.bf16.mxu0 0
      %11389 = vmatpush1.bf16.msra.mxu0 0
      %11390 = vmatprep.subr.bf16.mxu0 0
      %11391 = vmatpush1.bf16.msra.mxu0 0
      %11392 = vmatprep.subr.bf16.mxu0 0
      %11393 = vmatpush1.bf16.msra.mxu0 0
      %11394 = vmatprep.mubr.bf16.mxu0 0
      %11395 = vmatmul.mubr.bf16.gmra.mrb[0].mxu0 %v11287
      %v11396 = vpop.f32.mrb[0].mxu0
      %v11397 = vadd.f32 %v11312, %v11396
      %v11398 = vpop.f32.mrb[0].mxu0
      %v11399 = vpop.f32.mrb[0].mxu0
      %v11400 = vadd.f32 %v11312, %v11399
      %v11401 = vpop.f32.mrb[0].mxu0
      %11402 = vmatprep.mubr.bf16.mxu0 0
      %11403 = vmatmul.mubr.bf16.gmra.mrb[0].mxu0 %v11288
      %v11404 = vpop.f32.mrb[0].mxu0
      %v11405 = vadd.f32 %v11312, %v11404
      %v11406 = vpop.f32.mrb[0].mxu0
      %v11407 = vpop.f32.mrb[0].mxu0
      %v11408 = vadd.f32 %v11312, %v11407
      %v11409 = vpop.f32.mrb[0].mxu0
      %11410 = vmatprep.mubr.bf16.mxu0 0
      %11411 = vmatmul.mubr.bf16.gmra.mrb[0].mxu0 %v11289
      %v11412 = vpop.f32.mrb[0].mxu0
      %v11413 = vadd.f32 %v11312, %v11412
      %v11414 = vpop.f32.mrb[0].mxu0
      %v11415 = vpop.f32.mrb[0].mxu0
      %v11416 = vadd.f32 %v11312, %v11415
      %v11417 = vpop.f32.mrb[0].mxu0
      %11418 = vmatprep.mubr.bf16.mxu0 0
      %11419 = vmatmul.mubr.bf16.gmra.mrb[0].mxu0 %v11290
      %v11420 = vpop.f32.mrb[0].mxu0
      %v11421 = vadd.f32 %v11312, %v11420
      %v11422 = vpop.f32.mrb[0].mxu0
      %v11423 = vpop.f32.mrb[0].mxu0
      %v11424 = vadd.f32 %v11312, %v11423
      %v11425 = vpop.f32.mrb[0].mxu0
      %11426 = vdwg.mxu0
      %vm11427 = vcmask 80896
      %v11428 = vsel %vm11427, %v11397, -inf
      %11429 = vmax.xlane.f32.xlu0 %v11428
      %v11430 = vpop.xlane.xlu0 %11429
      %v11431 = vsel %vm11427, %v11400, -inf
      %11432 = vmax.xlane.f32.xlu0 %v11431
      %v11433 = vpop.xlane.xlu0 %11432
      %v11434 = vsel %vm11427, %v11405, -inf
      %11435 = vmax.xlane.f32.xlu0 %v11434
      %v11436 = vpop.xlane.xlu0 %11435
      %v11437 = vsel %vm11427, %v11408, -inf
      %11438 = vmax.xlane.f32.xlu0 %v11437
      %v11439 = vpop.xlane.xlu0 %11438
      %v11440 = vsel %vm11427, %v11413, -inf
      %11441 = vmax.xlane.f32.xlu0 %v11440
      %v11442 = vpop.xlane.xlu0 %11441
      %v11443 = vsel %vm11427, %v11416, -inf
      %11444 = vmax.xlane.f32.xlu0 %v11443
      %v11445 = vpop.xlane.xlu0 %11444
      %v11446 = vsel %vm11427, %v11421, -inf
      %11447 = vmax.xlane.f32.xlu0 %v11446
      %v11448 = vpop.xlane.xlu0 %11447
      %v11449 = vsel %vm11427, %v11424, -inf
      %11450 = vmax.xlane.f32.xlu0 %v11449
      %v11451 = vpop.xlane.xlu0 %11450
      %v11452 = vsub.f32 %v11397, %v11430
      %v11453 = vsub.f32 %v11400, %v11433
      %v11454 = vsub.f32 %v11405, %v11436
      %v11455 = vsub.f32 %v11408, %v11439
      %v11456 = vsub.f32 %v11413, %v11442
      %v11457 = vsub.f32 %v11416, %v11445
      %v11458 = vsub.f32 %v11421, %v11448
      %v11459 = vsub.f32 %v11424, %v11451
      %v11460 = vmul.f32 %v11452, 1.442695
      %v11461 = vpow.pop %v11460
      %v11462 = vmul.f32 %v11453, 1.442695
      %v11463 = vpow.pop %v11462
      %v11464 = vmul.f32 %v11454, 1.442695
      %v11465 = vpow.pop %v11464
      %v11466 = vmul.f32 %v11455, 1.442695
      %v11467 = vpow.pop %v11466
      %v11468 = vmul.f32 %v11456, 1.442695
      %v11469 = vpow.pop %v11468
      %v11470 = vmul.f32 %v11457, 1.442695
      %v11471 = vpow.pop %v11470
      %v11472 = vmul.f32 %v11458, 1.442695
      %v11473 = vpow.pop %v11472
      %v11474 = vmul.f32 %v11459, 1.442695
      %v11475 = vpow.pop %v11474
      %v11476 = vsel %vm11427, %v11461, 0.0
      %11477 = vadd.xlane.f32.xlu0 %v11476
      %v11478 = vpop.xlane.xlu0 %11477
      %v11479 = vsel %vm11427, %v11463, 0.0
      %11480 = vadd.xlane.f32.xlu0 %v11479
      %v11481 = vpop.xlane.xlu0 %11480
      %v11482 = vsel %vm11427, %v11465, 0.0
      %11483 = vadd.xlane.f32.xlu0 %v11482
      %v11484 = vpop.xlane.xlu0 %11483
      %v11485 = vsel %vm11427, %v11467, 0.0
      %11486 = vadd.xlane.f32.xlu0 %v11485
      %v11487 = vpop.xlane.xlu0 %11486
      %v11488 = vsel %vm11427, %v11469, 0.0
      %11489 = vadd.xlane.f32.xlu0 %v11488
      %v11490 = vpop.xlane.xlu0 %11489
      %v11491 = vsel %vm11427, %v11471, 0.0
      %11492 = vadd.xlane.f32.xlu0 %v11491
      %v11493 = vpop.xlane.xlu0 %11492
      %v11494 = vsel %vm11427, %v11473, 0.0
      %11495 = vadd.xlane.f32.xlu0 %v11494
      %v11496 = vpop.xlane.xlu0 %11495
      %v11497 = vsel %vm11427, %v11475, 0.0
      %11498 = vadd.xlane.f32.xlu0 %v11497
      %v11499 = vpop.xlane.xlu0 %11498
      %v11500 = vlog2.pop %v11478
      %v11501 = vmul.f32 %v11500, 0.6931472
      %v11502 = vlog2.pop %v11481
      %v11503 = vmul.f32 %v11502, 0.6931472
      %v11504 = vlog2.pop %v11484
      %v11505 = vmul.f32 %v11504, 0.6931472
      %v11506 = vlog2.pop %v11487
      %v11507 = vmul.f32 %v11506, 0.6931472
      %v11508 = vlog2.pop %v11490
      %v11509 = vmul.f32 %v11508, 0.6931472
      %v11510 = vlog2.pop %v11493
      %v11511 = vmul.f32 %v11510, 0.6931472
      %v11512 = vlog2.pop %v11496
      %v11513 = vmul.f32 %v11512, 0.6931472
      %v11514 = vlog2.pop %v11499
      %v11515 = vmul.f32 %v11514, 0.6931472
      %v11516 = vsub.f32 %v11452, %v11501
      %v11517 = vsub.f32 %v11453, %v11503
      %v11518 = vsub.f32 %v11454, %v11505
      %v11519 = vsub.f32 %v11455, %v11507
      %v11520 = vsub.f32 %v11456, %v11509
      %v11521 = vsub.f32 %v11457, %v11511
      %v11522 = vsub.f32 %v11458, %v11513
      %v11523 = vsub.f32 %v11459, %v11515
      %11524 = vst.msk [vmem:[%s337] sm:$0xff] %vm11427, %v11516
      %11525 = vst.msk [vmem:[%s337 + $0x8] sm:$0xff] %vm11427, %v11517
      %11526 = vst.msk [vmem:[%s337 + $0x10] sm:$0xff] %vm11427, %v11518
      %11527 = vst.msk [vmem:[%s337 + $0x18] sm:$0xff] %vm11427, %v11519
      %11528 = vst.msk [vmem:[%s337 + $0x20] sm:$0xff] %vm11427, %v11520
      %11529 = vst.msk [vmem:[%s337 + $0x28] sm:$0xff] %vm11427, %v11521
      %11530 = vst.msk [vmem:[%s337 + $0x30] sm:$0xff] %vm11427, %v11522
      %11531 = vst.msk [vmem:[%s337 + $0x38] sm:$0xff] %vm11427, %v11523
      %s11532 = smul.u32 8, %s20
      %p11533 = scmp.lt.s32.totalorder %s11532, 15
      %s11534 = scalar_select %p11533, %s11532, 15
      %s11535 = smul.addr %s11534, 8
      %s11536 = scalar_lea.vmem %s9, %s11535
      // Predicated region
      $region57: #{_lambda_.1} parent=55 // pred_check
        %p11537 = pneg %p232
      $region58: #{_lambda_.1} parent=55 // pred_check_branch
        %11539 = sbr.rel (%p11537) target = $region60
      $region59: #{_lambda_.1} parent=55 // pred_region
        %s11540 = smul.u32 8, %s20
      $region60: #{_lambda_.1} parent=55 // pred_fallthru
        _
    $region56: #{_lambda_.1} parent=5 // pred_fallthru
      _
    %p11541 = scmp.le.s32.totalorder 2, %s15
    // Predicated region
    $region61: #{_lambda_.1} parent=5 // pred_check
      %p11542 = pneg %p11541
    $region62: #{_lambda_.1} parent=5 // pred_check_branch
      %11544 = sbr.rel (%p11542) target = $region64
    $region63: #{_lambda_.1} parent=5 // pred_region
      %s11545 = ssub.s32 %s15, 2
      // Predicated region
      $region65: #{_lambda_.1} parent=63 // pred_check
        %p11546 = pneg %p238
      $region66: #{_lambda_.1} parent=63 // pred_check_branch
        %11548 = sbr.rel (%p11546) target = $region68
      $region67: #{_lambda_.1} parent=63 // pred_region
        %s11549 = smul.u32 8, %s21
        %p11550 = scmp.lt.s32.totalorder %s11549, 15
        %s11551 = scalar_select %p11550, %s11549, 15
        %s11552 = smul.addr %s11551, 8
        %s11553 = scalar_lea.vmem %s9, %s11552
      $region68: #{_lambda_.1} parent=63 // pred_fallthru
        _
    $region64: #{_lambda_.1} parent=5 // pred_fallthru
      _
  $region6: #{_lambda_.1} parent=0 // loop_footer
    %s19 = sadd.s32 1, %s15
  $region7: #{_lambda_.1} parent=0 // loop_footer_branch
    %14 = sbr.rel target = $region3
  $region8: #{_lambda_.1} parent=0 // loop_exit
    _

</llo_original>
